<compile_context>
chip_gen: v6e
topology: v6e:2x2x1
jax: 0.10.0
libtpu: 0.0.40
codegen_flags: <defaults>
</compile_context>

<pallas_src>
import functools
import math

import jax
import jax.numpy as jnp
from jax.experimental import pallas as pl
from jax.experimental.pallas import tpu as pltpu


def _layernorm(x, gamma, beta, eps=1e-5):
    # PyTorch nn.LayerNorm: biased variance over the last dim, eps=1e-5.
    mean = jnp.mean(x, axis=-1, keepdims=True)
    var = jnp.mean((x - mean) ** 2, axis=-1, keepdims=True)
    return (x - mean) * jax.lax.rsqrt(var + eps) * gamma + beta


def transformer_block_kernel(num_heads,
                             x_ref, g1_ref, b1_ref,
                             wqkv_ref, bqkv_ref, wo_ref, bo_ref,
                             g2_ref, b2_ref,
                             w1_ref, bf1_ref, w2_ref, bf2_ref,
                             o_ref,
                             ctx_ref):
    f32 = jnp.float32
    bf16 = jnp.bfloat16

    x = x_ref[0].astype(f32)                              # (N, C)
    N, C = x.shape
    hd = C // num_heads

    # ---------------- attention branch: x + Attn(LN1(x)) ----------------
    h = _layernorm(x, g1_ref[0], b1_ref[0])               # f32
    h_bf = h.astype(bf16)

    # Fused QKV projection: single lane-dense (N,C)x(C,3C) MXU matmul with
    # f32 accumulation.  The 1/sqrt(hd) scale is pre-folded into the Q columns
    # of w_qkv / b_qkv (wrapper), so no (N,N) scale multiply is needed below.
    qkv = jnp.dot(h_bf, wqkv_ref[...], preferred_element_type=f32) + bqkv_ref[0]

    # TODO(synk): flash-style KV-tiled online softmax + lax.fori_loop over
    # heads for large N / H; static unroll is fine at H<=4 and full-N scores.
    for hh in range(num_heads):
        lo = hh * hd
        q = qkv[:, lo:lo + hd]                            # (N, hd) f32 (scaled)
        k = qkv[:, C + lo:C + lo + hd]                    # (N, hd) f32
        v = qkv[:, 2 * C + lo:2 * C + lo + hd]            # (N, hd) f32

        # scores: contract head dim of q and k directly (no explicit transpose)
        s = jax.lax.dot_general(
            q.astype(bf16), k.astype(bf16),
            dimension_numbers=(((1,), (1,)), ((), ())),
            preferred_element_type=f32)                   # (N, N)

        s = s - jnp.max(s, axis=-1, keepdims=True)
        e = jnp.exp(s)                                    # un-normalized probs
        denom = jnp.sum(e, axis=-1, keepdims=True)        # (N, 1)

        # Deferred softmax normalization: normalize the small (N, hd) context
        # instead of the (N, N) probability matrix.
        ctx = jnp.dot(e.astype(bf16), v.astype(bf16),
                      preferred_element_type=f32)         # (N, hd)
        ctx = ctx * pl.reciprocal(denom, approx=True)     # EUP reciprocal

        # Head-major (N, C) slab -> single wide output-projection matmul.
        ctx_ref[:, lo:lo + hd] = ctx.astype(bf16)

    attn = jnp.dot(ctx_ref[...], wo_ref[...],
                   preferred_element_type=f32) + bo_ref[0]      # (N, C)
    x1 = x + attn

    # ---------------- feed-forward branch: x1 + FF(LN2(x1)) ----------------
    # TODO(synk): dropout omitted (identity / eval-mode semantics).
    h2 = _layernorm(x1, g2_ref[0], b2_ref[0])
    f = jnp.dot(h2.astype(bf16), w1_ref[...],
                preferred_element_type=f32) + bf1_ref[0]        # (N, mlp)
    f = 0.5 * f * (1.0 + jax.lax.erf(f * (2.0 ** -0.5)))        # exact GELU
    # TODO(synk): K-tile / stream w1,w2 for real ViT mlp dims.
    f = jnp.dot(f.astype(bf16), w2_ref[...],
                preferred_element_type=f32) + bf2_ref[0]        # (N, C)

    o_ref[0] = (x1 + f).astype(o_ref.dtype)


def prepare_params(params, num_heads):
    """One-time weight re-layout / bf16 cast (hoisted out of the call path)."""
    C = params["w_qkv"].shape[0]
    hd = C // num_heads
    bf16 = jnp.bfloat16
    scale = 1.0 / math.sqrt(hd)
    # Fold the attention scale into the Q columns (first C of 3C) of qkv.
    col_scale = jnp.concatenate([jnp.full((C,), scale, jnp.float32),
                                 jnp.ones((2 * C,), jnp.float32)])
    return {
        "gamma1": params["gamma1"].astype(jnp.float32),
        "beta1": params["beta1"].astype(jnp.float32),
        "w_qkv": (params["w_qkv"] * col_scale[None, :]).astype(bf16),   # (C,3C)
        "b_qkv": (params["b_qkv"] * col_scale[None, :]).astype(jnp.float32),
        "w_out": params["w_out"].astype(bf16),                          # (C,C)
        "b_out": params["b_out"].astype(jnp.float32),
        "gamma2": params["gamma2"].astype(jnp.float32),
        "beta2": params["beta2"].astype(jnp.float32),
        "w1": params["w1"].astype(bf16),                                # (C,mlp)
        "b1": params["b1"].astype(jnp.float32),
        "w2": params["w2"].astype(bf16),                                # (mlp,C)
        "b2": params["b2"].astype(jnp.float32),
    }


def _build_call(B, N, C, mlp, num_heads, x_dtype, buffer_weights_once):
    def const_spec(shape):
        nd = len(shape)
        if buffer_weights_once:
            # Constant index_map across the batch grid: no double-buffering.
            return pl.BlockSpec(shape, lambda b, _nd=nd: (0,) * _nd,
                                pipeline_mode=pl.Buffered(1))
        return pl.BlockSpec(shape, lambda b, _nd=nd: (0,) * _nd)

    in_specs = [
        pl.BlockSpec((1, N, C), lambda b: (b, 0, 0)),   # x
        const_spec((1, C)),                             # gamma1
        const_spec((1, C)),                             # beta1
        const_spec((C, 3 * C)),                         # w_qkv (bf16, scaled)
        const_spec((1, 3 * C)),                         # b_qkv (scaled)
        const_spec((C, C)),                             # w_out (bf16)
        const_spec((1, C)),                             # b_out
        const_spec((1, C)),                             # gamma2
        const_spec((1, C)),                             # beta2
        const_spec((C, mlp)),                           # w1 (bf16)
        const_spec((1, mlp)),                           # b1
        const_spec((mlp, C)),                           # w2 (bf16)
        const_spec((1, C)),                             # b2
    ]

    # Derive a VMEM budget from actual sizes instead of a blanket constant;
    # leave the default scoped limit when everything fits comfortably (safe on
    # v5e/v6e's 128 MiB and v7x's 64 MiB per TC).
    weight_bytes = 2 * (C * 3 * C + C * C + C * mlp + mlp * C)          # bf16
    act_bytes = 4 * (6 * N * C + N * 3 * C + 2 * N * N + N * mlp)       # f32 temps
    est = 2 * (2 * N * C * 4) + 2 * weight_bytes + act_bytes + N * C * 2
    vmem_limit = None if est < 12 * 1024 * 1024 else min(
        int(est * 1.25), 64 * 1024 * 1024)

    kernel = functools.partial(transformer_block_kernel, num_heads)
    return pl.pallas_call(
        kernel,
        out_shape=jax.ShapeDtypeStruct((B, N, C), x_dtype),
        grid_spec=pltpu.PrefetchScalarGridSpec(
            num_scalar_prefetch=0,
            grid=(B,),
            in_specs=in_specs,
            out_specs=pl.BlockSpec((1, N, C), lambda b: (b, 0, 0)),
            scratch_shapes=[pltpu.VMEM((N, C), jnp.bfloat16)],   # ctx slab
        ),
        compiler_params=pltpu.CompilerParams(
            dimension_semantics=("parallel",),
            vmem_limit_bytes=vmem_limit),
    )


def transformer_block(x, prep, num_heads):
    B, N, C = x.shape
    mlp = prep["w1"].shape[1]
    assert C % num_heads == 0, "C must be divisible by num_heads"
    args = (x,
            prep["gamma1"], prep["beta1"],
            prep["w_qkv"], prep["b_qkv"],
            prep["w_out"], prep["b_out"],
            prep["gamma2"], prep["beta2"],
            prep["w1"], prep["b1"], prep["w2"], prep["b2"])
    try:
        out = _build_call(B, N, C, mlp, num_heads, x.dtype, True)(*args)
        return jax.block_until_ready(out)
    except Exception:
        # pl.Buffered(1) not supported by this JAX/Mosaic build: fall back to
        # default (double-buffered) weight specs.
        return _build_call(B, N, C, mlp, num_heads, x.dtype, False)(*args)


# ----------------- pure-JAX reference (for verification) -----------------
def transformer_block_ref(x, params, num_heads):
    B, N, C = x.shape
    hd = C // num_heads

    def ln(z, g, b):
        m = jnp.mean(z, -1, keepdims=True)
        v = jnp.mean((z - m) ** 2, -1, keepdims=True)
        return (z - m) / jnp.sqrt(v + 1e-5) * g + b

    h = ln(x, params["gamma1"][0], params["beta1"][0])
    qkv = h @ params["w_qkv"] + params["b_qkv"][0]
    qkv = qkv.reshape(B, N, 3, num_heads, hd).transpose(2, 0, 3, 1, 4)
    q, k, v = qkv[0], qkv[1], qkv[2]
    attn = jnp.einsum("bhnd,bhmd->bhnm", q, k) / (hd ** 0.5)
    attn = jax.nn.softmax(attn, axis=-1)
    out = jnp.einsum("bhnm,bhmd->bhnd", attn, v).transpose(0, 2, 1, 3).reshape(B, N, C)
    out = out @ params["w_out"] + params["b_out"][0]
    x1 = x + out

    h2 = ln(x1, params["gamma2"][0], params["beta2"][0])
    f = h2 @ params["w1"] + params["b1"][0]
    f = jax.nn.gelu(f, approximate=False)
    f = f @ params["w2"] + params["b2"][0]
    return x1 + f


if __name__ == "__main__":
    # Lane-dense small shapes: C and N multiples of 128.
    B, N, C = 2, 128, 128
    num_heads = 4
    mlp_dim = 256

    key = jax.random.PRNGKey(0)
    ks = jax.random.split(key, 8)

    params = {
        "gamma1": jnp.ones((1, C), jnp.float32),
        "beta1": jnp.zeros((1, C), jnp.float32),
        "w_qkv": 0.05 * jax.random.normal(ks[0], (C, 3 * C), jnp.float32),
        "b_qkv": 0.05 * jax.random.normal(ks[1], (1, 3 * C), jnp.float32),
        "w_out": 0.05 * jax.random.normal(ks[2], (C, C), jnp.float32),
        "b_out": 0.05 * jax.random.normal(ks[3], (1, C), jnp.float32),
        "gamma2": jnp.ones((1, C), jnp.float32),
        "beta2": jnp.zeros((1, C), jnp.float32),
        "w1": 0.05 * jax.random.normal(ks[4], (C, mlp_dim), jnp.float32),
        "b1": 0.05 * jax.random.normal(ks[5], (1, mlp_dim), jnp.float32),
        "w2": 0.05 * jax.random.normal(ks[6], (mlp_dim, C), jnp.float32),
        "b2": 0.05 * jax.random.normal(ks[7], (1, C), jnp.float32),
    }

    x = jax.random.normal(key, (B, N, C), jnp.float32)

    prep = prepare_params(params, num_heads)   # one-time weight re-layout
    out = transformer_block(x, prep, num_heads)
    out = jax.block_until_ready(out)

    ref = transformer_block_ref(x, params, num_heads)
    assert out.shape == (B, N, C)
    # bf16 MXU inputs with f32 accumulation -> tolerance loosened accordingly.
    err = jnp.max(jnp.abs(out - ref))
    assert jnp.allclose(out, ref, atol=3e-2, rtol=3e-2), f"max abs err {err}"

    print("KERNEL_OK")
</pallas_src>

<mosaic_0001>
module attributes {stable_mosaic.version = 11 : i64} {
  func.func @transformer_block_kernel(%arg0: i32, %arg1: memref<1x128x128xf32, #tpu.memory_space<vmem>>, %arg2: memref<1x128xf32, #tpu.memory_space<vmem>>, %arg3: memref<1x128xf32, #tpu.memory_space<vmem>>, %arg4: memref<128x384xbf16, #tpu.memory_space<vmem>>, %arg5: memref<1x384xf32, #tpu.memory_space<vmem>>, %arg6: memref<128x128xbf16, #tpu.memory_space<vmem>>, %arg7: memref<1x128xf32, #tpu.memory_space<vmem>>, %arg8: memref<1x128xf32, #tpu.memory_space<vmem>>, %arg9: memref<1x128xf32, #tpu.memory_space<vmem>>, %arg10: memref<128x256xbf16, #tpu.memory_space<vmem>>, %arg11: memref<1x256xf32, #tpu.memory_space<vmem>>, %arg12: memref<256x128xbf16, #tpu.memory_space<vmem>>, %arg13: memref<1x128xf32, #tpu.memory_space<vmem>>, %arg14: memref<1x128x128xf32, #tpu.memory_space<vmem>>, %arg15: memref<128x128xbf16, #tpu.memory_space<vmem>>) attributes {dimension_semantics = [#tpu.dimension_semantics<parallel>], iteration_bounds = array<i64: 2>, scalar_prefetch = 0 : i64, scratch_operands = 1 : i64, tpu.core_type = #tpu.core_type<tc>, window_params = [{transform_indices = @transform_0, window_bounds = array<i64: 1, 128, 128>}, {pipeline_mode = #tpu.pipeline_mode<synchronous>, transform_indices = @transform_1, window_bounds = array<i64: 1, 128>}, {pipeline_mode = #tpu.pipeline_mode<synchronous>, transform_indices = @transform_2, window_bounds = array<i64: 1, 128>}, {pipeline_mode = #tpu.pipeline_mode<synchronous>, transform_indices = @transform_3, window_bounds = array<i64: 128, 384>}, {pipeline_mode = #tpu.pipeline_mode<synchronous>, transform_indices = @transform_4, window_bounds = array<i64: 1, 384>}, {pipeline_mode = #tpu.pipeline_mode<synchronous>, transform_indices = @transform_5, window_bounds = array<i64: 128, 128>}, {pipeline_mode = #tpu.pipeline_mode<synchronous>, transform_indices = @transform_6, window_bounds = array<i64: 1, 128>}, {pipeline_mode = #tpu.pipeline_mode<synchronous>, transform_indices = @transform_7, window_bounds = array<i64: 1, 128>}, {pipeline_mode = #tpu.pipeline_mode<synchronous>, transform_indices = @transform_8, window_bounds = array<i64: 1, 128>}, {pipeline_mode = #tpu.pipeline_mode<synchronous>, transform_indices = @transform_9, window_bounds = array<i64: 128, 256>}, {pipeline_mode = #tpu.pipeline_mode<synchronous>, transform_indices = @transform_10, window_bounds = array<i64: 1, 256>}, {pipeline_mode = #tpu.pipeline_mode<synchronous>, transform_indices = @transform_11, window_bounds = array<i64: 256, 128>}, {pipeline_mode = #tpu.pipeline_mode<synchronous>, transform_indices = @transform_12, window_bounds = array<i64: 1, 128>}, {transform_indices = @transform_13, window_bounds = array<i64: 1, 128, 128>}]} {
    %c0 = arith.constant 0 : index
    %c0_0 = arith.constant 0 : index
    %c0_1 = arith.constant 0 : index
    %0 = vector.load %arg1[%c0, %c0_0, %c0_1] : memref<1x128x128xf32, #tpu.memory_space<vmem>>, vector<1x128x128xf32>
    %1 = vector.shape_cast %0 : vector<1x128x128xf32> to vector<128x128xf32>
    %c0_2 = arith.constant 0 : index
    %c0_3 = arith.constant 0 : index
    %2 = vector.load %arg2[%c0_2, %c0_3] : memref<1x128xf32, #tpu.memory_space<vmem>>, vector<1x128xf32>
    %3 = vector.shape_cast %2 : vector<1x128xf32> to vector<128xf32>
    %c0_4 = arith.constant 0 : index
    %c0_5 = arith.constant 0 : index
    %4 = vector.load %arg3[%c0_4, %c0_5] : memref<1x128xf32, #tpu.memory_space<vmem>>, vector<1x128xf32>
    %5 = vector.shape_cast %4 : vector<1x128xf32> to vector<128xf32>
    %cst = arith.constant dense<0.000000e+00> : vector<128xf32>
    %6 = vector.multi_reduction <add>, %1, %cst [1] : vector<128x128xf32> to vector<128xf32>
    %7 = vector.shape_cast %6 : vector<128xf32> to vector<128x1xf32>
    %cst_6 = arith.constant 1.280000e+02 : f32
    %8 = vector.broadcast %cst_6 : f32 to vector<128x1xf32>
    %9 = arith.divf %7, %8 : vector<128x1xf32>
    %10 = vector.broadcast %9 : vector<128x1xf32> to vector<128x128xf32>
    %11 = arith.subf %1, %10 : vector<128x128xf32>
    %12 = arith.mulf %11, %11 : vector<128x128xf32>
    %cst_7 = arith.constant dense<0.000000e+00> : vector<128xf32>
    %13 = vector.multi_reduction <add>, %12, %cst_7 [1] : vector<128x128xf32> to vector<128xf32>
    %14 = vector.shape_cast %13 : vector<128xf32> to vector<128x1xf32>
    %cst_8 = arith.constant 1.280000e+02 : f32
    %15 = vector.broadcast %cst_8 : f32 to vector<128x1xf32>
    %16 = arith.divf %14, %15 : vector<128x1xf32>
    %17 = vector.broadcast %9 : vector<128x1xf32> to vector<128x128xf32>
    %18 = arith.subf %1, %17 : vector<128x128xf32>
    %cst_9 = arith.constant 9.99999974E-6 : f32
    %19 = vector.broadcast %cst_9 : f32 to vector<128x1xf32>
    %20 = arith.addf %16, %19 : vector<128x1xf32>
    %21 = math.rsqrt %20 : vector<128x1xf32>
    %22 = vector.broadcast %21 : vector<128x1xf32> to vector<128x128xf32>
    %23 = arith.mulf %18, %22 : vector<128x128xf32>
    %24 = vector.shape_cast %3 : vector<128xf32> to vector<1x128xf32>
    %25 = vector.broadcast %24 : vector<1x128xf32> to vector<128x128xf32>
    %26 = arith.mulf %23, %25 : vector<128x128xf32>
    %27 = vector.shape_cast %5 : vector<128xf32> to vector<1x128xf32>
    %28 = vector.broadcast %27 : vector<1x128xf32> to vector<128x128xf32>
    %29 = arith.addf %26, %28 : vector<128x128xf32>
    %30 = arith.truncf %29 : vector<128x128xf32> to vector<128x128xbf16>
    %c0_10 = arith.constant 0 : index
    %c0_11 = arith.constant 0 : index
    %31 = vector.load %arg4[%c0_10, %c0_11] : memref<128x384xbf16, #tpu.memory_space<vmem>>, vector<128x384xbf16>
    %cst_12 = arith.constant dense<0.000000e+00> : vector<128x384xf32>
    %32 = tpu.matmul %30, %31, %cst_12 {dimension_numbers = #tpu.dot_dimension_numbers<[1], [0], [0], [1], [0, 0, 1, 1], [], []>} : vector<128x128xbf16>, vector<128x384xbf16>, vector<128x384xf32> -> vector<128x384xf32>
    %c0_13 = arith.constant 0 : index
    %c0_14 = arith.constant 0 : index
    %33 = vector.load %arg5[%c0_13, %c0_14] : memref<1x384xf32, #tpu.memory_space<vmem>>, vector<1x384xf32>
    %34 = vector.shape_cast %33 : vector<1x384xf32> to vector<384xf32>
    %35 = vector.shape_cast %34 : vector<384xf32> to vector<1x384xf32>
    %36 = vector.broadcast %35 : vector<1x384xf32> to vector<128x384xf32>
    %37 = arith.addf %32, %36 : vector<128x384xf32>
    %38 = vector.extract_strided_slice %37 {offsets = [0, 0], sizes = [128, 32], strides = [1, 1]} : vector<128x384xf32> to vector<128x32xf32>
    %39 = vector.extract_strided_slice %37 {offsets = [0, 128], sizes = [128, 32], strides = [1, 1]} : vector<128x384xf32> to vector<128x32xf32>
    %40 = vector.extract_strided_slice %37 {offsets = [0, 256], sizes = [128, 32], strides = [1, 1]} : vector<128x384xf32> to vector<128x32xf32>
    %41 = arith.truncf %38 : vector<128x32xf32> to vector<128x32xbf16>
    %42 = arith.truncf %39 : vector<128x32xf32> to vector<128x32xbf16>
    %cst_15 = arith.constant dense<0.000000e+00> : vector<128x128xf32>
    %43 = tpu.matmul %41, %42, %cst_15 {dimension_numbers = #tpu.dot_dimension_numbers<[1], [1], [0], [0], [0, 0, 1, 0], [], []>} : vector<128x32xbf16>, vector<128x32xbf16>, vector<128x128xf32> -> vector<128x128xf32>
    %cst_16 = arith.constant dense<0xFF800000> : vector<128xf32>
    %44 = vector.multi_reduction <maximumf>, %43, %cst_16 [1] : vector<128x128xf32> to vector<128xf32>
    %45 = vector.shape_cast %44 : vector<128xf32> to vector<128x1xf32>
    %46 = vector.broadcast %45 : vector<128x1xf32> to vector<128x128xf32>
    %47 = arith.subf %43, %46 : vector<128x128xf32>
    %48 = math.exp %47 : vector<128x128xf32>
    %cst_17 = arith.constant dense<0.000000e+00> : vector<128xf32>
    %49 = vector.multi_reduction <add>, %48, %cst_17 [1] : vector<128x128xf32> to vector<128xf32>
    %50 = vector.shape_cast %49 : vector<128xf32> to vector<128x1xf32>
    %51 = arith.truncf %48 : vector<128x128xf32> to vector<128x128xbf16>
    %52 = arith.truncf %40 : vector<128x32xf32> to vector<128x32xbf16>
    %cst_18 = arith.constant dense<0.000000e+00> : vector<128x32xf32>
    %53 = tpu.matmul %51, %52, %cst_18 {dimension_numbers = #tpu.dot_dimension_numbers<[1], [0], [0], [1], [0, 0, 1, 1], [], []>} : vector<128x128xbf16>, vector<128x32xbf16>, vector<128x32xf32> -> vector<128x32xf32>
    %54 = tpu.reciprocal %50 {approx = true} : vector<128x1xf32> -> vector<128x1xf32>
    %55 = vector.broadcast %54 : vector<128x1xf32> to vector<128x32xf32>
    %56 = arith.mulf %53, %55 : vector<128x32xf32>
    %57 = arith.truncf %56 : vector<128x32xf32> to vector<128x32xbf16>
    %c0_19 = arith.constant 0 : index
    %c0_20 = arith.constant 0 : index
    %58 = vector.load %arg15[%c0_19, %c0_20] : memref<128x128xbf16, #tpu.memory_space<vmem>>, vector<128x32xbf16>
    tpu.vector_store %arg15[%c0_19, %c0_20], %57 {strides = array<i32>} : memref<128x128xbf16, #tpu.memory_space<vmem>>, vector<128x32xbf16>,
    %59 = vector.extract_strided_slice %37 {offsets = [0, 32], sizes = [128, 32], strides = [1, 1]} : vector<128x384xf32> to vector<128x32xf32>
    %60 = vector.extract_strided_slice %37 {offsets = [0, 160], sizes = [128, 32], strides = [1, 1]} : vector<128x384xf32> to vector<128x32xf32>
    %61 = vector.extract_strided_slice %37 {offsets = [0, 288], sizes = [128, 32], strides = [1, 1]} : vector<128x384xf32> to vector<128x32xf32>
    %62 = arith.truncf %59 : vector<128x32xf32> to vector<128x32xbf16>
    %63 = arith.truncf %60 : vector<128x32xf32> to vector<128x32xbf16>
    %cst_21 = arith.constant dense<0.000000e+00> : vector<128x128xf32>
    %64 = tpu.matmul %62, %63, %cst_21 {dimension_numbers = #tpu.dot_dimension_numbers<[1], [1], [0], [0], [0, 0, 1, 0], [], []>} : vector<128x32xbf16>, vector<128x32xbf16>, vector<128x128xf32> -> vector<128x128xf32>
    %cst_22 = arith.constant dense<0xFF800000> : vector<128xf32>
    %65 = vector.multi_reduction <maximumf>, %64, %cst_22 [1] : vector<128x128xf32> to vector<128xf32>
    %66 = vector.shape_cast %65 : vector<128xf32> to vector<128x1xf32>
    %67 = vector.broadcast %66 : vector<128x1xf32> to vector<128x128xf32>
    %68 = arith.subf %64, %67 : vector<128x128xf32>
    %69 = math.exp %68 : vector<128x128xf32>
    %cst_23 = arith.constant dense<0.000000e+00> : vector<128xf32>
    %70 = vector.multi_reduction <add>, %69, %cst_23 [1] : vector<128x128xf32> to vector<128xf32>
    %71 = vector.shape_cast %70 : vector<128xf32> to vector<128x1xf32>
    %72 = arith.truncf %69 : vector<128x128xf32> to vector<128x128xbf16>
    %73 = arith.truncf %61 : vector<128x32xf32> to vector<128x32xbf16>
    %cst_24 = arith.constant dense<0.000000e+00> : vector<128x32xf32>
    %74 = tpu.matmul %72, %73, %cst_24 {dimension_numbers = #tpu.dot_dimension_numbers<[1], [0], [0], [1], [0, 0, 1, 1], [], []>} : vector<128x128xbf16>, vector<128x32xbf16>, vector<128x32xf32> -> vector<128x32xf32>
    %75 = tpu.reciprocal %71 {approx = true} : vector<128x1xf32> -> vector<128x1xf32>
    %76 = vector.broadcast %75 : vector<128x1xf32> to vector<128x32xf32>
    %77 = arith.mulf %74, %76 : vector<128x32xf32>
    %78 = arith.truncf %77 : vector<128x32xf32> to vector<128x32xbf16>
    %c0_25 = arith.constant 0 : index
    %c32 = arith.constant 32 : index
    %79 = vector.load %arg15[%c0_25, %c32] : memref<128x128xbf16, #tpu.memory_space<vmem>>, vector<128x32xbf16>
    tpu.vector_store %arg15[%c0_25, %c32], %78 {strides = array<i32>} : memref<128x128xbf16, #tpu.memory_space<vmem>>, vector<128x32xbf16>,
    %80 = vector.extract_strided_slice %37 {offsets = [0, 64], sizes = [128, 32], strides = [1, 1]} : vector<128x384xf32> to vector<128x32xf32>
    %81 = vector.extract_strided_slice %37 {offsets = [0, 192], sizes = [128, 32], strides = [1, 1]} : vector<128x384xf32> to vector<128x32xf32>
    %82 = vector.extract_strided_slice %37 {offsets = [0, 320], sizes = [128, 32], strides = [1, 1]} : vector<128x384xf32> to vector<128x32xf32>
    %83 = arith.truncf %80 : vector<128x32xf32> to vector<128x32xbf16>
    %84 = arith.truncf %81 : vector<128x32xf32> to vector<128x32xbf16>
    %cst_26 = arith.constant dense<0.000000e+00> : vector<128x128xf32>
    %85 = tpu.matmul %83, %84, %cst_26 {dimension_numbers = #tpu.dot_dimension_numbers<[1], [1], [0], [0], [0, 0, 1, 0], [], []>} : vector<128x32xbf16>, vector<128x32xbf16>, vector<128x128xf32> -> vector<128x128xf32>
    %cst_27 = arith.constant dense<0xFF800000> : vector<128xf32>
    %86 = vector.multi_reduction <maximumf>, %85, %cst_27 [1] : vector<128x128xf32> to vector<128xf32>
    %87 = vector.shape_cast %86 : vector<128xf32> to vector<128x1xf32>
    %88 = vector.broadcast %87 : vector<128x1xf32> to vector<128x128xf32>
    %89 = arith.subf %85, %88 : vector<128x128xf32>
    %90 = math.exp %89 : vector<128x128xf32>
    %cst_28 = arith.constant dense<0.000000e+00> : vector<128xf32>
    %91 = vector.multi_reduction <add>, %90, %cst_28 [1] : vector<128x128xf32> to vector<128xf32>
    %92 = vector.shape_cast %91 : vector<128xf32> to vector<128x1xf32>
    %93 = arith.truncf %90 : vector<128x128xf32> to vector<128x128xbf16>
    %94 = arith.truncf %82 : vector<128x32xf32> to vector<128x32xbf16>
    %cst_29 = arith.constant dense<0.000000e+00> : vector<128x32xf32>
    %95 = tpu.matmul %93, %94, %cst_29 {dimension_numbers = #tpu.dot_dimension_numbers<[1], [0], [0], [1], [0, 0, 1, 1], [], []>} : vector<128x128xbf16>, vector<128x32xbf16>, vector<128x32xf32> -> vector<128x32xf32>
    %96 = tpu.reciprocal %92 {approx = true} : vector<128x1xf32> -> vector<128x1xf32>
    %97 = vector.broadcast %96 : vector<128x1xf32> to vector<128x32xf32>
    %98 = arith.mulf %95, %97 : vector<128x32xf32>
    %99 = arith.truncf %98 : vector<128x32xf32> to vector<128x32xbf16>
    %c0_30 = arith.constant 0 : index
    %c64 = arith.constant 64 : index
    %100 = vector.load %arg15[%c0_30, %c64] : memref<128x128xbf16, #tpu.memory_space<vmem>>, vector<128x32xbf16>
    tpu.vector_store %arg15[%c0_30, %c64], %99 {strides = array<i32>} : memref<128x128xbf16, #tpu.memory_space<vmem>>, vector<128x32xbf16>,
    %101 = vector.extract_strided_slice %37 {offsets = [0, 96], sizes = [128, 32], strides = [1, 1]} : vector<128x384xf32> to vector<128x32xf32>
    %102 = vector.extract_strided_slice %37 {offsets = [0, 224], sizes = [128, 32], strides = [1, 1]} : vector<128x384xf32> to vector<128x32xf32>
    %103 = vector.extract_strided_slice %37 {offsets = [0, 352], sizes = [128, 32], strides = [1, 1]} : vector<128x384xf32> to vector<128x32xf32>
    %104 = arith.truncf %101 : vector<128x32xf32> to vector<128x32xbf16>
    %105 = arith.truncf %102 : vector<128x32xf32> to vector<128x32xbf16>
    %cst_31 = arith.constant dense<0.000000e+00> : vector<128x128xf32>
    %106 = tpu.matmul %104, %105, %cst_31 {dimension_numbers = #tpu.dot_dimension_numbers<[1], [1], [0], [0], [0, 0, 1, 0], [], []>} : vector<128x32xbf16>, vector<128x32xbf16>, vector<128x128xf32> -> vector<128x128xf32>
    %cst_32 = arith.constant dense<0xFF800000> : vector<128xf32>
    %107 = vector.multi_reduction <maximumf>, %106, %cst_32 [1] : vector<128x128xf32> to vector<128xf32>
    %108 = vector.shape_cast %107 : vector<128xf32> to vector<128x1xf32>
    %109 = vector.broadcast %108 : vector<128x1xf32> to vector<128x128xf32>
    %110 = arith.subf %106, %109 : vector<128x128xf32>
    %111 = math.exp %110 : vector<128x128xf32>
    %cst_33 = arith.constant dense<0.000000e+00> : vector<128xf32>
    %112 = vector.multi_reduction <add>, %111, %cst_33 [1] : vector<128x128xf32> to vector<128xf32>
    %113 = vector.shape_cast %112 : vector<128xf32> to vector<128x1xf32>
    %114 = arith.truncf %111 : vector<128x128xf32> to vector<128x128xbf16>
    %115 = arith.truncf %103 : vector<128x32xf32> to vector<128x32xbf16>
    %cst_34 = arith.constant dense<0.000000e+00> : vector<128x32xf32>
    %116 = tpu.matmul %114, %115, %cst_34 {dimension_numbers = #tpu.dot_dimension_numbers<[1], [0], [0], [1], [0, 0, 1, 1], [], []>} : vector<128x128xbf16>, vector<128x32xbf16>, vector<128x32xf32> -> vector<128x32xf32>
    %117 = tpu.reciprocal %113 {approx = true} : vector<128x1xf32> -> vector<128x1xf32>
    %118 = vector.broadcast %117 : vector<128x1xf32> to vector<128x32xf32>
    %119 = arith.mulf %116, %118 : vector<128x32xf32>
    %120 = arith.truncf %119 : vector<128x32xf32> to vector<128x32xbf16>
    %c0_35 = arith.constant 0 : index
    %c96 = arith.constant 96 : index
    %121 = vector.load %arg15[%c0_35, %c96] : memref<128x128xbf16, #tpu.memory_space<vmem>>, vector<128x32xbf16>
    tpu.vector_store %arg15[%c0_35, %c96], %120 {strides = array<i32>} : memref<128x128xbf16, #tpu.memory_space<vmem>>, vector<128x32xbf16>,
    %c0_36 = arith.constant 0 : index
    %c0_37 = arith.constant 0 : index
    %122 = vector.load %arg15[%c0_36, %c0_37] : memref<128x128xbf16, #tpu.memory_space<vmem>>, vector<128x128xbf16>
    %c0_38 = arith.constant 0 : index
    %c0_39 = arith.constant 0 : index
    %123 = vector.load %arg6[%c0_38, %c0_39] : memref<128x128xbf16, #tpu.memory_space<vmem>>, vector<128x128xbf16>
    %cst_40 = arith.constant dense<0.000000e+00> : vector<128x128xf32>
    %124 = tpu.matmul %122, %123, %cst_40 {dimension_numbers = #tpu.dot_dimension_numbers<[1], [0], [0], [1], [0, 0, 1, 1], [], []>} : vector<128x128xbf16>, vector<128x128xbf16>, vector<128x128xf32> -> vector<128x128xf32>
    %c0_41 = arith.constant 0 : index
    %c0_42 = arith.constant 0 : index
    %125 = vector.load %arg7[%c0_41, %c0_42] : memref<1x128xf32, #tpu.memory_space<vmem>>, vector<1x128xf32>
    %126 = vector.shape_cast %125 : vector<1x128xf32> to vector<128xf32>
    %127 = vector.shape_cast %126 : vector<128xf32> to vector<1x128xf32>
    %128 = vector.broadcast %127 : vector<1x128xf32> to vector<128x128xf32>
    %129 = arith.addf %124, %128 : vector<128x128xf32>
    %130 = arith.addf %1, %129 : vector<128x128xf32>
    %c0_43 = arith.constant 0 : index
    %c0_44 = arith.constant 0 : index
    %131 = vector.load %arg8[%c0_43, %c0_44] : memref<1x128xf32, #tpu.memory_space<vmem>>, vector<1x128xf32>
    %132 = vector.shape_cast %131 : vector<1x128xf32> to vector<128xf32>
    %c0_45 = arith.constant 0 : index
    %c0_46 = arith.constant 0 : index
    %133 = vector.load %arg9[%c0_45, %c0_46] : memref<1x128xf32, #tpu.memory_space<vmem>>, vector<1x128xf32>
    %134 = vector.shape_cast %133 : vector<1x128xf32> to vector<128xf32>
    %cst_47 = arith.constant dense<0.000000e+00> : vector<128xf32>
    %135 = vector.multi_reduction <add>, %130, %cst_47 [1] : vector<128x128xf32> to vector<128xf32>
    %136 = vector.shape_cast %135 : vector<128xf32> to vector<128x1xf32>
    %cst_48 = arith.constant 1.280000e+02 : f32
    %137 = vector.broadcast %cst_48 : f32 to vector<128x1xf32>
    %138 = arith.divf %136, %137 : vector<128x1xf32>
    %139 = vector.broadcast %138 : vector<128x1xf32> to vector<128x128xf32>
    %140 = arith.subf %130, %139 : vector<128x128xf32>
    %141 = arith.mulf %140, %140 : vector<128x128xf32>
    %cst_49 = arith.constant dense<0.000000e+00> : vector<128xf32>
    %142 = vector.multi_reduction <add>, %141, %cst_49 [1] : vector<128x128xf32> to vector<128xf32>
    %143 = vector.shape_cast %142 : vector<128xf32> to vector<128x1xf32>
    %cst_50 = arith.constant 1.280000e+02 : f32
    %144 = vector.broadcast %cst_50 : f32 to vector<128x1xf32>
    %145 = arith.divf %143, %144 : vector<128x1xf32>
    %146 = vector.broadcast %138 : vector<128x1xf32> to vector<128x128xf32>
    %147 = arith.subf %130, %146 : vector<128x128xf32>
    %cst_51 = arith.constant 9.99999974E-6 : f32
    %148 = vector.broadcast %cst_51 : f32 to vector<128x1xf32>
    %149 = arith.addf %145, %148 : vector<128x1xf32>
    %150 = math.rsqrt %149 : vector<128x1xf32>
    %151 = vector.broadcast %150 : vector<128x1xf32> to vector<128x128xf32>
    %152 = arith.mulf %147, %151 : vector<128x128xf32>
    %153 = vector.shape_cast %132 : vector<128xf32> to vector<1x128xf32>
    %154 = vector.broadcast %153 : vector<1x128xf32> to vector<128x128xf32>
    %155 = arith.mulf %152, %154 : vector<128x128xf32>
    %156 = vector.shape_cast %134 : vector<128xf32> to vector<1x128xf32>
    %157 = vector.broadcast %156 : vector<1x128xf32> to vector<128x128xf32>
    %158 = arith.addf %155, %157 : vector<128x128xf32>
    %159 = arith.truncf %158 : vector<128x128xf32> to vector<128x128xbf16>
    %c0_52 = arith.constant 0 : index
    %c0_53 = arith.constant 0 : index
    %160 = vector.load %arg10[%c0_52, %c0_53] : memref<128x256xbf16, #tpu.memory_space<vmem>>, vector<128x256xbf16>
    %cst_54 = arith.constant dense<0.000000e+00> : vector<128x256xf32>
    %161 = tpu.matmul %159, %160, %cst_54 {dimension_numbers = #tpu.dot_dimension_numbers<[1], [0], [0], [1], [0, 0, 1, 1], [], []>} : vector<128x128xbf16>, vector<128x256xbf16>, vector<128x256xf32> -> vector<128x256xf32>
    %c0_55 = arith.constant 0 : index
    %c0_56 = arith.constant 0 : index
    %162 = vector.load %arg11[%c0_55, %c0_56] : memref<1x256xf32, #tpu.memory_space<vmem>>, vector<1x256xf32>
    %163 = vector.shape_cast %162 : vector<1x256xf32> to vector<256xf32>
    %164 = vector.shape_cast %163 : vector<256xf32> to vector<1x256xf32>
    %165 = vector.broadcast %164 : vector<1x256xf32> to vector<128x256xf32>
    %166 = arith.addf %161, %165 : vector<128x256xf32>
    %cst_57 = arith.constant 5.000000e-01 : f32
    %167 = vector.broadcast %cst_57 : f32 to vector<128x256xf32>
    %168 = arith.mulf %167, %166 : vector<128x256xf32>
    %cst_58 = arith.constant 0.707106769 : f32
    %169 = vector.broadcast %cst_58 : f32 to vector<128x256xf32>
    %170 = arith.mulf %166, %169 : vector<128x256xf32>
    %171 = math.erf %170 : vector<128x256xf32>
    %cst_59 = arith.constant 1.000000e+00 : f32
    %172 = vector.broadcast %cst_59 : f32 to vector<128x256xf32>
    %173 = arith.addf %172, %171 : vector<128x256xf32>
    %174 = arith.mulf %168, %173 : vector<128x256xf32>
    %175 = arith.truncf %174 : vector<128x256xf32> to vector<128x256xbf16>
    %c0_60 = arith.constant 0 : index
    %c0_61 = arith.constant 0 : index
    %176 = vector.load %arg12[%c0_60, %c0_61] : memref<256x128xbf16, #tpu.memory_space<vmem>>, vector<256x128xbf16>
    %cst_62 = arith.constant dense<0.000000e+00> : vector<128x128xf32>
    %177 = tpu.matmul %175, %176, %cst_62 {dimension_numbers = #tpu.dot_dimension_numbers<[1], [0], [0], [1], [0, 0, 1, 1], [], []>} : vector<128x256xbf16>, vector<256x128xbf16>, vector<128x128xf32> -> vector<128x128xf32>
    %c0_63 = arith.constant 0 : index
    %c0_64 = arith.constant 0 : index
    %178 = vector.load %arg13[%c0_63, %c0_64] : memref<1x128xf32, #tpu.memory_space<vmem>>, vector<1x128xf32>
    %179 = vector.shape_cast %178 : vector<1x128xf32> to vector<128xf32>
    %180 = vector.shape_cast %179 : vector<128xf32> to vector<1x128xf32>
    %181 = vector.broadcast %180 : vector<1x128xf32> to vector<128x128xf32>
    %182 = arith.addf %177, %181 : vector<128x128xf32>
    %183 = arith.addf %130, %182 : vector<128x128xf32>
    %c0_65 = arith.constant 0 : index
    %c0_66 = arith.constant 0 : index
    %c0_67 = arith.constant 0 : index
    %184 = vector.load %arg14[%c0_65, %c0_66, %c0_67] : memref<1x128x128xf32, #tpu.memory_space<vmem>>, vector<1x128x128xf32>
    %185 = vector.shape_cast %184 : vector<1x128x128xf32> to vector<128x128xf32>
    %186 = vector.shape_cast %183 : vector<128x128xf32> to vector<1x128x128xf32>
    tpu.vector_store %arg14[%c0_65, %c0_66, %c0_67], %186 {strides = array<i32>} : memref<1x128x128xf32, #tpu.memory_space<vmem>>, vector<1x128x128xf32>,
    return
  }
  func.func @transform_0(%arg0: i32) -> (i32, i32, i32) {
    %c0_i32 = arith.constant 0 : i32
    %c0_i32_0 = arith.constant 0 : i32
    %c0_i32_1 = arith.constant 0 : i32
    return %arg0, %c0_i32, %c0_i32_0 : i32, i32, i32
  }
  func.func @transform_1(%arg0: i32) -> (i32, i32) {
    %c0_i32 = arith.constant 0 : i32
    %c0_i32_0 = arith.constant 0 : i32
    %c0_i32_1 = arith.constant 0 : i32
    return %c0_i32, %c0_i32_0 : i32, i32
  }
  func.func @transform_2(%arg0: i32) -> (i32, i32) {
    %c0_i32 = arith.constant 0 : i32
    %c0_i32_0 = arith.constant 0 : i32
    %c0_i32_1 = arith.constant 0 : i32
    return %c0_i32, %c0_i32_0 : i32, i32
  }
  func.func @transform_3(%arg0: i32) -> (i32, i32) {
    %c0_i32 = arith.constant 0 : i32
    %c0_i32_0 = arith.constant 0 : i32
    %c0_i32_1 = arith.constant 0 : i32
    return %c0_i32, %c0_i32_0 : i32, i32
  }
  func.func @transform_4(%arg0: i32) -> (i32, i32) {
    %c0_i32 = arith.constant 0 : i32
    %c0_i32_0 = arith.constant 0 : i32
    %c0_i32_1 = arith.constant 0 : i32
    return %c0_i32, %c0_i32_0 : i32, i32
  }
  func.func @transform_5(%arg0: i32) -> (i32, i32) {
    %c0_i32 = arith.constant 0 : i32
    %c0_i32_0 = arith.constant 0 : i32
    %c0_i32_1 = arith.constant 0 : i32
    return %c0_i32, %c0_i32_0 : i32, i32
  }
  func.func @transform_6(%arg0: i32) -> (i32, i32) {
    %c0_i32 = arith.constant 0 : i32
    %c0_i32_0 = arith.constant 0 : i32
    %c0_i32_1 = arith.constant 0 : i32
    return %c0_i32, %c0_i32_0 : i32, i32
  }
  func.func @transform_7(%arg0: i32) -> (i32, i32) {
    %c0_i32 = arith.constant 0 : i32
    %c0_i32_0 = arith.constant 0 : i32
    %c0_i32_1 = arith.constant 0 : i32
    return %c0_i32, %c0_i32_0 : i32, i32
  }
  func.func @transform_8(%arg0: i32) -> (i32, i32) {
    %c0_i32 = arith.constant 0 : i32
    %c0_i32_0 = arith.constant 0 : i32
    %c0_i32_1 = arith.constant 0 : i32
    return %c0_i32, %c0_i32_0 : i32, i32
  }
  func.func @transform_9(%arg0: i32) -> (i32, i32) {
    %c0_i32 = arith.constant 0 : i32
    %c0_i32_0 = arith.constant 0 : i32
    %c0_i32_1 = arith.constant 0 : i32
    return %c0_i32, %c0_i32_0 : i32, i32
  }
  func.func @transform_10(%arg0: i32) -> (i32, i32) {
    %c0_i32 = arith.constant 0 : i32
    %c0_i32_0 = arith.constant 0 : i32
    %c0_i32_1 = arith.constant 0 : i32
    return %c0_i32, %c0_i32_0 : i32, i32
  }
  func.func @transform_11(%arg0: i32) -> (i32, i32) {
    %c0_i32 = arith.constant 0 : i32
    %c0_i32_0 = arith.constant 0 : i32
    %c0_i32_1 = arith.constant 0 : i32
    return %c0_i32, %c0_i32_0 : i32, i32
  }
  func.func @transform_12(%arg0: i32) -> (i32, i32) {
    %c0_i32 = arith.constant 0 : i32
    %c0_i32_0 = arith.constant 0 : i32
    %c0_i32_1 = arith.constant 0 : i32
    return %c0_i32, %c0_i32_0 : i32, i32
  }
  func.func @transform_13(%arg0: i32) -> (i32, i32, i32) {
    %c0_i32 = arith.constant 0 : i32
    %c0_i32_0 = arith.constant 0 : i32
    %c0_i32_1 = arith.constant 0 : i32
    return %arg0, %c0_i32, %c0_i32_0 : i32, i32, i32
  }
}

module attributes {stable_mosaic.version = 11 : i64} {
  func.func @transformer_block_kernel(%arg0: i32, %arg1: memref<1x128x128xf32, #tpu.memory_space<vmem>>, %arg2: memref<1x128xf32, #tpu.memory_space<vmem>>, %arg3: memref<1x128xf32, #tpu.memory_space<vmem>>, %arg4: memref<128x384xbf16, #tpu.memory_space<vmem>>, %arg5: memref<1x384xf32, #tpu.memory_space<vmem>>, %arg6: memref<128x128xbf16, #tpu.memory_space<vmem>>, %arg7: memref<1x128xf32, #tpu.memory_space<vmem>>, %arg8: memref<1x128xf32, #tpu.memory_space<vmem>>, %arg9: memref<1x128xf32, #tpu.memory_space<vmem>>, %arg10: memref<128x256xbf16, #tpu.memory_space<vmem>>, %arg11: memref<1x256xf32, #tpu.memory_space<vmem>>, %arg12: memref<256x128xbf16, #tpu.memory_space<vmem>>, %arg13: memref<1x128xf32, #tpu.memory_space<vmem>>, %arg14: memref<1x128x128xf32, #tpu.memory_space<vmem>>, %arg15: memref<128x128xbf16, #tpu.memory_space<vmem>>) attributes {dimension_semantics = [#tpu.dimension_semantics<parallel>], iteration_bounds = array<i64: 2>, scalar_prefetch = 0 : i64, scratch_operands = 1 : i64, tpu.core_type = #tpu.core_type<tc>, window_params = [{transform_indices = @transform_0, window_bounds = array<i64: 1, 128, 128>}, {pipeline_mode = #tpu.pipeline_mode<synchronous>, transform_indices = @transform_1, window_bounds = array<i64: 1, 128>}, {pipeline_mode = #tpu.pipeline_mode<synchronous>, transform_indices = @transform_2, window_bounds = array<i64: 1, 128>}, {pipeline_mode = #tpu.pipeline_mode<synchronous>, transform_indices = @transform_3, window_bounds = array<i64: 128, 384>}, {pipeline_mode = #tpu.pipeline_mode<synchronous>, transform_indices = @transform_4, window_bounds = array<i64: 1, 384>}, {pipeline_mode = #tpu.pipeline_mode<synchronous>, transform_indices = @transform_5, window_bounds = array<i64: 128, 128>}, {pipeline_mode = #tpu.pipeline_mode<synchronous>, transform_indices = @transform_6, window_bounds = array<i64: 1, 128>}, {pipeline_mode = #tpu.pipeline_mode<synchronous>, transform_indices = @transform_7, window_bounds = array<i64: 1, 128>}, {pipeline_mode = #tpu.pipeline_mode<synchronous>, transform_indices = @transform_8, window_bounds = array<i64: 1, 128>}, {pipeline_mode = #tpu.pipeline_mode<synchronous>, transform_indices = @transform_9, window_bounds = array<i64: 128, 256>}, {pipeline_mode = #tpu.pipeline_mode<synchronous>, transform_indices = @transform_10, window_bounds = array<i64: 1, 256>}, {pipeline_mode = #tpu.pipeline_mode<synchronous>, transform_indices = @transform_11, window_bounds = array<i64: 256, 128>}, {pipeline_mode = #tpu.pipeline_mode<synchronous>, transform_indices = @transform_12, window_bounds = array<i64: 1, 128>}, {transform_indices = @transform_13, window_bounds = array<i64: 1, 128, 128>}]} {
    %c0 = arith.constant 0 : index
    %c0_0 = arith.constant 0 : index
    %c0_1 = arith.constant 0 : index
    %0 = vector.load %arg1[%c0, %c0_0, %c0_1] : memref<1x128x128xf32, #tpu.memory_space<vmem>>, vector<1x128x128xf32>
    %1 = vector.shape_cast %0 : vector<1x128x128xf32> to vector<128x128xf32>
    %c0_2 = arith.constant 0 : index
    %c0_3 = arith.constant 0 : index
    %2 = vector.load %arg2[%c0_2, %c0_3] : memref<1x128xf32, #tpu.memory_space<vmem>>, vector<1x128xf32>
    %3 = vector.shape_cast %2 : vector<1x128xf32> to vector<128xf32>
    %c0_4 = arith.constant 0 : index
    %c0_5 = arith.constant 0 : index
    %4 = vector.load %arg3[%c0_4, %c0_5] : memref<1x128xf32, #tpu.memory_space<vmem>>, vector<1x128xf32>
    %5 = vector.shape_cast %4 : vector<1x128xf32> to vector<128xf32>
    %cst = arith.constant dense<0.000000e+00> : vector<128xf32>
    %6 = vector.multi_reduction <add>, %1, %cst [1] : vector<128x128xf32> to vector<128xf32>
    %7 = vector.shape_cast %6 : vector<128xf32> to vector<128x1xf32>
    %cst_6 = arith.constant 1.280000e+02 : f32
    %8 = vector.broadcast %cst_6 : f32 to vector<128x1xf32>
    %9 = arith.divf %7, %8 : vector<128x1xf32>
    %10 = vector.broadcast %9 : vector<128x1xf32> to vector<128x128xf32>
    %11 = arith.subf %1, %10 : vector<128x128xf32>
    %12 = arith.mulf %11, %11 : vector<128x128xf32>
    %cst_7 = arith.constant dense<0.000000e+00> : vector<128xf32>
    %13 = vector.multi_reduction <add>, %12, %cst_7 [1] : vector<128x128xf32> to vector<128xf32>
    %14 = vector.shape_cast %13 : vector<128xf32> to vector<128x1xf32>
    %cst_8 = arith.constant 1.280000e+02 : f32
    %15 = vector.broadcast %cst_8 : f32 to vector<128x1xf32>
    %16 = arith.divf %14, %15 : vector<128x1xf32>
    %17 = vector.broadcast %9 : vector<128x1xf32> to vector<128x128xf32>
    %18 = arith.subf %1, %17 : vector<128x128xf32>
    %cst_9 = arith.constant 9.99999974E-6 : f32
    %19 = vector.broadcast %cst_9 : f32 to vector<128x1xf32>
    %20 = arith.addf %16, %19 : vector<128x1xf32>
    %21 = math.rsqrt %20 : vector<128x1xf32>
    %22 = vector.broadcast %21 : vector<128x1xf32> to vector<128x128xf32>
    %23 = arith.mulf %18, %22 : vector<128x128xf32>
    %24 = vector.shape_cast %3 : vector<128xf32> to vector<1x128xf32>
    %25 = vector.broadcast %24 : vector<1x128xf32> to vector<128x128xf32>
    %26 = arith.mulf %23, %25 : vector<128x128xf32>
    %27 = vector.shape_cast %5 : vector<128xf32> to vector<1x128xf32>
    %28 = vector.broadcast %27 : vector<1x128xf32> to vector<128x128xf32>
    %29 = arith.addf %26, %28 : vector<128x128xf32>
    %30 = arith.truncf %29 : vector<128x128xf32> to vector<128x128xbf16>
    %c0_10 = arith.constant 0 : index
    %c0_11 = arith.constant 0 : index
    %31 = vector.load %arg4[%c0_10, %c0_11] : memref<128x384xbf16, #tpu.memory_space<vmem>>, vector<128x384xbf16>
    %cst_12 = arith.constant dense<0.000000e+00> : vector<128x384xf32>
    %32 = tpu.matmul %30, %31, %cst_12 {dimension_numbers = #tpu.dot_dimension_numbers<[1], [0], [0], [1], [0, 0, 1, 1], [], []>} : vector<128x128xbf16>, vector<128x384xbf16>, vector<128x384xf32> -> vector<128x384xf32>
    %c0_13 = arith.constant 0 : index
    %c0_14 = arith.constant 0 : index
    %33 = vector.load %arg5[%c0_13, %c0_14] : memref<1x384xf32, #tpu.memory_space<vmem>>, vector<1x384xf32>
    %34 = vector.shape_cast %33 : vector<1x384xf32> to vector<384xf32>
    %35 = vector.shape_cast %34 : vector<384xf32> to vector<1x384xf32>
    %36 = vector.broadcast %35 : vector<1x384xf32> to vector<128x384xf32>
    %37 = arith.addf %32, %36 : vector<128x384xf32>
    %38 = vector.extract_strided_slice %37 {offsets = [0, 0], sizes = [128, 32], strides = [1, 1]} : vector<128x384xf32> to vector<128x32xf32>
    %39 = vector.extract_strided_slice %37 {offsets = [0, 128], sizes = [128, 32], strides = [1, 1]} : vector<128x384xf32> to vector<128x32xf32>
    %40 = vector.extract_strided_slice %37 {offsets = [0, 256], sizes = [128, 32], strides = [1, 1]} : vector<128x384xf32> to vector<128x32xf32>
    %41 = arith.truncf %38 : vector<128x32xf32> to vector<128x32xbf16>
    %42 = arith.truncf %39 : vector<128x32xf32> to vector<128x32xbf16>
    %cst_15 = arith.constant dense<0.000000e+00> : vector<128x128xf32>
    %43 = tpu.matmul %41, %42, %cst_15 {dimension_numbers = #tpu.dot_dimension_numbers<[1], [1], [0], [0], [0, 0, 1, 0], [], []>} : vector<128x32xbf16>, vector<128x32xbf16>, vector<128x128xf32> -> vector<128x128xf32>
    %cst_16 = arith.constant dense<0xFF800000> : vector<128xf32>
    %44 = vector.multi_reduction <maximumf>, %43, %cst_16 [1] : vector<128x128xf32> to vector<128xf32>
    %45 = vector.shape_cast %44 : vector<128xf32> to vector<128x1xf32>
    %46 = vector.broadcast %45 : vector<128x1xf32> to vector<128x128xf32>
    %47 = arith.subf %43, %46 : vector<128x128xf32>
    %48 = math.exp %47 : vector<128x128xf32>
    %cst_17 = arith.constant dense<0.000000e+00> : vector<128xf32>
    %49 = vector.multi_reduction <add>, %48, %cst_17 [1] : vector<128x128xf32> to vector<128xf32>
    %50 = vector.shape_cast %49 : vector<128xf32> to vector<128x1xf32>
    %51 = arith.truncf %48 : vector<128x128xf32> to vector<128x128xbf16>
    %52 = arith.truncf %40 : vector<128x32xf32> to vector<128x32xbf16>
    %cst_18 = arith.constant dense<0.000000e+00> : vector<128x32xf32>
    %53 = tpu.matmul %51, %52, %cst_18 {dimension_numbers = #tpu.dot_dimension_numbers<[1], [0], [0], [1], [0, 0, 1, 1], [], []>} : vector<128x128xbf16>, vector<128x32xbf16>, vector<128x32xf32> -> vector<128x32xf32>
    %54 = tpu.reciprocal %50 {approx = true} : vector<128x1xf32> -> vector<128x1xf32>
    %55 = vector.broadcast %54 : vector<128x1xf32> to vector<128x32xf32>
    %56 = arith.mulf %53, %55 : vector<128x32xf32>
    %57 = arith.truncf %56 : vector<128x32xf32> to vector<128x32xbf16>
    %c0_19 = arith.constant 0 : index
    %c0_20 = arith.constant 0 : index
    %58 = vector.load %arg15[%c0_19, %c0_20] : memref<128x128xbf16, #tpu.memory_space<vmem>>, vector<128x32xbf16>
    tpu.vector_store %arg15[%c0_19, %c0_20], %57 {strides = array<i32>} : memref<128x128xbf16, #tpu.memory_space<vmem>>, vector<128x32xbf16>,
    %59 = vector.extract_strided_slice %37 {offsets = [0, 32], sizes = [128, 32], strides = [1, 1]} : vector<128x384xf32> to vector<128x32xf32>
    %60 = vector.extract_strided_slice %37 {offsets = [0, 160], sizes = [128, 32], strides = [1, 1]} : vector<128x384xf32> to vector<128x32xf32>
    %61 = vector.extract_strided_slice %37 {offsets = [0, 288], sizes = [128, 32], strides = [1, 1]} : vector<128x384xf32> to vector<128x32xf32>
    %62 = arith.truncf %59 : vector<128x32xf32> to vector<128x32xbf16>
    %63 = arith.truncf %60 : vector<128x32xf32> to vector<128x32xbf16>
    %cst_21 = arith.constant dense<0.000000e+00> : vector<128x128xf32>
    %64 = tpu.matmul %62, %63, %cst_21 {dimension_numbers = #tpu.dot_dimension_numbers<[1], [1], [0], [0], [0, 0, 1, 0], [], []>} : vector<128x32xbf16>, vector<128x32xbf16>, vector<128x128xf32> -> vector<128x128xf32>
    %cst_22 = arith.constant dense<0xFF800000> : vector<128xf32>
    %65 = vector.multi_reduction <maximumf>, %64, %cst_22 [1] : vector<128x128xf32> to vector<128xf32>
    %66 = vector.shape_cast %65 : vector<128xf32> to vector<128x1xf32>
    %67 = vector.broadcast %66 : vector<128x1xf32> to vector<128x128xf32>
    %68 = arith.subf %64, %67 : vector<128x128xf32>
    %69 = math.exp %68 : vector<128x128xf32>
    %cst_23 = arith.constant dense<0.000000e+00> : vector<128xf32>
    %70 = vector.multi_reduction <add>, %69, %cst_23 [1] : vector<128x128xf32> to vector<128xf32>
    %71 = vector.shape_cast %70 : vector<128xf32> to vector<128x1xf32>
    %72 = arith.truncf %69 : vector<128x128xf32> to vector<128x128xbf16>
    %73 = arith.truncf %61 : vector<128x32xf32> to vector<128x32xbf16>
    %cst_24 = arith.constant dense<0.000000e+00> : vector<128x32xf32>
    %74 = tpu.matmul %72, %73, %cst_24 {dimension_numbers = #tpu.dot_dimension_numbers<[1], [0], [0], [1], [0, 0, 1, 1], [], []>} : vector<128x128xbf16>, vector<128x32xbf16>, vector<128x32xf32> -> vector<128x32xf32>
    %75 = tpu.reciprocal %71 {approx = true} : vector<128x1xf32> -> vector<128x1xf32>
    %76 = vector.broadcast %75 : vector<128x1xf32> to vector<128x32xf32>
    %77 = arith.mulf %74, %76 : vector<128x32xf32>
    %78 = arith.truncf %77 : vector<128x32xf32> to vector<128x32xbf16>
    %c0_25 = arith.constant 0 : index
    %c32 = arith.constant 32 : index
    %79 = vector.load %arg15[%c0_25, %c32] : memref<128x128xbf16, #tpu.memory_space<vmem>>, vector<128x32xbf16>
    tpu.vector_store %arg15[%c0_25, %c32], %78 {strides = array<i32>} : memref<128x128xbf16, #tpu.memory_space<vmem>>, vector<128x32xbf16>,
    %80 = vector.extract_strided_slice %37 {offsets = [0, 64], sizes = [128, 32], strides = [1, 1]} : vector<128x384xf32> to vector<128x32xf32>
    %81 = vector.extract_strided_slice %37 {offsets = [0, 192], sizes = [128, 32], strides = [1, 1]} : vector<128x384xf32> to vector<128x32xf32>
    %82 = vector.extract_strided_slice %37 {offsets = [0, 320], sizes = [128, 32], strides = [1, 1]} : vector<128x384xf32> to vector<128x32xf32>
    %83 = arith.truncf %80 : vector<128x32xf32> to vector<128x32xbf16>
    %84 = arith.truncf %81 : vector<128x32xf32> to vector<128x32xbf16>
    %cst_26 = arith.constant dense<0.000000e+00> : vector<128x128xf32>
    %85 = tpu.matmul %83, %84, %cst_26 {dimension_numbers = #tpu.dot_dimension_numbers<[1], [1], [0], [0], [0, 0, 1, 0], [], []>} : vector<128x32xbf16>, vector<128x32xbf16>, vector<128x128xf32> -> vector<128x128xf32>
    %cst_27 = arith.constant dense<0xFF800000> : vector<128xf32>
    %86 = vector.multi_reduction <maximumf>, %85, %cst_27 [1] : vector<128x128xf32> to vector<128xf32>
    %87 = vector.shape_cast %86 : vector<128xf32> to vector<128x1xf32>
    %88 = vector.broadcast %87 : vector<128x1xf32> to vector<128x128xf32>
    %89 = arith.subf %85, %88 : vector<128x128xf32>
    %90 = math.exp %89 : vector<128x128xf32>
    %cst_28 = arith.constant dense<0.000000e+00> : vector<128xf32>
    %91 = vector.multi_reduction <add>, %90, %cst_28 [1] : vector<128x128xf32> to vector<128xf32>
    %92 = vector.shape_cast %91 : vector<128xf32> to vector<128x1xf32>
    %93 = arith.truncf %90 : vector<128x128xf32> to vector<128x128xbf16>
    %94 = arith.truncf %82 : vector<128x32xf32> to vector<128x32xbf16>
    %cst_29 = arith.constant dense<0.000000e+00> : vector<128x32xf32>
    %95 = tpu.matmul %93, %94, %cst_29 {dimension_numbers = #tpu.dot_dimension_numbers<[1], [0], [0], [1], [0, 0, 1, 1], [], []>} : vector<128x128xbf16>, vector<128x32xbf16>, vector<128x32xf32> -> vector<128x32xf32>
    %96 = tpu.reciprocal %92 {approx = true} : vector<128x1xf32> -> vector<128x1xf32>
    %97 = vector.broadcast %96 : vector<128x1xf32> to vector<128x32xf32>
    %98 = arith.mulf %95, %97 : vector<128x32xf32>
    %99 = arith.truncf %98 : vector<128x32xf32> to vector<128x32xbf16>
    %c0_30 = arith.constant 0 : index
    %c64 = arith.constant 64 : index
    %100 = vector.load %arg15[%c0_30, %c64] : memref<128x128xbf16, #tpu.memory_space<vmem>>, vector<128x32xbf16>
    tpu.vector_store %arg15[%c0_30, %c64], %99 {strides = array<i32>} : memref<128x128xbf16, #tpu.memory_space<vmem>>, vector<128x32xbf16>,
    %101 = vector.extract_strided_slice %37 {offsets = [0, 96], sizes = [128, 32], strides = [1, 1]} : vector<128x384xf32> to vector<128x32xf32>
    %102 = vector.extract_strided_slice %37 {offsets = [0, 224], sizes = [128, 32], strides = [1, 1]} : vector<128x384xf32> to vector<128x32xf32>
    %103 = vector.extract_strided_slice %37 {offsets = [0, 352], sizes = [128, 32], strides = [1, 1]} : vector<128x384xf32> to vector<128x32xf32>
    %104 = arith.truncf %101 : vector<128x32xf32> to vector<128x32xbf16>
    %105 = arith.truncf %102 : vector<128x32xf32> to vector<128x32xbf16>
    %cst_31 = arith.constant dense<0.000000e+00> : vector<128x128xf32>
    %106 = tpu.matmul %104, %105, %cst_31 {dimension_numbers = #tpu.dot_dimension_numbers<[1], [1], [0], [0], [0, 0, 1, 0], [], []>} : vector<128x32xbf16>, vector<128x32xbf16>, vector<128x128xf32> -> vector<128x128xf32>
    %cst_32 = arith.constant dense<0xFF800000> : vector<128xf32>
    %107 = vector.multi_reduction <maximumf>, %106, %cst_32 [1] : vector<128x128xf32> to vector<128xf32>
    %108 = vector.shape_cast %107 : vector<128xf32> to vector<128x1xf32>
    %109 = vector.broadcast %108 : vector<128x1xf32> to vector<128x128xf32>
    %110 = arith.subf %106, %109 : vector<128x128xf32>
    %111 = math.exp %110 : vector<128x128xf32>
    %cst_33 = arith.constant dense<0.000000e+00> : vector<128xf32>
    %112 = vector.multi_reduction <add>, %111, %cst_33 [1] : vector<128x128xf32> to vector<128xf32>
    %113 = vector.shape_cast %112 : vector<128xf32> to vector<128x1xf32>
    %114 = arith.truncf %111 : vector<128x128xf32> to vector<128x128xbf16>
    %115 = arith.truncf %103 : vector<128x32xf32> to vector<128x32xbf16>
    %cst_34 = arith.constant dense<0.000000e+00> : vector<128x32xf32>
    %116 = tpu.matmul %114, %115, %cst_34 {dimension_numbers = #tpu.dot_dimension_numbers<[1], [0], [0], [1], [0, 0, 1, 1], [], []>} : vector<128x128xbf16>, vector<128x32xbf16>, vector<128x32xf32> -> vector<128x32xf32>
    %117 = tpu.reciprocal %113 {approx = true} : vector<128x1xf32> -> vector<128x1xf32>
    %118 = vector.broadcast %117 : vector<128x1xf32> to vector<128x32xf32>
    %119 = arith.mulf %116, %118 : vector<128x32xf32>
    %120 = arith.truncf %119 : vector<128x32xf32> to vector<128x32xbf16>
    %c0_35 = arith.constant 0 : index
    %c96 = arith.constant 96 : index
    %121 = vector.load %arg15[%c0_35, %c96] : memref<128x128xbf16, #tpu.memory_space<vmem>>, vector<128x32xbf16>
    tpu.vector_store %arg15[%c0_35, %c96], %120 {strides = array<i32>} : memref<128x128xbf16, #tpu.memory_space<vmem>>, vector<128x32xbf16>,
    %c0_36 = arith.constant 0 : index
    %c0_37 = arith.constant 0 : index
    %122 = vector.load %arg15[%c0_36, %c0_37] : memref<128x128xbf16, #tpu.memory_space<vmem>>, vector<128x128xbf16>
    %c0_38 = arith.constant 0 : index
    %c0_39 = arith.constant 0 : index
    %123 = vector.load %arg6[%c0_38, %c0_39] : memref<128x128xbf16, #tpu.memory_space<vmem>>, vector<128x128xbf16>
    %cst_40 = arith.constant dense<0.000000e+00> : vector<128x128xf32>
    %124 = tpu.matmul %122, %123, %cst_40 {dimension_numbers = #tpu.dot_dimension_numbers<[1], [0], [0], [1], [0, 0, 1, 1], [], []>} : vector<128x128xbf16>, vector<128x128xbf16>, vector<128x128xf32> -> vector<128x128xf32>
    %c0_41 = arith.constant 0 : index
    %c0_42 = arith.constant 0 : index
    %125 = vector.load %arg7[%c0_41, %c0_42] : memref<1x128xf32, #tpu.memory_space<vmem>>, vector<1x128xf32>
    %126 = vector.shape_cast %125 : vector<1x128xf32> to vector<128xf32>
    %127 = vector.shape_cast %126 : vector<128xf32> to vector<1x128xf32>
    %128 = vector.broadcast %127 : vector<1x128xf32> to vector<128x128xf32>
    %129 = arith.addf %124, %128 : vector<128x128xf32>
    %130 = arith.addf %1, %129 : vector<128x128xf32>
    %c0_43 = arith.constant 0 : index
    %c0_44 = arith.constant 0 : index
    %131 = vector.load %arg8[%c0_43, %c0_44] : memref<1x128xf32, #tpu.memory_space<vmem>>, vector<1x128xf32>
    %132 = vector.shape_cast %131 : vector<1x128xf32> to vector<128xf32>
    %c0_45 = arith.constant 0 : index
    %c0_46 = arith.constant 0 : index
    %133 = vector.load %arg9[%c0_45, %c0_46] : memref<1x128xf32, #tpu.memory_space<vmem>>, vector<1x128xf32>
    %134 = vector.shape_cast %133 : vector<1x128xf32> to vector<128xf32>
    %cst_47 = arith.constant dense<0.000000e+00> : vector<128xf32>
    %135 = vector.multi_reduction <add>, %130, %cst_47 [1] : vector<128x128xf32> to vector<128xf32>
    %136 = vector.shape_cast %135 : vector<128xf32> to vector<128x1xf32>
    %cst_48 = arith.constant 1.280000e+02 : f32
    %137 = vector.broadcast %cst_48 : f32 to vector<128x1xf32>
    %138 = arith.divf %136, %137 : vector<128x1xf32>
    %139 = vector.broadcast %138 : vector<128x1xf32> to vector<128x128xf32>
    %140 = arith.subf %130, %139 : vector<128x128xf32>
    %141 = arith.mulf %140, %140 : vector<128x128xf32>
    %cst_49 = arith.constant dense<0.000000e+00> : vector<128xf32>
    %142 = vector.multi_reduction <add>, %141, %cst_49 [1] : vector<128x128xf32> to vector<128xf32>
    %143 = vector.shape_cast %142 : vector<128xf32> to vector<128x1xf32>
    %cst_50 = arith.constant 1.280000e+02 : f32
    %144 = vector.broadcast %cst_50 : f32 to vector<128x1xf32>
    %145 = arith.divf %143, %144 : vector<128x1xf32>
    %146 = vector.broadcast %138 : vector<128x1xf32> to vector<128x128xf32>
    %147 = arith.subf %130, %146 : vector<128x128xf32>
    %cst_51 = arith.constant 9.99999974E-6 : f32
    %148 = vector.broadcast %cst_51 : f32 to vector<128x1xf32>
    %149 = arith.addf %145, %148 : vector<128x1xf32>
    %150 = math.rsqrt %149 : vector<128x1xf32>
    %151 = vector.broadcast %150 : vector<128x1xf32> to vector<128x128xf32>
    %152 = arith.mulf %147, %151 : vector<128x128xf32>
    %153 = vector.shape_cast %132 : vector<128xf32> to vector<1x128xf32>
    %154 = vector.broadcast %153 : vector<1x128xf32> to vector<128x128xf32>
    %155 = arith.mulf %152, %154 : vector<128x128xf32>
    %156 = vector.shape_cast %134 : vector<128xf32> to vector<1x128xf32>
    %157 = vector.broadcast %156 : vector<1x128xf32> to vector<128x128xf32>
    %158 = arith.addf %155, %157 : vector<128x128xf32>
    %159 = arith.truncf %158 : vector<128x128xf32> to vector<128x128xbf16>
    %c0_52 = arith.constant 0 : index
    %c0_53 = arith.constant 0 : index
    %160 = vector.load %arg10[%c0_52, %c0_53] : memref<128x256xbf16, #tpu.memory_space<vmem>>, vector<128x256xbf16>
    %cst_54 = arith.constant dense<0.000000e+00> : vector<128x256xf32>
    %161 = tpu.matmul %159, %160, %cst_54 {dimension_numbers = #tpu.dot_dimension_numbers<[1], [0], [0], [1], [0, 0, 1, 1], [], []>} : vector<128x128xbf16>, vector<128x256xbf16>, vector<128x256xf32> -> vector<128x256xf32>
    %c0_55 = arith.constant 0 : index
    %c0_56 = arith.constant 0 : index
    %162 = vector.load %arg11[%c0_55, %c0_56] : memref<1x256xf32, #tpu.memory_space<vmem>>, vector<1x256xf32>
    %163 = vector.shape_cast %162 : vector<1x256xf32> to vector<256xf32>
    %164 = vector.shape_cast %163 : vector<256xf32> to vector<1x256xf32>
    %165 = vector.broadcast %164 : vector<1x256xf32> to vector<128x256xf32>
    %166 = arith.addf %161, %165 : vector<128x256xf32>
    %cst_57 = arith.constant 5.000000e-01 : f32
    %167 = vector.broadcast %cst_57 : f32 to vector<128x256xf32>
    %168 = arith.mulf %167, %166 : vector<128x256xf32>
    %cst_58 = arith.constant 0.707106769 : f32
    %169 = vector.broadcast %cst_58 : f32 to vector<128x256xf32>
    %170 = arith.mulf %166, %169 : vector<128x256xf32>
    %171 = math.erf %170 : vector<128x256xf32>
    %cst_59 = arith.constant 1.000000e+00 : f32
    %172 = vector.broadcast %cst_59 : f32 to vector<128x256xf32>
    %173 = arith.addf %172, %171 : vector<128x256xf32>
    %174 = arith.mulf %168, %173 : vector<128x256xf32>
    %175 = arith.truncf %174 : vector<128x256xf32> to vector<128x256xbf16>
    %c0_60 = arith.constant 0 : index
    %c0_61 = arith.constant 0 : index
    %176 = vector.load %arg12[%c0_60, %c0_61] : memref<256x128xbf16, #tpu.memory_space<vmem>>, vector<256x128xbf16>
    %cst_62 = arith.constant dense<0.000000e+00> : vector<128x128xf32>
    %177 = tpu.matmul %175, %176, %cst_62 {dimension_numbers = #tpu.dot_dimension_numbers<[1], [0], [0], [1], [0, 0, 1, 1], [], []>} : vector<128x256xbf16>, vector<256x128xbf16>, vector<128x128xf32> -> vector<128x128xf32>
    %c0_63 = arith.constant 0 : index
    %c0_64 = arith.constant 0 : index
    %178 = vector.load %arg13[%c0_63, %c0_64] : memref<1x128xf32, #tpu.memory_space<vmem>>, vector<1x128xf32>
    %179 = vector.shape_cast %178 : vector<1x128xf32> to vector<128xf32>
    %180 = vector.shape_cast %179 : vector<128xf32> to vector<1x128xf32>
    %181 = vector.broadcast %180 : vector<1x128xf32> to vector<128x128xf32>
    %182 = arith.addf %177, %181 : vector<128x128xf32>
    %183 = arith.addf %130, %182 : vector<128x128xf32>
    %c0_65 = arith.constant 0 : index
    %c0_66 = arith.constant 0 : index
    %c0_67 = arith.constant 0 : index
    %184 = vector.load %arg14[%c0_65, %c0_66, %c0_67] : memref<1x128x128xf32, #tpu.memory_space<vmem>>, vector<1x128x128xf32>
    %185 = vector.shape_cast %184 : vector<1x128x128xf32> to vector<128x128xf32>
    %186 = vector.shape_cast %183 : vector<128x128xf32> to vector<1x128x128xf32>
    tpu.vector_store %arg14[%c0_65, %c0_66, %c0_67], %186 {strides = array<i32>} : memref<1x128x128xf32, #tpu.memory_space<vmem>>, vector<1x128x128xf32>,
    return
  }
  func.func @transform_0(%arg0: i32) -> (i32, i32, i32) {
    %c0_i32 = arith.constant 0 : i32
    %c0_i32_0 = arith.constant 0 : i32
    %c0_i32_1 = arith.constant 0 : i32
    return %arg0, %c0_i32, %c0_i32_0 : i32, i32, i32
  }
  func.func @transform_1(%arg0: i32) -> (i32, i32) {
    %c0_i32 = arith.constant 0 : i32
    %c0_i32_0 = arith.constant 0 : i32
    %c0_i32_1 = arith.constant 0 : i32
    return %c0_i32, %c0_i32_0 : i32, i32
  }
  func.func @transform_2(%arg0: i32) -> (i32, i32) {
    %c0_i32 = arith.constant 0 : i32
    %c0_i32_0 = arith.constant 0 : i32
    %c0_i32_1 = arith.constant 0 : i32
    return %c0_i32, %c0_i32_0 : i32, i32
  }
  func.func @transform_3(%arg0: i32) -> (i32, i32) {
    %c0_i32 = arith.constant 0 : i32
    %c0_i32_0 = arith.constant 0 : i32
    %c0_i32_1 = arith.constant 0 : i32
    return %c0_i32, %c0_i32_0 : i32, i32
  }
  func.func @transform_4(%arg0: i32) -> (i32, i32) {
    %c0_i32 = arith.constant 0 : i32
    %c0_i32_0 = arith.constant 0 : i32
    %c0_i32_1 = arith.constant 0 : i32
    return %c0_i32, %c0_i32_0 : i32, i32
  }
  func.func @transform_5(%arg0: i32) -> (i32, i32) {
    %c0_i32 = arith.constant 0 : i32
    %c0_i32_0 = arith.constant 0 : i32
    %c0_i32_1 = arith.constant 0 : i32
    return %c0_i32, %c0_i32_0 : i32, i32
  }
  func.func @transform_6(%arg0: i32) -> (i32, i32) {
    %c0_i32 = arith.constant 0 : i32
    %c0_i32_0 = arith.constant 0 : i32
    %c0_i32_1 = arith.constant 0 : i32
    return %c0_i32, %c0_i32_0 : i32, i32
  }
  func.func @transform_7(%arg0: i32) -> (i32, i32) {
    %c0_i32 = arith.constant 0 : i32
    %c0_i32_0 = arith.constant 0 : i32
    %c0_i32_1 = arith.constant 0 : i32
    return %c0_i32, %c0_i32_0 : i32, i32
  }
  func.func @transform_8(%arg0: i32) -> (i32, i32) {
    %c0_i32 = arith.constant 0 : i32
    %c0_i32_0 = arith.constant 0 : i32
    %c0_i32_1 = arith.constant 0 : i32
    return %c0_i32, %c0_i32_0 : i32, i32
  }
  func.func @transform_9(%arg0: i32) -> (i32, i32) {
    %c0_i32 = arith.constant 0 : i32
    %c0_i32_0 = arith.constant 0 : i32
    %c0_i32_1 = arith.constant 0 : i32
    return %c0_i32, %c0_i32_0 : i32, i32
  }
  func.func @transform_10(%arg0: i32) -> (i32, i32) {
    %c0_i32 = arith.constant 0 : i32
    %c0_i32_0 = arith.constant 0 : i32
    %c0_i32_1 = arith.constant 0 : i32
    return %c0_i32, %c0_i32_0 : i32, i32
  }
  func.func @transform_11(%arg0: i32) -> (i32, i32) {
    %c0_i32 = arith.constant 0 : i32
    %c0_i32_0 = arith.constant 0 : i32
    %c0_i32_1 = arith.constant 0 : i32
    return %c0_i32, %c0_i32_0 : i32, i32
  }
  func.func @transform_12(%arg0: i32) -> (i32, i32) {
    %c0_i32 = arith.constant 0 : i32
    %c0_i32_0 = arith.constant 0 : i32
    %c0_i32_1 = arith.constant 0 : i32
    return %c0_i32, %c0_i32_0 : i32, i32
  }
  func.func @transform_13(%arg0: i32) -> (i32, i32, i32) {
    %c0_i32 = arith.constant 0 : i32
    %c0_i32_0 = arith.constant 0 : i32
    %c0_i32_1 = arith.constant 0 : i32
    return %arg0, %c0_i32, %c0_i32_0 : i32, i32, i32
  }
}

</mosaic_0001>

<llo_original>
// kernel: tpu_custom_call.1
$region0: #{tpu_custom_call.1}
  #allocation0 [shape = 'u32[]', space=smem, size = 0x4, offset = 0x4, fixed_abs, tag = 'smem constant byte address 0x4 - core index']
  #allocation1 [shape = 'u32[144,128]{1,0:T(1,128)}', space=vmem, size = 0x12000, scoped, tag = 'internal scratch']
  #allocation2 [shape = 'bf16[128,128]{1,0:T(8,128)(2,1)}', space=vmem, size = 0x8000, scoped, tag = 'scratch operand']
  %s0 = inlined_call_operand.hbm [shape: f32[2,128,128], index: 0, kind: input, shape index: {}]
  %s1 = inlined_call_operand.hbm [shape: f32[1,128], index: 1, kind: input, shape index: {}]
  %s2 = inlined_call_operand.hbm [shape: f32[1,128], index: 2, kind: input, shape index: {}]
  %s3 = inlined_call_operand.hbm [shape: bf16[128,384], index: 3, kind: input, shape index: {}]
  %s4 = inlined_call_operand.vmem [shape: f32[1,384], index: 4, kind: input, shape index: {}]
  %s5 = inlined_call_operand.hbm [shape: bf16[128,128], index: 5, kind: input, shape index: {}]
  %s6 = inlined_call_operand.vmem [shape: f32[1,128], index: 6, kind: input, shape index: {}]
  %s7 = inlined_call_operand.vmem [shape: f32[1,128], index: 7, kind: input, shape index: {}]
  %s8 = inlined_call_operand.vmem [shape: f32[1,128], index: 8, kind: input, shape index: {}]
  %s9 = inlined_call_operand.hbm [shape: bf16[128,256], index: 9, kind: input, shape index: {}]
  %s10 = inlined_call_operand.vmem [shape: f32[1,256], index: 10, kind: input, shape index: {}]
  %s11 = inlined_call_operand.hbm [shape: bf16[256,128], index: 11, kind: input, shape index: {}]
  %s12 = inlined_call_operand.vmem [shape: f32[1,128], index: 12, kind: input, shape index: {}]
  %s13 = inlined_call_operand.hbm [shape: f32[2,128,128], index: 13, kind: output, shape index: {}]
  %s14 = sld [smem:[#allocation0]]
  $region113: #{tpu_custom_call.1} parent=0
    _
  %s16 = ssub.s32 1, %s14
  %s17 = scalar_select 0, %s16, %s14
  $region1: #{tpu_custom_call.1} parent=0
    #allocation3 [shape = 'u8[131072]{0}', space=vmem, size = 0x20000, scoped, tag = 'input window, operand 0']
    #allocation4 [shape = 's32[2]{0}', space=sflag, size = 0x8, scoped, tag = 'scoped memory for tpu_custom_call.1']
    #allocation5 [shape = 's32[2]{0}', space=sflag, size = 0x8, scoped, tag = 'scoped memory for tpu_custom_call.1']
    #allocation6 [shape = 'u8[512]{0}', space=vmem, size = 0x400, scoped, tag = 'input window, operand 1, single buffered']
    #allocation7 [shape = 's32[1]{0}', space=sflag, size = 0x4, scoped, tag = 'scoped memory for tpu_custom_call.1']
    #allocation8 [shape = 'u8[512]{0}', space=vmem, size = 0x400, scoped, tag = 'input window, operand 2, single buffered']
    #allocation9 [shape = 'u8[98304]{0}', space=vmem, size = 0x18000, scoped, tag = 'input window, operand 3, single buffered']
    #allocation10 [shape = 's32[1]{0}', space=sflag, size = 0x4, scoped, tag = 'scoped memory for tpu_custom_call.1']
    #allocation11 [shape = 'u8[32768]{0}', space=vmem, size = 0x8000, scoped, tag = 'input window, operand 5, single buffered']
    #allocation12 [shape = 'u8[65536]{0}', space=vmem, size = 0x10000, scoped, tag = 'input window, operand 9, single buffered']
    #allocation13 [shape = 's32[1]{0}', space=sflag, size = 0x4, scoped, tag = 'scoped memory for tpu_custom_call.1']
    #allocation14 [shape = 'u8[65536]{0}', space=vmem, size = 0x10000, scoped, tag = 'input window, operand 11, single buffered']
    #allocation15 [shape = 'u8[131072]{0}', space=vmem, size = 0x20000, scoped, tag = 'output window, operand 0']
    %18 = vsyncpa [#allocation4], 0
    %s19 = scalar_lea.sflag [#allocation4], 1
    %20 = vsyncpa %s19, 0
    %21 = vsyncpa [#allocation7], 0
    %22 = vsyncpa [#allocation10], 0
    %23 = vsyncpa [#allocation13], 0
    %24 = vsyncpa [#allocation5], 0
    %s25 = scalar_lea.sflag [#allocation5], 1
    %26 = vsyncpa %s25, 0
    loop: start=0, step=1, limit=4
    $region2: #{tpu_custom_call.1} parent=1 // loop_pre_header
      _
    $region3: #{tpu_custom_call.1} parent=1 // loop_header
      %s28 = sphi 0, %s32
      %p29 = scmp.ge.s32.totalorder %s28, 4
      %s38 = sphi 0, %s40
      %s41 = sphi 0, %s38
      %s42 = sphi 0, %s41
      %s58 = sphi 0, %s42
      %s62 = sphi 0, %s62
      %s64 = sphi 0, %s62
      %s65 = sphi 0, %s64
      %s79 = sphi 0, %s65
      %s83 = sphi 0, %s83
      %s85 = sphi 0, %s83
      %s86 = sphi 0, %s85
      %s100 = sphi 0, %s86
      %s104 = sphi 0, %s104
      %s106 = sphi 0, %s104
      %s107 = sphi 0, %s106
      %s121 = sphi 0, %s107
      %s125 = sphi 0, %s125
      %s127 = sphi 0, %s125
      %s128 = sphi 0, %s127
      %s142 = sphi 0, %s128
      %s146 = sphi 0, %s146
      %s148 = sphi 0, %s146
      %s149 = sphi 0, %s148
      %s163 = sphi 0, %s149
      %s167 = sphi 0, %s167
      %s169 = sphi 0, %s167
      %s170 = sphi 0, %s169
      %s184 = sphi 0, %s170
      %s188 = sphi 0, %s188
      %s190 = sphi 0, %s188
      %s191 = sphi 0, %s190
      %s205 = sphi 0, %s191
      %s209 = sphi 0, %s209
      %s211 = sphi 0, %s209
      %s212 = sphi 0, %s211
      %s226 = sphi 0, %s212
      %s230 = sphi 0, %s230
      %s232 = sphi 0, %s230
      %s233 = sphi 0, %s232
      %s247 = sphi 0, %s233
      %s251 = sphi 0, %s251
      %s253 = sphi 0, %s251
      %s254 = sphi 0, %s253
      %s268 = sphi 0, %s254
      %s272 = sphi 0, %s272
      %s274 = sphi 0, %s272
      %s275 = sphi 0, %s274
      %s289 = sphi 0, %s275
      %s293 = sphi 0, %s293
      %s295 = sphi 0, %s293
      %s296 = sphi 0, %s295
      %s310 = sphi 0, %s296
      %s316 = sphi 0, %s318
      %s319 = sphi 0, %s316
      %s320 = sphi 0, %s319
      %s336 = sphi 0, %s320
    $region4: #{tpu_custom_call.1} parent=1 // loop_header_branch
      %31 = sbr.rel (%p29) target = $region8
    $region5: #{tpu_custom_call.1} parent=1 // loop_body
      %s33 = ssub.s32 %s28, 1
      %s34 = ssub.s32 %s28, 2
      %s35 = sadd.s32 %s28, 1
      %s36 = ssub.s32 %s28, %s35
      %p37 = scmp.eq.s32.totalorder %s36, 0
      %s39 = sadd.s32 %s38, 1
      %s40 = scalar_select %p37, %s38, %s39
      %p43 = pneg %p37
      %p44 = scmp.eq.s32.totalorder %s28, 1
      %p45 = por %p43, %p44
      %p46 = scmp.ne.s32.totalorder %s38, %s41
      %p47 = scmp.eq.s32.totalorder %s28, 0
      %p48 = por %p46, %p47
      %p49 = scmp.ne.s32.totalorder %s38, %s41
      %p50 = scmp.eq.s32.totalorder %s33, 1
      %p51 = por %p49, %p50
      %p52 = scmp.ne.s32.totalorder %s41, %s42
      %p53 = scmp.eq.s32.totalorder %s33, 0
      %p54 = por %p52, %p53
      %p55 = scmp.ne.s32.totalorder %s41, %s42
      %p56 = scmp.eq.s32.totalorder %s34, 1
      %p57 = por %p55, %p56
      %p59 = scmp.ne.s32.totalorder %s42, %s58
      %p60 = scmp.eq.s32.totalorder %s34, 0
      %p61 = por %p59, %p60
      %s63 = sadd.s32 %s62, 1
      %p66 = scmp.eq.s32.totalorder %s28, 1
      %p67 = scmp.ne.s32.totalorder %s62, %s64
      %p68 = scmp.eq.s32.totalorder %s28, 0
      %p69 = por %p67, %p68
      %p70 = scmp.ne.s32.totalorder %s62, %s64
      %p71 = scmp.eq.s32.totalorder %s33, 1
      %p72 = por %p70, %p71
      %p73 = scmp.ne.s32.totalorder %s64, %s65
      %p74 = scmp.eq.s32.totalorder %s33, 0
      %p75 = por %p73, %p74
      %p76 = scmp.ne.s32.totalorder %s64, %s65
      %p77 = scmp.eq.s32.totalorder %s34, 1
      %p78 = por %p76, %p77
      %p80 = scmp.ne.s32.totalorder %s65, %s79
      %p81 = scmp.eq.s32.totalorder %s34, 0
      %p82 = por %p80, %p81
      %s84 = sadd.s32 %s83, 1
      %p87 = scmp.eq.s32.totalorder %s28, 1
      %p88 = scmp.ne.s32.totalorder %s83, %s85
      %p89 = scmp.eq.s32.totalorder %s28, 0
      %p90 = por %p88, %p89
      %p91 = scmp.ne.s32.totalorder %s83, %s85
      %p92 = scmp.eq.s32.totalorder %s33, 1
      %p93 = por %p91, %p92
      %p94 = scmp.ne.s32.totalorder %s85, %s86
      %p95 = scmp.eq.s32.totalorder %s33, 0
      %p96 = por %p94, %p95
      %p97 = scmp.ne.s32.totalorder %s85, %s86
      %p98 = scmp.eq.s32.totalorder %s34, 1
      %p99 = por %p97, %p98
      %p101 = scmp.ne.s32.totalorder %s86, %s100
      %p102 = scmp.eq.s32.totalorder %s34, 0
      %p103 = por %p101, %p102
      %s105 = sadd.s32 %s104, 1
      %p108 = scmp.eq.s32.totalorder %s28, 1
      %p109 = scmp.ne.s32.totalorder %s104, %s106
      %p110 = scmp.eq.s32.totalorder %s28, 0
      %p111 = por %p109, %p110
      %p112 = scmp.ne.s32.totalorder %s104, %s106
      %p113 = scmp.eq.s32.totalorder %s33, 1
      %p114 = por %p112, %p113
      %p115 = scmp.ne.s32.totalorder %s106, %s107
      %p116 = scmp.eq.s32.totalorder %s33, 0
      %p117 = por %p115, %p116
      %p118 = scmp.ne.s32.totalorder %s106, %s107
      %p119 = scmp.eq.s32.totalorder %s34, 1
      %p120 = por %p118, %p119
      %p122 = scmp.ne.s32.totalorder %s107, %s121
      %p123 = scmp.eq.s32.totalorder %s34, 0
      %p124 = por %p122, %p123
      %s126 = sadd.s32 %s125, 1
      %p129 = scmp.eq.s32.totalorder %s28, 1
      %p130 = scmp.ne.s32.totalorder %s125, %s127
      %p131 = scmp.eq.s32.totalorder %s28, 0
      %p132 = por %p130, %p131
      %p133 = scmp.ne.s32.totalorder %s125, %s127
      %p134 = scmp.eq.s32.totalorder %s33, 1
      %p135 = por %p133, %p134
      %p136 = scmp.ne.s32.totalorder %s127, %s128
      %p137 = scmp.eq.s32.totalorder %s33, 0
      %p138 = por %p136, %p137
      %p139 = scmp.ne.s32.totalorder %s127, %s128
      %p140 = scmp.eq.s32.totalorder %s34, 1
      %p141 = por %p139, %p140
      %p143 = scmp.ne.s32.totalorder %s128, %s142
      %p144 = scmp.eq.s32.totalorder %s34, 0
      %p145 = por %p143, %p144
      %s147 = sadd.s32 %s146, 1
      %p150 = scmp.eq.s32.totalorder %s28, 1
      %p151 = scmp.ne.s32.totalorder %s146, %s148
      %p152 = scmp.eq.s32.totalorder %s28, 0
      %p153 = por %p151, %p152
      %p154 = scmp.ne.s32.totalorder %s146, %s148
      %p155 = scmp.eq.s32.totalorder %s33, 1
      %p156 = por %p154, %p155
      %p157 = scmp.ne.s32.totalorder %s148, %s149
      %p158 = scmp.eq.s32.totalorder %s33, 0
      %p159 = por %p157, %p158
      %p160 = scmp.ne.s32.totalorder %s148, %s149
      %p161 = scmp.eq.s32.totalorder %s34, 1
      %p162 = por %p160, %p161
      %p164 = scmp.ne.s32.totalorder %s149, %s163
      %p165 = scmp.eq.s32.totalorder %s34, 0
      %p166 = por %p164, %p165
      %s168 = sadd.s32 %s167, 1
      %p171 = scmp.eq.s32.totalorder %s28, 1
      %p172 = scmp.ne.s32.totalorder %s167, %s169
      %p173 = scmp.eq.s32.totalorder %s28, 0
      %p174 = por %p172, %p173
      %p175 = scmp.ne.s32.totalorder %s167, %s169
      %p176 = scmp.eq.s32.totalorder %s33, 1
      %p177 = por %p175, %p176
      %p178 = scmp.ne.s32.totalorder %s169, %s170
      %p179 = scmp.eq.s32.totalorder %s33, 0
      %p180 = por %p178, %p179
      %p181 = scmp.ne.s32.totalorder %s169, %s170
      %p182 = scmp.eq.s32.totalorder %s34, 1
      %p183 = por %p181, %p182
      %p185 = scmp.ne.s32.totalorder %s170, %s184
      %p186 = scmp.eq.s32.totalorder %s34, 0
      %p187 = por %p185, %p186
      %s189 = sadd.s32 %s188, 1
      %p192 = scmp.eq.s32.totalorder %s28, 1
      %p193 = scmp.ne.s32.totalorder %s188, %s190
      %p194 = scmp.eq.s32.totalorder %s28, 0
      %p195 = por %p193, %p194
      %p196 = scmp.ne.s32.totalorder %s188, %s190
      %p197 = scmp.eq.s32.totalorder %s33, 1
      %p198 = por %p196, %p197
      %p199 = scmp.ne.s32.totalorder %s190, %s191
      %p200 = scmp.eq.s32.totalorder %s33, 0
      %p201 = por %p199, %p200
      %p202 = scmp.ne.s32.totalorder %s190, %s191
      %p203 = scmp.eq.s32.totalorder %s34, 1
      %p204 = por %p202, %p203
      %p206 = scmp.ne.s32.totalorder %s191, %s205
      %p207 = scmp.eq.s32.totalorder %s34, 0
      %p208 = por %p206, %p207
      %s210 = sadd.s32 %s209, 1
      %p213 = scmp.eq.s32.totalorder %s28, 1
      %p214 = scmp.ne.s32.totalorder %s209, %s211
      %p215 = scmp.eq.s32.totalorder %s28, 0
      %p216 = por %p214, %p215
      %p217 = scmp.ne.s32.totalorder %s209, %s211
      %p218 = scmp.eq.s32.totalorder %s33, 1
      %p219 = por %p217, %p218
      %p220 = scmp.ne.s32.totalorder %s211, %s212
      %p221 = scmp.eq.s32.totalorder %s33, 0
      %p222 = por %p220, %p221
      %p223 = scmp.ne.s32.totalorder %s211, %s212
      %p224 = scmp.eq.s32.totalorder %s34, 1
      %p225 = por %p223, %p224
      %p227 = scmp.ne.s32.totalorder %s212, %s226
      %p228 = scmp.eq.s32.totalorder %s34, 0
      %p229 = por %p227, %p228
      %s231 = sadd.s32 %s230, 1
      %p234 = scmp.eq.s32.totalorder %s28, 1
      %p235 = scmp.ne.s32.totalorder %s230, %s232
      %p236 = scmp.eq.s32.totalorder %s28, 0
      %p237 = por %p235, %p236
      %p238 = scmp.ne.s32.totalorder %s230, %s232
      %p239 = scmp.eq.s32.totalorder %s33, 1
      %p240 = por %p238, %p239
      %p241 = scmp.ne.s32.totalorder %s232, %s233
      %p242 = scmp.eq.s32.totalorder %s33, 0
      %p243 = por %p241, %p242
      %p244 = scmp.ne.s32.totalorder %s232, %s233
      %p245 = scmp.eq.s32.totalorder %s34, 1
      %p246 = por %p244, %p245
      %p248 = scmp.ne.s32.totalorder %s233, %s247
      %p249 = scmp.eq.s32.totalorder %s34, 0
      %p250 = por %p248, %p249
      %s252 = sadd.s32 %s251, 1
      %p255 = scmp.eq.s32.totalorder %s28, 1
      %p256 = scmp.ne.s32.totalorder %s251, %s253
      %p257 = scmp.eq.s32.totalorder %s28, 0
      %p258 = por %p256, %p257
      %p259 = scmp.ne.s32.totalorder %s251, %s253
      %p260 = scmp.eq.s32.totalorder %s33, 1
      %p261 = por %p259, %p260
      %p262 = scmp.ne.s32.totalorder %s253, %s254
      %p263 = scmp.eq.s32.totalorder %s33, 0
      %p264 = por %p262, %p263
      %p265 = scmp.ne.s32.totalorder %s253, %s254
      %p266 = scmp.eq.s32.totalorder %s34, 1
      %p267 = por %p265, %p266
      %p269 = scmp.ne.s32.totalorder %s254, %s268
      %p270 = scmp.eq.s32.totalorder %s34, 0
      %p271 = por %p269, %p270
      %s273 = sadd.s32 %s272, 1
      %p276 = scmp.eq.s32.totalorder %s28, 1
      %p277 = scmp.ne.s32.totalorder %s272, %s274
      %p278 = scmp.eq.s32.totalorder %s28, 0
      %p279 = por %p277, %p278
      %p280 = scmp.ne.s32.totalorder %s272, %s274
      %p281 = scmp.eq.s32.totalorder %s33, 1
      %p282 = por %p280, %p281
      %p283 = scmp.ne.s32.totalorder %s274, %s275
      %p284 = scmp.eq.s32.totalorder %s33, 0
      %p285 = por %p283, %p284
      %p286 = scmp.ne.s32.totalorder %s274, %s275
      %p287 = scmp.eq.s32.totalorder %s34, 1
      %p288 = por %p286, %p287
      %p290 = scmp.ne.s32.totalorder %s275, %s289
      %p291 = scmp.eq.s32.totalorder %s34, 0
      %p292 = por %p290, %p291
      %s294 = sadd.s32 %s293, 1
      %p297 = scmp.eq.s32.totalorder %s28, 1
      %p298 = scmp.ne.s32.totalorder %s293, %s295
      %p299 = scmp.eq.s32.totalorder %s28, 0
      %p300 = por %p298, %p299
      %p301 = scmp.ne.s32.totalorder %s293, %s295
      %p302 = scmp.eq.s32.totalorder %s33, 1
      %p303 = por %p301, %p302
      %p304 = scmp.ne.s32.totalorder %s295, %s296
      %p305 = scmp.eq.s32.totalorder %s33, 0
      %p306 = por %p304, %p305
      %p307 = scmp.ne.s32.totalorder %s295, %s296
      %p308 = scmp.eq.s32.totalorder %s34, 1
      %p309 = por %p307, %p308
      %p311 = scmp.ne.s32.totalorder %s296, %s310
      %p312 = scmp.eq.s32.totalorder %s34, 0
      %p313 = por %p311, %p312
      %s314 = ssub.s32 %s28, %s35
      %p315 = scmp.eq.s32.totalorder %s314, 0
      %s317 = sadd.s32 %s316, 1
      %s318 = scalar_select %p315, %s316, %s317
      %p321 = pneg %p315
      %p322 = scmp.eq.s32.totalorder %s28, 1
      %p323 = por %p321, %p322
      %p324 = scmp.ne.s32.totalorder %s316, %s319
      %p325 = scmp.eq.s32.totalorder %s28, 0
      %p326 = por %p324, %p325
      %p327 = scmp.ne.s32.totalorder %s316, %s319
      %p328 = scmp.eq.s32.totalorder %s33, 1
      %p329 = por %p327, %p328
      %p330 = scmp.ne.s32.totalorder %s319, %s320
      %p331 = scmp.eq.s32.totalorder %s33, 0
      %p332 = por %p330, %p331
      %p333 = scmp.ne.s32.totalorder %s319, %s320
      %p334 = scmp.eq.s32.totalorder %s34, 1
      %p335 = por %p333, %p334
      %p337 = scmp.ne.s32.totalorder %s320, %s336
      %p338 = scmp.eq.s32.totalorder %s34, 0
      %p339 = por %p337, %p338
      %p340 = scmp.le.s32.totalorder 1, %s28
      %p341 = scmp.lt.s32.totalorder %s28, 3
      %p342 = pnand %p340, %p341
      %p343 = pneg %p342
      // Predicated region
      $region9: #{tpu_custom_call.1} parent=5 // pred_check
        _
      $region10: #{tpu_custom_call.1} parent=5 // pred_check_branch
        %345 = sbr.rel (%p342) target = $region12
      $region11: #{tpu_custom_call.1} parent=5 // pred_region
        %s346 = ssub.s32 %s28, 1
        // Predicated region
        $region13: #{tpu_custom_call.1} parent=11 // pred_check
          %p347 = pneg %p75
        $region14: #{tpu_custom_call.1} parent=11 // pred_check_branch
          %349 = sbr.rel (%p347) target = $region16
        $region15: #{tpu_custom_call.1} parent=11 // pred_region
          %s351 = ssub.s32 16, 16
          %352 = vsyncadd [#allocation7], %s351
          %s354 = sshll.u32 [#allocation6], 4
          %s355 = int_to_ptr.vmem [resolvable:$true] %s354
          %357 = dma.hbm_to_vmem [thread:$0]  %s1, 16, %s355, [#allocation7]
        $region16: #{tpu_custom_call.1} parent=11 // pred_fallthru
          _
        // Predicated region
        $region17: #{tpu_custom_call.1} parent=11 // pred_check
          %p358 = pneg %p96
        $region18: #{tpu_custom_call.1} parent=11 // pred_check_branch
          %360 = sbr.rel (%p358) target = $region20
        $region19: #{tpu_custom_call.1} parent=11 // pred_region
          %s362 = ssub.s32 16, 16
          %363 = vsyncadd [#allocation7], %s362
          %s365 = sshll.u32 [#allocation8], 4
          %s366 = int_to_ptr.vmem [resolvable:$true] %s365
          %368 = dma.hbm_to_vmem [thread:$0]  %s2, 16, %s366, [#allocation7]
        $region20: #{tpu_custom_call.1} parent=11 // pred_fallthru
          _
        // Predicated region
        $region21: #{tpu_custom_call.1} parent=11 // pred_check
          %p369 = pneg %p117
        $region22: #{tpu_custom_call.1} parent=11 // pred_check_branch
          %371 = sbr.rel (%p369) target = $region24
        $region23: #{tpu_custom_call.1} parent=11 // pred_region
          %s373 = ssub.s32 3072, 3072
          %374 = vsyncadd [#allocation10], %s373
          %s375 = sshll.u32 [#allocation9], 4
          %s376 = int_to_ptr.vmem [resolvable:$true] %s375
          %381 = dma.hbm_to_vmem [thread:$0]  %s3, 3072, %s376, [#allocation10], 192, 192, 12
        $region24: #{tpu_custom_call.1} parent=11 // pred_fallthru
          _
        // Predicated region
        $region25: #{tpu_custom_call.1} parent=11 // pred_check
          %p382 = pneg %p138
        $region26: #{tpu_custom_call.1} parent=11 // pred_check_branch
          %384 = sbr.rel (%p382) target = $region28
        $region27: #{tpu_custom_call.1} parent=11 // pred_region
          _
        $region28: #{tpu_custom_call.1} parent=11 // pred_fallthru
          _
        // Predicated region
        $region29: #{tpu_custom_call.1} parent=11 // pred_check
          %p385 = pneg %p159
        $region30: #{tpu_custom_call.1} parent=11 // pred_check_branch
          %387 = sbr.rel (%p385) target = $region32
        $region31: #{tpu_custom_call.1} parent=11 // pred_region
          %s389 = ssub.s32 1024, 1024
          %390 = vsyncadd [#allocation10], %s389
          %s391 = sshll.u32 [#allocation11], 4
          %s392 = int_to_ptr.vmem [resolvable:$true] %s391
          %397 = dma.hbm_to_vmem [thread:$0]  %s5, 1024, %s392, [#allocation10], 64, 64, 4
        $region32: #{tpu_custom_call.1} parent=11 // pred_fallthru
          _
        // Predicated region
        $region33: #{tpu_custom_call.1} parent=11 // pred_check
          %p398 = pneg %p180
        $region34: #{tpu_custom_call.1} parent=11 // pred_check_branch
          %400 = sbr.rel (%p398) target = $region36
        $region35: #{tpu_custom_call.1} parent=11 // pred_region
          _
        $region36: #{tpu_custom_call.1} parent=11 // pred_fallthru
          _
        // Predicated region
        $region37: #{tpu_custom_call.1} parent=11 // pred_check
          %p401 = pneg %p201
        $region38: #{tpu_custom_call.1} parent=11 // pred_check_branch
          %403 = sbr.rel (%p401) target = $region40
        $region39: #{tpu_custom_call.1} parent=11 // pred_region
          _
        $region40: #{tpu_custom_call.1} parent=11 // pred_fallthru
          _
        // Predicated region
        $region41: #{tpu_custom_call.1} parent=11 // pred_check
          %p404 = pneg %p222
        $region42: #{tpu_custom_call.1} parent=11 // pred_check_branch
          %406 = sbr.rel (%p404) target = $region44
        $region43: #{tpu_custom_call.1} parent=11 // pred_region
          _
        $region44: #{tpu_custom_call.1} parent=11 // pred_fallthru
          _
        // Predicated region
        $region45: #{tpu_custom_call.1} parent=11 // pred_check
          %p407 = pneg %p243
        $region46: #{tpu_custom_call.1} parent=11 // pred_check_branch
          %409 = sbr.rel (%p407) target = $region48
        $region47: #{tpu_custom_call.1} parent=11 // pred_region
          %s411 = ssub.s32 2048, 2048
          %412 = vsyncadd [#allocation13], %s411
          %s413 = sshll.u32 [#allocation12], 4
          %s414 = int_to_ptr.vmem [resolvable:$true] %s413
          %419 = dma.hbm_to_vmem [thread:$0]  %s9, 2048, %s414, [#allocation13], 128, 128, 8
        $region48: #{tpu_custom_call.1} parent=11 // pred_fallthru
          _
        // Predicated region
        $region49: #{tpu_custom_call.1} parent=11 // pred_check
          %p420 = pneg %p264
        $region50: #{tpu_custom_call.1} parent=11 // pred_check_branch
          %422 = sbr.rel (%p420) target = $region52
        $region51: #{tpu_custom_call.1} parent=11 // pred_region
          _
        $region52: #{tpu_custom_call.1} parent=11 // pred_fallthru
          _
        // Predicated region
        $region53: #{tpu_custom_call.1} parent=11 // pred_check
          %p423 = pneg %p285
        $region54: #{tpu_custom_call.1} parent=11 // pred_check_branch
          %425 = sbr.rel (%p423) target = $region56
        $region55: #{tpu_custom_call.1} parent=11 // pred_region
          %s427 = ssub.s32 2048, 2048
          %428 = vsyncadd [#allocation13], %s427
          %s429 = sshll.u32 [#allocation14], 4
          %s430 = int_to_ptr.vmem [resolvable:$true] %s429
          %435 = dma.hbm_to_vmem [thread:$0]  %s11, 2048, %s430, [#allocation13], 64, 64, 4
        $region56: #{tpu_custom_call.1} parent=11 // pred_fallthru
          _
        // Predicated region
        $region57: #{tpu_custom_call.1} parent=11 // pred_check
          %p436 = pneg %p306
        $region58: #{tpu_custom_call.1} parent=11 // pred_check_branch
          %438 = sbr.rel (%p436) target = $region60
        $region59: #{tpu_custom_call.1} parent=11 // pred_region
          _
        $region60: #{tpu_custom_call.1} parent=11 // pred_fallthru
          _
      $region12: #{tpu_custom_call.1} parent=5 // pred_fallthru
        _
      %p439 = scmp.lt.s32.totalorder %s28, 2
      // Predicated region
      $region61: #{tpu_custom_call.1} parent=5 // pred_check
        %p440 = pneg %p439
      $region62: #{tpu_custom_call.1} parent=5 // pred_check_branch
        %442 = sbr.rel (%p440) target = $region64
      $region63: #{tpu_custom_call.1} parent=5 // pred_region
        // Predicated region
        $region65: #{tpu_custom_call.1} parent=63 // pred_check
          %p443 = pneg %p48
        $region66: #{tpu_custom_call.1} parent=63 // pred_check_branch
          %445 = sbr.rel (%p443) target = $region68
        $region67: #{tpu_custom_call.1} parent=63 // pred_region
          %s446 = sand.u32 %s38, 1
          %s447 = scalar_lea.sflag [#allocation4], %s446
          %s448 = sand.u32 %s38, 1
          %s449 = smul.addr %s448, 128
          %s450 = scalar_lea.vmem [#allocation3], %s449
          %s452 = ssub.s32 2048, 2048
          %453 = vsyncadd %s447, %s452
          %s454 = smul.addr %s28, 16
          %s455 = smul.addr %s454, 128
          %s456 = scalar_lea.hbm %s0, %s455
          %s457 = sshll.u32 %s450, 4
          %s458 = int_to_ptr.vmem [resolvable:$true] %s457
          %463 = dma.hbm_to_vmem [thread:$0]  %s456, 2048, %s458, %s447, 128, 128, 8
        $region68: #{tpu_custom_call.1} parent=63 // pred_fallthru
          _
      $region64: #{tpu_custom_call.1} parent=5 // pred_fallthru
        _
      %p464 = scmp.le.s32.totalorder 1, %s28
      %p465 = scmp.lt.s32.totalorder %s28, 3
      %p466 = pnand %p464, %p465
      %p467 = pneg %p466
      // Predicated region
      $region69: #{tpu_custom_call.1} parent=5 // pred_check
        _
      $region70: #{tpu_custom_call.1} parent=5 // pred_check_branch
        %469 = sbr.rel (%p466) target = $region72
      $region71: #{tpu_custom_call.1} parent=5 // pred_region
        %s470 = ssub.s32 %s28, 1
        %s471 = sand.u32 %s41, 1
        %s472 = scalar_lea.sflag [#allocation4], %s471
        %s473 = sand.u32 %s41, 1
        %s474 = smul.addr %s473, 128
        %s475 = scalar_lea.vmem [#allocation3], %s474
        // Predicated region
        $region73: #{tpu_custom_call.1} parent=71 // pred_check
          %p476 = pneg %p54
        $region74: #{tpu_custom_call.1} parent=71 // pred_check_branch
          %478 = sbr.rel (%p476) target = $region76
        $region75: #{tpu_custom_call.1} parent=71 // pred_region
          %479 = dma.done %s472, 2048
        $region76: #{tpu_custom_call.1} parent=71 // pred_fallthru
          _
        // Predicated region
        $region77: #{tpu_custom_call.1} parent=71 // pred_check
          %p480 = pneg %p75
        $region78: #{tpu_custom_call.1} parent=71 // pred_check_branch
          %482 = sbr.rel (%p480) target = $region80
        $region79: #{tpu_custom_call.1} parent=71 // pred_region
          %483 = dma.done [#allocation7], 16
        $region80: #{tpu_custom_call.1} parent=71 // pred_fallthru
          _
        // Predicated region
        $region81: #{tpu_custom_call.1} parent=71 // pred_check
          %p484 = pneg %p96
        $region82: #{tpu_custom_call.1} parent=71 // pred_check_branch
          %486 = sbr.rel (%p484) target = $region84
        $region83: #{tpu_custom_call.1} parent=71 // pred_region
          %487 = dma.done [#allocation7], 16
        $region84: #{tpu_custom_call.1} parent=71 // pred_fallthru
          _
        // Predicated region
        $region85: #{tpu_custom_call.1} parent=71 // pred_check
          %p488 = pneg %p117
        $region86: #{tpu_custom_call.1} parent=71 // pred_check_branch
          %490 = sbr.rel (%p488) target = $region88
        $region87: #{tpu_custom_call.1} parent=71 // pred_region
          %491 = dma.done [#allocation10], 3072
        $region88: #{tpu_custom_call.1} parent=71 // pred_fallthru
          _
        // Predicated region
        $region89: #{tpu_custom_call.1} parent=71 // pred_check
          %p492 = pneg %p159
        $region90: #{tpu_custom_call.1} parent=71 // pred_check_branch
          %494 = sbr.rel (%p492) target = $region92
        $region91: #{tpu_custom_call.1} parent=71 // pred_region
          %495 = dma.done [#allocation10], 1024
        $region92: #{tpu_custom_call.1} parent=71 // pred_fallthru
          _
        // Predicated region
        $region93: #{tpu_custom_call.1} parent=71 // pred_check
          %p496 = pneg %p243
        $region94: #{tpu_custom_call.1} parent=71 // pred_check_branch
          %498 = sbr.rel (%p496) target = $region96
        $region95: #{tpu_custom_call.1} parent=71 // pred_region
          %499 = dma.done [#allocation13], 2048
        $region96: #{tpu_custom_call.1} parent=71 // pred_fallthru
          _
        // Predicated region
        $region97: #{tpu_custom_call.1} parent=71 // pred_check
          %p500 = pneg %p285
        $region98: #{tpu_custom_call.1} parent=71 // pred_check_branch
          %502 = sbr.rel (%p500) target = $region100
        $region99: #{tpu_custom_call.1} parent=71 // pred_region
          %503 = dma.done [#allocation13], 2048
        $region100: #{tpu_custom_call.1} parent=71 // pred_fallthru
          _
        %s504 = sand.u32 %s41, 1
        %s505 = scalar_lea.sflag [#allocation4], %s504
        %s506 = sand.u32 %s41, 1
        %s507 = smul.addr %s506, 128
        %s508 = scalar_lea.vmem [#allocation3], %s507
        %p509 = pneg %p54
        %p510 = pneg %p51
        %p511 = pneg %p75
        %p512 = pneg %p72
        %p513 = pneg %p96
        %p514 = pneg %p93
        %p515 = pneg %p117
        %p516 = pneg %p114
        %p517 = pneg %p138
        %p518 = pneg %p135
        %p519 = pneg %p159
        %p520 = pneg %p156
        %p521 = pneg %p180
        %p522 = pneg %p177
        %p523 = pneg %p201
        %p524 = pneg %p198
        %p525 = pneg %p222
        %p526 = pneg %p219
        %p527 = pneg %p243
        %p528 = pneg %p240
        %p529 = pneg %p264
        %p530 = pneg %p261
        %p531 = pneg %p285
        %p532 = pneg %p282
        %p533 = pneg %p306
        %p534 = pneg %p303
        %p535 = pneg %p332
        %p536 = pneg %p329
        %s537 = sand.u32 %s319, 1
        %s538 = scalar_lea.sflag [#allocation5], %s537
        %s539 = sand.u32 %s319, 1
        %s540 = smul.addr %s539, 128
        %s541 = scalar_lea.vmem [#allocation15], %s540
        %v543 = vld [vmem:[%s475] sm:$0xff]
        %v544 = vld [vmem:[%s475 + $0x8] sm:$0xff]
        %v545 = vld [vmem:[%s475 + $0x10] sm:$0xff]
        %v546 = vld [vmem:[%s475 + $0x18] sm:$0xff]
        %v547 = vld [vmem:[%s475 + $0x20] sm:$0xff]
        %v548 = vld [vmem:[%s475 + $0x28] sm:$0xff]
        %v549 = vld [vmem:[%s475 + $0x30] sm:$0xff]
        %v550 = vld [vmem:[%s475 + $0x38] sm:$0xff]
        %v551 = vld [vmem:[%s475 + $0x40] sm:$0xff]
        %v552 = vld [vmem:[%s475 + $0x48] sm:$0xff]
        %v553 = vld [vmem:[%s475 + $0x50] sm:$0xff]
        %v554 = vld [vmem:[%s475 + $0x58] sm:$0xff]
        %v555 = vld [vmem:[%s475 + $0x60] sm:$0xff]
        %v556 = vld [vmem:[%s475 + $0x68] sm:$0xff]
        %v557 = vld [vmem:[%s475 + $0x70] sm:$0xff]
        %v558 = vld [vmem:[%s475 + $0x78] sm:$0xff]
        %v559 = vld [vmem:[#allocation6] sm:$0x1]
        %v560 = vld [vmem:[#allocation8] sm:$0x1]
        %561 = vadd.xlane.f32.xlu0 %v543
        %v562 = vpop.xlane.xlu0 %561
        %563 = vadd.xlane.f32.xlu0 %v544
        %v564 = vpop.xlane.xlu0 %563
        %565 = vadd.xlane.f32.xlu0 %v545
        %v566 = vpop.xlane.xlu0 %565
        %567 = vadd.xlane.f32.xlu0 %v546
        %v568 = vpop.xlane.xlu0 %567
        %569 = vadd.xlane.f32.xlu0 %v547
        %v570 = vpop.xlane.xlu0 %569
        %571 = vadd.xlane.f32.xlu0 %v548
        %v572 = vpop.xlane.xlu0 %571
        %573 = vadd.xlane.f32.xlu0 %v549
        %v574 = vpop.xlane.xlu0 %573
        %575 = vadd.xlane.f32.xlu0 %v550
        %v576 = vpop.xlane.xlu0 %575
        %577 = vadd.xlane.f32.xlu0 %v551
        %v578 = vpop.xlane.xlu0 %577
        %579 = vadd.xlane.f32.xlu0 %v552
        %v580 = vpop.xlane.xlu0 %579
        %581 = vadd.xlane.f32.xlu0 %v553
        %v582 = vpop.xlane.xlu0 %581
        %583 = vadd.xlane.f32.xlu0 %v554
        %v584 = vpop.xlane.xlu0 %583
        %585 = vadd.xlane.f32.xlu0 %v555
        %v586 = vpop.xlane.xlu0 %585
        %587 = vadd.xlane.f32.xlu0 %v556
        %v588 = vpop.xlane.xlu0 %587
        %589 = vadd.xlane.f32.xlu0 %v557
        %v590 = vpop.xlane.xlu0 %589
        %591 = vadd.xlane.f32.xlu0 %v558
        %v592 = vpop.xlane.xlu0 %591
        %v593 = vrcp.pop 128.0
        %v594 = vmul.f32 %v562, %v593
        %v595 = vmul.f32 %v564, %v593
        %v596 = vmul.f32 %v566, %v593
        %v597 = vmul.f32 %v568, %v593
        %v598 = vmul.f32 %v570, %v593
        %v599 = vmul.f32 %v572, %v593
        %v600 = vmul.f32 %v574, %v593
        %v601 = vmul.f32 %v576, %v593
        %v602 = vmul.f32 %v578, %v593
        %v603 = vmul.f32 %v580, %v593
        %v604 = vmul.f32 %v582, %v593
        %v605 = vmul.f32 %v584, %v593
        %v606 = vmul.f32 %v586, %v593
        %v607 = vmul.f32 %v588, %v593
        %v608 = vmul.f32 %v590, %v593
        %v609 = vmul.f32 %v592, %v593
        %v610 = vsub.f32 %v543, %v594
        %v611 = vsub.f32 %v544, %v595
        %v612 = vsub.f32 %v545, %v596
        %v613 = vsub.f32 %v546, %v597
        %v614 = vsub.f32 %v547, %v598
        %v615 = vsub.f32 %v548, %v599
        %v616 = vsub.f32 %v549, %v600
        %v617 = vsub.f32 %v550, %v601
        %v618 = vsub.f32 %v551, %v602
        %v619 = vsub.f32 %v552, %v603
        %v620 = vsub.f32 %v553, %v604
        %v621 = vsub.f32 %v554, %v605
        %v622 = vsub.f32 %v555, %v606
        %v623 = vsub.f32 %v556, %v607
        %v624 = vsub.f32 %v557, %v608
        %v625 = vsub.f32 %v558, %v609
        %v626 = vmul.f32 %v610, %v610
        %v627 = vmul.f32 %v611, %v611
        %v628 = vmul.f32 %v612, %v612
        %v629 = vmul.f32 %v613, %v613
        %v630 = vmul.f32 %v614, %v614
        %v631 = vmul.f32 %v615, %v615
        %v632 = vmul.f32 %v616, %v616
        %v633 = vmul.f32 %v617, %v617
        %v634 = vmul.f32 %v618, %v618
        %v635 = vmul.f32 %v619, %v619
        %v636 = vmul.f32 %v620, %v620
        %v637 = vmul.f32 %v621, %v621
        %v638 = vmul.f32 %v622, %v622
        %v639 = vmul.f32 %v623, %v623
        %v640 = vmul.f32 %v624, %v624
        %v641 = vmul.f32 %v625, %v625
        %642 = vadd.xlane.f32.xlu0 %v626
        %v643 = vpop.xlane.xlu0 %642
        %644 = vadd.xlane.f32.xlu0 %v627
        %v645 = vpop.xlane.xlu0 %644
        %646 = vadd.xlane.f32.xlu0 %v628
        %v647 = vpop.xlane.xlu0 %646
        %648 = vadd.xlane.f32.xlu0 %v629
        %v649 = vpop.xlane.xlu0 %648
        %650 = vadd.xlane.f32.xlu0 %v630
        %v651 = vpop.xlane.xlu0 %650
        %652 = vadd.xlane.f32.xlu0 %v631
        %v653 = vpop.xlane.xlu0 %652
        %654 = vadd.xlane.f32.xlu0 %v632
        %v655 = vpop.xlane.xlu0 %654
        %656 = vadd.xlane.f32.xlu0 %v633
        %v657 = vpop.xlane.xlu0 %656
        %658 = vadd.xlane.f32.xlu0 %v634
        %v659 = vpop.xlane.xlu0 %658
        %660 = vadd.xlane.f32.xlu0 %v635
        %v661 = vpop.xlane.xlu0 %660
        %662 = vadd.xlane.f32.xlu0 %v636
        %v663 = vpop.xlane.xlu0 %662
        %664 = vadd.xlane.f32.xlu0 %v637
        %v665 = vpop.xlane.xlu0 %664
        %666 = vadd.xlane.f32.xlu0 %v638
        %v667 = vpop.xlane.xlu0 %666
        %668 = vadd.xlane.f32.xlu0 %v639
        %v669 = vpop.xlane.xlu0 %668
        %670 = vadd.xlane.f32.xlu0 %v640
        %v671 = vpop.xlane.xlu0 %670
        %672 = vadd.xlane.f32.xlu0 %v641
        %v673 = vpop.xlane.xlu0 %672
        %v674 = vmul.f32 %v643, %v593
        %v675 = vmul.f32 %v645, %v593
        %v676 = vmul.f32 %v647, %v593
        %v677 = vmul.f32 %v649, %v593
        %v678 = vmul.f32 %v651, %v593
        %v679 = vmul.f32 %v653, %v593
        %v680 = vmul.f32 %v655, %v593
        %v681 = vmul.f32 %v657, %v593
        %v682 = vmul.f32 %v659, %v593
        %v683 = vmul.f32 %v661, %v593
        %v684 = vmul.f32 %v663, %v593
        %v685 = vmul.f32 %v665, %v593
        %v686 = vmul.f32 %v667, %v593
        %v687 = vmul.f32 %v669, %v593
        %v688 = vmul.f32 %v671, %v593
        %v689 = vmul.f32 %v673, %v593
        %v690 = vadd.f32 %v674, 1e-05
        %v691 = vadd.f32 %v675, 1e-05
        %v692 = vadd.f32 %v676, 1e-05
        %v693 = vadd.f32 %v677, 1e-05
        %v694 = vadd.f32 %v678, 1e-05
        %v695 = vadd.f32 %v679, 1e-05
        %v696 = vadd.f32 %v680, 1e-05
        %v697 = vadd.f32 %v681, 1e-05
        %v698 = vadd.f32 %v682, 1e-05
        %v699 = vadd.f32 %v683, 1e-05
        %v700 = vadd.f32 %v684, 1e-05
        %v701 = vadd.f32 %v685, 1e-05
        %v702 = vadd.f32 %v686, 1e-05
        %v703 = vadd.f32 %v687, 1e-05
        %v704 = vadd.f32 %v688, 1e-05
        %v705 = vadd.f32 %v689, 1e-05
        %v706 = vrsqrt.pop %v690
        %v707 = vrsqrt.pop %v691
        %v708 = vrsqrt.pop %v692
        %v709 = vrsqrt.pop %v693
        %v710 = vrsqrt.pop %v694
        %v711 = vrsqrt.pop %v695
        %v712 = vrsqrt.pop %v696
        %v713 = vrsqrt.pop %v697
        %v714 = vrsqrt.pop %v698
        %v715 = vrsqrt.pop %v699
        %v716 = vrsqrt.pop %v700
        %v717 = vrsqrt.pop %v701
        %v718 = vrsqrt.pop %v702
        %v719 = vrsqrt.pop %v703
        %v720 = vrsqrt.pop %v704
        %v721 = vrsqrt.pop %v705
        %v722 = vmul.f32 %v610, %v706
        %v723 = vmul.f32 %v611, %v707
        %v724 = vmul.f32 %v612, %v708
        %v725 = vmul.f32 %v613, %v709
        %v726 = vmul.f32 %v614, %v710
        %v727 = vmul.f32 %v615, %v711
        %v728 = vmul.f32 %v616, %v712
        %v729 = vmul.f32 %v617, %v713
        %v730 = vmul.f32 %v618, %v714
        %v731 = vmul.f32 %v619, %v715
        %v732 = vmul.f32 %v620, %v716
        %v733 = vmul.f32 %v621, %v717
        %v734 = vmul.f32 %v622, %v718
        %v735 = vmul.f32 %v623, %v719
        %v736 = vmul.f32 %v624, %v720
        %v737 = vmul.f32 %v625, %v721
        %v739 = vlaneseq
        %v740 = vshrl.u32 %v739, 7
        %v741 = vsub.s32 0, %v740
        %v742 = vrot.slane %v559, %v741
        %v744 = vmul.f32 %v722, %v742
        %v745 = vmul.f32 %v723, %v742
        %v746 = vmul.f32 %v724, %v742
        %v747 = vmul.f32 %v725, %v742
        %v748 = vmul.f32 %v726, %v742
        %v749 = vmul.f32 %v727, %v742
        %v750 = vmul.f32 %v728, %v742
        %v751 = vmul.f32 %v729, %v742
        %v752 = vmul.f32 %v730, %v742
        %v753 = vmul.f32 %v731, %v742
        %v754 = vmul.f32 %v732, %v742
        %v755 = vmul.f32 %v733, %v742
        %v756 = vmul.f32 %v734, %v742
        %v757 = vmul.f32 %v735, %v742
        %v758 = vmul.f32 %v736, %v742
        %v759 = vmul.f32 %v737, %v742
        %v761 = vlaneseq
        %v762 = vshrl.u32 %v761, 7
        %v763 = vsub.s32 0, %v762
        %v764 = vrot.slane %v560, %v763
        %v766 = vadd.f32 %v744, %v764
        %v767 = vadd.f32 %v745, %v764
        %v768 = vadd.f32 %v746, %v764
        %v769 = vadd.f32 %v747, %v764
        %v770 = vadd.f32 %v748, %v764
        %v771 = vadd.f32 %v749, %v764
        %v772 = vadd.f32 %v750, %v764
        %v773 = vadd.f32 %v751, %v764
        %v774 = vadd.f32 %v752, %v764
        %v775 = vadd.f32 %v753, %v764
        %v776 = vadd.f32 %v754, %v764
        %v777 = vadd.f32 %v755, %v764
        %v778 = vadd.f32 %v756, %v764
        %v779 = vadd.f32 %v757, %v764
        %v780 = vadd.f32 %v758, %v764
        %v781 = vadd.f32 %v759, %v764
        %v782 = vpack.c.bf16 %v767, %v766
        %v783 = vpack.c.bf16 %v769, %v768
        %v784 = vpack.c.bf16 %v771, %v770
        %v785 = vpack.c.bf16 %v773, %v772
        %v786 = vpack.c.bf16 %v775, %v774
        %v787 = vpack.c.bf16 %v777, %v776
        %v788 = vpack.c.bf16 %v779, %v778
        %v789 = vpack.c.bf16 %v781, %v780
        %v790 = vld [vmem:[#allocation9] sm:$0xff]
        %v791 = vld [vmem:[#allocation9 + $0x8] sm:$0xf]
        %v792 = vld [vmem:[#allocation9 + $0xc] sm:$0xff]
        %v793 = vld [vmem:[#allocation9 + $0x14] sm:$0xf]
        %v794 = vld [vmem:[#allocation9 + $0x18] sm:$0xff]
        %v795 = vld [vmem:[#allocation9 + $0x20] sm:$0xf]
        %v796 = vld [vmem:[#allocation9 + $0x24] sm:$0xff]
        %v797 = vld [vmem:[#allocation9 + $0x2c] sm:$0xf]
        %v798 = vld [vmem:[#allocation9 + $0x30] sm:$0xff]
        %v799 = vld [vmem:[#allocation9 + $0x38] sm:$0xf]
        %v800 = vld [vmem:[#allocation9 + $0x3c] sm:$0xff]
        %v801 = vld [vmem:[#allocation9 + $0x44] sm:$0xf]
        %v802 = vld [vmem:[#allocation9 + $0x48] sm:$0xff]
        %v803 = vld [vmem:[#allocation9 + $0x50] sm:$0xf]
        %v804 = vld [vmem:[#allocation9 + $0x54] sm:$0xff]
        %v805 = vld [vmem:[#allocation9 + $0x5c] sm:$0xf]
        %v806 = vld [vmem:[#allocation9 + $0x60] sm:$0xff]
        %v807 = vld [vmem:[#allocation9 + $0x68] sm:$0xf]
        %v808 = vld [vmem:[#allocation9 + $0x6c] sm:$0xff]
        %v809 = vld [vmem:[#allocation9 + $0x74] sm:$0xf]
        %v810 = vld [vmem:[#allocation9 + $0x78] sm:$0xff]
        %v811 = vld [vmem:[#allocation9 + $0x80] sm:$0xf]
        %v812 = vld [vmem:[#allocation9 + $0x84] sm:$0xff]
        %v813 = vld [vmem:[#allocation9 + $0x8c] sm:$0xf]
        %v814 = vld [vmem:[#allocation9 + $0x90] sm:$0xff]
        %v815 = vld [vmem:[#allocation9 + $0x98] sm:$0xf]
        %v816 = vld [vmem:[#allocation9 + $0x9c] sm:$0xff]
        %v817 = vld [vmem:[#allocation9 + $0xa4] sm:$0xf]
        %v818 = vld [vmem:[#allocation9 + $0xa8] sm:$0xff]
        %v819 = vld [vmem:[#allocation9 + $0xb0] sm:$0xf]
        %v820 = vld [vmem:[#allocation9 + $0xb4] sm:$0xff]
        %v821 = vld [vmem:[#allocation9 + $0xbc] sm:$0xf]
        %v822 = vld [vmem:[%s4] sm:$0x7]
        %v824 = vlaneseq
        %v825 = vshrl.u32 %v824, 7
        %v826 = vsub.s32 0, %v825
        %v827 = vrot.slane %v822, %v826
        %v828 = vlaneseq
        %v829 = vshrl.u32 %v828, 7
        %v830 = vsub.s32 1, %v829
        %v831 = vrot.slane %v822, %v830
        %v832 = vlaneseq
        %v833 = vshrl.u32 %v832, 7
        %v834 = vsub.s32 2, %v833
        %v835 = vrot.slane %v822, %v834
        %v871 = vunpack.c.l.b16 %v790
        %v872 = vunpack.c.h.b16 %v790
        %v873 = vunpack.c.l.b16 %v791
        %v874 = vunpack.c.l.b16 %v792
        %v875 = vunpack.c.h.b16 %v792
        %v876 = vunpack.c.l.b16 %v793
        %v877 = vunpack.c.l.b16 %v794
        %v878 = vunpack.c.h.b16 %v794
        %v879 = vunpack.c.l.b16 %v795
        %v880 = vunpack.c.l.b16 %v796
        %v881 = vunpack.c.h.b16 %v796
        %v882 = vunpack.c.l.b16 %v797
        %v883 = vunpack.c.l.b16 %v798
        %v884 = vunpack.c.h.b16 %v798
        %v885 = vunpack.c.l.b16 %v799
        %v886 = vunpack.c.l.b16 %v800
        %v887 = vunpack.c.h.b16 %v800
        %v888 = vunpack.c.l.b16 %v801
        %v889 = vunpack.c.l.b16 %v802
        %v890 = vunpack.c.h.b16 %v802
        %v891 = vunpack.c.l.b16 %v803
        %v892 = vunpack.c.l.b16 %v804
        %v893 = vunpack.c.h.b16 %v804
        %v894 = vunpack.c.l.b16 %v805
        %v895 = vunpack.c.l.b16 %v806
        %v896 = vunpack.c.h.b16 %v806
        %v897 = vunpack.c.l.b16 %v807
        %v898 = vunpack.c.l.b16 %v808
        %v899 = vunpack.c.h.b16 %v808
        %v900 = vunpack.c.l.b16 %v809
        %v901 = vunpack.c.l.b16 %v810
        %v902 = vunpack.c.h.b16 %v810
        %v903 = vunpack.c.l.b16 %v811
        %v904 = vunpack.c.l.b16 %v812
        %v905 = vunpack.c.h.b16 %v812
        %v906 = vunpack.c.l.b16 %v813
        %v907 = vunpack.c.l.b16 %v814
        %v908 = vunpack.c.h.b16 %v814
        %v909 = vunpack.c.l.b16 %v815
        %v910 = vunpack.c.l.b16 %v816
        %v911 = vunpack.c.h.b16 %v816
        %v912 = vunpack.c.l.b16 %v817
        %v913 = vunpack.c.l.b16 %v818
        %v914 = vunpack.c.h.b16 %v818
        %v915 = vunpack.c.l.b16 %v819
        %v916 = vunpack.c.l.b16 %v820
        %v917 = vunpack.c.h.b16 %v820
        %v918 = vunpack.c.l.b16 %v821
        %v919 = vpack.c.b16 %v874, %v871
        %v920 = vpack.c.b16 %v875, %v872
        %v921 = vpack.c.b16 %v876, %v873
        %v922 = vpack.c.b16 %v880, %v877
        %v923 = vpack.c.b16 %v881, %v878
        %v924 = vpack.c.b16 %v882, %v879
        %v925 = vpack.c.b16 %v886, %v883
        %v926 = vpack.c.b16 %v887, %v884
        %v927 = vpack.c.b16 %v888, %v885
        %v928 = vpack.c.b16 %v892, %v889
        %v929 = vpack.c.b16 %v893, %v890
        %v930 = vpack.c.b16 %v894, %v891
        %v931 = vpack.c.b16 %v898, %v895
        %v932 = vpack.c.b16 %v899, %v896
        %v933 = vpack.c.b16 %v900, %v897
        %v934 = vpack.c.b16 %v904, %v901
        %v935 = vpack.c.b16 %v905, %v902
        %v936 = vpack.c.b16 %v906, %v903
        %v937 = vpack.c.b16 %v910, %v907
        %v938 = vpack.c.b16 %v911, %v908
        %v939 = vpack.c.b16 %v912, %v909
        %v940 = vpack.c.b16 %v916, %v913
        %v941 = vpack.c.b16 %v917, %v914
        %v942 = vpack.c.b16 %v918, %v915
        %967 = vmatprep.subr.bf16.mxu0 %v941
        %968 = vmatpush1.bf16.msra.mxu0 %v940
        %969 = vmatprep.subr.bf16.mxu0 %v938
        %970 = vmatpush1.bf16.msra.mxu0 %v937
        %971 = vmatprep.subr.bf16.mxu0 %v935
        %972 = vmatpush1.bf16.msra.mxu0 %v934
        %973 = vmatprep.subr.bf16.mxu0 %v932
        %974 = vmatpush1.bf16.msra.mxu0 %v931
        %975 = vmatprep.subr.bf16.mxu0 %v929
        %976 = vmatpush1.bf16.msra.mxu0 %v928
        %977 = vmatprep.subr.bf16.mxu0 %v926
        %978 = vmatpush1.bf16.msra.mxu0 %v925
        %979 = vmatprep.subr.bf16.mxu0 %v923
        %980 = vmatpush1.bf16.msra.mxu0 %v922
        %981 = vmatprep.subr.bf16.mxu0 %v920
        %982 = vmatpush1.bf16.msra.mxu0 %v919
        %983 = vmatprep.subr.bf16.mxu0 0
        %984 = vmatpush2.bf16.msra.mxu0 0
        %985 = vmatprep.subr.bf16.mxu0 0
        %986 = vmatpush2.bf16.msra.mxu0 0
        %987 = vmatprep.subr.bf16.mxu0 0
        %988 = vmatpush2.bf16.msra.mxu0 0
        %989 = vmatprep.subr.bf16.mxu0 0
        %990 = vmatpush2.bf16.msra.mxu0 0
        %991 = vmatprep.subr.bf16.mxu0 0
        %992 = vmatpush2.bf16.msra.mxu0 0
        %993 = vmatprep.subr.bf16.mxu0 0
        %994 = vmatpush2.bf16.msra.mxu0 0
        %995 = vmatprep.subr.bf16.mxu0 0
        %996 = vmatpush2.bf16.msra.mxu0 0
        %997 = vmatprep.subr.bf16.mxu0 0
        %998 = vmatpush2.bf16.msra.mxu0 0
        %999 = vmatprep.mubr.bf16.mxu0 0
        %1000 = vmatmul.mubr.bf16.gmra.mxu0 %v782
        %v1001 = vpop.f32.mrf.mxu0
        %v1002 = vadd.f32 %v827, %v1001
        %v1003 = vpop.f32.mrf.mxu0
        %v1004 = vadd.f32 %v831, %v1003
        %v1005 = vpop.f32.mrf.mxu0
        %v1006 = vadd.f32 %v827, %v1005
        %v1007 = vpop.f32.mrf.mxu0
        %v1008 = vadd.f32 %v831, %v1007
        %1009 = vmatprep.mubr.bf16.mxu0 0
        %1010 = vmatmul.mubr.bf16.gmra.mxu0 %v783
        %v1011 = vpop.f32.mrf.mxu0
        %v1012 = vadd.f32 %v827, %v1011
        %v1013 = vpop.f32.mrf.mxu0
        %v1014 = vadd.f32 %v831, %v1013
        %v1015 = vpop.f32.mrf.mxu0
        %v1016 = vadd.f32 %v827, %v1015
        %v1017 = vpop.f32.mrf.mxu0
        %v1018 = vadd.f32 %v831, %v1017
        %1019 = vmatprep.mubr.bf16.mxu0 0
        %1020 = vmatmul.mubr.bf16.gmra.mxu0 %v784
        %v1021 = vpop.f32.mrf.mxu0
        %v1022 = vadd.f32 %v827, %v1021
        %v1023 = vpop.f32.mrf.mxu0
        %v1024 = vadd.f32 %v831, %v1023
        %v1025 = vpop.f32.mrf.mxu0
        %v1026 = vadd.f32 %v827, %v1025
        %v1027 = vpop.f32.mrf.mxu0
        %v1028 = vadd.f32 %v831, %v1027
        %1029 = vmatprep.mubr.bf16.mxu0 0
        %1030 = vmatmul.mubr.bf16.gmra.mxu0 %v785
        %v1031 = vpop.f32.mrf.mxu0
        %v1032 = vadd.f32 %v827, %v1031
        %v1033 = vpop.f32.mrf.mxu0
        %v1034 = vadd.f32 %v831, %v1033
        %v1035 = vpop.f32.mrf.mxu0
        %v1036 = vadd.f32 %v827, %v1035
        %v1037 = vpop.f32.mrf.mxu0
        %v1038 = vadd.f32 %v831, %v1037
        %1039 = vmatprep.mubr.bf16.mxu0 0
        %1040 = vmatmul.mubr.bf16.gmra.mxu0 %v786
        %v1041 = vpop.f32.mrf.mxu0
        %v1042 = vadd.f32 %v827, %v1041
        %v1043 = vpop.f32.mrf.mxu0
        %v1044 = vadd.f32 %v831, %v1043
        %v1045 = vpop.f32.mrf.mxu0
        %v1046 = vadd.f32 %v827, %v1045
        %v1047 = vpop.f32.mrf.mxu0
        %v1048 = vadd.f32 %v831, %v1047
        %1049 = vmatprep.mubr.bf16.mxu0 0
        %1050 = vmatmul.mubr.bf16.gmra.mxu0 %v787
        %v1051 = vpop.f32.mrf.mxu0
        %v1052 = vadd.f32 %v827, %v1051
        %v1053 = vpop.f32.mrf.mxu0
        %v1054 = vadd.f32 %v831, %v1053
        %v1055 = vpop.f32.mrf.mxu0
        %v1056 = vadd.f32 %v827, %v1055
        %v1057 = vpop.f32.mrf.mxu0
        %v1058 = vadd.f32 %v831, %v1057
        %1059 = vmatprep.mubr.bf16.mxu0 0
        %1060 = vmatmul.mubr.bf16.gmra.mxu0 %v788
        %v1061 = vpop.f32.mrf.mxu0
        %v1062 = vadd.f32 %v827, %v1061
        %v1063 = vpop.f32.mrf.mxu0
        %v1064 = vadd.f32 %v831, %v1063
        %v1065 = vpop.f32.mrf.mxu0
        %v1066 = vadd.f32 %v827, %v1065
        %v1067 = vpop.f32.mrf.mxu0
        %v1068 = vadd.f32 %v831, %v1067
        %1069 = vmatprep.mubr.bf16.mxu0 0
        %1070 = vmatmul.mubr.bf16.gmra.mxu0 %v789
        %v1071 = vpop.f32.mrf.mxu0
        %v1072 = vadd.f32 %v827, %v1071
        %v1073 = vpop.f32.mrf.mxu0
        %v1074 = vadd.f32 %v831, %v1073
        %v1075 = vpop.f32.mrf.mxu0
        %v1076 = vadd.f32 %v827, %v1075
        %v1077 = vpop.f32.mrf.mxu0
        %v1078 = vadd.f32 %v831, %v1077
        %1079 = vdwg.mxu0
        %1080 = vmatprep.subr.bf16.mxu0 0
        %1081 = vmatpush1.bf16.msra.mxu0 %v942
        %1082 = vmatprep.subr.bf16.mxu0 0
        %1083 = vmatpush1.bf16.msra.mxu0 %v939
        %1084 = vmatprep.subr.bf16.mxu0 0
        %1085 = vmatpush1.bf16.msra.mxu0 %v936
        %1086 = vmatprep.subr.bf16.mxu0 0
        %1087 = vmatpush1.bf16.msra.mxu0 %v933
        %1088 = vmatprep.subr.bf16.mxu0 0
        %1089 = vmatpush1.bf16.msra.mxu0 %v930
        %1090 = vmatprep.subr.bf16.mxu0 0
        %1091 = vmatpush1.bf16.msra.mxu0 %v927
        %1092 = vmatprep.subr.bf16.mxu0 0
        %1093 = vmatpush1.bf16.msra.mxu0 %v924
        %1094 = vmatprep.subr.bf16.mxu0 0
        %1095 = vmatpush1.bf16.msra.mxu0 %v921
        %1096 = vmatprep.subr.bf16.mxu0 0
        %1097 = vmatpush2.bf16.msra.mxu0 0
        %1098 = vmatprep.subr.bf16.mxu0 0
        %1099 = vmatpush2.bf16.msra.mxu0 0
        %1100 = vmatprep.subr.bf16.mxu0 0
        %1101 = vmatpush2.bf16.msra.mxu0 0
        %1102 = vmatprep.subr.bf16.mxu0 0
        %1103 = vmatpush2.bf16.msra.mxu0 0
        %1104 = vmatprep.subr.bf16.mxu0 0
        %1105 = vmatpush2.bf16.msra.mxu0 0
        %1106 = vmatprep.subr.bf16.mxu0 0
        %1107 = vmatpush2.bf16.msra.mxu0 0
        %1108 = vmatprep.subr.bf16.mxu0 0
        %1109 = vmatpush2.bf16.msra.mxu0 0
        %1110 = vmatprep.subr.bf16.mxu0 0
        %1111 = vmatpush2.bf16.msra.mxu0 0
        %1112 = vmatprep.mubr.bf16.mxu0 0
        %1113 = vmatmul.mubr.bf16.gmra.mxu0 %v782
        %v1114 = vpop.f32.mrf.mxu0
        %v1115 = vadd.f32 %v835, %v1114
        %v1116 = vpop.f32.mrf.mxu0
        %v1117 = vpop.f32.mrf.mxu0
        %v1118 = vadd.f32 %v835, %v1117
        %v1119 = vpop.f32.mrf.mxu0
        %1120 = vmatprep.mubr.bf16.mxu0 0
        %1121 = vmatmul.mubr.bf16.gmra.mxu0 %v783
        %v1122 = vpop.f32.mrf.mxu0
        %v1123 = vadd.f32 %v835, %v1122
        %v1124 = vpop.f32.mrf.mxu0
        %v1125 = vpop.f32.mrf.mxu0
        %v1126 = vadd.f32 %v835, %v1125
        %v1127 = vpop.f32.mrf.mxu0
        %1128 = vmatprep.mubr.bf16.mxu0 0
        %1129 = vmatmul.mubr.bf16.gmra.mxu0 %v784
        %v1130 = vpop.f32.mrf.mxu0
        %v1131 = vadd.f32 %v835, %v1130
        %v1132 = vpop.f32.mrf.mxu0
        %v1133 = vpop.f32.mrf.mxu0
        %v1134 = vadd.f32 %v835, %v1133
        %v1135 = vpop.f32.mrf.mxu0
        %1136 = vmatprep.mubr.bf16.mxu0 0
        %1137 = vmatmul.mubr.bf16.gmra.mxu0 %v785
        %v1138 = vpop.f32.mrf.mxu0
        %v1139 = vadd.f32 %v835, %v1138
        %v1140 = vpop.f32.mrf.mxu0
        %v1141 = vpop.f32.mrf.mxu0
        %v1142 = vadd.f32 %v835, %v1141
        %v1143 = vpop.f32.mrf.mxu0
        %1144 = vmatprep.mubr.bf16.mxu0 0
        %1145 = vmatmul.mubr.bf16.gmra.mxu0 %v786
        %v1146 = vpop.f32.mrf.mxu0
        %v1147 = vadd.f32 %v835, %v1146
        %v1148 = vpop.f32.mrf.mxu0
        %v1149 = vpop.f32.mrf.mxu0
        %v1150 = vadd.f32 %v835, %v1149
        %v1151 = vpop.f32.mrf.mxu0
        %1152 = vmatprep.mubr.bf16.mxu0 0
        %1153 = vmatmul.mubr.bf16.gmra.mxu0 %v787
        %v1154 = vpop.f32.mrf.mxu0
        %v1155 = vadd.f32 %v835, %v1154
        %v1156 = vpop.f32.mrf.mxu0
        %v1157 = vpop.f32.mrf.mxu0
        %v1158 = vadd.f32 %v835, %v1157
        %v1159 = vpop.f32.mrf.mxu0
        %1160 = vmatprep.mubr.bf16.mxu0 0
        %1161 = vmatmul.mubr.bf16.gmra.mxu0 %v788
        %v1162 = vpop.f32.mrf.mxu0
        %v1163 = vadd.f32 %v835, %v1162
        %v1164 = vpop.f32.mrf.mxu0
        %v1165 = vpop.f32.mrf.mxu0
        %v1166 = vadd.f32 %v835, %v1165
        %v1167 = vpop.f32.mrf.mxu0
        %1168 = vmatprep.mubr.bf16.mxu0 0
        %1169 = vmatmul.mubr.bf16.gmra.mxu0 %v789
        %v1170 = vpop.f32.mrf.mxu0
        %v1171 = vadd.f32 %v835, %v1170
        %v1172 = vpop.f32.mrf.mxu0
        %v1173 = vpop.f32.mrf.mxu0
        %v1174 = vadd.f32 %v835, %v1173
        %v1175 = vpop.f32.mrf.mxu0
        %1176 = vdwg.mxu0
        %v1177 = vpack.c.bf16 %v1006, %v1002
        %v1178 = vpack.c.bf16 %v1016, %v1012
        %v1179 = vpack.c.bf16 %v1026, %v1022
        %v1180 = vpack.c.bf16 %v1036, %v1032
        %v1181 = vpack.c.bf16 %v1046, %v1042
        %v1182 = vpack.c.bf16 %v1056, %v1052
        %v1183 = vpack.c.bf16 %v1066, %v1062
        %v1184 = vpack.c.bf16 %v1076, %v1072
        %v1185 = vpack.c.bf16 %v1008, %v1004
        %v1186 = vpack.c.bf16 %v1018, %v1014
        %v1187 = vpack.c.bf16 %v1028, %v1024
        %v1188 = vpack.c.bf16 %v1038, %v1034
        %v1189 = vpack.c.bf16 %v1048, %v1044
        %v1190 = vpack.c.bf16 %v1058, %v1054
        %v1191 = vpack.c.bf16 %v1068, %v1064
        %v1192 = vpack.c.bf16 %v1078, %v1074
        %vm1193 = vcmask 261120
        %v1195 = vsel %vm1193, %v1177, 0
        %v1198 = vsel %vm1193, %v1178, 0
        %v1201 = vsel %vm1193, %v1179, 0
        %v1204 = vsel %vm1193, %v1180, 0
        %v1207 = vsel %vm1193, %v1181, 0
        %v1210 = vsel %vm1193, %v1182, 0
        %v1213 = vsel %vm1193, %v1183, 0
        %v1216 = vsel %vm1193, %v1184, 0
        %v1219 = vsel %vm1193, %v1185, 0
        %v1222 = vsel %vm1193, %v1186, 0
        %v1225 = vsel %vm1193, %v1187, 0
        %v1228 = vsel %vm1193, %v1188, 0
        %v1231 = vsel %vm1193, %v1189, 0
        %v1234 = vsel %vm1193, %v1190, 0
        %v1237 = vsel %vm1193, %v1191, 0
        %v1240 = vsel %vm1193, %v1192, 0
        %1242 = vmatprep.subr.bf16.mxu0 0
        %1243 = vmatpush1.bf16.xpose.msra.mxu0 %v1240
        %1244 = vmatprep.subr.bf16.mxu0 0
        %1245 = vmatpush1.bf16.xpose.msra.mxu0 %v1237
        %1246 = vmatprep.subr.bf16.mxu0 0
        %1247 = vmatpush1.bf16.xpose.msra.mxu0 %v1234
        %1248 = vmatprep.subr.bf16.mxu0 0
        %1249 = vmatpush1.bf16.xpose.msra.mxu0 %v1231
        %1250 = vmatprep.subr.bf16.mxu0 0
        %1251 = vmatpush1.bf16.xpose.msra.mxu0 %v1228
        %1252 = vmatprep.subr.bf16.mxu0 0
        %1253 = vmatpush1.bf16.xpose.msra.mxu0 %v1225
        %1254 = vmatprep.subr.bf16.mxu0 0
        %1255 = vmatpush1.bf16.xpose.msra.mxu0 %v1222
        %1256 = vmatprep.subr.bf16.mxu0 0
        %1257 = vmatpush1.bf16.xpose.msra.mxu0 %v1219
        %1258 = vmatprep.subr.bf16.mxu0 0
        %1259 = vmatpush2.bf16.xpose.msra.mxu0 0
        %1260 = vmatprep.subr.bf16.mxu0 0
        %1261 = vmatpush2.bf16.xpose.msra.mxu0 0
        %1262 = vmatprep.subr.bf16.mxu0 0
        %1263 = vmatpush2.bf16.xpose.msra.mxu0 0
        %1264 = vmatprep.subr.bf16.mxu0 0
        %1265 = vmatpush2.bf16.xpose.msra.mxu0 0
        %1266 = vmatprep.subr.bf16.mxu0 0
        %1267 = vmatpush2.bf16.xpose.msra.mxu0 0
        %1268 = vmatprep.subr.bf16.mxu0 0
        %1269 = vmatpush2.bf16.xpose.msra.mxu0 0
        %1270 = vmatprep.subr.bf16.mxu0 0
        %1271 = vmatpush2.bf16.xpose.msra.mxu0 0
        %1272 = vmatprep.subr.bf16.mxu0 0
        %1273 = vmatpush2.bf16.xpose.msra.mxu0 0
        %1274 = vmatprep.mubr.bf16.mxu0 0
        %1275 = vmatmul.mubr.bf16.gmra.mxu0 %v1195
        %v1276 = vpop.f32.mrf.mxu0
        %v1277 = vadd.f32 0.0, %v1276
        %v1278 = vpop.f32.mrf.mxu0
        %v1279 = vpop.f32.mrf.mxu0
        %v1280 = vadd.f32 0.0, %v1279
        %v1281 = vpop.f32.mrf.mxu0
        %1282 = vmatprep.mubr.bf16.mxu0 0
        %1283 = vmatmul.mubr.bf16.gmra.mxu0 %v1198
        %v1284 = vpop.f32.mrf.mxu0
        %v1285 = vadd.f32 0.0, %v1284
        %v1286 = vpop.f32.mrf.mxu0
        %v1287 = vpop.f32.mrf.mxu0
        %v1288 = vadd.f32 0.0, %v1287
        %v1289 = vpop.f32.mrf.mxu0
        %1290 = vmatprep.mubr.bf16.mxu0 0
        %1291 = vmatmul.mubr.bf16.gmra.mxu0 %v1201
        %v1292 = vpop.f32.mrf.mxu0
        %v1293 = vadd.f32 0.0, %v1292
        %v1294 = vpop.f32.mrf.mxu0
        %v1295 = vpop.f32.mrf.mxu0
        %v1296 = vadd.f32 0.0, %v1295
        %v1297 = vpop.f32.mrf.mxu0
        %1298 = vmatprep.mubr.bf16.mxu0 0
        %1299 = vmatmul.mubr.bf16.gmra.mxu0 %v1204
        %v1300 = vpop.f32.mrf.mxu0
        %v1301 = vadd.f32 0.0, %v1300
        %v1302 = vpop.f32.mrf.mxu0
        %v1303 = vpop.f32.mrf.mxu0
        %v1304 = vadd.f32 0.0, %v1303
        %v1305 = vpop.f32.mrf.mxu0
        %1306 = vmatprep.mubr.bf16.mxu0 0
        %1307 = vmatmul.mubr.bf16.gmra.mxu0 %v1207
        %v1308 = vpop.f32.mrf.mxu0
        %v1309 = vadd.f32 0.0, %v1308
        %v1310 = vpop.f32.mrf.mxu0
        %v1311 = vpop.f32.mrf.mxu0
        %v1312 = vadd.f32 0.0, %v1311
        %v1313 = vpop.f32.mrf.mxu0
        %1314 = vmatprep.mubr.bf16.mxu0 0
        %1315 = vmatmul.mubr.bf16.gmra.mxu0 %v1210
        %v1316 = vpop.f32.mrf.mxu0
        %v1317 = vadd.f32 0.0, %v1316
        %v1318 = vpop.f32.mrf.mxu0
        %v1319 = vpop.f32.mrf.mxu0
        %v1320 = vadd.f32 0.0, %v1319
        %v1321 = vpop.f32.mrf.mxu0
        %1322 = vmatprep.mubr.bf16.mxu0 0
        %1323 = vmatmul.mubr.bf16.gmra.mxu0 %v1213
        %v1324 = vpop.f32.mrf.mxu0
        %v1325 = vadd.f32 0.0, %v1324
        %v1326 = vpop.f32.mrf.mxu0
        %v1327 = vpop.f32.mrf.mxu0
        %v1328 = vadd.f32 0.0, %v1327
        %v1329 = vpop.f32.mrf.mxu0
        %1330 = vmatprep.mubr.bf16.mxu0 0
        %1331 = vmatmul.mubr.bf16.gmra.mxu0 %v1216
        %v1332 = vpop.f32.mrf.mxu0
        %v1333 = vadd.f32 0.0, %v1332
        %v1334 = vpop.f32.mrf.mxu0
        %v1335 = vpop.f32.mrf.mxu0
        %v1336 = vadd.f32 0.0, %v1335
        %v1337 = vpop.f32.mrf.mxu0
        %1338 = vdwg.mxu0
        %1339 = vmax.xlane.f32.xlu0 %v1277
        %v1340 = vpop.xlane.xlu0 %1339
        %1341 = vmax.xlane.f32.xlu0 %v1280
        %v1342 = vpop.xlane.xlu0 %1341
        %1343 = vmax.xlane.f32.xlu0 %v1285
        %v1344 = vpop.xlane.xlu0 %1343
        %1345 = vmax.xlane.f32.xlu0 %v1288
        %v1346 = vpop.xlane.xlu0 %1345
        %1347 = vmax.xlane.f32.xlu0 %v1293
        %v1348 = vpop.xlane.xlu0 %1347
        %1349 = vmax.xlane.f32.xlu0 %v1296
        %v1350 = vpop.xlane.xlu0 %1349
        %1351 = vmax.xlane.f32.xlu0 %v1301
        %v1352 = vpop.xlane.xlu0 %1351
        %1353 = vmax.xlane.f32.xlu0 %v1304
        %v1354 = vpop.xlane.xlu0 %1353
        %1355 = vmax.xlane.f32.xlu0 %v1309
        %v1356 = vpop.xlane.xlu0 %1355
        %1357 = vmax.xlane.f32.xlu0 %v1312
        %v1358 = vpop.xlane.xlu0 %1357
        %1359 = vmax.xlane.f32.xlu0 %v1317
        %v1360 = vpop.xlane.xlu0 %1359
        %1361 = vmax.xlane.f32.xlu0 %v1320
        %v1362 = vpop.xlane.xlu0 %1361
        %1363 = vmax.xlane.f32.xlu0 %v1325
        %v1364 = vpop.xlane.xlu0 %1363
        %1365 = vmax.xlane.f32.xlu0 %v1328
        %v1366 = vpop.xlane.xlu0 %1365
        %1367 = vmax.xlane.f32.xlu0 %v1333
        %v1368 = vpop.xlane.xlu0 %1367
        %1369 = vmax.xlane.f32.xlu0 %v1336
        %v1370 = vpop.xlane.xlu0 %1369
        %v1371 = vsub.f32 %v1277, %v1340
        %v1372 = vsub.f32 %v1280, %v1342
        %v1373 = vsub.f32 %v1285, %v1344
        %v1374 = vsub.f32 %v1288, %v1346
        %v1375 = vsub.f32 %v1293, %v1348
        %v1376 = vsub.f32 %v1296, %v1350
        %v1377 = vsub.f32 %v1301, %v1352
        %v1378 = vsub.f32 %v1304, %v1354
        %v1379 = vsub.f32 %v1309, %v1356
        %v1380 = vsub.f32 %v1312, %v1358
        %v1381 = vsub.f32 %v1317, %v1360
        %v1382 = vsub.f32 %v1320, %v1362
        %v1383 = vsub.f32 %v1325, %v1364
        %v1384 = vsub.f32 %v1328, %v1366
        %v1385 = vsub.f32 %v1333, %v1368
        %v1386 = vsub.f32 %v1336, %v1370
        %v1387 = vmul.f32 %v1371, 1.442695
        %v1388 = vpow.pop %v1387
        %v1389 = vmul.f32 %v1372, 1.442695
        %v1390 = vpow.pop %v1389
        %v1391 = vmul.f32 %v1373, 1.442695
        %v1392 = vpow.pop %v1391
        %v1393 = vmul.f32 %v1374, 1.442695
        %v1394 = vpow.pop %v1393
        %v1395 = vmul.f32 %v1375, 1.442695
        %v1396 = vpow.pop %v1395
        %v1397 = vmul.f32 %v1376, 1.442695
        %v1398 = vpow.pop %v1397
        %v1399 = vmul.f32 %v1377, 1.442695
        %v1400 = vpow.pop %v1399
        %v1401 = vmul.f32 %v1378, 1.442695
        %v1402 = vpow.pop %v1401
        %v1403 = vmul.f32 %v1379, 1.442695
        %v1404 = vpow.pop %v1403
        %v1405 = vmul.f32 %v1380, 1.442695
        %v1406 = vpow.pop %v1405
        %v1407 = vmul.f32 %v1381, 1.442695
        %v1408 = vpow.pop %v1407
        %v1409 = vmul.f32 %v1382, 1.442695
        %v1410 = vpow.pop %v1409
        %v1411 = vmul.f32 %v1383, 1.442695
        %v1412 = vpow.pop %v1411
        %v1413 = vmul.f32 %v1384, 1.442695
        %v1414 = vpow.pop %v1413
        %v1415 = vmul.f32 %v1385, 1.442695
        %v1416 = vpow.pop %v1415
        %v1417 = vmul.f32 %v1386, 1.442695
        %v1418 = vpow.pop %v1417
        %1419 = vadd.xlane.f32.xlu0 %v1388
        %v1420 = vpop.xlane.xlu0 %1419
        %1421 = vadd.xlane.f32.xlu0 %v1390
        %v1422 = vpop.xlane.xlu0 %1421
        %1423 = vadd.xlane.f32.xlu0 %v1392
        %v1424 = vpop.xlane.xlu0 %1423
        %1425 = vadd.xlane.f32.xlu0 %v1394
        %v1426 = vpop.xlane.xlu0 %1425
        %1427 = vadd.xlane.f32.xlu0 %v1396
        %v1428 = vpop.xlane.xlu0 %1427
        %1429 = vadd.xlane.f32.xlu0 %v1398
        %v1430 = vpop.xlane.xlu0 %1429
        %1431 = vadd.xlane.f32.xlu0 %v1400
        %v1432 = vpop.xlane.xlu0 %1431
        %1433 = vadd.xlane.f32.xlu0 %v1402
        %v1434 = vpop.xlane.xlu0 %1433
        %1435 = vadd.xlane.f32.xlu0 %v1404
        %v1436 = vpop.xlane.xlu0 %1435
        %1437 = vadd.xlane.f32.xlu0 %v1406
        %v1438 = vpop.xlane.xlu0 %1437
        %1439 = vadd.xlane.f32.xlu0 %v1408
        %v1440 = vpop.xlane.xlu0 %1439
        %1441 = vadd.xlane.f32.xlu0 %v1410
        %v1442 = vpop.xlane.xlu0 %1441
        %1443 = vadd.xlane.f32.xlu0 %v1412
        %v1444 = vpop.xlane.xlu0 %1443
        %1445 = vadd.xlane.f32.xlu0 %v1414
        %v1446 = vpop.xlane.xlu0 %1445
        %1447 = vadd.xlane.f32.xlu0 %v1416
        %v1448 = vpop.xlane.xlu0 %1447
        %1449 = vadd.xlane.f32.xlu0 %v1418
        %v1450 = vpop.xlane.xlu0 %1449
        %v1451 = vpack.c.bf16 %v1390, %v1388
        %v1452 = vpack.c.bf16 %v1394, %v1392
        %v1453 = vpack.c.bf16 %v1398, %v1396
        %v1454 = vpack.c.bf16 %v1402, %v1400
        %v1455 = vpack.c.bf16 %v1406, %v1404
        %v1456 = vpack.c.bf16 %v1410, %v1408
        %v1457 = vpack.c.bf16 %v1414, %v1412
        %v1458 = vpack.c.bf16 %v1418, %v1416
        %v1459 = vpack.c.bf16 %v1118, %v1115
        %v1460 = vpack.c.bf16 %v1126, %v1123
        %v1461 = vpack.c.bf16 %v1134, %v1131
        %v1462 = vpack.c.bf16 %v1142, %v1139
        %v1463 = vpack.c.bf16 %v1150, %v1147
        %v1464 = vpack.c.bf16 %v1158, %v1155
        %v1465 = vpack.c.bf16 %v1166, %v1163
        %v1466 = vpack.c.bf16 %v1174, %v1171
        %1467 = vmatprep.subr.bf16.mxu0 0
        %1468 = vmatpush1.bf16.msra.mxu0 %v1466
        %1469 = vmatprep.subr.bf16.mxu0 0
        %1470 = vmatpush1.bf16.msra.mxu0 %v1465
        %1471 = vmatprep.subr.bf16.mxu0 0
        %1472 = vmatpush1.bf16.msra.mxu0 %v1464
        %1473 = vmatprep.subr.bf16.mxu0 0
        %1474 = vmatpush1.bf16.msra.mxu0 %v1463
        %1475 = vmatprep.subr.bf16.mxu0 0
        %1476 = vmatpush1.bf16.msra.mxu0 %v1462
        %1477 = vmatprep.subr.bf16.mxu0 0
        %1478 = vmatpush1.bf16.msra.mxu0 %v1461
        %1479 = vmatprep.subr.bf16.mxu0 0
        %1480 = vmatpush1.bf16.msra.mxu0 %v1460
        %1481 = vmatprep.subr.bf16.mxu0 0
        %1482 = vmatpush1.bf16.msra.mxu0 %v1459
        %1483 = vmatprep.subr.bf16.mxu0 0
        %1484 = vmatpush2.bf16.msra.mxu0 0
        %1485 = vmatprep.subr.bf16.mxu0 0
        %1486 = vmatpush2.bf16.msra.mxu0 0
        %1487 = vmatprep.subr.bf16.mxu0 0
        %1488 = vmatpush2.bf16.msra.mxu0 0
        %1489 = vmatprep.subr.bf16.mxu0 0
        %1490 = vmatpush2.bf16.msra.mxu0 0
        %1491 = vmatprep.subr.bf16.mxu0 0
        %1492 = vmatpush2.bf16.msra.mxu0 0
        %1493 = vmatprep.subr.bf16.mxu0 0
        %1494 = vmatpush2.bf16.msra.mxu0 0
        %1495 = vmatprep.subr.bf16.mxu0 0
        %1496 = vmatpush2.bf16.msra.mxu0 0
        %1497 = vmatprep.subr.bf16.mxu0 0
        %1498 = vmatpush2.bf16.msra.mxu0 0
        %1499 = vmatprep.mubr.bf16.mxu0 0
        %1500 = vmatmul.mubr.bf16.gmra.mxu0 %v1451
        %v1501 = vpop.f32.mrf.mxu0
        %v1502 = vadd.f32 0.0, %v1501
        %v1503 = vpop.f32.mrf.mxu0
        %v1504 = vpop.f32.mrf.mxu0
        %v1505 = vadd.f32 0.0, %v1504
        %v1506 = vpop.f32.mrf.mxu0
        %1507 = vmatprep.mubr.bf16.mxu0 0
        %1508 = vmatmul.mubr.bf16.gmra.mxu0 %v1452
        %v1509 = vpop.f32.mrf.mxu0
        %v1510 = vadd.f32 0.0, %v1509
        %v1511 = vpop.f32.mrf.mxu0
        %v1512 = vpop.f32.mrf.mxu0
        %v1513 = vadd.f32 0.0, %v1512
        %v1514 = vpop.f32.mrf.mxu0
        %1515 = vmatprep.mubr.bf16.mxu0 0
        %1516 = vmatmul.mubr.bf16.gmra.mxu0 %v1453
        %v1517 = vpop.f32.mrf.mxu0
        %v1518 = vadd.f32 0.0, %v1517
        %v1519 = vpop.f32.mrf.mxu0
        %v1520 = vpop.f32.mrf.mxu0
        %v1521 = vadd.f32 0.0, %v1520
        %v1522 = vpop.f32.mrf.mxu0
        %1523 = vmatprep.mubr.bf16.mxu0 0
        %1524 = vmatmul.mubr.bf16.gmra.mxu0 %v1454
        %v1525 = vpop.f32.mrf.mxu0
        %v1526 = vadd.f32 0.0, %v1525
        %v1527 = vpop.f32.mrf.mxu0
        %v1528 = vpop.f32.mrf.mxu0
        %v1529 = vadd.f32 0.0, %v1528
        %v1530 = vpop.f32.mrf.mxu0
        %1531 = vmatprep.mubr.bf16.mxu0 0
        %1532 = vmatmul.mubr.bf16.gmra.mxu0 %v1455
        %v1533 = vpop.f32.mrf.mxu0
        %v1534 = vadd.f32 0.0, %v1533
        %v1535 = vpop.f32.mrf.mxu0
        %v1536 = vpop.f32.mrf.mxu0
        %v1537 = vadd.f32 0.0, %v1536
        %v1538 = vpop.f32.mrf.mxu0
        %1539 = vmatprep.mubr.bf16.mxu0 0
        %1540 = vmatmul.mubr.bf16.gmra.mxu0 %v1456
        %v1541 = vpop.f32.mrf.mxu0
        %v1542 = vadd.f32 0.0, %v1541
        %v1543 = vpop.f32.mrf.mxu0
        %v1544 = vpop.f32.mrf.mxu0
        %v1545 = vadd.f32 0.0, %v1544
        %v1546 = vpop.f32.mrf.mxu0
        %1547 = vmatprep.mubr.bf16.mxu0 0
        %1548 = vmatmul.mubr.bf16.gmra.mxu0 %v1457
        %v1549 = vpop.f32.mrf.mxu0
        %v1550 = vadd.f32 0.0, %v1549
        %v1551 = vpop.f32.mrf.mxu0
        %v1552 = vpop.f32.mrf.mxu0
        %v1553 = vadd.f32 0.0, %v1552
        %v1554 = vpop.f32.mrf.mxu0
        %1555 = vmatprep.mubr.bf16.mxu0 0
        %1556 = vmatmul.mubr.bf16.gmra.mxu0 %v1458
        %v1557 = vpop.f32.mrf.mxu0
        %v1558 = vadd.f32 0.0, %v1557
        %v1559 = vpop.f32.mrf.mxu0
        %v1560 = vpop.f32.mrf.mxu0
        %v1561 = vadd.f32 0.0, %v1560
        %v1562 = vpop.f32.mrf.mxu0
        %1563 = vdwg.mxu0
        %v1564 = vrcp.pop %v1420
        %v1565 = vrcp.pop %v1422
        %v1566 = vrcp.pop %v1424
        %v1567 = vrcp.pop %v1426
        %v1568 = vrcp.pop %v1428
        %v1569 = vrcp.pop %v1430
        %v1570 = vrcp.pop %v1432
        %v1571 = vrcp.pop %v1434
        %v1572 = vrcp.pop %v1436
        %v1573 = vrcp.pop %v1438
        %v1574 = vrcp.pop %v1440
        %v1575 = vrcp.pop %v1442
        %v1576 = vrcp.pop %v1444
        %v1577 = vrcp.pop %v1446
        %v1578 = vrcp.pop %v1448
        %v1579 = vrcp.pop %v1450
        %v1580 = vmul.f32 %v1502, %v1564
        %v1581 = vmul.f32 %v1505, %v1565
        %v1582 = vmul.f32 %v1510, %v1566
        %v1583 = vmul.f32 %v1513, %v1567
        %v1584 = vmul.f32 %v1518, %v1568
        %v1585 = vmul.f32 %v1521, %v1569
        %v1586 = vmul.f32 %v1526, %v1570
        %v1587 = vmul.f32 %v1529, %v1571
        %v1588 = vmul.f32 %v1534, %v1572
        %v1589 = vmul.f32 %v1537, %v1573
        %v1590 = vmul.f32 %v1542, %v1574
        %v1591 = vmul.f32 %v1545, %v1575
        %v1592 = vmul.f32 %v1550, %v1576
        %v1593 = vmul.f32 %v1553, %v1577
        %v1594 = vmul.f32 %v1558, %v1578
        %v1595 = vmul.f32 %v1561, %v1579
        %v1596 = vpack.c.bf16 %v1581, %v1580
        %v1597 = vpack.c.bf16 %v1583, %v1582
        %v1598 = vpack.c.bf16 %v1585, %v1584
        %v1599 = vpack.c.bf16 %v1587, %v1586
        %v1600 = vpack.c.bf16 %v1589, %v1588
        %v1601 = vpack.c.bf16 %v1591, %v1590
        %v1602 = vpack.c.bf16 %v1593, %v1592
        %v1603 = vpack.c.bf16 %v1595, %v1594
        %v1612 = vunpack.c.l.b16 %v1596
        %v1613 = vunpack.c.h.b16 %v1596
        %v1614 = vunpack.c.l.b16 %v1597
        %v1615 = vunpack.c.h.b16 %v1597
        %v1616 = vunpack.c.l.b16 %v1598
        %v1617 = vunpack.c.h.b16 %v1598
        %v1618 = vunpack.c.l.b16 %v1599
        %v1619 = vunpack.c.h.b16 %v1599
        %v1620 = vunpack.c.l.b16 %v1600
        %v1621 = vunpack.c.h.b16 %v1600
        %v1622 = vunpack.c.l.b16 %v1601
        %v1623 = vunpack.c.h.b16 %v1601
        %v1624 = vunpack.c.l.b16 %v1602
        %v1625 = vunpack.c.h.b16 %v1602
        %v1626 = vunpack.c.l.b16 %v1603
        %v1627 = vunpack.c.h.b16 %v1603
        %v1628 = vpack.c.b16 %v1612, %v1612
        %v1629 = vpack.c.b16 %v1613, %v1613
        %v1630 = vpack.c.b16 %v1614, %v1614
        %v1631 = vpack.c.b16 %v1615, %v1615
        %v1632 = vpack.c.b16 %v1616, %v1616
        %v1633 = vpack.c.b16 %v1617, %v1617
        %v1634 = vpack.c.b16 %v1618, %v1618
        %v1635 = vpack.c.b16 %v1619, %v1619
        %v1636 = vpack.c.b16 %v1620, %v1620
        %v1637 = vpack.c.b16 %v1621, %v1621
        %v1638 = vpack.c.b16 %v1622, %v1622
        %v1639 = vpack.c.b16 %v1623, %v1623
        %v1640 = vpack.c.b16 %v1624, %v1624
        %v1641 = vpack.c.b16 %v1625, %v1625
        %v1642 = vpack.c.b16 %v1626, %v1626
        %v1643 = vpack.c.b16 %v1627, %v1627
        %vm1660 = vcmask 257024
        %1661 = vst.msk [vmem:[#allocation2] sm:$0xf] %vm1660, %v1628
        %1662 = vst.msk [vmem:[#allocation2 + $0x4] sm:$0xf] %vm1660, %v1629
        %1663 = vst.msk [vmem:[#allocation2 + $0x8] sm:$0xf] %vm1660, %v1630
        %1664 = vst.msk [vmem:[#allocation2 + $0xc] sm:$0xf] %vm1660, %v1631
        %1665 = vst.msk [vmem:[#allocation2 + $0x10] sm:$0xf] %vm1660, %v1632
        %1666 = vst.msk [vmem:[#allocation2 + $0x14] sm:$0xf] %vm1660, %v1633
        %1667 = vst.msk [vmem:[#allocation2 + $0x18] sm:$0xf] %vm1660, %v1634
        %1668 = vst.msk [vmem:[#allocation2 + $0x1c] sm:$0xf] %vm1660, %v1635
        %1669 = vst.msk [vmem:[#allocation2 + $0x20] sm:$0xf] %vm1660, %v1636
        %1670 = vst.msk [vmem:[#allocation2 + $0x24] sm:$0xf] %vm1660, %v1637
        %1671 = vst.msk [vmem:[#allocation2 + $0x28] sm:$0xf] %vm1660, %v1638
        %1672 = vst.msk [vmem:[#allocation2 + $0x2c] sm:$0xf] %vm1660, %v1639
        %1673 = vst.msk [vmem:[#allocation2 + $0x30] sm:$0xf] %vm1660, %v1640
        %1674 = vst.msk [vmem:[#allocation2 + $0x34] sm:$0xf] %vm1660, %v1641
        %1675 = vst.msk [vmem:[#allocation2 + $0x38] sm:$0xf] %vm1660, %v1642
        %1676 = vst.msk [vmem:[#allocation2 + $0x3c] sm:$0xf] %vm1660, %v1643
        %1685 = vrot.lane.b32.xlu0 %v1177, 96
        %v1686 = vpop.permute.xlu0 %1685
        %1687 = vrot.lane.b32.xlu0 %v1178, 96
        %v1688 = vpop.permute.xlu0 %1687
        %1689 = vrot.lane.b32.xlu0 %v1179, 96
        %v1690 = vpop.permute.xlu0 %1689
        %1691 = vrot.lane.b32.xlu0 %v1180, 96
        %v1692 = vpop.permute.xlu0 %1691
        %1693 = vrot.lane.b32.xlu0 %v1181, 96
        %v1694 = vpop.permute.xlu0 %1693
        %1695 = vrot.lane.b32.xlu0 %v1182, 96
        %v1696 = vpop.permute.xlu0 %1695
        %1697 = vrot.lane.b32.xlu0 %v1183, 96
        %v1698 = vpop.permute.xlu0 %1697
        %1699 = vrot.lane.b32.xlu0 %v1184, 96
        %v1700 = vpop.permute.xlu0 %1699
        %1709 = vrot.lane.b32.xlu0 %v1185, 96
        %v1710 = vpop.permute.xlu0 %1709
        %1711 = vrot.lane.b32.xlu0 %v1186, 96
        %v1712 = vpop.permute.xlu0 %1711
        %1713 = vrot.lane.b32.xlu0 %v1187, 96
        %v1714 = vpop.permute.xlu0 %1713
        %1715 = vrot.lane.b32.xlu0 %v1188, 96
        %v1716 = vpop.permute.xlu0 %1715
        %1717 = vrot.lane.b32.xlu0 %v1189, 96
        %v1718 = vpop.permute.xlu0 %1717
        %1719 = vrot.lane.b32.xlu0 %v1190, 96
        %v1720 = vpop.permute.xlu0 %1719
        %1721 = vrot.lane.b32.xlu0 %v1191, 96
        %v1722 = vpop.permute.xlu0 %1721
        %1723 = vrot.lane.b32.xlu0 %v1192, 96
        %v1724 = vpop.permute.xlu0 %1723
        %v1726 = vsel %vm1193, %v1686, 0
        %v1729 = vsel %vm1193, %v1688, 0
        %v1732 = vsel %vm1193, %v1690, 0
        %v1735 = vsel %vm1193, %v1692, 0
        %v1738 = vsel %vm1193, %v1694, 0
        %v1741 = vsel %vm1193, %v1696, 0
        %v1744 = vsel %vm1193, %v1698, 0
        %v1747 = vsel %vm1193, %v1700, 0
        %v1750 = vsel %vm1193, %v1710, 0
        %v1753 = vsel %vm1193, %v1712, 0
        %v1756 = vsel %vm1193, %v1714, 0
        %v1759 = vsel %vm1193, %v1716, 0
        %v1762 = vsel %vm1193, %v1718, 0
        %v1765 = vsel %vm1193, %v1720, 0
        %v1768 = vsel %vm1193, %v1722, 0
        %v1771 = vsel %vm1193, %v1724, 0
        %1773 = vmatprep.subr.bf16.mxu0 0
        %1774 = vmatpush1.bf16.xpose.msra.mxu0 %v1771
        %1775 = vmatprep.subr.bf16.mxu0 0
        %1776 = vmatpush1.bf16.xpose.msra.mxu0 %v1768
        %1777 = vmatprep.subr.bf16.mxu0 0
        %1778 = vmatpush1.bf16.xpose.msra.mxu0 %v1765
        %1779 = vmatprep.subr.bf16.mxu0 0
        %1780 = vmatpush1.bf16.xpose.msra.mxu0 %v1762
        %1781 = vmatprep.subr.bf16.mxu0 0
        %1782 = vmatpush1.bf16.xpose.msra.mxu0 %v1759
        %1783 = vmatprep.subr.bf16.mxu0 0
        %1784 = vmatpush1.bf16.xpose.msra.mxu0 %v1756
        %1785 = vmatprep.subr.bf16.mxu0 0
        %1786 = vmatpush1.bf16.xpose.msra.mxu0 %v1753
        %1787 = vmatprep.subr.bf16.mxu0 0
        %1788 = vmatpush1.bf16.xpose.msra.mxu0 %v1750
        %1789 = vmatprep.subr.bf16.mxu0 0
        %1790 = vmatpush2.bf16.xpose.msra.mxu0 0
        %1791 = vmatprep.subr.bf16.mxu0 0
        %1792 = vmatpush2.bf16.xpose.msra.mxu0 0
        %1793 = vmatprep.subr.bf16.mxu0 0
        %1794 = vmatpush2.bf16.xpose.msra.mxu0 0
        %1795 = vmatprep.subr.bf16.mxu0 0
        %1796 = vmatpush2.bf16.xpose.msra.mxu0 0
        %1797 = vmatprep.subr.bf16.mxu0 0
        %1798 = vmatpush2.bf16.xpose.msra.mxu0 0
        %1799 = vmatprep.subr.bf16.mxu0 0
        %1800 = vmatpush2.bf16.xpose.msra.mxu0 0
        %1801 = vmatprep.subr.bf16.mxu0 0
        %1802 = vmatpush2.bf16.xpose.msra.mxu0 0
        %1803 = vmatprep.subr.bf16.mxu0 0
        %1804 = vmatpush2.bf16.xpose.msra.mxu0 0
        %1805 = vmatprep.mubr.bf16.mxu0 0
        %1806 = vmatmul.mubr.bf16.gmra.mxu0 %v1726
        %v1807 = vpop.f32.mrf.mxu0
        %v1808 = vadd.f32 0.0, %v1807
        %v1809 = vpop.f32.mrf.mxu0
        %v1810 = vpop.f32.mrf.mxu0
        %v1811 = vadd.f32 0.0, %v1810
        %v1812 = vpop.f32.mrf.mxu0
        %1813 = vmatprep.mubr.bf16.mxu0 0
        %1814 = vmatmul.mubr.bf16.gmra.mxu0 %v1729
        %v1815 = vpop.f32.mrf.mxu0
        %v1816 = vadd.f32 0.0, %v1815
        %v1817 = vpop.f32.mrf.mxu0
        %v1818 = vpop.f32.mrf.mxu0
        %v1819 = vadd.f32 0.0, %v1818
        %v1820 = vpop.f32.mrf.mxu0
        %1821 = vmatprep.mubr.bf16.mxu0 0
        %1822 = vmatmul.mubr.bf16.gmra.mxu0 %v1732
        %v1823 = vpop.f32.mrf.mxu0
        %v1824 = vadd.f32 0.0, %v1823
        %v1825 = vpop.f32.mrf.mxu0
        %v1826 = vpop.f32.mrf.mxu0
        %v1827 = vadd.f32 0.0, %v1826
        %v1828 = vpop.f32.mrf.mxu0
        %1829 = vmatprep.mubr.bf16.mxu0 0
        %1830 = vmatmul.mubr.bf16.gmra.mxu0 %v1735
        %v1831 = vpop.f32.mrf.mxu0
        %v1832 = vadd.f32 0.0, %v1831
        %v1833 = vpop.f32.mrf.mxu0
        %v1834 = vpop.f32.mrf.mxu0
        %v1835 = vadd.f32 0.0, %v1834
        %v1836 = vpop.f32.mrf.mxu0
        %1837 = vmatprep.mubr.bf16.mxu0 0
        %1838 = vmatmul.mubr.bf16.gmra.mxu0 %v1738
        %v1839 = vpop.f32.mrf.mxu0
        %v1840 = vadd.f32 0.0, %v1839
        %v1841 = vpop.f32.mrf.mxu0
        %v1842 = vpop.f32.mrf.mxu0
        %v1843 = vadd.f32 0.0, %v1842
        %v1844 = vpop.f32.mrf.mxu0
        %1845 = vmatprep.mubr.bf16.mxu0 0
        %1846 = vmatmul.mubr.bf16.gmra.mxu0 %v1741
        %v1847 = vpop.f32.mrf.mxu0
        %v1848 = vadd.f32 0.0, %v1847
        %v1849 = vpop.f32.mrf.mxu0
        %v1850 = vpop.f32.mrf.mxu0
        %v1851 = vadd.f32 0.0, %v1850
        %v1852 = vpop.f32.mrf.mxu0
        %1853 = vmatprep.mubr.bf16.mxu0 0
        %1854 = vmatmul.mubr.bf16.gmra.mxu0 %v1744
        %v1855 = vpop.f32.mrf.mxu0
        %v1856 = vadd.f32 0.0, %v1855
        %v1857 = vpop.f32.mrf.mxu0
        %v1858 = vpop.f32.mrf.mxu0
        %v1859 = vadd.f32 0.0, %v1858
        %v1860 = vpop.f32.mrf.mxu0
        %1861 = vmatprep.mubr.bf16.mxu0 0
        %1862 = vmatmul.mubr.bf16.gmra.mxu0 %v1747
        %v1863 = vpop.f32.mrf.mxu0
        %v1864 = vadd.f32 0.0, %v1863
        %v1865 = vpop.f32.mrf.mxu0
        %v1866 = vpop.f32.mrf.mxu0
        %v1867 = vadd.f32 0.0, %v1866
        %v1868 = vpop.f32.mrf.mxu0
        %1869 = vdwg.mxu0
        %1870 = vmax.xlane.f32.xlu0 %v1808
        %v1871 = vpop.xlane.xlu0 %1870
        %1872 = vmax.xlane.f32.xlu0 %v1811
        %v1873 = vpop.xlane.xlu0 %1872
        %1874 = vmax.xlane.f32.xlu0 %v1816
        %v1875 = vpop.xlane.xlu0 %1874
        %1876 = vmax.xlane.f32.xlu0 %v1819
        %v1877 = vpop.xlane.xlu0 %1876
        %1878 = vmax.xlane.f32.xlu0 %v1824
        %v1879 = vpop.xlane.xlu0 %1878
        %1880 = vmax.xlane.f32.xlu0 %v1827
        %v1881 = vpop.xlane.xlu0 %1880
        %1882 = vmax.xlane.f32.xlu0 %v1832
        %v1883 = vpop.xlane.xlu0 %1882
        %1884 = vmax.xlane.f32.xlu0 %v1835
        %v1885 = vpop.xlane.xlu0 %1884
        %1886 = vmax.xlane.f32.xlu0 %v1840
        %v1887 = vpop.xlane.xlu0 %1886
        %1888 = vmax.xlane.f32.xlu0 %v1843
        %v1889 = vpop.xlane.xlu0 %1888
        %1890 = vmax.xlane.f32.xlu0 %v1848
        %v1891 = vpop.xlane.xlu0 %1890
        %1892 = vmax.xlane.f32.xlu0 %v1851
        %v1893 = vpop.xlane.xlu0 %1892
        %1894 = vmax.xlane.f32.xlu0 %v1856
        %v1895 = vpop.xlane.xlu0 %1894
        %1896 = vmax.xlane.f32.xlu0 %v1859
        %v1897 = vpop.xlane.xlu0 %1896
        %1898 = vmax.xlane.f32.xlu0 %v1864
        %v1899 = vpop.xlane.xlu0 %1898
        %1900 = vmax.xlane.f32.xlu0 %v1867
        %v1901 = vpop.xlane.xlu0 %1900
        %v1902 = vsub.f32 %v1808, %v1871
        %v1903 = vsub.f32 %v1811, %v1873
        %v1904 = vsub.f32 %v1816, %v1875
        %v1905 = vsub.f32 %v1819, %v1877
        %v1906 = vsub.f32 %v1824, %v1879
        %v1907 = vsub.f32 %v1827, %v1881
        %v1908 = vsub.f32 %v1832, %v1883
        %v1909 = vsub.f32 %v1835, %v1885
        %v1910 = vsub.f32 %v1840, %v1887
        %v1911 = vsub.f32 %v1843, %v1889
        %v1912 = vsub.f32 %v1848, %v1891
        %v1913 = vsub.f32 %v1851, %v1893
        %v1914 = vsub.f32 %v1856, %v1895
        %v1915 = vsub.f32 %v1859, %v1897
        %v1916 = vsub.f32 %v1864, %v1899
        %v1917 = vsub.f32 %v1867, %v1901
        %v1918 = vmul.f32 %v1902, 1.442695
        %v1919 = vpow.pop %v1918
        %v1920 = vmul.f32 %v1903, 1.442695
        %v1921 = vpow.pop %v1920
        %v1922 = vmul.f32 %v1904, 1.442695
        %v1923 = vpow.pop %v1922
        %v1924 = vmul.f32 %v1905, 1.442695
        %v1925 = vpow.pop %v1924
        %v1926 = vmul.f32 %v1906, 1.442695
        %v1927 = vpow.pop %v1926
        %v1928 = vmul.f32 %v1907, 1.442695
        %v1929 = vpow.pop %v1928
        %v1930 = vmul.f32 %v1908, 1.442695
        %v1931 = vpow.pop %v1930
        %v1932 = vmul.f32 %v1909, 1.442695
        %v1933 = vpow.pop %v1932
        %v1934 = vmul.f32 %v1910, 1.442695
        %v1935 = vpow.pop %v1934
        %v1936 = vmul.f32 %v1911, 1.442695
        %v1937 = vpow.pop %v1936
        %v1938 = vmul.f32 %v1912, 1.442695
        %v1939 = vpow.pop %v1938
        %v1940 = vmul.f32 %v1913, 1.442695
        %v1941 = vpow.pop %v1940
        %v1942 = vmul.f32 %v1914, 1.442695
        %v1943 = vpow.pop %v1942
        %v1944 = vmul.f32 %v1915, 1.442695
        %v1945 = vpow.pop %v1944
        %v1946 = vmul.f32 %v1916, 1.442695
        %v1947 = vpow.pop %v1946
        %v1948 = vmul.f32 %v1917, 1.442695
        %v1949 = vpow.pop %v1948
        %1950 = vadd.xlane.f32.xlu0 %v1919
        %v1951 = vpop.xlane.xlu0 %1950
        %1952 = vadd.xlane.f32.xlu0 %v1921
        %v1953 = vpop.xlane.xlu0 %1952
        %1954 = vadd.xlane.f32.xlu0 %v1923
        %v1955 = vpop.xlane.xlu0 %1954
        %1956 = vadd.xlane.f32.xlu0 %v1925
        %v1957 = vpop.xlane.xlu0 %1956
        %1958 = vadd.xlane.f32.xlu0 %v1927
        %v1959 = vpop.xlane.xlu0 %1958
        %1960 = vadd.xlane.f32.xlu0 %v1929
        %v1961 = vpop.xlane.xlu0 %1960
        %1962 = vadd.xlane.f32.xlu0 %v1931
        %v1963 = vpop.xlane.xlu0 %1962
        %1964 = vadd.xlane.f32.xlu0 %v1933
        %v1965 = vpop.xlane.xlu0 %1964
        %1966 = vadd.xlane.f32.xlu0 %v1935
        %v1967 = vpop.xlane.xlu0 %1966
        %1968 = vadd.xlane.f32.xlu0 %v1937
        %v1969 = vpop.xlane.xlu0 %1968
        %1970 = vadd.xlane.f32.xlu0 %v1939
        %v1971 = vpop.xlane.xlu0 %1970
        %1972 = vadd.xlane.f32.xlu0 %v1941
        %v1973 = vpop.xlane.xlu0 %1972
        %1974 = vadd.xlane.f32.xlu0 %v1943
        %v1975 = vpop.xlane.xlu0 %1974
        %1976 = vadd.xlane.f32.xlu0 %v1945
        %v1977 = vpop.xlane.xlu0 %1976
        %1978 = vadd.xlane.f32.xlu0 %v1947
        %v1979 = vpop.xlane.xlu0 %1978
        %1980 = vadd.xlane.f32.xlu0 %v1949
        %v1981 = vpop.xlane.xlu0 %1980
        %v1982 = vpack.c.bf16 %v1921, %v1919
        %v1983 = vpack.c.bf16 %v1925, %v1923
        %v1984 = vpack.c.bf16 %v1929, %v1927
        %v1985 = vpack.c.bf16 %v1933, %v1931
        %v1986 = vpack.c.bf16 %v1937, %v1935
        %v1987 = vpack.c.bf16 %v1941, %v1939
        %v1988 = vpack.c.bf16 %v1945, %v1943
        %v1989 = vpack.c.bf16 %v1949, %v1947
        %1998 = vrot.lane.b32.xlu0 %v1459, 96
        %v1999 = vpop.permute.xlu0 %1998
        %2000 = vrot.lane.b32.xlu0 %v1460, 96
        %v2001 = vpop.permute.xlu0 %2000
        %2002 = vrot.lane.b32.xlu0 %v1461, 96
        %v2003 = vpop.permute.xlu0 %2002
        %2004 = vrot.lane.b32.xlu0 %v1462, 96
        %v2005 = vpop.permute.xlu0 %2004
        %2006 = vrot.lane.b32.xlu0 %v1463, 96
        %v2007 = vpop.permute.xlu0 %2006
        %2008 = vrot.lane.b32.xlu0 %v1464, 96
        %v2009 = vpop.permute.xlu0 %2008
        %2010 = vrot.lane.b32.xlu0 %v1465, 96
        %v2011 = vpop.permute.xlu0 %2010
        %2012 = vrot.lane.b32.xlu0 %v1466, 96
        %v2013 = vpop.permute.xlu0 %2012
        %2022 = vmatprep.subr.bf16.mxu0 0
        %2023 = vmatpush1.bf16.msra.mxu0 %v2013
        %2024 = vmatprep.subr.bf16.mxu0 0
        %2025 = vmatpush1.bf16.msra.mxu0 %v2011
        %2026 = vmatprep.subr.bf16.mxu0 0
        %2027 = vmatpush1.bf16.msra.mxu0 %v2009
        %2028 = vmatprep.subr.bf16.mxu0 0
        %2029 = vmatpush1.bf16.msra.mxu0 %v2007
        %2030 = vmatprep.subr.bf16.mxu0 0
        %2031 = vmatpush1.bf16.msra.mxu0 %v2005
        %2032 = vmatprep.subr.bf16.mxu0 0
        %2033 = vmatpush1.bf16.msra.mxu0 %v2003
        %2034 = vmatprep.subr.bf16.mxu0 0
        %2035 = vmatpush1.bf16.msra.mxu0 %v2001
        %2036 = vmatprep.subr.bf16.mxu0 0
        %2037 = vmatpush1.bf16.msra.mxu0 %v1999
        %2038 = vmatprep.subr.bf16.mxu0 0
        %2039 = vmatpush2.bf16.msra.mxu0 0
        %2040 = vmatprep.subr.bf16.mxu0 0
        %2041 = vmatpush2.bf16.msra.mxu0 0
        %2042 = vmatprep.subr.bf16.mxu0 0
        %2043 = vmatpush2.bf16.msra.mxu0 0
        %2044 = vmatprep.subr.bf16.mxu0 0
        %2045 = vmatpush2.bf16.msra.mxu0 0
        %2046 = vmatprep.subr.bf16.mxu0 0
        %2047 = vmatpush2.bf16.msra.mxu0 0
        %2048 = vmatprep.subr.bf16.mxu0 0
        %2049 = vmatpush2.bf16.msra.mxu0 0
        %2050 = vmatprep.subr.bf16.mxu0 0
        %2051 = vmatpush2.bf16.msra.mxu0 0
        %2052 = vmatprep.subr.bf16.mxu0 0
        %2053 = vmatpush2.bf16.msra.mxu0 0
        %2054 = vmatprep.mubr.bf16.mxu0 0
        %2055 = vmatmul.mubr.bf16.gmra.mxu0 %v1982
        %v2056 = vpop.f32.mrf.mxu0
        %v2057 = vadd.f32 0.0, %v2056
        %v2058 = vpop.f32.mrf.mxu0
        %v2059 = vpop.f32.mrf.mxu0
        %v2060 = vadd.f32 0.0, %v2059
        %v2061 = vpop.f32.mrf.mxu0
        %2062 = vmatprep.mubr.bf16.mxu0 0
        %2063 = vmatmul.mubr.bf16.gmra.mxu0 %v1983
        %v2064 = vpop.f32.mrf.mxu0
        %v2065 = vadd.f32 0.0, %v2064
        %v2066 = vpop.f32.mrf.mxu0
        %v2067 = vpop.f32.mrf.mxu0
        %v2068 = vadd.f32 0.0, %v2067
        %v2069 = vpop.f32.mrf.mxu0
        %2070 = vmatprep.mubr.bf16.mxu0 0
        %2071 = vmatmul.mubr.bf16.gmra.mxu0 %v1984
        %v2072 = vpop.f32.mrf.mxu0
        %v2073 = vadd.f32 0.0, %v2072
        %v2074 = vpop.f32.mrf.mxu0
        %v2075 = vpop.f32.mrf.mxu0
        %v2076 = vadd.f32 0.0, %v2075
        %v2077 = vpop.f32.mrf.mxu0
        %2078 = vmatprep.mubr.bf16.mxu0 0
        %2079 = vmatmul.mubr.bf16.gmra.mxu0 %v1985
        %v2080 = vpop.f32.mrf.mxu0
        %v2081 = vadd.f32 0.0, %v2080
        %v2082 = vpop.f32.mrf.mxu0
        %v2083 = vpop.f32.mrf.mxu0
        %v2084 = vadd.f32 0.0, %v2083
        %v2085 = vpop.f32.mrf.mxu0
        %2086 = vmatprep.mubr.bf16.mxu0 0
        %2087 = vmatmul.mubr.bf16.gmra.mxu0 %v1986
        %v2088 = vpop.f32.mrf.mxu0
        %v2089 = vadd.f32 0.0, %v2088
        %v2090 = vpop.f32.mrf.mxu0
        %v2091 = vpop.f32.mrf.mxu0
        %v2092 = vadd.f32 0.0, %v2091
        %v2093 = vpop.f32.mrf.mxu0
        %2094 = vmatprep.mubr.bf16.mxu0 0
        %2095 = vmatmul.mubr.bf16.gmra.mxu0 %v1987
        %v2096 = vpop.f32.mrf.mxu0
        %v2097 = vadd.f32 0.0, %v2096
        %v2098 = vpop.f32.mrf.mxu0
        %v2099 = vpop.f32.mrf.mxu0
        %v2100 = vadd.f32 0.0, %v2099
        %v2101 = vpop.f32.mrf.mxu0
        %2102 = vmatprep.mubr.bf16.mxu0 0
        %2103 = vmatmul.mubr.bf16.gmra.mxu0 %v1988
        %v2104 = vpop.f32.mrf.mxu0
        %v2105 = vadd.f32 0.0, %v2104
        %v2106 = vpop.f32.mrf.mxu0
        %v2107 = vpop.f32.mrf.mxu0
        %v2108 = vadd.f32 0.0, %v2107
        %v2109 = vpop.f32.mrf.mxu0
        %2110 = vmatprep.mubr.bf16.mxu0 0
        %2111 = vmatmul.mubr.bf16.gmra.mxu0 %v1989
        %v2112 = vpop.f32.mrf.mxu0
        %v2113 = vadd.f32 0.0, %v2112
        %v2114 = vpop.f32.mrf.mxu0
        %v2115 = vpop.f32.mrf.mxu0
        %v2116 = vadd.f32 0.0, %v2115
        %v2117 = vpop.f32.mrf.mxu0
        %2118 = vdwg.mxu0
        %v2119 = vrcp.pop %v1951
        %v2120 = vrcp.pop %v1953
        %v2121 = vrcp.pop %v1955
        %v2122 = vrcp.pop %v1957
        %v2123 = vrcp.pop %v1959
        %v2124 = vrcp.pop %v1961
        %v2125 = vrcp.pop %v1963
        %v2126 = vrcp.pop %v1965
        %v2127 = vrcp.pop %v1967
        %v2128 = vrcp.pop %v1969
        %v2129 = vrcp.pop %v1971
        %v2130 = vrcp.pop %v1973
        %v2131 = vrcp.pop %v1975
        %v2132 = vrcp.pop %v1977
        %v2133 = vrcp.pop %v1979
        %v2134 = vrcp.pop %v1981
        %v2135 = vmul.f32 %v2057, %v2119
        %v2136 = vmul.f32 %v2060, %v2120
        %v2137 = vmul.f32 %v2065, %v2121
        %v2138 = vmul.f32 %v2068, %v2122
        %v2139 = vmul.f32 %v2073, %v2123
        %v2140 = vmul.f32 %v2076, %v2124
        %v2141 = vmul.f32 %v2081, %v2125
        %v2142 = vmul.f32 %v2084, %v2126
        %v2143 = vmul.f32 %v2089, %v2127
        %v2144 = vmul.f32 %v2092, %v2128
        %v2145 = vmul.f32 %v2097, %v2129
        %v2146 = vmul.f32 %v2100, %v2130
        %v2147 = vmul.f32 %v2105, %v2131
        %v2148 = vmul.f32 %v2108, %v2132
        %v2149 = vmul.f32 %v2113, %v2133
        %v2150 = vmul.f32 %v2116, %v2134
        %v2151 = vpack.c.bf16 %v2136, %v2135
        %v2152 = vpack.c.bf16 %v2138, %v2137
        %v2153 = vpack.c.bf16 %v2140, %v2139
        %v2154 = vpack.c.bf16 %v2142, %v2141
        %v2155 = vpack.c.bf16 %v2144, %v2143
        %v2156 = vpack.c.bf16 %v2146, %v2145
        %v2157 = vpack.c.bf16 %v2148, %v2147
        %v2158 = vpack.c.bf16 %v2150, %v2149
        %v2167 = vunpack.c.l.b16 %v2151
        %v2168 = vunpack.c.h.b16 %v2151
        %v2169 = vunpack.c.l.b16 %v2152
        %v2170 = vunpack.c.h.b16 %v2152
        %v2171 = vunpack.c.l.b16 %v2153
        %v2172 = vunpack.c.h.b16 %v2153
        %v2173 = vunpack.c.l.b16 %v2154
        %v2174 = vunpack.c.h.b16 %v2154
        %v2175 = vunpack.c.l.b16 %v2155
        %v2176 = vunpack.c.h.b16 %v2155
        %v2177 = vunpack.c.l.b16 %v2156
        %v2178 = vunpack.c.h.b16 %v2156
        %v2179 = vunpack.c.l.b16 %v2157
        %v2180 = vunpack.c.h.b16 %v2157
        %v2181 = vunpack.c.l.b16 %v2158
        %v2182 = vunpack.c.h.b16 %v2158
        %v2183 = vpack.c.b16 %v2167, %v2167
        %v2184 = vpack.c.b16 %v2168, %v2168
        %v2185 = vpack.c.b16 %v2169, %v2169
        %v2186 = vpack.c.b16 %v2170, %v2170
        %v2187 = vpack.c.b16 %v2171, %v2171
        %v2188 = vpack.c.b16 %v2172, %v2172
        %v2189 = vpack.c.b16 %v2173, %v2173
        %v2190 = vpack.c.b16 %v2174, %v2174
        %v2191 = vpack.c.b16 %v2175, %v2175
        %v2192 = vpack.c.b16 %v2176, %v2176
        %v2193 = vpack.c.b16 %v2177, %v2177
        %v2194 = vpack.c.b16 %v2178, %v2178
        %v2195 = vpack.c.b16 %v2179, %v2179
        %v2196 = vpack.c.b16 %v2180, %v2180
        %v2197 = vpack.c.b16 %v2181, %v2181
        %v2198 = vpack.c.b16 %v2182, %v2182
        %2199 = vrot.lane.b32.xlu0 %v2183, 32
        %v2200 = vpop.permute.xlu0 %2199
        %2201 = vrot.lane.b32.xlu0 %v2184, 32
        %v2202 = vpop.permute.xlu0 %2201
        %2203 = vrot.lane.b32.xlu0 %v2185, 32
        %v2204 = vpop.permute.xlu0 %2203
        %2205 = vrot.lane.b32.xlu0 %v2186, 32
        %v2206 = vpop.permute.xlu0 %2205
        %2207 = vrot.lane.b32.xlu0 %v2187, 32
        %v2208 = vpop.permute.xlu0 %2207
        %2209 = vrot.lane.b32.xlu0 %v2188, 32
        %v2210 = vpop.permute.xlu0 %2209
        %2211 = vrot.lane.b32.xlu0 %v2189, 32
        %v2212 = vpop.permute.xlu0 %2211
        %2213 = vrot.lane.b32.xlu0 %v2190, 32
        %v2214 = vpop.permute.xlu0 %2213
        %2215 = vrot.lane.b32.xlu0 %v2191, 32
        %v2216 = vpop.permute.xlu0 %2215
        %2217 = vrot.lane.b32.xlu0 %v2192, 32
        %v2218 = vpop.permute.xlu0 %2217
        %2219 = vrot.lane.b32.xlu0 %v2193, 32
        %v2220 = vpop.permute.xlu0 %2219
        %2221 = vrot.lane.b32.xlu0 %v2194, 32
        %v2222 = vpop.permute.xlu0 %2221
        %2223 = vrot.lane.b32.xlu0 %v2195, 32
        %v2224 = vpop.permute.xlu0 %2223
        %2225 = vrot.lane.b32.xlu0 %v2196, 32
        %v2226 = vpop.permute.xlu0 %2225
        %2227 = vrot.lane.b32.xlu0 %v2197, 32
        %v2228 = vpop.permute.xlu0 %2227
        %2229 = vrot.lane.b32.xlu0 %v2198, 32
        %v2230 = vpop.permute.xlu0 %2229
        %vm2247 = vcmask 519424
        %2248 = vst.msk [vmem:[#allocation2] sm:$0xf] %vm2247, %v2200
        %2249 = vst.msk [vmem:[#allocation2 + $0x4] sm:$0xf] %vm2247, %v2202
        %2250 = vst.msk [vmem:[#allocation2 + $0x8] sm:$0xf] %vm2247, %v2204
        %2251 = vst.msk [vmem:[#allocation2 + $0xc] sm:$0xf] %vm2247, %v2206
        %2252 = vst.msk [vmem:[#allocation2 + $0x10] sm:$0xf] %vm2247, %v2208
        %2253 = vst.msk [vmem:[#allocation2 + $0x14] sm:$0xf] %vm2247, %v2210
        %2254 = vst.msk [vmem:[#allocation2 + $0x18] sm:$0xf] %vm2247, %v2212
        %2255 = vst.msk [vmem:[#allocation2 + $0x1c] sm:$0xf] %vm2247, %v2214
        %2256 = vst.msk [vmem:[#allocation2 + $0x20] sm:$0xf] %vm2247, %v2216
        %2257 = vst.msk [vmem:[#allocation2 + $0x24] sm:$0xf] %vm2247, %v2218
        %2258 = vst.msk [vmem:[#allocation2 + $0x28] sm:$0xf] %vm2247, %v2220
        %2259 = vst.msk [vmem:[#allocation2 + $0x2c] sm:$0xf] %vm2247, %v2222
        %2260 = vst.msk [vmem:[#allocation2 + $0x30] sm:$0xf] %vm2247, %v2224
        %2261 = vst.msk [vmem:[#allocation2 + $0x34] sm:$0xf] %vm2247, %v2226
        %2262 = vst.msk [vmem:[#allocation2 + $0x38] sm:$0xf] %vm2247, %v2228
        %2263 = vst.msk [vmem:[#allocation2 + $0x3c] sm:$0xf] %vm2247, %v2230
        %2264 = vrot.lane.b32.xlu0 %v1177, 64
        %v2265 = vpop.permute.xlu0 %2264
        %2266 = vrot.lane.b32.xlu0 %v1178, 64
        %v2267 = vpop.permute.xlu0 %2266
        %2268 = vrot.lane.b32.xlu0 %v1179, 64
        %v2269 = vpop.permute.xlu0 %2268
        %2270 = vrot.lane.b32.xlu0 %v1180, 64
        %v2271 = vpop.permute.xlu0 %2270
        %2272 = vrot.lane.b32.xlu0 %v1181, 64
        %v2273 = vpop.permute.xlu0 %2272
        %2274 = vrot.lane.b32.xlu0 %v1182, 64
        %v2275 = vpop.permute.xlu0 %2274
        %2276 = vrot.lane.b32.xlu0 %v1183, 64
        %v2277 = vpop.permute.xlu0 %2276
        %2278 = vrot.lane.b32.xlu0 %v1184, 64
        %v2279 = vpop.permute.xlu0 %2278
        %2280 = vrot.lane.b32.xlu0 %v1185, 64
        %v2281 = vpop.permute.xlu0 %2280
        %2282 = vrot.lane.b32.xlu0 %v1186, 64
        %v2283 = vpop.permute.xlu0 %2282
        %2284 = vrot.lane.b32.xlu0 %v1187, 64
        %v2285 = vpop.permute.xlu0 %2284
        %2286 = vrot.lane.b32.xlu0 %v1188, 64
        %v2287 = vpop.permute.xlu0 %2286
        %2288 = vrot.lane.b32.xlu0 %v1189, 64
        %v2289 = vpop.permute.xlu0 %2288
        %2290 = vrot.lane.b32.xlu0 %v1190, 64
        %v2291 = vpop.permute.xlu0 %2290
        %2292 = vrot.lane.b32.xlu0 %v1191, 64
        %v2293 = vpop.permute.xlu0 %2292
        %2294 = vrot.lane.b32.xlu0 %v1192, 64
        %v2295 = vpop.permute.xlu0 %2294
        %v2297 = vsel %vm1193, %v2265, 0
        %v2300 = vsel %vm1193, %v2267, 0
        %v2303 = vsel %vm1193, %v2269, 0
        %v2306 = vsel %vm1193, %v2271, 0
        %v2309 = vsel %vm1193, %v2273, 0
        %v2312 = vsel %vm1193, %v2275, 0
        %v2315 = vsel %vm1193, %v2277, 0
        %v2318 = vsel %vm1193, %v2279, 0
        %v2321 = vsel %vm1193, %v2281, 0
        %v2324 = vsel %vm1193, %v2283, 0
        %v2327 = vsel %vm1193, %v2285, 0
        %v2330 = vsel %vm1193, %v2287, 0
        %v2333 = vsel %vm1193, %v2289, 0
        %v2336 = vsel %vm1193, %v2291, 0
        %v2339 = vsel %vm1193, %v2293, 0
        %v2342 = vsel %vm1193, %v2295, 0
        %2344 = vmatprep.subr.bf16.mxu0 0
        %2345 = vmatpush1.bf16.xpose.msra.mxu0 %v2342
        %2346 = vmatprep.subr.bf16.mxu0 0
        %2347 = vmatpush1.bf16.xpose.msra.mxu0 %v2339
        %2348 = vmatprep.subr.bf16.mxu0 0
        %2349 = vmatpush1.bf16.xpose.msra.mxu0 %v2336
        %2350 = vmatprep.subr.bf16.mxu0 0
        %2351 = vmatpush1.bf16.xpose.msra.mxu0 %v2333
        %2352 = vmatprep.subr.bf16.mxu0 0
        %2353 = vmatpush1.bf16.xpose.msra.mxu0 %v2330
        %2354 = vmatprep.subr.bf16.mxu0 0
        %2355 = vmatpush1.bf16.xpose.msra.mxu0 %v2327
        %2356 = vmatprep.subr.bf16.mxu0 0
        %2357 = vmatpush1.bf16.xpose.msra.mxu0 %v2324
        %2358 = vmatprep.subr.bf16.mxu0 0
        %2359 = vmatpush1.bf16.xpose.msra.mxu0 %v2321
        %2360 = vmatprep.subr.bf16.mxu0 0
        %2361 = vmatpush2.bf16.xpose.msra.mxu0 0
        %2362 = vmatprep.subr.bf16.mxu0 0
        %2363 = vmatpush2.bf16.xpose.msra.mxu0 0
        %2364 = vmatprep.subr.bf16.mxu0 0
        %2365 = vmatpush2.bf16.xpose.msra.mxu0 0
        %2366 = vmatprep.subr.bf16.mxu0 0
        %2367 = vmatpush2.bf16.xpose.msra.mxu0 0
        %2368 = vmatprep.subr.bf16.mxu0 0
        %2369 = vmatpush2.bf16.xpose.msra.mxu0 0
        %2370 = vmatprep.subr.bf16.mxu0 0
        %2371 = vmatpush2.bf16.xpose.msra.mxu0 0
        %2372 = vmatprep.subr.bf16.mxu0 0
        %2373 = vmatpush2.bf16.xpose.msra.mxu0 0
        %2374 = vmatprep.subr.bf16.mxu0 0
        %2375 = vmatpush2.bf16.xpose.msra.mxu0 0
        %2376 = vmatprep.mubr.bf16.mxu0 0
        %2377 = vmatmul.mubr.bf16.gmra.mxu0 %v2297
        %v2378 = vpop.f32.mrf.mxu0
        %v2379 = vadd.f32 0.0, %v2378
        %v2380 = vpop.f32.mrf.mxu0
        %v2381 = vpop.f32.mrf.mxu0
        %v2382 = vadd.f32 0.0, %v2381
        %v2383 = vpop.f32.mrf.mxu0
        %2384 = vmatprep.mubr.bf16.mxu0 0
        %2385 = vmatmul.mubr.bf16.gmra.mxu0 %v2300
        %v2386 = vpop.f32.mrf.mxu0
        %v2387 = vadd.f32 0.0, %v2386
        %v2388 = vpop.f32.mrf.mxu0
        %v2389 = vpop.f32.mrf.mxu0
        %v2390 = vadd.f32 0.0, %v2389
        %v2391 = vpop.f32.mrf.mxu0
        %2392 = vmatprep.mubr.bf16.mxu0 0
        %2393 = vmatmul.mubr.bf16.gmra.mxu0 %v2303
        %v2394 = vpop.f32.mrf.mxu0
        %v2395 = vadd.f32 0.0, %v2394
        %v2396 = vpop.f32.mrf.mxu0
        %v2397 = vpop.f32.mrf.mxu0
        %v2398 = vadd.f32 0.0, %v2397
        %v2399 = vpop.f32.mrf.mxu0
        %2400 = vmatprep.mubr.bf16.mxu0 0
        %2401 = vmatmul.mubr.bf16.gmra.mxu0 %v2306
        %v2402 = vpop.f32.mrf.mxu0
        %v2403 = vadd.f32 0.0, %v2402
        %v2404 = vpop.f32.mrf.mxu0
        %v2405 = vpop.f32.mrf.mxu0
        %v2406 = vadd.f32 0.0, %v2405
        %v2407 = vpop.f32.mrf.mxu0
        %2408 = vmatprep.mubr.bf16.mxu0 0
        %2409 = vmatmul.mubr.bf16.gmra.mxu0 %v2309
        %v2410 = vpop.f32.mrf.mxu0
        %v2411 = vadd.f32 0.0, %v2410
        %v2412 = vpop.f32.mrf.mxu0
        %v2413 = vpop.f32.mrf.mxu0
        %v2414 = vadd.f32 0.0, %v2413
        %v2415 = vpop.f32.mrf.mxu0
        %2416 = vmatprep.mubr.bf16.mxu0 0
        %2417 = vmatmul.mubr.bf16.gmra.mxu0 %v2312
        %v2418 = vpop.f32.mrf.mxu0
        %v2419 = vadd.f32 0.0, %v2418
        %v2420 = vpop.f32.mrf.mxu0
        %v2421 = vpop.f32.mrf.mxu0
        %v2422 = vadd.f32 0.0, %v2421
        %v2423 = vpop.f32.mrf.mxu0
        %2424 = vmatprep.mubr.bf16.mxu0 0
        %2425 = vmatmul.mubr.bf16.gmra.mxu0 %v2315
        %v2426 = vpop.f32.mrf.mxu0
        %v2427 = vadd.f32 0.0, %v2426
        %v2428 = vpop.f32.mrf.mxu0
        %v2429 = vpop.f32.mrf.mxu0
        %v2430 = vadd.f32 0.0, %v2429
        %v2431 = vpop.f32.mrf.mxu0
        %2432 = vmatprep.mubr.bf16.mxu0 0
        %2433 = vmatmul.mubr.bf16.gmra.mxu0 %v2318
        %v2434 = vpop.f32.mrf.mxu0
        %v2435 = vadd.f32 0.0, %v2434
        %v2436 = vpop.f32.mrf.mxu0
        %v2437 = vpop.f32.mrf.mxu0
        %v2438 = vadd.f32 0.0, %v2437
        %v2439 = vpop.f32.mrf.mxu0
        %2440 = vdwg.mxu0
        %2441 = vmax.xlane.f32.xlu0 %v2379
        %v2442 = vpop.xlane.xlu0 %2441
        %2443 = vmax.xlane.f32.xlu0 %v2382
        %v2444 = vpop.xlane.xlu0 %2443
        %2445 = vmax.xlane.f32.xlu0 %v2387
        %v2446 = vpop.xlane.xlu0 %2445
        %2447 = vmax.xlane.f32.xlu0 %v2390
        %v2448 = vpop.xlane.xlu0 %2447
        %2449 = vmax.xlane.f32.xlu0 %v2395
        %v2450 = vpop.xlane.xlu0 %2449
        %2451 = vmax.xlane.f32.xlu0 %v2398
        %v2452 = vpop.xlane.xlu0 %2451
        %2453 = vmax.xlane.f32.xlu0 %v2403
        %v2454 = vpop.xlane.xlu0 %2453
        %2455 = vmax.xlane.f32.xlu0 %v2406
        %v2456 = vpop.xlane.xlu0 %2455
        %2457 = vmax.xlane.f32.xlu0 %v2411
        %v2458 = vpop.xlane.xlu0 %2457
        %2459 = vmax.xlane.f32.xlu0 %v2414
        %v2460 = vpop.xlane.xlu0 %2459
        %2461 = vmax.xlane.f32.xlu0 %v2419
        %v2462 = vpop.xlane.xlu0 %2461
        %2463 = vmax.xlane.f32.xlu0 %v2422
        %v2464 = vpop.xlane.xlu0 %2463
        %2465 = vmax.xlane.f32.xlu0 %v2427
        %v2466 = vpop.xlane.xlu0 %2465
        %2467 = vmax.xlane.f32.xlu0 %v2430
        %v2468 = vpop.xlane.xlu0 %2467
        %2469 = vmax.xlane.f32.xlu0 %v2435
        %v2470 = vpop.xlane.xlu0 %2469
        %2471 = vmax.xlane.f32.xlu0 %v2438
        %v2472 = vpop.xlane.xlu0 %2471
        %v2473 = vsub.f32 %v2379, %v2442
        %v2474 = vsub.f32 %v2382, %v2444
        %v2475 = vsub.f32 %v2387, %v2446
        %v2476 = vsub.f32 %v2390, %v2448
        %v2477 = vsub.f32 %v2395, %v2450
        %v2478 = vsub.f32 %v2398, %v2452
        %v2479 = vsub.f32 %v2403, %v2454
        %v2480 = vsub.f32 %v2406, %v2456
        %v2481 = vsub.f32 %v2411, %v2458
        %v2482 = vsub.f32 %v2414, %v2460
        %v2483 = vsub.f32 %v2419, %v2462
        %v2484 = vsub.f32 %v2422, %v2464
        %v2485 = vsub.f32 %v2427, %v2466
        %v2486 = vsub.f32 %v2430, %v2468
        %v2487 = vsub.f32 %v2435, %v2470
        %v2488 = vsub.f32 %v2438, %v2472
        %v2489 = vmul.f32 %v2473, 1.442695
        %v2490 = vpow.pop %v2489
        %v2491 = vmul.f32 %v2474, 1.442695
        %v2492 = vpow.pop %v2491
        %v2493 = vmul.f32 %v2475, 1.442695
        %v2494 = vpow.pop %v2493
        %v2495 = vmul.f32 %v2476, 1.442695
        %v2496 = vpow.pop %v2495
        %v2497 = vmul.f32 %v2477, 1.442695
        %v2498 = vpow.pop %v2497
        %v2499 = vmul.f32 %v2478, 1.442695
        %v2500 = vpow.pop %v2499
        %v2501 = vmul.f32 %v2479, 1.442695
        %v2502 = vpow.pop %v2501
        %v2503 = vmul.f32 %v2480, 1.442695
        %v2504 = vpow.pop %v2503
        %v2505 = vmul.f32 %v2481, 1.442695
        %v2506 = vpow.pop %v2505
        %v2507 = vmul.f32 %v2482, 1.442695
        %v2508 = vpow.pop %v2507
        %v2509 = vmul.f32 %v2483, 1.442695
        %v2510 = vpow.pop %v2509
        %v2511 = vmul.f32 %v2484, 1.442695
        %v2512 = vpow.pop %v2511
        %v2513 = vmul.f32 %v2485, 1.442695
        %v2514 = vpow.pop %v2513
        %v2515 = vmul.f32 %v2486, 1.442695
        %v2516 = vpow.pop %v2515
        %v2517 = vmul.f32 %v2487, 1.442695
        %v2518 = vpow.pop %v2517
        %v2519 = vmul.f32 %v2488, 1.442695
        %v2520 = vpow.pop %v2519
        %2521 = vadd.xlane.f32.xlu0 %v2490
        %v2522 = vpop.xlane.xlu0 %2521
        %2523 = vadd.xlane.f32.xlu0 %v2492
        %v2524 = vpop.xlane.xlu0 %2523
        %2525 = vadd.xlane.f32.xlu0 %v2494
        %v2526 = vpop.xlane.xlu0 %2525
        %2527 = vadd.xlane.f32.xlu0 %v2496
        %v2528 = vpop.xlane.xlu0 %2527
        %2529 = vadd.xlane.f32.xlu0 %v2498
        %v2530 = vpop.xlane.xlu0 %2529
        %2531 = vadd.xlane.f32.xlu0 %v2500
        %v2532 = vpop.xlane.xlu0 %2531
        %2533 = vadd.xlane.f32.xlu0 %v2502
        %v2534 = vpop.xlane.xlu0 %2533
        %2535 = vadd.xlane.f32.xlu0 %v2504
        %v2536 = vpop.xlane.xlu0 %2535
        %2537 = vadd.xlane.f32.xlu0 %v2506
        %v2538 = vpop.xlane.xlu0 %2537
        %2539 = vadd.xlane.f32.xlu0 %v2508
        %v2540 = vpop.xlane.xlu0 %2539
        %2541 = vadd.xlane.f32.xlu0 %v2510
        %v2542 = vpop.xlane.xlu0 %2541
        %2543 = vadd.xlane.f32.xlu0 %v2512
        %v2544 = vpop.xlane.xlu0 %2543
        %2545 = vadd.xlane.f32.xlu0 %v2514
        %v2546 = vpop.xlane.xlu0 %2545
        %2547 = vadd.xlane.f32.xlu0 %v2516
        %v2548 = vpop.xlane.xlu0 %2547
        %2549 = vadd.xlane.f32.xlu0 %v2518
        %v2550 = vpop.xlane.xlu0 %2549
        %2551 = vadd.xlane.f32.xlu0 %v2520
        %v2552 = vpop.xlane.xlu0 %2551
        %v2553 = vpack.c.bf16 %v2492, %v2490
        %v2554 = vpack.c.bf16 %v2496, %v2494
        %v2555 = vpack.c.bf16 %v2500, %v2498
        %v2556 = vpack.c.bf16 %v2504, %v2502
        %v2557 = vpack.c.bf16 %v2508, %v2506
        %v2558 = vpack.c.bf16 %v2512, %v2510
        %v2559 = vpack.c.bf16 %v2516, %v2514
        %v2560 = vpack.c.bf16 %v2520, %v2518
        %2561 = vrot.lane.b32.xlu0 %v1459, 64
        %v2562 = vpop.permute.xlu0 %2561
        %2563 = vrot.lane.b32.xlu0 %v1460, 64
        %v2564 = vpop.permute.xlu0 %2563
        %2565 = vrot.lane.b32.xlu0 %v1461, 64
        %v2566 = vpop.permute.xlu0 %2565
        %2567 = vrot.lane.b32.xlu0 %v1462, 64
        %v2568 = vpop.permute.xlu0 %2567
        %2569 = vrot.lane.b32.xlu0 %v1463, 64
        %v2570 = vpop.permute.xlu0 %2569
        %2571 = vrot.lane.b32.xlu0 %v1464, 64
        %v2572 = vpop.permute.xlu0 %2571
        %2573 = vrot.lane.b32.xlu0 %v1465, 64
        %v2574 = vpop.permute.xlu0 %2573
        %2575 = vrot.lane.b32.xlu0 %v1466, 64
        %v2576 = vpop.permute.xlu0 %2575
        %2585 = vmatprep.subr.bf16.mxu0 0
        %2586 = vmatpush1.bf16.msra.mxu0 %v2576
        %2587 = vmatprep.subr.bf16.mxu0 0
        %2588 = vmatpush1.bf16.msra.mxu0 %v2574
        %2589 = vmatprep.subr.bf16.mxu0 0
        %2590 = vmatpush1.bf16.msra.mxu0 %v2572
        %2591 = vmatprep.subr.bf16.mxu0 0
        %2592 = vmatpush1.bf16.msra.mxu0 %v2570
        %2593 = vmatprep.subr.bf16.mxu0 0
        %2594 = vmatpush1.bf16.msra.mxu0 %v2568
        %2595 = vmatprep.subr.bf16.mxu0 0
        %2596 = vmatpush1.bf16.msra.mxu0 %v2566
        %2597 = vmatprep.subr.bf16.mxu0 0
        %2598 = vmatpush1.bf16.msra.mxu0 %v2564
        %2599 = vmatprep.subr.bf16.mxu0 0
        %2600 = vmatpush1.bf16.msra.mxu0 %v2562
        %2601 = vmatprep.subr.bf16.mxu0 0
        %2602 = vmatpush2.bf16.msra.mxu0 0
        %2603 = vmatprep.subr.bf16.mxu0 0
        %2604 = vmatpush2.bf16.msra.mxu0 0
        %2605 = vmatprep.subr.bf16.mxu0 0
        %2606 = vmatpush2.bf16.msra.mxu0 0
        %2607 = vmatprep.subr.bf16.mxu0 0
        %2608 = vmatpush2.bf16.msra.mxu0 0
        %2609 = vmatprep.subr.bf16.mxu0 0
        %2610 = vmatpush2.bf16.msra.mxu0 0
        %2611 = vmatprep.subr.bf16.mxu0 0
        %2612 = vmatpush2.bf16.msra.mxu0 0
        %2613 = vmatprep.subr.bf16.mxu0 0
        %2614 = vmatpush2.bf16.msra.mxu0 0
        %2615 = vmatprep.subr.bf16.mxu0 0
        %2616 = vmatpush2.bf16.msra.mxu0 0
        %2617 = vmatprep.mubr.bf16.mxu0 0
        %2618 = vmatmul.mubr.bf16.gmra.mxu0 %v2553
        %v2619 = vpop.f32.mrf.mxu0
        %v2620 = vadd.f32 0.0, %v2619
        %v2621 = vpop.f32.mrf.mxu0
        %v2622 = vpop.f32.mrf.mxu0
        %v2623 = vadd.f32 0.0, %v2622
        %v2624 = vpop.f32.mrf.mxu0
        %2625 = vmatprep.mubr.bf16.mxu0 0
        %2626 = vmatmul.mubr.bf16.gmra.mxu0 %v2554
        %v2627 = vpop.f32.mrf.mxu0
        %v2628 = vadd.f32 0.0, %v2627
        %v2629 = vpop.f32.mrf.mxu0
        %v2630 = vpop.f32.mrf.mxu0
        %v2631 = vadd.f32 0.0, %v2630
        %v2632 = vpop.f32.mrf.mxu0
        %2633 = vmatprep.mubr.bf16.mxu0 0
        %2634 = vmatmul.mubr.bf16.gmra.mxu0 %v2555
        %v2635 = vpop.f32.mrf.mxu0
        %v2636 = vadd.f32 0.0, %v2635
        %v2637 = vpop.f32.mrf.mxu0
        %v2638 = vpop.f32.mrf.mxu0
        %v2639 = vadd.f32 0.0, %v2638
        %v2640 = vpop.f32.mrf.mxu0
        %2641 = vmatprep.mubr.bf16.mxu0 0
        %2642 = vmatmul.mubr.bf16.gmra.mxu0 %v2556
        %v2643 = vpop.f32.mrf.mxu0
        %v2644 = vadd.f32 0.0, %v2643
        %v2645 = vpop.f32.mrf.mxu0
        %v2646 = vpop.f32.mrf.mxu0
        %v2647 = vadd.f32 0.0, %v2646
        %v2648 = vpop.f32.mrf.mxu0
        %2649 = vmatprep.mubr.bf16.mxu0 0
        %2650 = vmatmul.mubr.bf16.gmra.mxu0 %v2557
        %v2651 = vpop.f32.mrf.mxu0
        %v2652 = vadd.f32 0.0, %v2651
        %v2653 = vpop.f32.mrf.mxu0
        %v2654 = vpop.f32.mrf.mxu0
        %v2655 = vadd.f32 0.0, %v2654
        %v2656 = vpop.f32.mrf.mxu0
        %2657 = vmatprep.mubr.bf16.mxu0 0
        %2658 = vmatmul.mubr.bf16.gmra.mxu0 %v2558
        %v2659 = vpop.f32.mrf.mxu0
        %v2660 = vadd.f32 0.0, %v2659
        %v2661 = vpop.f32.mrf.mxu0
        %v2662 = vpop.f32.mrf.mxu0
        %v2663 = vadd.f32 0.0, %v2662
        %v2664 = vpop.f32.mrf.mxu0
        %2665 = vmatprep.mubr.bf16.mxu0 0
        %2666 = vmatmul.mubr.bf16.gmra.mxu0 %v2559
        %v2667 = vpop.f32.mrf.mxu0
        %v2668 = vadd.f32 0.0, %v2667
        %v2669 = vpop.f32.mrf.mxu0
        %v2670 = vpop.f32.mrf.mxu0
        %v2671 = vadd.f32 0.0, %v2670
        %v2672 = vpop.f32.mrf.mxu0
        %2673 = vmatprep.mubr.bf16.mxu0 0
        %2674 = vmatmul.mubr.bf16.gmra.mxu0 %v2560
        %v2675 = vpop.f32.mrf.mxu0
        %v2676 = vadd.f32 0.0, %v2675
        %v2677 = vpop.f32.mrf.mxu0
        %v2678 = vpop.f32.mrf.mxu0
        %v2679 = vadd.f32 0.0, %v2678
        %v2680 = vpop.f32.mrf.mxu0
        %2681 = vdwg.mxu0
        %v2682 = vrcp.pop %v2522
        %v2683 = vrcp.pop %v2524
        %v2684 = vrcp.pop %v2526
        %v2685 = vrcp.pop %v2528
        %v2686 = vrcp.pop %v2530
        %v2687 = vrcp.pop %v2532
        %v2688 = vrcp.pop %v2534
        %v2689 = vrcp.pop %v2536
        %v2690 = vrcp.pop %v2538
        %v2691 = vrcp.pop %v2540
        %v2692 = vrcp.pop %v2542
        %v2693 = vrcp.pop %v2544
        %v2694 = vrcp.pop %v2546
        %v2695 = vrcp.pop %v2548
        %v2696 = vrcp.pop %v2550
        %v2697 = vrcp.pop %v2552
        %v2698 = vmul.f32 %v2620, %v2682
        %v2699 = vmul.f32 %v2623, %v2683
        %v2700 = vmul.f32 %v2628, %v2684
        %v2701 = vmul.f32 %v2631, %v2685
        %v2702 = vmul.f32 %v2636, %v2686
        %v2703 = vmul.f32 %v2639, %v2687
        %v2704 = vmul.f32 %v2644, %v2688
        %v2705 = vmul.f32 %v2647, %v2689
        %v2706 = vmul.f32 %v2652, %v2690
        %v2707 = vmul.f32 %v2655, %v2691
        %v2708 = vmul.f32 %v2660, %v2692
        %v2709 = vmul.f32 %v2663, %v2693
        %v2710 = vmul.f32 %v2668, %v2694
        %v2711 = vmul.f32 %v2671, %v2695
        %v2712 = vmul.f32 %v2676, %v2696
        %v2713 = vmul.f32 %v2679, %v2697
        %v2714 = vpack.c.bf16 %v2699, %v2698
        %v2715 = vpack.c.bf16 %v2701, %v2700
        %v2716 = vpack.c.bf16 %v2703, %v2702
        %v2717 = vpack.c.bf16 %v2705, %v2704
        %v2718 = vpack.c.bf16 %v2707, %v2706
        %v2719 = vpack.c.bf16 %v2709, %v2708
        %v2720 = vpack.c.bf16 %v2711, %v2710
        %v2721 = vpack.c.bf16 %v2713, %v2712
        %v2730 = vunpack.c.l.b16 %v2714
        %v2731 = vunpack.c.h.b16 %v2714
        %v2732 = vunpack.c.l.b16 %v2715
        %v2733 = vunpack.c.h.b16 %v2715
        %v2734 = vunpack.c.l.b16 %v2716
        %v2735 = vunpack.c.h.b16 %v2716
        %v2736 = vunpack.c.l.b16 %v2717
        %v2737 = vunpack.c.h.b16 %v2717
        %v2738 = vunpack.c.l.b16 %v2718
        %v2739 = vunpack.c.h.b16 %v2718
        %v2740 = vunpack.c.l.b16 %v2719
        %v2741 = vunpack.c.h.b16 %v2719
        %v2742 = vunpack.c.l.b16 %v2720
        %v2743 = vunpack.c.h.b16 %v2720
        %v2744 = vunpack.c.l.b16 %v2721
        %v2745 = vunpack.c.h.b16 %v2721
        %v2746 = vpack.c.b16 %v2730, %v2730
        %v2747 = vpack.c.b16 %v2731, %v2731
        %v2748 = vpack.c.b16 %v2732, %v2732
        %v2749 = vpack.c.b16 %v2733, %v2733
        %v2750 = vpack.c.b16 %v2734, %v2734
        %v2751 = vpack.c.b16 %v2735, %v2735
        %v2752 = vpack.c.b16 %v2736, %v2736
        %v2753 = vpack.c.b16 %v2737, %v2737
        %v2754 = vpack.c.b16 %v2738, %v2738
        %v2755 = vpack.c.b16 %v2739, %v2739
        %v2756 = vpack.c.b16 %v2740, %v2740
        %v2757 = vpack.c.b16 %v2741, %v2741
        %v2758 = vpack.c.b16 %v2742, %v2742
        %v2759 = vpack.c.b16 %v2743, %v2743
        %v2760 = vpack.c.b16 %v2744, %v2744
        %v2761 = vpack.c.b16 %v2745, %v2745
        %2762 = vrot.lane.b32.xlu0 %v2746, 64
        %v2763 = vpop.permute.xlu0 %2762
        %2764 = vrot.lane.b32.xlu0 %v2747, 64
        %v2765 = vpop.permute.xlu0 %2764
        %2766 = vrot.lane.b32.xlu0 %v2748, 64
        %v2767 = vpop.permute.xlu0 %2766
        %2768 = vrot.lane.b32.xlu0 %v2749, 64
        %v2769 = vpop.permute.xlu0 %2768
        %2770 = vrot.lane.b32.xlu0 %v2750, 64
        %v2771 = vpop.permute.xlu0 %2770
        %2772 = vrot.lane.b32.xlu0 %v2751, 64
        %v2773 = vpop.permute.xlu0 %2772
        %2774 = vrot.lane.b32.xlu0 %v2752, 64
        %v2775 = vpop.permute.xlu0 %2774
        %2776 = vrot.lane.b32.xlu0 %v2753, 64
        %v2777 = vpop.permute.xlu0 %2776
        %2778 = vrot.lane.b32.xlu0 %v2754, 64
        %v2779 = vpop.permute.xlu0 %2778
        %2780 = vrot.lane.b32.xlu0 %v2755, 64
        %v2781 = vpop.permute.xlu0 %2780
        %2782 = vrot.lane.b32.xlu0 %v2756, 64
        %v2783 = vpop.permute.xlu0 %2782
        %2784 = vrot.lane.b32.xlu0 %v2757, 64
        %v2785 = vpop.permute.xlu0 %2784
        %2786 = vrot.lane.b32.xlu0 %v2758, 64
        %v2787 = vpop.permute.xlu0 %2786
        %2788 = vrot.lane.b32.xlu0 %v2759, 64
        %v2789 = vpop.permute.xlu0 %2788
        %2790 = vrot.lane.b32.xlu0 %v2760, 64
        %v2791 = vpop.permute.xlu0 %2790
        %2792 = vrot.lane.b32.xlu0 %v2761, 64
        %v2793 = vpop.permute.xlu0 %2792
        %vm2810 = vcmask 781824
        %2811 = vst.msk [vmem:[#allocation2] sm:$0xf] %vm2810, %v2763
        %2812 = vst.msk [vmem:[#allocation2 + $0x4] sm:$0xf] %vm2810, %v2765
        %2813 = vst.msk [vmem:[#allocation2 + $0x8] sm:$0xf] %vm2810, %v2767
        %2814 = vst.msk [vmem:[#allocation2 + $0xc] sm:$0xf] %vm2810, %v2769
        %2815 = vst.msk [vmem:[#allocation2 + $0x10] sm:$0xf] %vm2810, %v2771
        %2816 = vst.msk [vmem:[#allocation2 + $0x14] sm:$0xf] %vm2810, %v2773
        %2817 = vst.msk [vmem:[#allocation2 + $0x18] sm:$0xf] %vm2810, %v2775
        %2818 = vst.msk [vmem:[#allocation2 + $0x1c] sm:$0xf] %vm2810, %v2777
        %2819 = vst.msk [vmem:[#allocation2 + $0x20] sm:$0xf] %vm2810, %v2779
        %2820 = vst.msk [vmem:[#allocation2 + $0x24] sm:$0xf] %vm2810, %v2781
        %2821 = vst.msk [vmem:[#allocation2 + $0x28] sm:$0xf] %vm2810, %v2783
        %2822 = vst.msk [vmem:[#allocation2 + $0x2c] sm:$0xf] %vm2810, %v2785
        %2823 = vst.msk [vmem:[#allocation2 + $0x30] sm:$0xf] %vm2810, %v2787
        %2824 = vst.msk [vmem:[#allocation2 + $0x34] sm:$0xf] %vm2810, %v2789
        %2825 = vst.msk [vmem:[#allocation2 + $0x38] sm:$0xf] %vm2810, %v2791
        %2826 = vst.msk [vmem:[#allocation2 + $0x3c] sm:$0xf] %vm2810, %v2793
        %2827 = vrot.lane.b32.xlu0 %v1177, 32
        %v2828 = vpop.permute.xlu0 %2827
        %2829 = vrot.lane.b32.xlu0 %v1178, 32
        %v2830 = vpop.permute.xlu0 %2829
        %2831 = vrot.lane.b32.xlu0 %v1179, 32
        %v2832 = vpop.permute.xlu0 %2831
        %2833 = vrot.lane.b32.xlu0 %v1180, 32
        %v2834 = vpop.permute.xlu0 %2833
        %2835 = vrot.lane.b32.xlu0 %v1181, 32
        %v2836 = vpop.permute.xlu0 %2835
        %2837 = vrot.lane.b32.xlu0 %v1182, 32
        %v2838 = vpop.permute.xlu0 %2837
        %2839 = vrot.lane.b32.xlu0 %v1183, 32
        %v2840 = vpop.permute.xlu0 %2839
        %2841 = vrot.lane.b32.xlu0 %v1184, 32
        %v2842 = vpop.permute.xlu0 %2841
        %2843 = vrot.lane.b32.xlu0 %v1185, 32
        %v2844 = vpop.permute.xlu0 %2843
        %2845 = vrot.lane.b32.xlu0 %v1186, 32
        %v2846 = vpop.permute.xlu0 %2845
        %2847 = vrot.lane.b32.xlu0 %v1187, 32
        %v2848 = vpop.permute.xlu0 %2847
        %2849 = vrot.lane.b32.xlu0 %v1188, 32
        %v2850 = vpop.permute.xlu0 %2849
        %2851 = vrot.lane.b32.xlu0 %v1189, 32
        %v2852 = vpop.permute.xlu0 %2851
        %2853 = vrot.lane.b32.xlu0 %v1190, 32
        %v2854 = vpop.permute.xlu0 %2853
        %2855 = vrot.lane.b32.xlu0 %v1191, 32
        %v2856 = vpop.permute.xlu0 %2855
        %2857 = vrot.lane.b32.xlu0 %v1192, 32
        %v2858 = vpop.permute.xlu0 %2857
        %v2860 = vsel %vm1193, %v2828, 0
        %v2863 = vsel %vm1193, %v2830, 0
        %v2866 = vsel %vm1193, %v2832, 0
        %v2869 = vsel %vm1193, %v2834, 0
        %v2872 = vsel %vm1193, %v2836, 0
        %v2875 = vsel %vm1193, %v2838, 0
        %v2878 = vsel %vm1193, %v2840, 0
        %v2881 = vsel %vm1193, %v2842, 0
        %v2884 = vsel %vm1193, %v2844, 0
        %v2887 = vsel %vm1193, %v2846, 0
        %v2890 = vsel %vm1193, %v2848, 0
        %v2893 = vsel %vm1193, %v2850, 0
        %v2896 = vsel %vm1193, %v2852, 0
        %v2899 = vsel %vm1193, %v2854, 0
        %v2902 = vsel %vm1193, %v2856, 0
        %v2905 = vsel %vm1193, %v2858, 0
        %2907 = vmatprep.subr.bf16.mxu0 0
        %2908 = vmatpush1.bf16.xpose.msra.mxu0 %v2905
        %2909 = vmatprep.subr.bf16.mxu0 0
        %2910 = vmatpush1.bf16.xpose.msra.mxu0 %v2902
        %2911 = vmatprep.subr.bf16.mxu0 0
        %2912 = vmatpush1.bf16.xpose.msra.mxu0 %v2899
        %2913 = vmatprep.subr.bf16.mxu0 0
        %2914 = vmatpush1.bf16.xpose.msra.mxu0 %v2896
        %2915 = vmatprep.subr.bf16.mxu0 0
        %2916 = vmatpush1.bf16.xpose.msra.mxu0 %v2893
        %2917 = vmatprep.subr.bf16.mxu0 0
        %2918 = vmatpush1.bf16.xpose.msra.mxu0 %v2890
        %2919 = vmatprep.subr.bf16.mxu0 0
        %2920 = vmatpush1.bf16.xpose.msra.mxu0 %v2887
        %2921 = vmatprep.subr.bf16.mxu0 0
        %2922 = vmatpush1.bf16.xpose.msra.mxu0 %v2884
        %2923 = vmatprep.subr.bf16.mxu0 0
        %2924 = vmatpush2.bf16.xpose.msra.mxu0 0
        %2925 = vmatprep.subr.bf16.mxu0 0
        %2926 = vmatpush2.bf16.xpose.msra.mxu0 0
        %2927 = vmatprep.subr.bf16.mxu0 0
        %2928 = vmatpush2.bf16.xpose.msra.mxu0 0
        %2929 = vmatprep.subr.bf16.mxu0 0
        %2930 = vmatpush2.bf16.xpose.msra.mxu0 0
        %2931 = vmatprep.subr.bf16.mxu0 0
        %2932 = vmatpush2.bf16.xpose.msra.mxu0 0
        %2933 = vmatprep.subr.bf16.mxu0 0
        %2934 = vmatpush2.bf16.xpose.msra.mxu0 0
        %2935 = vmatprep.subr.bf16.mxu0 0
        %2936 = vmatpush2.bf16.xpose.msra.mxu0 0
        %2937 = vmatprep.subr.bf16.mxu0 0
        %2938 = vmatpush2.bf16.xpose.msra.mxu0 0
        %2939 = vmatprep.mubr.bf16.mxu0 0
        %2940 = vmatmul.mubr.bf16.gmra.mxu0 %v2860
        %v2941 = vpop.f32.mrf.mxu0
        %v2942 = vadd.f32 0.0, %v2941
        %v2943 = vpop.f32.mrf.mxu0
        %v2944 = vpop.f32.mrf.mxu0
        %v2945 = vadd.f32 0.0, %v2944
        %v2946 = vpop.f32.mrf.mxu0
        %2947 = vmatprep.mubr.bf16.mxu0 0
        %2948 = vmatmul.mubr.bf16.gmra.mxu0 %v2863
        %v2949 = vpop.f32.mrf.mxu0
        %v2950 = vadd.f32 0.0, %v2949
        %v2951 = vpop.f32.mrf.mxu0
        %v2952 = vpop.f32.mrf.mxu0
        %v2953 = vadd.f32 0.0, %v2952
        %v2954 = vpop.f32.mrf.mxu0
        %2955 = vmatprep.mubr.bf16.mxu0 0
        %2956 = vmatmul.mubr.bf16.gmra.mxu0 %v2866
        %v2957 = vpop.f32.mrf.mxu0
        %v2958 = vadd.f32 0.0, %v2957
        %v2959 = vpop.f32.mrf.mxu0
        %v2960 = vpop.f32.mrf.mxu0
        %v2961 = vadd.f32 0.0, %v2960
        %v2962 = vpop.f32.mrf.mxu0
        %2963 = vmatprep.mubr.bf16.mxu0 0
        %2964 = vmatmul.mubr.bf16.gmra.mxu0 %v2869
        %v2965 = vpop.f32.mrf.mxu0
        %v2966 = vadd.f32 0.0, %v2965
        %v2967 = vpop.f32.mrf.mxu0
        %v2968 = vpop.f32.mrf.mxu0
        %v2969 = vadd.f32 0.0, %v2968
        %v2970 = vpop.f32.mrf.mxu0
        %2971 = vmatprep.mubr.bf16.mxu0 0
        %2972 = vmatmul.mubr.bf16.gmra.mxu0 %v2872
        %v2973 = vpop.f32.mrf.mxu0
        %v2974 = vadd.f32 0.0, %v2973
        %v2975 = vpop.f32.mrf.mxu0
        %v2976 = vpop.f32.mrf.mxu0
        %v2977 = vadd.f32 0.0, %v2976
        %v2978 = vpop.f32.mrf.mxu0
        %2979 = vmatprep.mubr.bf16.mxu0 0
        %2980 = vmatmul.mubr.bf16.gmra.mxu0 %v2875
        %v2981 = vpop.f32.mrf.mxu0
        %v2982 = vadd.f32 0.0, %v2981
        %v2983 = vpop.f32.mrf.mxu0
        %v2984 = vpop.f32.mrf.mxu0
        %v2985 = vadd.f32 0.0, %v2984
        %v2986 = vpop.f32.mrf.mxu0
        %2987 = vmatprep.mubr.bf16.mxu0 0
        %2988 = vmatmul.mubr.bf16.gmra.mxu0 %v2878
        %v2989 = vpop.f32.mrf.mxu0
        %v2990 = vadd.f32 0.0, %v2989
        %v2991 = vpop.f32.mrf.mxu0
        %v2992 = vpop.f32.mrf.mxu0
        %v2993 = vadd.f32 0.0, %v2992
        %v2994 = vpop.f32.mrf.mxu0
        %2995 = vmatprep.mubr.bf16.mxu0 0
        %2996 = vmatmul.mubr.bf16.gmra.mxu0 %v2881
        %v2997 = vpop.f32.mrf.mxu0
        %v2998 = vadd.f32 0.0, %v2997
        %v2999 = vpop.f32.mrf.mxu0
        %v3000 = vpop.f32.mrf.mxu0
        %v3001 = vadd.f32 0.0, %v3000
        %v3002 = vpop.f32.mrf.mxu0
        %3003 = vdwg.mxu0
        %3004 = vmax.xlane.f32.xlu0 %v2942
        %v3005 = vpop.xlane.xlu0 %3004
        %3006 = vmax.xlane.f32.xlu0 %v2945
        %v3007 = vpop.xlane.xlu0 %3006
        %3008 = vmax.xlane.f32.xlu0 %v2950
        %v3009 = vpop.xlane.xlu0 %3008
        %3010 = vmax.xlane.f32.xlu0 %v2953
        %v3011 = vpop.xlane.xlu0 %3010
        %3012 = vmax.xlane.f32.xlu0 %v2958
        %v3013 = vpop.xlane.xlu0 %3012
        %3014 = vmax.xlane.f32.xlu0 %v2961
        %v3015 = vpop.xlane.xlu0 %3014
        %3016 = vmax.xlane.f32.xlu0 %v2966
        %v3017 = vpop.xlane.xlu0 %3016
        %3018 = vmax.xlane.f32.xlu0 %v2969
        %v3019 = vpop.xlane.xlu0 %3018
        %3020 = vmax.xlane.f32.xlu0 %v2974
        %v3021 = vpop.xlane.xlu0 %3020
        %3022 = vmax.xlane.f32.xlu0 %v2977
        %v3023 = vpop.xlane.xlu0 %3022
        %3024 = vmax.xlane.f32.xlu0 %v2982
        %v3025 = vpop.xlane.xlu0 %3024
        %3026 = vmax.xlane.f32.xlu0 %v2985
        %v3027 = vpop.xlane.xlu0 %3026
        %3028 = vmax.xlane.f32.xlu0 %v2990
        %v3029 = vpop.xlane.xlu0 %3028
        %3030 = vmax.xlane.f32.xlu0 %v2993
        %v3031 = vpop.xlane.xlu0 %3030
        %3032 = vmax.xlane.f32.xlu0 %v2998
        %v3033 = vpop.xlane.xlu0 %3032
        %3034 = vmax.xlane.f32.xlu0 %v3001
        %v3035 = vpop.xlane.xlu0 %3034
        %v3036 = vsub.f32 %v2942, %v3005
        %v3037 = vsub.f32 %v2945, %v3007
        %v3038 = vsub.f32 %v2950, %v3009
        %v3039 = vsub.f32 %v2953, %v3011
        %v3040 = vsub.f32 %v2958, %v3013
        %v3041 = vsub.f32 %v2961, %v3015
        %v3042 = vsub.f32 %v2966, %v3017
        %v3043 = vsub.f32 %v2969, %v3019
        %v3044 = vsub.f32 %v2974, %v3021
        %v3045 = vsub.f32 %v2977, %v3023
        %v3046 = vsub.f32 %v2982, %v3025
        %v3047 = vsub.f32 %v2985, %v3027
        %v3048 = vsub.f32 %v2990, %v3029
        %v3049 = vsub.f32 %v2993, %v3031
        %v3050 = vsub.f32 %v2998, %v3033
        %v3051 = vsub.f32 %v3001, %v3035
        %v3052 = vmul.f32 %v3036, 1.442695
        %v3053 = vpow.pop %v3052
        %v3054 = vmul.f32 %v3037, 1.442695
        %v3055 = vpow.pop %v3054
        %v3056 = vmul.f32 %v3038, 1.442695
        %v3057 = vpow.pop %v3056
        %v3058 = vmul.f32 %v3039, 1.442695
        %v3059 = vpow.pop %v3058
        %v3060 = vmul.f32 %v3040, 1.442695
        %v3061 = vpow.pop %v3060
        %v3062 = vmul.f32 %v3041, 1.442695
        %v3063 = vpow.pop %v3062
        %v3064 = vmul.f32 %v3042, 1.442695
        %v3065 = vpow.pop %v3064
        %v3066 = vmul.f32 %v3043, 1.442695
        %v3067 = vpow.pop %v3066
        %v3068 = vmul.f32 %v3044, 1.442695
        %v3069 = vpow.pop %v3068
        %v3070 = vmul.f32 %v3045, 1.442695
        %v3071 = vpow.pop %v3070
        %v3072 = vmul.f32 %v3046, 1.442695
        %v3073 = vpow.pop %v3072
        %v3074 = vmul.f32 %v3047, 1.442695
        %v3075 = vpow.pop %v3074
        %v3076 = vmul.f32 %v3048, 1.442695
        %v3077 = vpow.pop %v3076
        %v3078 = vmul.f32 %v3049, 1.442695
        %v3079 = vpow.pop %v3078
        %v3080 = vmul.f32 %v3050, 1.442695
        %v3081 = vpow.pop %v3080
        %v3082 = vmul.f32 %v3051, 1.442695
        %v3083 = vpow.pop %v3082
        %3084 = vadd.xlane.f32.xlu0 %v3053
        %v3085 = vpop.xlane.xlu0 %3084
        %3086 = vadd.xlane.f32.xlu0 %v3055
        %v3087 = vpop.xlane.xlu0 %3086
        %3088 = vadd.xlane.f32.xlu0 %v3057
        %v3089 = vpop.xlane.xlu0 %3088
        %3090 = vadd.xlane.f32.xlu0 %v3059
        %v3091 = vpop.xlane.xlu0 %3090
        %3092 = vadd.xlane.f32.xlu0 %v3061
        %v3093 = vpop.xlane.xlu0 %3092
        %3094 = vadd.xlane.f32.xlu0 %v3063
        %v3095 = vpop.xlane.xlu0 %3094
        %3096 = vadd.xlane.f32.xlu0 %v3065
        %v3097 = vpop.xlane.xlu0 %3096
        %3098 = vadd.xlane.f32.xlu0 %v3067
        %v3099 = vpop.xlane.xlu0 %3098
        %3100 = vadd.xlane.f32.xlu0 %v3069
        %v3101 = vpop.xlane.xlu0 %3100
        %3102 = vadd.xlane.f32.xlu0 %v3071
        %v3103 = vpop.xlane.xlu0 %3102
        %3104 = vadd.xlane.f32.xlu0 %v3073
        %v3105 = vpop.xlane.xlu0 %3104
        %3106 = vadd.xlane.f32.xlu0 %v3075
        %v3107 = vpop.xlane.xlu0 %3106
        %3108 = vadd.xlane.f32.xlu0 %v3077
        %v3109 = vpop.xlane.xlu0 %3108
        %3110 = vadd.xlane.f32.xlu0 %v3079
        %v3111 = vpop.xlane.xlu0 %3110
        %3112 = vadd.xlane.f32.xlu0 %v3081
        %v3113 = vpop.xlane.xlu0 %3112
        %3114 = vadd.xlane.f32.xlu0 %v3083
        %v3115 = vpop.xlane.xlu0 %3114
        %v3116 = vpack.c.bf16 %v3055, %v3053
        %v3117 = vpack.c.bf16 %v3059, %v3057
        %v3118 = vpack.c.bf16 %v3063, %v3061
        %v3119 = vpack.c.bf16 %v3067, %v3065
        %v3120 = vpack.c.bf16 %v3071, %v3069
        %v3121 = vpack.c.bf16 %v3075, %v3073
        %v3122 = vpack.c.bf16 %v3079, %v3077
        %v3123 = vpack.c.bf16 %v3083, %v3081
        %3124 = vrot.lane.b32.xlu0 %v1459, 32
        %v3125 = vpop.permute.xlu0 %3124
        %3126 = vrot.lane.b32.xlu0 %v1460, 32
        %v3127 = vpop.permute.xlu0 %3126
        %3128 = vrot.lane.b32.xlu0 %v1461, 32
        %v3129 = vpop.permute.xlu0 %3128
        %3130 = vrot.lane.b32.xlu0 %v1462, 32
        %v3131 = vpop.permute.xlu0 %3130
        %3132 = vrot.lane.b32.xlu0 %v1463, 32
        %v3133 = vpop.permute.xlu0 %3132
        %3134 = vrot.lane.b32.xlu0 %v1464, 32
        %v3135 = vpop.permute.xlu0 %3134
        %3136 = vrot.lane.b32.xlu0 %v1465, 32
        %v3137 = vpop.permute.xlu0 %3136
        %3138 = vrot.lane.b32.xlu0 %v1466, 32
        %v3139 = vpop.permute.xlu0 %3138
        %3148 = vmatprep.subr.bf16.mxu0 0
        %3149 = vmatpush1.bf16.msra.mxu0 %v3139
        %3150 = vmatprep.subr.bf16.mxu0 0
        %3151 = vmatpush1.bf16.msra.mxu0 %v3137
        %3152 = vmatprep.subr.bf16.mxu0 0
        %3153 = vmatpush1.bf16.msra.mxu0 %v3135
        %3154 = vmatprep.subr.bf16.mxu0 0
        %3155 = vmatpush1.bf16.msra.mxu0 %v3133
        %3156 = vmatprep.subr.bf16.mxu0 0
        %3157 = vmatpush1.bf16.msra.mxu0 %v3131
        %3158 = vmatprep.subr.bf16.mxu0 0
        %3159 = vmatpush1.bf16.msra.mxu0 %v3129
        %3160 = vmatprep.subr.bf16.mxu0 0
        %3161 = vmatpush1.bf16.msra.mxu0 %v3127
        %3162 = vmatprep.subr.bf16.mxu0 0
        %3163 = vmatpush1.bf16.msra.mxu0 %v3125
        %3164 = vmatprep.subr.bf16.mxu0 0
        %3165 = vmatpush2.bf16.msra.mxu0 0
        %3166 = vmatprep.subr.bf16.mxu0 0
        %3167 = vmatpush2.bf16.msra.mxu0 0
        %3168 = vmatprep.subr.bf16.mxu0 0
        %3169 = vmatpush2.bf16.msra.mxu0 0
        %3170 = vmatprep.subr.bf16.mxu0 0
        %3171 = vmatpush2.bf16.msra.mxu0 0
        %3172 = vmatprep.subr.bf16.mxu0 0
        %3173 = vmatpush2.bf16.msra.mxu0 0
        %3174 = vmatprep.subr.bf16.mxu0 0
        %3175 = vmatpush2.bf16.msra.mxu0 0
        %3176 = vmatprep.subr.bf16.mxu0 0
        %3177 = vmatpush2.bf16.msra.mxu0 0
        %3178 = vmatprep.subr.bf16.mxu0 0
        %3179 = vmatpush2.bf16.msra.mxu0 0
        %3180 = vmatprep.mubr.bf16.mxu0 0
        %3181 = vmatmul.mubr.bf16.gmra.mxu0 %v3116
        %v3182 = vpop.f32.mrf.mxu0
        %v3183 = vadd.f32 0.0, %v3182
        %v3184 = vpop.f32.mrf.mxu0
        %v3185 = vpop.f32.mrf.mxu0
        %v3186 = vadd.f32 0.0, %v3185
        %v3187 = vpop.f32.mrf.mxu0
        %3188 = vmatprep.mubr.bf16.mxu0 0
        %3189 = vmatmul.mubr.bf16.gmra.mxu0 %v3117
        %v3190 = vpop.f32.mrf.mxu0
        %v3191 = vadd.f32 0.0, %v3190
        %v3192 = vpop.f32.mrf.mxu0
        %v3193 = vpop.f32.mrf.mxu0
        %v3194 = vadd.f32 0.0, %v3193
        %v3195 = vpop.f32.mrf.mxu0
        %3196 = vmatprep.mubr.bf16.mxu0 0
        %3197 = vmatmul.mubr.bf16.gmra.mxu0 %v3118
        %v3198 = vpop.f32.mrf.mxu0
        %v3199 = vadd.f32 0.0, %v3198
        %v3200 = vpop.f32.mrf.mxu0
        %v3201 = vpop.f32.mrf.mxu0
        %v3202 = vadd.f32 0.0, %v3201
        %v3203 = vpop.f32.mrf.mxu0
        %3204 = vmatprep.mubr.bf16.mxu0 0
        %3205 = vmatmul.mubr.bf16.gmra.mxu0 %v3119
        %v3206 = vpop.f32.mrf.mxu0
        %v3207 = vadd.f32 0.0, %v3206
        %v3208 = vpop.f32.mrf.mxu0
        %v3209 = vpop.f32.mrf.mxu0
        %v3210 = vadd.f32 0.0, %v3209
        %v3211 = vpop.f32.mrf.mxu0
        %3212 = vmatprep.mubr.bf16.mxu0 0
        %3213 = vmatmul.mubr.bf16.gmra.mxu0 %v3120
        %v3214 = vpop.f32.mrf.mxu0
        %v3215 = vadd.f32 0.0, %v3214
        %v3216 = vpop.f32.mrf.mxu0
        %v3217 = vpop.f32.mrf.mxu0
        %v3218 = vadd.f32 0.0, %v3217
        %v3219 = vpop.f32.mrf.mxu0
        %3220 = vmatprep.mubr.bf16.mxu0 0
        %3221 = vmatmul.mubr.bf16.gmra.mxu0 %v3121
        %v3222 = vpop.f32.mrf.mxu0
        %v3223 = vadd.f32 0.0, %v3222
        %v3224 = vpop.f32.mrf.mxu0
        %v3225 = vpop.f32.mrf.mxu0
        %v3226 = vadd.f32 0.0, %v3225
        %v3227 = vpop.f32.mrf.mxu0
        %3228 = vmatprep.mubr.bf16.mxu0 0
        %3229 = vmatmul.mubr.bf16.gmra.mxu0 %v3122
        %v3230 = vpop.f32.mrf.mxu0
        %v3231 = vadd.f32 0.0, %v3230
        %v3232 = vpop.f32.mrf.mxu0
        %v3233 = vpop.f32.mrf.mxu0
        %v3234 = vadd.f32 0.0, %v3233
        %v3235 = vpop.f32.mrf.mxu0
        %3236 = vmatprep.mubr.bf16.mxu0 0
        %3237 = vmatmul.mubr.bf16.gmra.mxu0 %v3123
        %v3238 = vpop.f32.mrf.mxu0
        %v3239 = vadd.f32 0.0, %v3238
        %v3240 = vpop.f32.mrf.mxu0
        %v3241 = vpop.f32.mrf.mxu0
        %v3242 = vadd.f32 0.0, %v3241
        %v3243 = vpop.f32.mrf.mxu0
        %3244 = vdwg.mxu0
        %v3245 = vrcp.pop %v3085
        %v3246 = vrcp.pop %v3087
        %v3247 = vrcp.pop %v3089
        %v3248 = vrcp.pop %v3091
        %v3249 = vrcp.pop %v3093
        %v3250 = vrcp.pop %v3095
        %v3251 = vrcp.pop %v3097
        %v3252 = vrcp.pop %v3099
        %v3253 = vrcp.pop %v3101
        %v3254 = vrcp.pop %v3103
        %v3255 = vrcp.pop %v3105
        %v3256 = vrcp.pop %v3107
        %v3257 = vrcp.pop %v3109
        %v3258 = vrcp.pop %v3111
        %v3259 = vrcp.pop %v3113
        %v3260 = vrcp.pop %v3115
        %v3261 = vmul.f32 %v3183, %v3245
        %v3262 = vmul.f32 %v3186, %v3246
        %v3263 = vmul.f32 %v3191, %v3247
        %v3264 = vmul.f32 %v3194, %v3248
        %v3265 = vmul.f32 %v3199, %v3249
        %v3266 = vmul.f32 %v3202, %v3250
        %v3267 = vmul.f32 %v3207, %v3251
        %v3268 = vmul.f32 %v3210, %v3252
        %v3269 = vmul.f32 %v3215, %v3253
        %v3270 = vmul.f32 %v3218, %v3254
        %v3271 = vmul.f32 %v3223, %v3255
        %v3272 = vmul.f32 %v3226, %v3256
        %v3273 = vmul.f32 %v3231, %v3257
        %v3274 = vmul.f32 %v3234, %v3258
        %v3275 = vmul.f32 %v3239, %v3259
        %v3276 = vmul.f32 %v3242, %v3260
        %v3277 = vpack.c.bf16 %v3262, %v3261
        %v3278 = vpack.c.bf16 %v3264, %v3263
        %v3279 = vpack.c.bf16 %v3266, %v3265
        %v3280 = vpack.c.bf16 %v3268, %v3267
        %v3281 = vpack.c.bf16 %v3270, %v3269
        %v3282 = vpack.c.bf16 %v3272, %v3271
        %v3283 = vpack.c.bf16 %v3274, %v3273
        %v3284 = vpack.c.bf16 %v3276, %v3275
        %v3293 = vunpack.c.l.b16 %v3277
        %v3294 = vunpack.c.h.b16 %v3277
        %v3295 = vunpack.c.l.b16 %v3278
        %v3296 = vunpack.c.h.b16 %v3278
        %v3297 = vunpack.c.l.b16 %v3279
        %v3298 = vunpack.c.h.b16 %v3279
        %v3299 = vunpack.c.l.b16 %v3280
        %v3300 = vunpack.c.h.b16 %v3280
        %v3301 = vunpack.c.l.b16 %v3281
        %v3302 = vunpack.c.h.b16 %v3281
        %v3303 = vunpack.c.l.b16 %v3282
        %v3304 = vunpack.c.h.b16 %v3282
        %v3305 = vunpack.c.l.b16 %v3283
        %v3306 = vunpack.c.h.b16 %v3283
        %v3307 = vunpack.c.l.b16 %v3284
        %v3308 = vunpack.c.h.b16 %v3284
        %v3309 = vpack.c.b16 %v3293, %v3293
        %v3310 = vpack.c.b16 %v3294, %v3294
        %v3311 = vpack.c.b16 %v3295, %v3295
        %v3312 = vpack.c.b16 %v3296, %v3296
        %v3313 = vpack.c.b16 %v3297, %v3297
        %v3314 = vpack.c.b16 %v3298, %v3298
        %v3315 = vpack.c.b16 %v3299, %v3299
        %v3316 = vpack.c.b16 %v3300, %v3300
        %v3317 = vpack.c.b16 %v3301, %v3301
        %v3318 = vpack.c.b16 %v3302, %v3302
        %v3319 = vpack.c.b16 %v3303, %v3303
        %v3320 = vpack.c.b16 %v3304, %v3304
        %v3321 = vpack.c.b16 %v3305, %v3305
        %v3322 = vpack.c.b16 %v3306, %v3306
        %v3323 = vpack.c.b16 %v3307, %v3307
        %v3324 = vpack.c.b16 %v3308, %v3308
        %3325 = vrot.lane.b32.xlu0 %v3309, 96
        %v3326 = vpop.permute.xlu0 %3325
        %3327 = vrot.lane.b32.xlu0 %v3310, 96
        %v3328 = vpop.permute.xlu0 %3327
        %3329 = vrot.lane.b32.xlu0 %v3311, 96
        %v3330 = vpop.permute.xlu0 %3329
        %3331 = vrot.lane.b32.xlu0 %v3312, 96
        %v3332 = vpop.permute.xlu0 %3331
        %3333 = vrot.lane.b32.xlu0 %v3313, 96
        %v3334 = vpop.permute.xlu0 %3333
        %3335 = vrot.lane.b32.xlu0 %v3314, 96
        %v3336 = vpop.permute.xlu0 %3335
        %3337 = vrot.lane.b32.xlu0 %v3315, 96
        %v3338 = vpop.permute.xlu0 %3337
        %3339 = vrot.lane.b32.xlu0 %v3316, 96
        %v3340 = vpop.permute.xlu0 %3339
        %3341 = vrot.lane.b32.xlu0 %v3317, 96
        %v3342 = vpop.permute.xlu0 %3341
        %3343 = vrot.lane.b32.xlu0 %v3318, 96
        %v3344 = vpop.permute.xlu0 %3343
        %3345 = vrot.lane.b32.xlu0 %v3319, 96
        %v3346 = vpop.permute.xlu0 %3345
        %3347 = vrot.lane.b32.xlu0 %v3320, 96
        %v3348 = vpop.permute.xlu0 %3347
        %3349 = vrot.lane.b32.xlu0 %v3321, 96
        %v3350 = vpop.permute.xlu0 %3349
        %3351 = vrot.lane.b32.xlu0 %v3322, 96
        %v3352 = vpop.permute.xlu0 %3351
        %3353 = vrot.lane.b32.xlu0 %v3323, 96
        %v3354 = vpop.permute.xlu0 %3353
        %3355 = vrot.lane.b32.xlu0 %v3324, 96
        %v3356 = vpop.permute.xlu0 %3355
        %vm3373 = vcmask 1044224
        %3374 = vst.msk [vmem:[#allocation2] sm:$0xf] %vm3373, %v3326
        %3375 = vst.msk [vmem:[#allocation2 + $0x4] sm:$0xf] %vm3373, %v3328
        %3376 = vst.msk [vmem:[#allocation2 + $0x8] sm:$0xf] %vm3373, %v3330
        %3377 = vst.msk [vmem:[#allocation2 + $0xc] sm:$0xf] %vm3373, %v3332
        %3378 = vst.msk [vmem:[#allocation2 + $0x10] sm:$0xf] %vm3373, %v3334
        %3379 = vst.msk [vmem:[#allocation2 + $0x14] sm:$0xf] %vm3373, %v3336
        %3380 = vst.msk [vmem:[#allocation2 + $0x18] sm:$0xf] %vm3373, %v3338
        %3381 = vst.msk [vmem:[#allocation2 + $0x1c] sm:$0xf] %vm3373, %v3340
        %3382 = vst.msk [vmem:[#allocation2 + $0x20] sm:$0xf] %vm3373, %v3342
        %3383 = vst.msk [vmem:[#allocation2 + $0x24] sm:$0xf] %vm3373, %v3344
        %3384 = vst.msk [vmem:[#allocation2 + $0x28] sm:$0xf] %vm3373, %v3346
        %3385 = vst.msk [vmem:[#allocation2 + $0x2c] sm:$0xf] %vm3373, %v3348
        %3386 = vst.msk [vmem:[#allocation2 + $0x30] sm:$0xf] %vm3373, %v3350
        %3387 = vst.msk [vmem:[#allocation2 + $0x34] sm:$0xf] %vm3373, %v3352
        %3388 = vst.msk [vmem:[#allocation2 + $0x38] sm:$0xf] %vm3373, %v3354
        %3389 = vst.msk [vmem:[#allocation2 + $0x3c] sm:$0xf] %vm3373, %v3356
        %v3390 = vld [vmem:[#allocation2] sm:$0xf]
        %v3391 = vld [vmem:[#allocation2 + $0x4] sm:$0xf]
        %v3392 = vld [vmem:[#allocation2 + $0x8] sm:$0xf]
        %v3393 = vld [vmem:[#allocation2 + $0xc] sm:$0xf]
        %v3394 = vld [vmem:[#allocation2 + $0x10] sm:$0xf]
        %v3395 = vld [vmem:[#allocation2 + $0x14] sm:$0xf]
        %v3396 = vld [vmem:[#allocation2 + $0x18] sm:$0xf]
        %v3397 = vld [vmem:[#allocation2 + $0x1c] sm:$0xf]
        %v3398 = vld [vmem:[#allocation2 + $0x20] sm:$0xf]
        %v3399 = vld [vmem:[#allocation2 + $0x24] sm:$0xf]
        %v3400 = vld [vmem:[#allocation2 + $0x28] sm:$0xf]
        %v3401 = vld [vmem:[#allocation2 + $0x2c] sm:$0xf]
        %v3402 = vld [vmem:[#allocation2 + $0x30] sm:$0xf]
        %v3403 = vld [vmem:[#allocation2 + $0x34] sm:$0xf]
        %v3404 = vld [vmem:[#allocation2 + $0x38] sm:$0xf]
        %v3405 = vld [vmem:[#allocation2 + $0x3c] sm:$0xf]
        %v3406 = vld [vmem:[#allocation11] sm:$0xf]
        %v3407 = vld [vmem:[#allocation11 + $0x4] sm:$0xf]
        %v3408 = vld [vmem:[#allocation11 + $0x8] sm:$0xf]
        %v3409 = vld [vmem:[#allocation11 + $0xc] sm:$0xf]
        %v3410 = vld [vmem:[#allocation11 + $0x10] sm:$0xf]
        %v3411 = vld [vmem:[#allocation11 + $0x14] sm:$0xf]
        %v3412 = vld [vmem:[#allocation11 + $0x18] sm:$0xf]
        %v3413 = vld [vmem:[#allocation11 + $0x1c] sm:$0xf]
        %v3414 = vld [vmem:[#allocation11 + $0x20] sm:$0xf]
        %v3415 = vld [vmem:[#allocation11 + $0x24] sm:$0xf]
        %v3416 = vld [vmem:[#allocation11 + $0x28] sm:$0xf]
        %v3417 = vld [vmem:[#allocation11 + $0x2c] sm:$0xf]
        %v3418 = vld [vmem:[#allocation11 + $0x30] sm:$0xf]
        %v3419 = vld [vmem:[#allocation11 + $0x34] sm:$0xf]
        %v3420 = vld [vmem:[#allocation11 + $0x38] sm:$0xf]
        %v3421 = vld [vmem:[#allocation11 + $0x3c] sm:$0xf]
        %v3422 = vld [vmem:[%s6] sm:$0x1]
        %v3424 = vlaneseq
        %v3425 = vshrl.u32 %v3424, 7
        %v3426 = vsub.s32 0, %v3425
        %v3427 = vrot.slane %v3422, %v3426
        %v3445 = vunpack.c.l.b16 %v3390
        %v3446 = vunpack.c.l.b16 %v3391
        %v3447 = vunpack.c.l.b16 %v3392
        %v3448 = vunpack.c.l.b16 %v3393
        %v3449 = vunpack.c.l.b16 %v3394
        %v3450 = vunpack.c.l.b16 %v3395
        %v3451 = vunpack.c.l.b16 %v3396
        %v3452 = vunpack.c.l.b16 %v3397
        %v3453 = vunpack.c.l.b16 %v3398
        %v3454 = vunpack.c.l.b16 %v3399
        %v3455 = vunpack.c.l.b16 %v3400
        %v3456 = vunpack.c.l.b16 %v3401
        %v3457 = vunpack.c.l.b16 %v3402
        %v3458 = vunpack.c.l.b16 %v3403
        %v3459 = vunpack.c.l.b16 %v3404
        %v3460 = vunpack.c.l.b16 %v3405
        %v3461 = vpack.c.b16 %v3446, %v3445
        %v3462 = vpack.c.b16 %v3448, %v3447
        %v3463 = vpack.c.b16 %v3450, %v3449
        %v3464 = vpack.c.b16 %v3452, %v3451
        %v3465 = vpack.c.b16 %v3454, %v3453
        %v3466 = vpack.c.b16 %v3456, %v3455
        %v3467 = vpack.c.b16 %v3458, %v3457
        %v3468 = vpack.c.b16 %v3460, %v3459
        %v3493 = vunpack.c.l.b16 %v3406
        %v3494 = vunpack.c.l.b16 %v3407
        %v3495 = vunpack.c.l.b16 %v3408
        %v3496 = vunpack.c.l.b16 %v3409
        %v3497 = vunpack.c.l.b16 %v3410
        %v3498 = vunpack.c.l.b16 %v3411
        %v3499 = vunpack.c.l.b16 %v3412
        %v3500 = vunpack.c.l.b16 %v3413
        %v3501 = vunpack.c.l.b16 %v3414
        %v3502 = vunpack.c.l.b16 %v3415
        %v3503 = vunpack.c.l.b16 %v3416
        %v3504 = vunpack.c.l.b16 %v3417
        %v3505 = vunpack.c.l.b16 %v3418
        %v3506 = vunpack.c.l.b16 %v3419
        %v3507 = vunpack.c.l.b16 %v3420
        %v3508 = vunpack.c.l.b16 %v3421
        %v3509 = vpack.c.b16 %v3494, %v3493
        %v3510 = vpack.c.b16 %v3496, %v3495
        %v3511 = vpack.c.b16 %v3498, %v3497
        %v3512 = vpack.c.b16 %v3500, %v3499
        %v3513 = vpack.c.b16 %v3502, %v3501
        %v3514 = vpack.c.b16 %v3504, %v3503
        %v3515 = vpack.c.b16 %v3506, %v3505
        %v3516 = vpack.c.b16 %v3508, %v3507
        %3525 = vmatprep.subr.bf16.mxu0 0
        %3526 = vmatpush1.bf16.msra.mxu0 %v3516
        %3527 = vmatprep.subr.bf16.mxu0 0
        %3528 = vmatpush1.bf16.msra.mxu0 %v3515
        %3529 = vmatprep.subr.bf16.mxu0 0
        %3530 = vmatpush1.bf16.msra.mxu0 %v3514
        %3531 = vmatprep.subr.bf16.mxu0 0
        %3532 = vmatpush1.bf16.msra.mxu0 %v3513
        %3533 = vmatprep.subr.bf16.mxu0 0
        %3534 = vmatpush1.bf16.msra.mxu0 %v3512
        %3535 = vmatprep.subr.bf16.mxu0 0
        %3536 = vmatpush1.bf16.msra.mxu0 %v3511
        %3537 = vmatprep.subr.bf16.mxu0 0
        %3538 = vmatpush1.bf16.msra.mxu0 %v3510
        %3539 = vmatprep.subr.bf16.mxu0 0
        %3540 = vmatpush1.bf16.msra.mxu0 %v3509
        %3541 = vmatprep.subr.bf16.mxu0 0
        %3542 = vmatpush2.bf16.msra.mxu0 0
        %3543 = vmatprep.subr.bf16.mxu0 0
        %3544 = vmatpush2.bf16.msra.mxu0 0
        %3545 = vmatprep.subr.bf16.mxu0 0
        %3546 = vmatpush2.bf16.msra.mxu0 0
        %3547 = vmatprep.subr.bf16.mxu0 0
        %3548 = vmatpush2.bf16.msra.mxu0 0
        %3549 = vmatprep.subr.bf16.mxu0 0
        %3550 = vmatpush2.bf16.msra.mxu0 0
        %3551 = vmatprep.subr.bf16.mxu0 0
        %3552 = vmatpush2.bf16.msra.mxu0 0
        %3553 = vmatprep.subr.bf16.mxu0 0
        %3554 = vmatpush2.bf16.msra.mxu0 0
        %3555 = vmatprep.subr.bf16.mxu0 0
        %3556 = vmatpush2.bf16.msra.mxu0 0
        %3557 = vmatprep.mubr.bf16.mxu0 0
        %3558 = vmatmul.mubr.bf16.gmra.mxu0 %v3461
        %v3559 = vpop.f32.mrf.mxu0
        %v3560 = vadd.f32 %v3427, %v3559
        %v3561 = vpop.f32.mrf.mxu0
        %v3562 = vpop.f32.mrf.mxu0
        %v3563 = vadd.f32 %v3427, %v3562
        %v3564 = vpop.f32.mrf.mxu0
        %3565 = vmatprep.mubr.bf16.mxu0 0
        %3566 = vmatmul.mubr.bf16.gmra.mxu0 %v3462
        %v3567 = vpop.f32.mrf.mxu0
        %v3568 = vadd.f32 %v3427, %v3567
        %v3569 = vpop.f32.mrf.mxu0
        %v3570 = vpop.f32.mrf.mxu0
        %v3571 = vadd.f32 %v3427, %v3570
        %v3572 = vpop.f32.mrf.mxu0
        %3573 = vmatprep.mubr.bf16.mxu0 0
        %3574 = vmatmul.mubr.bf16.gmra.mxu0 %v3463
        %v3575 = vpop.f32.mrf.mxu0
        %v3576 = vadd.f32 %v3427, %v3575
        %v3577 = vpop.f32.mrf.mxu0
        %v3578 = vpop.f32.mrf.mxu0
        %v3579 = vadd.f32 %v3427, %v3578
        %v3580 = vpop.f32.mrf.mxu0
        %3581 = vmatprep.mubr.bf16.mxu0 0
        %3582 = vmatmul.mubr.bf16.gmra.mxu0 %v3464
        %v3583 = vpop.f32.mrf.mxu0
        %v3584 = vadd.f32 %v3427, %v3583
        %v3585 = vpop.f32.mrf.mxu0
        %v3586 = vpop.f32.mrf.mxu0
        %v3587 = vadd.f32 %v3427, %v3586
        %v3588 = vpop.f32.mrf.mxu0
        %3589 = vmatprep.mubr.bf16.mxu0 0
        %3590 = vmatmul.mubr.bf16.gmra.mxu0 %v3465
        %v3591 = vpop.f32.mrf.mxu0
        %v3592 = vadd.f32 %v3427, %v3591
        %v3593 = vpop.f32.mrf.mxu0
        %v3594 = vpop.f32.mrf.mxu0
        %v3595 = vadd.f32 %v3427, %v3594
        %v3596 = vpop.f32.mrf.mxu0
        %3597 = vmatprep.mubr.bf16.mxu0 0
        %3598 = vmatmul.mubr.bf16.gmra.mxu0 %v3466
        %v3599 = vpop.f32.mrf.mxu0
        %v3600 = vadd.f32 %v3427, %v3599
        %v3601 = vpop.f32.mrf.mxu0
        %v3602 = vpop.f32.mrf.mxu0
        %v3603 = vadd.f32 %v3427, %v3602
        %v3604 = vpop.f32.mrf.mxu0
        %3605 = vmatprep.mubr.bf16.mxu0 0
        %3606 = vmatmul.mubr.bf16.gmra.mxu0 %v3467
        %v3607 = vpop.f32.mrf.mxu0
        %v3608 = vadd.f32 %v3427, %v3607
        %v3609 = vpop.f32.mrf.mxu0
        %v3610 = vpop.f32.mrf.mxu0
        %v3611 = vadd.f32 %v3427, %v3610
        %v3612 = vpop.f32.mrf.mxu0
        %3613 = vmatprep.mubr.bf16.mxu0 0
        %3614 = vmatmul.mubr.bf16.gmra.mxu0 %v3468
        %v3615 = vpop.f32.mrf.mxu0
        %v3616 = vadd.f32 %v3427, %v3615
        %v3617 = vpop.f32.mrf.mxu0
        %v3618 = vpop.f32.mrf.mxu0
        %v3619 = vadd.f32 %v3427, %v3618
        %v3620 = vpop.f32.mrf.mxu0
        %3621 = vdwg.mxu0
        %v3622 = vadd.f32 %v543, %v3560
        %v3623 = vadd.f32 %v544, %v3563
        %v3624 = vadd.f32 %v545, %v3568
        %v3625 = vadd.f32 %v546, %v3571
        %v3626 = vadd.f32 %v547, %v3576
        %v3627 = vadd.f32 %v548, %v3579
        %v3628 = vadd.f32 %v549, %v3584
        %v3629 = vadd.f32 %v550, %v3587
        %v3630 = vadd.f32 %v551, %v3592
        %v3631 = vadd.f32 %v552, %v3595
        %v3632 = vadd.f32 %v553, %v3600
        %v3633 = vadd.f32 %v554, %v3603
        %v3634 = vadd.f32 %v555, %v3608
        %v3635 = vadd.f32 %v556, %v3611
        %v3636 = vadd.f32 %v557, %v3616
        %v3637 = vadd.f32 %v558, %v3619
        %v3638 = vld [vmem:[%s7] sm:$0x1]
        %v3639 = vld [vmem:[%s8] sm:$0x1]
        %3640 = vadd.xlane.f32.xlu0 %v3622
        %v3641 = vpop.xlane.xlu0 %3640
        %3642 = vadd.xlane.f32.xlu0 %v3623
        %v3643 = vpop.xlane.xlu0 %3642
        %3644 = vadd.xlane.f32.xlu0 %v3624
        %v3645 = vpop.xlane.xlu0 %3644
        %3646 = vadd.xlane.f32.xlu0 %v3625
        %v3647 = vpop.xlane.xlu0 %3646
        %3648 = vadd.xlane.f32.xlu0 %v3626
        %v3649 = vpop.xlane.xlu0 %3648
        %3650 = vadd.xlane.f32.xlu0 %v3627
        %v3651 = vpop.xlane.xlu0 %3650
        %3652 = vadd.xlane.f32.xlu0 %v3628
        %v3653 = vpop.xlane.xlu0 %3652
        %3654 = vadd.xlane.f32.xlu0 %v3629
        %v3655 = vpop.xlane.xlu0 %3654
        %3656 = vadd.xlane.f32.xlu0 %v3630
        %v3657 = vpop.xlane.xlu0 %3656
        %3658 = vadd.xlane.f32.xlu0 %v3631
        %v3659 = vpop.xlane.xlu0 %3658
        %3660 = vadd.xlane.f32.xlu0 %v3632
        %v3661 = vpop.xlane.xlu0 %3660
        %3662 = vadd.xlane.f32.xlu0 %v3633
        %v3663 = vpop.xlane.xlu0 %3662
        %3664 = vadd.xlane.f32.xlu0 %v3634
        %v3665 = vpop.xlane.xlu0 %3664
        %3666 = vadd.xlane.f32.xlu0 %v3635
        %v3667 = vpop.xlane.xlu0 %3666
        %3668 = vadd.xlane.f32.xlu0 %v3636
        %v3669 = vpop.xlane.xlu0 %3668
        %3670 = vadd.xlane.f32.xlu0 %v3637
        %v3671 = vpop.xlane.xlu0 %3670
        %v3672 = vmul.f32 %v3641, %v593
        %v3673 = vmul.f32 %v3643, %v593
        %v3674 = vmul.f32 %v3645, %v593
        %v3675 = vmul.f32 %v3647, %v593
        %v3676 = vmul.f32 %v3649, %v593
        %v3677 = vmul.f32 %v3651, %v593
        %v3678 = vmul.f32 %v3653, %v593
        %v3679 = vmul.f32 %v3655, %v593
        %v3680 = vmul.f32 %v3657, %v593
        %v3681 = vmul.f32 %v3659, %v593
        %v3682 = vmul.f32 %v3661, %v593
        %v3683 = vmul.f32 %v3663, %v593
        %v3684 = vmul.f32 %v3665, %v593
        %v3685 = vmul.f32 %v3667, %v593
        %v3686 = vmul.f32 %v3669, %v593
        %v3687 = vmul.f32 %v3671, %v593
        %v3688 = vsub.f32 %v3622, %v3672
        %v3689 = vsub.f32 %v3623, %v3673
        %v3690 = vsub.f32 %v3624, %v3674
        %v3691 = vsub.f32 %v3625, %v3675
        %v3692 = vsub.f32 %v3626, %v3676
        %v3693 = vsub.f32 %v3627, %v3677
        %v3694 = vsub.f32 %v3628, %v3678
        %v3695 = vsub.f32 %v3629, %v3679
        %v3696 = vsub.f32 %v3630, %v3680
        %v3697 = vsub.f32 %v3631, %v3681
        %v3698 = vsub.f32 %v3632, %v3682
        %v3699 = vsub.f32 %v3633, %v3683
        %v3700 = vsub.f32 %v3634, %v3684
        %v3701 = vsub.f32 %v3635, %v3685
        %v3702 = vsub.f32 %v3636, %v3686
        %v3703 = vsub.f32 %v3637, %v3687
        %v3704 = vmul.f32 %v3688, %v3688
        %v3705 = vmul.f32 %v3689, %v3689
        %v3706 = vmul.f32 %v3690, %v3690
        %v3707 = vmul.f32 %v3691, %v3691
        %v3708 = vmul.f32 %v3692, %v3692
        %v3709 = vmul.f32 %v3693, %v3693
        %v3710 = vmul.f32 %v3694, %v3694
        %v3711 = vmul.f32 %v3695, %v3695
        %v3712 = vmul.f32 %v3696, %v3696
        %v3713 = vmul.f32 %v3697, %v3697
        %v3714 = vmul.f32 %v3698, %v3698
        %v3715 = vmul.f32 %v3699, %v3699
        %v3716 = vmul.f32 %v3700, %v3700
        %v3717 = vmul.f32 %v3701, %v3701
        %v3718 = vmul.f32 %v3702, %v3702
        %v3719 = vmul.f32 %v3703, %v3703
        %3720 = vadd.xlane.f32.xlu0 %v3704
        %v3721 = vpop.xlane.xlu0 %3720
        %3722 = vadd.xlane.f32.xlu0 %v3705
        %v3723 = vpop.xlane.xlu0 %3722
        %3724 = vadd.xlane.f32.xlu0 %v3706
        %v3725 = vpop.xlane.xlu0 %3724
        %3726 = vadd.xlane.f32.xlu0 %v3707
        %v3727 = vpop.xlane.xlu0 %3726
        %3728 = vadd.xlane.f32.xlu0 %v3708
        %v3729 = vpop.xlane.xlu0 %3728
        %3730 = vadd.xlane.f32.xlu0 %v3709
        %v3731 = vpop.xlane.xlu0 %3730
        %3732 = vadd.xlane.f32.xlu0 %v3710
        %v3733 = vpop.xlane.xlu0 %3732
        %3734 = vadd.xlane.f32.xlu0 %v3711
        %v3735 = vpop.xlane.xlu0 %3734
        %3736 = vadd.xlane.f32.xlu0 %v3712
        %v3737 = vpop.xlane.xlu0 %3736
        %3738 = vadd.xlane.f32.xlu0 %v3713
        %v3739 = vpop.xlane.xlu0 %3738
        %3740 = vadd.xlane.f32.xlu0 %v3714
        %v3741 = vpop.xlane.xlu0 %3740
        %3742 = vadd.xlane.f32.xlu0 %v3715
        %v3743 = vpop.xlane.xlu0 %3742
        %3744 = vadd.xlane.f32.xlu0 %v3716
        %v3745 = vpop.xlane.xlu0 %3744
        %3746 = vadd.xlane.f32.xlu0 %v3717
        %v3747 = vpop.xlane.xlu0 %3746
        %3748 = vadd.xlane.f32.xlu0 %v3718
        %v3749 = vpop.xlane.xlu0 %3748
        %3750 = vadd.xlane.f32.xlu0 %v3719
        %v3751 = vpop.xlane.xlu0 %3750
        %v3752 = vmul.f32 %v3721, %v593
        %v3753 = vmul.f32 %v3723, %v593
        %v3754 = vmul.f32 %v3725, %v593
        %v3755 = vmul.f32 %v3727, %v593
        %v3756 = vmul.f32 %v3729, %v593
        %v3757 = vmul.f32 %v3731, %v593
        %v3758 = vmul.f32 %v3733, %v593
        %v3759 = vmul.f32 %v3735, %v593
        %v3760 = vmul.f32 %v3737, %v593
        %v3761 = vmul.f32 %v3739, %v593
        %v3762 = vmul.f32 %v3741, %v593
        %v3763 = vmul.f32 %v3743, %v593
        %v3764 = vmul.f32 %v3745, %v593
        %v3765 = vmul.f32 %v3747, %v593
        %v3766 = vmul.f32 %v3749, %v593
        %v3767 = vmul.f32 %v3751, %v593
        %v3768 = vadd.f32 %v3752, 1e-05
        %v3769 = vadd.f32 %v3753, 1e-05
        %v3770 = vadd.f32 %v3754, 1e-05
        %v3771 = vadd.f32 %v3755, 1e-05
        %v3772 = vadd.f32 %v3756, 1e-05
        %v3773 = vadd.f32 %v3757, 1e-05
        %v3774 = vadd.f32 %v3758, 1e-05
        %v3775 = vadd.f32 %v3759, 1e-05
        %v3776 = vadd.f32 %v3760, 1e-05
        %v3777 = vadd.f32 %v3761, 1e-05
        %v3778 = vadd.f32 %v3762, 1e-05
        %v3779 = vadd.f32 %v3763, 1e-05
        %v3780 = vadd.f32 %v3764, 1e-05
        %v3781 = vadd.f32 %v3765, 1e-05
        %v3782 = vadd.f32 %v3766, 1e-05
        %v3783 = vadd.f32 %v3767, 1e-05
        %v3784 = vrsqrt.pop %v3768
        %v3785 = vrsqrt.pop %v3769
        %v3786 = vrsqrt.pop %v3770
        %v3787 = vrsqrt.pop %v3771
        %v3788 = vrsqrt.pop %v3772
        %v3789 = vrsqrt.pop %v3773
        %v3790 = vrsqrt.pop %v3774
        %v3791 = vrsqrt.pop %v3775
        %v3792 = vrsqrt.pop %v3776
        %v3793 = vrsqrt.pop %v3777
        %v3794 = vrsqrt.pop %v3778
        %v3795 = vrsqrt.pop %v3779
        %v3796 = vrsqrt.pop %v3780
        %v3797 = vrsqrt.pop %v3781
        %v3798 = vrsqrt.pop %v3782
        %v3799 = vrsqrt.pop %v3783
        %v3800 = vmul.f32 %v3688, %v3784
        %v3801 = vmul.f32 %v3689, %v3785
        %v3802 = vmul.f32 %v3690, %v3786
        %v3803 = vmul.f32 %v3691, %v3787
        %v3804 = vmul.f32 %v3692, %v3788
        %v3805 = vmul.f32 %v3693, %v3789
        %v3806 = vmul.f32 %v3694, %v3790
        %v3807 = vmul.f32 %v3695, %v3791
        %v3808 = vmul.f32 %v3696, %v3792
        %v3809 = vmul.f32 %v3697, %v3793
        %v3810 = vmul.f32 %v3698, %v3794
        %v3811 = vmul.f32 %v3699, %v3795
        %v3812 = vmul.f32 %v3700, %v3796
        %v3813 = vmul.f32 %v3701, %v3797
        %v3814 = vmul.f32 %v3702, %v3798
        %v3815 = vmul.f32 %v3703, %v3799
        %v3817 = vlaneseq
        %v3818 = vshrl.u32 %v3817, 7
        %v3819 = vsub.s32 0, %v3818
        %v3820 = vrot.slane %v3638, %v3819
        %v3822 = vmul.f32 %v3800, %v3820
        %v3823 = vmul.f32 %v3801, %v3820
        %v3824 = vmul.f32 %v3802, %v3820
        %v3825 = vmul.f32 %v3803, %v3820
        %v3826 = vmul.f32 %v3804, %v3820
        %v3827 = vmul.f32 %v3805, %v3820
        %v3828 = vmul.f32 %v3806, %v3820
        %v3829 = vmul.f32 %v3807, %v3820
        %v3830 = vmul.f32 %v3808, %v3820
        %v3831 = vmul.f32 %v3809, %v3820
        %v3832 = vmul.f32 %v3810, %v3820
        %v3833 = vmul.f32 %v3811, %v3820
        %v3834 = vmul.f32 %v3812, %v3820
        %v3835 = vmul.f32 %v3813, %v3820
        %v3836 = vmul.f32 %v3814, %v3820
        %v3837 = vmul.f32 %v3815, %v3820
        %v3839 = vlaneseq
        %v3840 = vshrl.u32 %v3839, 7
        %v3841 = vsub.s32 0, %v3840
        %v3842 = vrot.slane %v3639, %v3841
        %v3844 = vadd.f32 %v3822, %v3842
        %v3845 = vadd.f32 %v3823, %v3842
        %v3846 = vadd.f32 %v3824, %v3842
        %v3847 = vadd.f32 %v3825, %v3842
        %v3848 = vadd.f32 %v3826, %v3842
        %v3849 = vadd.f32 %v3827, %v3842
        %v3850 = vadd.f32 %v3828, %v3842
        %v3851 = vadd.f32 %v3829, %v3842
        %v3852 = vadd.f32 %v3830, %v3842
        %v3853 = vadd.f32 %v3831, %v3842
        %v3854 = vadd.f32 %v3832, %v3842
        %v3855 = vadd.f32 %v3833, %v3842
        %v3856 = vadd.f32 %v3834, %v3842
        %v3857 = vadd.f32 %v3835, %v3842
        %v3858 = vadd.f32 %v3836, %v3842
        %v3859 = vadd.f32 %v3837, %v3842
        %v3860 = vpack.c.bf16 %v3845, %v3844
        %v3861 = vpack.c.bf16 %v3847, %v3846
        %v3862 = vpack.c.bf16 %v3849, %v3848
        %v3863 = vpack.c.bf16 %v3851, %v3850
        %v3864 = vpack.c.bf16 %v3853, %v3852
        %v3865 = vpack.c.bf16 %v3855, %v3854
        %v3866 = vpack.c.bf16 %v3857, %v3856
        %v3867 = vpack.c.bf16 %v3859, %v3858
        %v3868 = vld [vmem:[#allocation12] sm:$0xff]
        %v3869 = vld [vmem:[#allocation12 + $0x8] sm:$0xff]
        %v3870 = vld [vmem:[#allocation12 + $0x10] sm:$0xff]
        %v3871 = vld [vmem:[#allocation12 + $0x18] sm:$0xff]
        %v3872 = vld [vmem:[#allocation12 + $0x20] sm:$0xff]
        %v3873 = vld [vmem:[#allocation12 + $0x28] sm:$0xff]
        %v3874 = vld [vmem:[#allocation12 + $0x30] sm:$0xff]
        %v3875 = vld [vmem:[#allocation12 + $0x38] sm:$0xff]
        %v3876 = vld [vmem:[#allocation12 + $0x40] sm:$0xff]
        %v3877 = vld [vmem:[#allocation12 + $0x48] sm:$0xff]
        %v3878 = vld [vmem:[#allocation12 + $0x50] sm:$0xff]
        %v3879 = vld [vmem:[#allocation12 + $0x58] sm:$0xff]
        %v3880 = vld [vmem:[#allocation12 + $0x60] sm:$0xff]
        %v3881 = vld [vmem:[#allocation12 + $0x68] sm:$0xff]
        %v3882 = vld [vmem:[#allocation12 + $0x70] sm:$0xff]
        %v3883 = vld [vmem:[#allocation12 + $0x78] sm:$0xff]
        %v3884 = vld [vmem:[%s10] sm:$0x3]
        %v3886 = vlaneseq
        %v3887 = vshrl.u32 %v3886, 7
        %v3888 = vsub.s32 0, %v3887
        %v3889 = vrot.slane %v3884, %v3888
        %v3890 = vlaneseq
        %v3891 = vshrl.u32 %v3890, 7
        %v3892 = vsub.s32 1, %v3891
        %v3893 = vrot.slane %v3884, %v3892
        %v3912 = vunpack.c.l.b16 %v3868
        %v3913 = vunpack.c.h.b16 %v3868
        %v3914 = vunpack.c.l.b16 %v3869
        %v3915 = vunpack.c.h.b16 %v3869
        %v3916 = vunpack.c.l.b16 %v3870
        %v3917 = vunpack.c.h.b16 %v3870
        %v3918 = vunpack.c.l.b16 %v3871
        %v3919 = vunpack.c.h.b16 %v3871
        %v3920 = vunpack.c.l.b16 %v3872
        %v3921 = vunpack.c.h.b16 %v3872
        %v3922 = vunpack.c.l.b16 %v3873
        %v3923 = vunpack.c.h.b16 %v3873
        %v3924 = vunpack.c.l.b16 %v3874
        %v3925 = vunpack.c.h.b16 %v3874
        %v3926 = vunpack.c.l.b16 %v3875
        %v3927 = vunpack.c.h.b16 %v3875
        %v3928 = vunpack.c.l.b16 %v3876
        %v3929 = vunpack.c.h.b16 %v3876
        %v3930 = vunpack.c.l.b16 %v3877
        %v3931 = vunpack.c.h.b16 %v3877
        %v3932 = vunpack.c.l.b16 %v3878
        %v3933 = vunpack.c.h.b16 %v3878
        %v3934 = vunpack.c.l.b16 %v3879
        %v3935 = vunpack.c.h.b16 %v3879
        %v3936 = vunpack.c.l.b16 %v3880
        %v3937 = vunpack.c.h.b16 %v3880
        %v3938 = vunpack.c.l.b16 %v3881
        %v3939 = vunpack.c.h.b16 %v3881
        %v3940 = vunpack.c.l.b16 %v3882
        %v3941 = vunpack.c.h.b16 %v3882
        %v3942 = vunpack.c.l.b16 %v3883
        %v3943 = vunpack.c.h.b16 %v3883
        %v3944 = vpack.c.b16 %v3914, %v3912
        %v3945 = vpack.c.b16 %v3915, %v3913
        %v3946 = vpack.c.b16 %v3918, %v3916
        %v3947 = vpack.c.b16 %v3919, %v3917
        %v3948 = vpack.c.b16 %v3922, %v3920
        %v3949 = vpack.c.b16 %v3923, %v3921
        %v3950 = vpack.c.b16 %v3926, %v3924
        %v3951 = vpack.c.b16 %v3927, %v3925
        %v3952 = vpack.c.b16 %v3930, %v3928
        %v3953 = vpack.c.b16 %v3931, %v3929
        %v3954 = vpack.c.b16 %v3934, %v3932
        %v3955 = vpack.c.b16 %v3935, %v3933
        %v3956 = vpack.c.b16 %v3938, %v3936
        %v3957 = vpack.c.b16 %v3939, %v3937
        %v3958 = vpack.c.b16 %v3942, %v3940
        %v3959 = vpack.c.b16 %v3943, %v3941
        %3976 = vmatprep.subr.bf16.mxu0 %v3959
        %3977 = vmatpush1.bf16.msra.mxu0 %v3958
        %3978 = vmatprep.subr.bf16.mxu0 %v3957
        %3979 = vmatpush1.bf16.msra.mxu0 %v3956
        %3980 = vmatprep.subr.bf16.mxu0 %v3955
        %3981 = vmatpush1.bf16.msra.mxu0 %v3954
        %3982 = vmatprep.subr.bf16.mxu0 %v3953
        %3983 = vmatpush1.bf16.msra.mxu0 %v3952
        %3984 = vmatprep.subr.bf16.mxu0 %v3951
        %3985 = vmatpush1.bf16.msra.mxu0 %v3950
        %3986 = vmatprep.subr.bf16.mxu0 %v3949
        %3987 = vmatpush1.bf16.msra.mxu0 %v3948
        %3988 = vmatprep.subr.bf16.mxu0 %v3947
        %3989 = vmatpush1.bf16.msra.mxu0 %v3946
        %3990 = vmatprep.subr.bf16.mxu0 %v3945
        %3991 = vmatpush1.bf16.msra.mxu0 %v3944
        %3992 = vmatprep.subr.bf16.mxu0 0
        %3993 = vmatpush2.bf16.msra.mxu0 0
        %3994 = vmatprep.subr.bf16.mxu0 0
        %3995 = vmatpush2.bf16.msra.mxu0 0
        %3996 = vmatprep.subr.bf16.mxu0 0
        %3997 = vmatpush2.bf16.msra.mxu0 0
        %3998 = vmatprep.subr.bf16.mxu0 0
        %3999 = vmatpush2.bf16.msra.mxu0 0
        %4000 = vmatprep.subr.bf16.mxu0 0
        %4001 = vmatpush2.bf16.msra.mxu0 0
        %4002 = vmatprep.subr.bf16.mxu0 0
        %4003 = vmatpush2.bf16.msra.mxu0 0
        %4004 = vmatprep.subr.bf16.mxu0 0
        %4005 = vmatpush2.bf16.msra.mxu0 0
        %4006 = vmatprep.subr.bf16.mxu0 0
        %4007 = vmatpush2.bf16.msra.mxu0 0
        %4008 = vmatprep.mubr.bf16.mxu0 0
        %4009 = vmatmul.mubr.bf16.gmra.mxu0 %v3860
        %v4010 = vpop.f32.mrf.mxu0
        %v4011 = vadd.f32 %v3889, %v4010
        %v4012 = vpop.f32.mrf.mxu0
        %v4013 = vadd.f32 %v3893, %v4012
        %v4014 = vpop.f32.mrf.mxu0
        %v4015 = vadd.f32 %v3889, %v4014
        %v4016 = vpop.f32.mrf.mxu0
        %v4017 = vadd.f32 %v3893, %v4016
        %4018 = vmatprep.mubr.bf16.mxu0 0
        %4019 = vmatmul.mubr.bf16.gmra.mxu0 %v3861
        %v4020 = vpop.f32.mrf.mxu0
        %v4021 = vadd.f32 %v3889, %v4020
        %v4022 = vpop.f32.mrf.mxu0
        %v4023 = vadd.f32 %v3893, %v4022
        %v4024 = vpop.f32.mrf.mxu0
        %v4025 = vadd.f32 %v3889, %v4024
        %v4026 = vpop.f32.mrf.mxu0
        %v4027 = vadd.f32 %v3893, %v4026
        %4028 = vmatprep.mubr.bf16.mxu0 0
        %4029 = vmatmul.mubr.bf16.gmra.mxu0 %v3862
        %v4030 = vpop.f32.mrf.mxu0
        %v4031 = vadd.f32 %v3889, %v4030
        %v4032 = vpop.f32.mrf.mxu0
        %v4033 = vadd.f32 %v3893, %v4032
        %v4034 = vpop.f32.mrf.mxu0
        %v4035 = vadd.f32 %v3889, %v4034
        %v4036 = vpop.f32.mrf.mxu0
        %v4037 = vadd.f32 %v3893, %v4036
        %4038 = vmatprep.mubr.bf16.mxu0 0
        %4039 = vmatmul.mubr.bf16.gmra.mxu0 %v3863
        %v4040 = vpop.f32.mrf.mxu0
        %v4041 = vadd.f32 %v3889, %v4040
        %v4042 = vpop.f32.mrf.mxu0
        %v4043 = vadd.f32 %v3893, %v4042
        %v4044 = vpop.f32.mrf.mxu0
        %v4045 = vadd.f32 %v3889, %v4044
        %v4046 = vpop.f32.mrf.mxu0
        %v4047 = vadd.f32 %v3893, %v4046
        %4048 = vmatprep.mubr.bf16.mxu0 0
        %4049 = vmatmul.mubr.bf16.gmra.mxu0 %v3864
        %v4050 = vpop.f32.mrf.mxu0
        %v4051 = vadd.f32 %v3889, %v4050
        %v4052 = vpop.f32.mrf.mxu0
        %v4053 = vadd.f32 %v3893, %v4052
        %v4054 = vpop.f32.mrf.mxu0
        %v4055 = vadd.f32 %v3889, %v4054
        %v4056 = vpop.f32.mrf.mxu0
        %v4057 = vadd.f32 %v3893, %v4056
        %4058 = vmatprep.mubr.bf16.mxu0 0
        %4059 = vmatmul.mubr.bf16.gmra.mxu0 %v3865
        %v4060 = vpop.f32.mrf.mxu0
        %v4061 = vadd.f32 %v3889, %v4060
        %v4062 = vpop.f32.mrf.mxu0
        %v4063 = vadd.f32 %v3893, %v4062
        %v4064 = vpop.f32.mrf.mxu0
        %v4065 = vadd.f32 %v3889, %v4064
        %v4066 = vpop.f32.mrf.mxu0
        %v4067 = vadd.f32 %v3893, %v4066
        %4068 = vmatprep.mubr.bf16.mxu0 0
        %4069 = vmatmul.mubr.bf16.gmra.mxu0 %v3866
        %v4070 = vpop.f32.mrf.mxu0
        %v4071 = vadd.f32 %v3889, %v4070
        %v4072 = vpop.f32.mrf.mxu0
        %v4073 = vadd.f32 %v3893, %v4072
        %v4074 = vpop.f32.mrf.mxu0
        %v4075 = vadd.f32 %v3889, %v4074
        %v4076 = vpop.f32.mrf.mxu0
        %v4077 = vadd.f32 %v3893, %v4076
        %4078 = vmatprep.mubr.bf16.mxu0 0
        %4079 = vmatmul.mubr.bf16.gmra.mxu0 %v3867
        %v4080 = vpop.f32.mrf.mxu0
        %v4081 = vadd.f32 %v3889, %v4080
        %v4082 = vpop.f32.mrf.mxu0
        %v4083 = vadd.f32 %v3893, %v4082
        %v4084 = vpop.f32.mrf.mxu0
        %v4085 = vadd.f32 %v3889, %v4084
        %v4086 = vpop.f32.mrf.mxu0
        %v4087 = vadd.f32 %v3893, %v4086
        %4088 = vdwg.mxu0
        %v4089 = vmul.f32 %v4011, 0.5
        %v4090 = vmul.f32 %v4013, 0.5
        %v4091 = vmul.f32 %v4015, 0.5
        %v4092 = vmul.f32 %v4017, 0.5
        %v4093 = vmul.f32 %v4021, 0.5
        %v4094 = vmul.f32 %v4023, 0.5
        %v4095 = vmul.f32 %v4025, 0.5
        %v4096 = vmul.f32 %v4027, 0.5
        %v4097 = vmul.f32 %v4031, 0.5
        %v4098 = vmul.f32 %v4033, 0.5
        %v4099 = vmul.f32 %v4035, 0.5
        %v4100 = vmul.f32 %v4037, 0.5
        %v4101 = vmul.f32 %v4041, 0.5
        %v4102 = vmul.f32 %v4043, 0.5
        %v4103 = vmul.f32 %v4045, 0.5
        %v4104 = vmul.f32 %v4047, 0.5
        %v4105 = vmul.f32 %v4051, 0.5
        %v4106 = vmul.f32 %v4053, 0.5
        %v4107 = vmul.f32 %v4055, 0.5
        %v4108 = vmul.f32 %v4057, 0.5
        %v4109 = vmul.f32 %v4061, 0.5
        %v4110 = vmul.f32 %v4063, 0.5
        %v4111 = vmul.f32 %v4065, 0.5
        %v4112 = vmul.f32 %v4067, 0.5
        %v4113 = vmul.f32 %v4071, 0.5
        %v4114 = vmul.f32 %v4073, 0.5
        %v4115 = vmul.f32 %v4075, 0.5
        %v4116 = vmul.f32 %v4077, 0.5
        %v4117 = vmul.f32 %v4081, 0.5
        %v4118 = vmul.f32 %v4083, 0.5
        %v4119 = vmul.f32 %v4085, 0.5
        %v4120 = vmul.f32 %v4087, 0.5
        %v4121 = vmul.f32 %v4011, 0.70710677
        %v4122 = vmul.f32 %v4013, 0.70710677
        %v4123 = vmul.f32 %v4015, 0.70710677
        %v4124 = vmul.f32 %v4017, 0.70710677
        %v4125 = vmul.f32 %v4021, 0.70710677
        %v4126 = vmul.f32 %v4023, 0.70710677
        %v4127 = vmul.f32 %v4025, 0.70710677
        %v4128 = vmul.f32 %v4027, 0.70710677
        %v4129 = vmul.f32 %v4031, 0.70710677
        %v4130 = vmul.f32 %v4033, 0.70710677
        %v4131 = vmul.f32 %v4035, 0.70710677
        %v4132 = vmul.f32 %v4037, 0.70710677
        %v4133 = vmul.f32 %v4041, 0.70710677
        %v4134 = vmul.f32 %v4043, 0.70710677
        %v4135 = vmul.f32 %v4045, 0.70710677
        %v4136 = vmul.f32 %v4047, 0.70710677
        %v4137 = vmul.f32 %v4051, 0.70710677
        %v4138 = vmul.f32 %v4053, 0.70710677
        %v4139 = vmul.f32 %v4055, 0.70710677
        %v4140 = vmul.f32 %v4057, 0.70710677
        %v4141 = vmul.f32 %v4061, 0.70710677
        %v4142 = vmul.f32 %v4063, 0.70710677
        %v4143 = vmul.f32 %v4065, 0.70710677
        %v4144 = vmul.f32 %v4067, 0.70710677
        %v4145 = vmul.f32 %v4071, 0.70710677
        %v4146 = vmul.f32 %v4073, 0.70710677
        %v4147 = vmul.f32 %v4075, 0.70710677
        %v4148 = vmul.f32 %v4077, 0.70710677
        %v4149 = vmul.f32 %v4081, 0.70710677
        %v4150 = vmul.f32 %v4083, 0.70710677
        %v4151 = vmul.f32 %v4085, 0.70710677
        %v4152 = vmul.f32 %v4087, 0.70710677
        %v4153 = verf.f32.pop %v4121
        %v4154 = verf.f32.pop %v4122
        %v4155 = verf.f32.pop %v4123
        %v4156 = verf.f32.pop %v4124
        %v4157 = verf.f32.pop %v4125
        %v4158 = verf.f32.pop %v4126
        %v4159 = verf.f32.pop %v4127
        %v4160 = verf.f32.pop %v4128
        %v4161 = verf.f32.pop %v4129
        %v4162 = verf.f32.pop %v4130
        %v4163 = verf.f32.pop %v4131
        %v4164 = verf.f32.pop %v4132
        %v4165 = verf.f32.pop %v4133
        %v4166 = verf.f32.pop %v4134
        %v4167 = verf.f32.pop %v4135
        %v4168 = verf.f32.pop %v4136
        %v4169 = verf.f32.pop %v4137
        %v4170 = verf.f32.pop %v4138
        %v4171 = verf.f32.pop %v4139
        %v4172 = verf.f32.pop %v4140
        %v4173 = verf.f32.pop %v4141
        %v4174 = verf.f32.pop %v4142
        %v4175 = verf.f32.pop %v4143
        %v4176 = verf.f32.pop %v4144
        %v4177 = verf.f32.pop %v4145
        %v4178 = verf.f32.pop %v4146
        %v4179 = verf.f32.pop %v4147
        %v4180 = verf.f32.pop %v4148
        %v4181 = verf.f32.pop %v4149
        %v4182 = verf.f32.pop %v4150
        %v4183 = verf.f32.pop %v4151
        %v4184 = verf.f32.pop %v4152
        %v4185 = vadd.f32 %v4153, 1.0
        %v4186 = vadd.f32 %v4154, 1.0
        %v4187 = vadd.f32 %v4155, 1.0
        %v4188 = vadd.f32 %v4156, 1.0
        %v4189 = vadd.f32 %v4157, 1.0
        %v4190 = vadd.f32 %v4158, 1.0
        %v4191 = vadd.f32 %v4159, 1.0
        %v4192 = vadd.f32 %v4160, 1.0
        %v4193 = vadd.f32 %v4161, 1.0
        %v4194 = vadd.f32 %v4162, 1.0
        %v4195 = vadd.f32 %v4163, 1.0
        %v4196 = vadd.f32 %v4164, 1.0
        %v4197 = vadd.f32 %v4165, 1.0
        %v4198 = vadd.f32 %v4166, 1.0
        %v4199 = vadd.f32 %v4167, 1.0
        %v4200 = vadd.f32 %v4168, 1.0
        %v4201 = vadd.f32 %v4169, 1.0
        %v4202 = vadd.f32 %v4170, 1.0
        %v4203 = vadd.f32 %v4171, 1.0
        %v4204 = vadd.f32 %v4172, 1.0
        %v4205 = vadd.f32 %v4173, 1.0
        %v4206 = vadd.f32 %v4174, 1.0
        %v4207 = vadd.f32 %v4175, 1.0
        %v4208 = vadd.f32 %v4176, 1.0
        %v4209 = vadd.f32 %v4177, 1.0
        %v4210 = vadd.f32 %v4178, 1.0
        %v4211 = vadd.f32 %v4179, 1.0
        %v4212 = vadd.f32 %v4180, 1.0
        %v4213 = vadd.f32 %v4181, 1.0
        %v4214 = vadd.f32 %v4182, 1.0
        %v4215 = vadd.f32 %v4183, 1.0
        %v4216 = vadd.f32 %v4184, 1.0
        %v4217 = vmul.f32 %v4089, %v4185
        %v4218 = vmul.f32 %v4090, %v4186
        %v4219 = vmul.f32 %v4091, %v4187
        %v4220 = vmul.f32 %v4092, %v4188
        %v4221 = vmul.f32 %v4093, %v4189
        %v4222 = vmul.f32 %v4094, %v4190
        %v4223 = vmul.f32 %v4095, %v4191
        %v4224 = vmul.f32 %v4096, %v4192
        %v4225 = vmul.f32 %v4097, %v4193
        %v4226 = vmul.f32 %v4098, %v4194
        %v4227 = vmul.f32 %v4099, %v4195
        %v4228 = vmul.f32 %v4100, %v4196
        %v4229 = vmul.f32 %v4101, %v4197
        %v4230 = vmul.f32 %v4102, %v4198
        %v4231 = vmul.f32 %v4103, %v4199
        %v4232 = vmul.f32 %v4104, %v4200
        %v4233 = vmul.f32 %v4105, %v4201
        %v4234 = vmul.f32 %v4106, %v4202
        %v4235 = vmul.f32 %v4107, %v4203
        %v4236 = vmul.f32 %v4108, %v4204
        %v4237 = vmul.f32 %v4109, %v4205
        %v4238 = vmul.f32 %v4110, %v4206
        %v4239 = vmul.f32 %v4111, %v4207
        %v4240 = vmul.f32 %v4112, %v4208
        %v4241 = vmul.f32 %v4113, %v4209
        %v4242 = vmul.f32 %v4114, %v4210
        %v4243 = vmul.f32 %v4115, %v4211
        %v4244 = vmul.f32 %v4116, %v4212
        %v4245 = vmul.f32 %v4117, %v4213
        %v4246 = vmul.f32 %v4118, %v4214
        %v4247 = vmul.f32 %v4119, %v4215
        %v4248 = vmul.f32 %v4120, %v4216
        %v4249 = vpack.c.bf16 %v4219, %v4217
        %v4250 = vpack.c.bf16 %v4220, %v4218
        %v4251 = vpack.c.bf16 %v4223, %v4221
        %v4252 = vpack.c.bf16 %v4224, %v4222
        %v4253 = vpack.c.bf16 %v4227, %v4225
        %v4254 = vpack.c.bf16 %v4228, %v4226
        %v4255 = vpack.c.bf16 %v4231, %v4229
        %v4256 = vpack.c.bf16 %v4232, %v4230
        %v4257 = vpack.c.bf16 %v4235, %v4233
        %v4258 = vpack.c.bf16 %v4236, %v4234
        %v4259 = vpack.c.bf16 %v4239, %v4237
        %v4260 = vpack.c.bf16 %v4240, %v4238
        %v4261 = vpack.c.bf16 %v4243, %v4241
        %v4262 = vpack.c.bf16 %v4244, %v4242
        %v4263 = vpack.c.bf16 %v4247, %v4245
        %v4264 = vpack.c.bf16 %v4248, %v4246
        %v4265 = vld [vmem:[#allocation14] sm:$0xf]
        %v4266 = vld [vmem:[#allocation14 + $0x4] sm:$0xf]
        %v4267 = vld [vmem:[#allocation14 + $0x8] sm:$0xf]
        %v4268 = vld [vmem:[#allocation14 + $0xc] sm:$0xf]
        %v4269 = vld [vmem:[#allocation14 + $0x10] sm:$0xf]
        %v4270 = vld [vmem:[#allocation14 + $0x14] sm:$0xf]
        %v4271 = vld [vmem:[#allocation14 + $0x18] sm:$0xf]
        %v4272 = vld [vmem:[#allocation14 + $0x1c] sm:$0xf]
        %v4273 = vld [vmem:[#allocation14 + $0x20] sm:$0xf]
        %v4274 = vld [vmem:[#allocation14 + $0x24] sm:$0xf]
        %v4275 = vld [vmem:[#allocation14 + $0x28] sm:$0xf]
        %v4276 = vld [vmem:[#allocation14 + $0x2c] sm:$0xf]
        %v4277 = vld [vmem:[#allocation14 + $0x30] sm:$0xf]
        %v4278 = vld [vmem:[#allocation14 + $0x34] sm:$0xf]
        %v4279 = vld [vmem:[#allocation14 + $0x38] sm:$0xf]
        %v4280 = vld [vmem:[#allocation14 + $0x3c] sm:$0xf]
        %v4281 = vld [vmem:[#allocation14 + $0x40] sm:$0xf]
        %v4282 = vld [vmem:[#allocation14 + $0x44] sm:$0xf]
        %v4283 = vld [vmem:[#allocation14 + $0x48] sm:$0xf]
        %v4284 = vld [vmem:[#allocation14 + $0x4c] sm:$0xf]
        %v4285 = vld [vmem:[#allocation14 + $0x50] sm:$0xf]
        %v4286 = vld [vmem:[#allocation14 + $0x54] sm:$0xf]
        %v4287 = vld [vmem:[#allocation14 + $0x58] sm:$0xf]
        %v4288 = vld [vmem:[#allocation14 + $0x5c] sm:$0xf]
        %v4289 = vld [vmem:[#allocation14 + $0x60] sm:$0xf]
        %v4290 = vld [vmem:[#allocation14 + $0x64] sm:$0xf]
        %v4291 = vld [vmem:[#allocation14 + $0x68] sm:$0xf]
        %v4292 = vld [vmem:[#allocation14 + $0x6c] sm:$0xf]
        %v4293 = vld [vmem:[#allocation14 + $0x70] sm:$0xf]
        %v4294 = vld [vmem:[#allocation14 + $0x74] sm:$0xf]
        %v4295 = vld [vmem:[#allocation14 + $0x78] sm:$0xf]
        %v4296 = vld [vmem:[#allocation14 + $0x7c] sm:$0xf]
        %v4297 = vld [vmem:[%s12] sm:$0x1]
        %v4299 = vlaneseq
        %v4300 = vshrl.u32 %v4299, 7
        %v4301 = vsub.s32 0, %v4300
        %v4302 = vrot.slane %v4297, %v4301
        %v4336 = vunpack.c.l.b16 %v4265
        %v4337 = vunpack.c.l.b16 %v4266
        %v4338 = vunpack.c.l.b16 %v4267
        %v4339 = vunpack.c.l.b16 %v4268
        %v4340 = vunpack.c.l.b16 %v4269
        %v4341 = vunpack.c.l.b16 %v4270
        %v4342 = vunpack.c.l.b16 %v4271
        %v4343 = vunpack.c.l.b16 %v4272
        %v4344 = vunpack.c.l.b16 %v4273
        %v4345 = vunpack.c.l.b16 %v4274
        %v4346 = vunpack.c.l.b16 %v4275
        %v4347 = vunpack.c.l.b16 %v4276
        %v4348 = vunpack.c.l.b16 %v4277
        %v4349 = vunpack.c.l.b16 %v4278
        %v4350 = vunpack.c.l.b16 %v4279
        %v4351 = vunpack.c.l.b16 %v4280
        %v4352 = vunpack.c.l.b16 %v4281
        %v4353 = vunpack.c.l.b16 %v4282
        %v4354 = vunpack.c.l.b16 %v4283
        %v4355 = vunpack.c.l.b16 %v4284
        %v4356 = vunpack.c.l.b16 %v4285
        %v4357 = vunpack.c.l.b16 %v4286
        %v4358 = vunpack.c.l.b16 %v4287
        %v4359 = vunpack.c.l.b16 %v4288
        %v4360 = vunpack.c.l.b16 %v4289
        %v4361 = vunpack.c.l.b16 %v4290
        %v4362 = vunpack.c.l.b16 %v4291
        %v4363 = vunpack.c.l.b16 %v4292
        %v4364 = vunpack.c.l.b16 %v4293
        %v4365 = vunpack.c.l.b16 %v4294
        %v4366 = vunpack.c.l.b16 %v4295
        %v4367 = vunpack.c.l.b16 %v4296
        %v4368 = vpack.c.b16 %v4337, %v4336
        %v4369 = vpack.c.b16 %v4339, %v4338
        %v4370 = vpack.c.b16 %v4341, %v4340
        %v4371 = vpack.c.b16 %v4343, %v4342
        %v4372 = vpack.c.b16 %v4345, %v4344
        %v4373 = vpack.c.b16 %v4347, %v4346
        %v4374 = vpack.c.b16 %v4349, %v4348
        %v4375 = vpack.c.b16 %v4351, %v4350
        %v4376 = vpack.c.b16 %v4353, %v4352
        %v4377 = vpack.c.b16 %v4355, %v4354
        %v4378 = vpack.c.b16 %v4357, %v4356
        %v4379 = vpack.c.b16 %v4359, %v4358
        %v4380 = vpack.c.b16 %v4361, %v4360
        %v4381 = vpack.c.b16 %v4363, %v4362
        %v4382 = vpack.c.b16 %v4365, %v4364
        %v4383 = vpack.c.b16 %v4367, %v4366
        %4400 = vmatprep.subr.bf16.mxu0 0
        %4401 = vmatpush1.bf16.msra.mxu0 %v4375
        %4402 = vmatprep.subr.bf16.mxu0 0
        %4403 = vmatpush1.bf16.msra.mxu0 %v4374
        %4404 = vmatprep.subr.bf16.mxu0 0
        %4405 = vmatpush1.bf16.msra.mxu0 %v4373
        %4406 = vmatprep.subr.bf16.mxu0 0
        %4407 = vmatpush1.bf16.msra.mxu0 %v4372
        %4408 = vmatprep.subr.bf16.mxu0 0
        %4409 = vmatpush1.bf16.msra.mxu0 %v4371
        %4410 = vmatprep.subr.bf16.mxu0 0
        %4411 = vmatpush1.bf16.msra.mxu0 %v4370
        %4412 = vmatprep.subr.bf16.mxu0 0
        %4413 = vmatpush1.bf16.msra.mxu0 %v4369
        %4414 = vmatprep.subr.bf16.mxu0 0
        %4415 = vmatpush1.bf16.msra.mxu0 %v4368
        %4416 = vmatprep.subr.bf16.mxu0 0
        %4417 = vmatpush2.bf16.msra.mxu0 %v4383
        %4418 = vmatprep.subr.bf16.mxu0 0
        %4419 = vmatpush2.bf16.msra.mxu0 %v4382
        %4420 = vmatprep.subr.bf16.mxu0 0
        %4421 = vmatpush2.bf16.msra.mxu0 %v4381
        %4422 = vmatprep.subr.bf16.mxu0 0
        %4423 = vmatpush2.bf16.msra.mxu0 %v4380
        %4424 = vmatprep.subr.bf16.mxu0 0
        %4425 = vmatpush2.bf16.msra.mxu0 %v4379
        %4426 = vmatprep.subr.bf16.mxu0 0
        %4427 = vmatpush2.bf16.msra.mxu0 %v4378
        %4428 = vmatprep.subr.bf16.mxu0 0
        %4429 = vmatpush2.bf16.msra.mxu0 %v4377
        %4430 = vmatprep.subr.bf16.mxu0 0
        %4431 = vmatpush2.bf16.msra.mxu0 %v4376
        %4432 = vmatprep.mubr.bf16.mxu0 %v4250
        %4433 = vmatmul.mubr.bf16.gmra.mxu0 %v4249
        %v4434 = vpop.f32.mrf.mxu0
        %v4435 = vadd.f32 %v4302, %v4434
        %v4436 = vpop.f32.mrf.mxu0
        %v4437 = vpop.f32.mrf.mxu0
        %v4438 = vadd.f32 %v4302, %v4437
        %v4439 = vpop.f32.mrf.mxu0
        %4440 = vmatprep.mubr.bf16.mxu0 %v4252
        %4441 = vmatmul.mubr.bf16.gmra.mxu0 %v4251
        %v4442 = vpop.f32.mrf.mxu0
        %v4443 = vadd.f32 %v4302, %v4442
        %v4444 = vpop.f32.mrf.mxu0
        %v4445 = vpop.f32.mrf.mxu0
        %v4446 = vadd.f32 %v4302, %v4445
        %v4447 = vpop.f32.mrf.mxu0
        %4448 = vmatprep.mubr.bf16.mxu0 %v4254
        %4449 = vmatmul.mubr.bf16.gmra.mxu0 %v4253
        %v4450 = vpop.f32.mrf.mxu0
        %v4451 = vadd.f32 %v4302, %v4450
        %v4452 = vpop.f32.mrf.mxu0
        %v4453 = vpop.f32.mrf.mxu0
        %v4454 = vadd.f32 %v4302, %v4453
        %v4455 = vpop.f32.mrf.mxu0
        %4456 = vmatprep.mubr.bf16.mxu0 %v4256
        %4457 = vmatmul.mubr.bf16.gmra.mxu0 %v4255
        %v4458 = vpop.f32.mrf.mxu0
        %v4459 = vadd.f32 %v4302, %v4458
        %v4460 = vpop.f32.mrf.mxu0
        %v4461 = vpop.f32.mrf.mxu0
        %v4462 = vadd.f32 %v4302, %v4461
        %v4463 = vpop.f32.mrf.mxu0
        %4464 = vmatprep.mubr.bf16.mxu0 %v4258
        %4465 = vmatmul.mubr.bf16.gmra.mxu0 %v4257
        %v4466 = vpop.f32.mrf.mxu0
        %v4467 = vadd.f32 %v4302, %v4466
        %v4468 = vpop.f32.mrf.mxu0
        %v4469 = vpop.f32.mrf.mxu0
        %v4470 = vadd.f32 %v4302, %v4469
        %v4471 = vpop.f32.mrf.mxu0
        %4472 = vmatprep.mubr.bf16.mxu0 %v4260
        %4473 = vmatmul.mubr.bf16.gmra.mxu0 %v4259
        %v4474 = vpop.f32.mrf.mxu0
        %v4475 = vadd.f32 %v4302, %v4474
        %v4476 = vpop.f32.mrf.mxu0
        %v4477 = vpop.f32.mrf.mxu0
        %v4478 = vadd.f32 %v4302, %v4477
        %v4479 = vpop.f32.mrf.mxu0
        %4480 = vmatprep.mubr.bf16.mxu0 %v4262
        %4481 = vmatmul.mubr.bf16.gmra.mxu0 %v4261
        %v4482 = vpop.f32.mrf.mxu0
        %v4483 = vadd.f32 %v4302, %v4482
        %v4484 = vpop.f32.mrf.mxu0
        %v4485 = vpop.f32.mrf.mxu0
        %v4486 = vadd.f32 %v4302, %v4485
        %v4487 = vpop.f32.mrf.mxu0
        %4488 = vmatprep.mubr.bf16.mxu0 %v4264
        %4489 = vmatmul.mubr.bf16.gmra.mxu0 %v4263
        %v4490 = vpop.f32.mrf.mxu0
        %v4491 = vadd.f32 %v4302, %v4490
        %v4492 = vpop.f32.mrf.mxu0
        %v4493 = vpop.f32.mrf.mxu0
        %v4494 = vadd.f32 %v4302, %v4493
        %v4495 = vpop.f32.mrf.mxu0
        %4496 = vdwg.mxu0
        %v4497 = vadd.f32 %v3622, %v4435
        %v4498 = vadd.f32 %v3623, %v4438
        %v4499 = vadd.f32 %v3624, %v4443
        %v4500 = vadd.f32 %v3625, %v4446
        %v4501 = vadd.f32 %v3626, %v4451
        %v4502 = vadd.f32 %v3627, %v4454
        %v4503 = vadd.f32 %v3628, %v4459
        %v4504 = vadd.f32 %v3629, %v4462
        %v4505 = vadd.f32 %v3630, %v4467
        %v4506 = vadd.f32 %v3631, %v4470
        %v4507 = vadd.f32 %v3632, %v4475
        %v4508 = vadd.f32 %v3633, %v4478
        %v4509 = vadd.f32 %v3634, %v4483
        %v4510 = vadd.f32 %v3635, %v4486
        %v4511 = vadd.f32 %v3636, %v4491
        %v4512 = vadd.f32 %v3637, %v4494
        %4513 = vst [vmem:[%s541] sm:$0xff] %v4497
        %4514 = vst [vmem:[%s541 + $0x8] sm:$0xff] %v4498
        %4515 = vst [vmem:[%s541 + $0x10] sm:$0xff] %v4499
        %4516 = vst [vmem:[%s541 + $0x18] sm:$0xff] %v4500
        %4517 = vst [vmem:[%s541 + $0x20] sm:$0xff] %v4501
        %4518 = vst [vmem:[%s541 + $0x28] sm:$0xff] %v4502
        %4519 = vst [vmem:[%s541 + $0x30] sm:$0xff] %v4503
        %4520 = vst [vmem:[%s541 + $0x38] sm:$0xff] %v4504
        %4521 = vst [vmem:[%s541 + $0x40] sm:$0xff] %v4505
        %4522 = vst [vmem:[%s541 + $0x48] sm:$0xff] %v4506
        %4523 = vst [vmem:[%s541 + $0x50] sm:$0xff] %v4507
        %4524 = vst [vmem:[%s541 + $0x58] sm:$0xff] %v4508
        %4525 = vst [vmem:[%s541 + $0x60] sm:$0xff] %v4509
        %4526 = vst [vmem:[%s541 + $0x68] sm:$0xff] %v4510
        %4527 = vst [vmem:[%s541 + $0x70] sm:$0xff] %v4511
        %4528 = vst [vmem:[%s541 + $0x78] sm:$0xff] %v4512
        %s4529 = sand.u32 %s319, 1
        %s4530 = scalar_lea.sflag [#allocation5], %s4529
        %s4531 = sand.u32 %s319, 1
        %s4532 = smul.addr %s4531, 128
        %s4533 = scalar_lea.vmem [#allocation15], %s4532
        // Predicated region
        $region101: #{tpu_custom_call.1} parent=71 // pred_check
          %p4534 = pneg %p329
        $region102: #{tpu_custom_call.1} parent=71 // pred_check_branch
          %4536 = sbr.rel (%p4534) target = $region104
        $region103: #{tpu_custom_call.1} parent=71 // pred_region
          %s4538 = ssub.s32 2048, 2048
          %4539 = vsyncadd %s4530, %s4538
          %s4540 = smul.addr %s33, 16
          %s4541 = smul.addr %s4540, 128
          %s4542 = scalar_lea.hbm %s13, %s4541
          %s4543 = sshll.u32 %s4533, 4
          %s4544 = int_to_ptr.vmem [resolvable:$true] %s4543
          %4549 = dma.vmem_to_hbm [thread:$0]  %s4544, 2048, %s4542, %s4530, 128, 128, 8
        $region104: #{tpu_custom_call.1} parent=71 // pred_fallthru
          _
      $region72: #{tpu_custom_call.1} parent=5 // pred_fallthru
        _
      %p4550 = scmp.le.s32.totalorder 2, %s28
      // Predicated region
      $region105: #{tpu_custom_call.1} parent=5 // pred_check
        %p4551 = pneg %p4550
      $region106: #{tpu_custom_call.1} parent=5 // pred_check_branch
        %4553 = sbr.rel (%p4551) target = $region108
      $region107: #{tpu_custom_call.1} parent=5 // pred_region
        %s4554 = ssub.s32 %s28, 2
        // Predicated region
        $region109: #{tpu_custom_call.1} parent=107 // pred_check
          %p4555 = pneg %p335
        $region110: #{tpu_custom_call.1} parent=107 // pred_check_branch
          %4557 = sbr.rel (%p4555) target = $region112
        $region111: #{tpu_custom_call.1} parent=107 // pred_region
          %s4558 = sand.u32 %s320, 1
          %s4559 = scalar_lea.sflag [#allocation5], %s4558
          %s4560 = sand.u32 %s320, 1
          %s4561 = smul.addr %s4560, 128
          %s4562 = scalar_lea.vmem [#allocation15], %s4561
          %4563 = dma.done %s4559, 2048
        $region112: #{tpu_custom_call.1} parent=107 // pred_fallthru
          _
      $region108: #{tpu_custom_call.1} parent=5 // pred_fallthru
        _
    $region6: #{tpu_custom_call.1} parent=1 // loop_footer
      %s32 = sadd.s32 1, %s28
    $region7: #{tpu_custom_call.1} parent=1 // loop_footer_branch
      %27 = sbr.rel target = $region3
    $region8: #{tpu_custom_call.1} parent=1 // loop_exit
      _
    %4564 = vsyncpa [#allocation4], 1
    %s4565 = scalar_lea.sflag [#allocation4], 1
    %4566 = vsyncpa %s4565, 1
    %4567 = vsyncpa [#allocation7], 1
    %4568 = vsyncpa [#allocation10], 1
    %4569 = vsyncpa [#allocation13], 1
    %4570 = vsyncpa [#allocation5], 1
    %s4571 = scalar_lea.sflag [#allocation5], 1
    %4572 = vsyncpa %s4571, 1

// kernel: tpu_custom_call.1
$region0: #{tpu_custom_call.1}
  #allocation0 [shape = 'u32[]', space=smem, size = 0x4, offset = 0x4, fixed_abs, tag = 'smem constant byte address 0x4 - core index']
  #allocation1 [shape = 'u32[144,128]{1,0:T(1,128)}', space=vmem, size = 0x12000, scoped, tag = 'internal scratch']
  #allocation2 [shape = 'bf16[128,128]{1,0:T(8,128)(2,1)}', space=vmem, size = 0x8000, scoped, tag = 'scratch operand']
  %s0 = inlined_call_operand.hbm [shape: f32[2,128,128], index: 0, kind: input, shape index: {}]
  %s1 = inlined_call_operand.hbm [shape: f32[1,128], index: 1, kind: input, shape index: {}]
  %s2 = inlined_call_operand.hbm [shape: f32[1,128], index: 2, kind: input, shape index: {}]
  %s3 = inlined_call_operand.hbm [shape: bf16[128,384], index: 3, kind: input, shape index: {}]
  %s4 = inlined_call_operand.vmem [shape: f32[1,384], index: 4, kind: input, shape index: {}]
  %s5 = inlined_call_operand.hbm [shape: bf16[128,128], index: 5, kind: input, shape index: {}]
  %s6 = inlined_call_operand.vmem [shape: f32[1,128], index: 6, kind: input, shape index: {}]
  %s7 = inlined_call_operand.vmem [shape: f32[1,128], index: 7, kind: input, shape index: {}]
  %s8 = inlined_call_operand.vmem [shape: f32[1,128], index: 8, kind: input, shape index: {}]
  %s9 = inlined_call_operand.hbm [shape: bf16[128,256], index: 9, kind: input, shape index: {}]
  %s10 = inlined_call_operand.vmem [shape: f32[1,256], index: 10, kind: input, shape index: {}]
  %s11 = inlined_call_operand.hbm [shape: bf16[256,128], index: 11, kind: input, shape index: {}]
  %s12 = inlined_call_operand.vmem [shape: f32[1,128], index: 12, kind: input, shape index: {}]
  %s13 = inlined_call_operand.hbm [shape: f32[2,128,128], index: 13, kind: output, shape index: {}]
  %s14 = sld [smem:[#allocation0]]
  $region113: #{tpu_custom_call.1} parent=0
    _
  %s16 = ssub.s32 1, %s14
  %s17 = scalar_select 0, %s16, %s14
  $region1: #{tpu_custom_call.1} parent=0
    #allocation3 [shape = 'u8[131072]{0}', space=vmem, size = 0x20000, scoped, tag = 'input window, operand 0']
    #allocation4 [shape = 's32[2]{0}', space=sflag, size = 0x8, scoped, tag = 'scoped memory for tpu_custom_call.1']
    #allocation5 [shape = 's32[2]{0}', space=sflag, size = 0x8, scoped, tag = 'scoped memory for tpu_custom_call.1']
    #allocation6 [shape = 'u8[512]{0}', space=vmem, size = 0x400, scoped, tag = 'input window, operand 1, single buffered']
    #allocation7 [shape = 's32[1]{0}', space=sflag, size = 0x4, scoped, tag = 'scoped memory for tpu_custom_call.1']
    #allocation8 [shape = 'u8[512]{0}', space=vmem, size = 0x400, scoped, tag = 'input window, operand 2, single buffered']
    #allocation9 [shape = 'u8[98304]{0}', space=vmem, size = 0x18000, scoped, tag = 'input window, operand 3, single buffered']
    #allocation10 [shape = 's32[1]{0}', space=sflag, size = 0x4, scoped, tag = 'scoped memory for tpu_custom_call.1']
    #allocation11 [shape = 'u8[32768]{0}', space=vmem, size = 0x8000, scoped, tag = 'input window, operand 5, single buffered']
    #allocation12 [shape = 'u8[65536]{0}', space=vmem, size = 0x10000, scoped, tag = 'input window, operand 9, single buffered']
    #allocation13 [shape = 's32[1]{0}', space=sflag, size = 0x4, scoped, tag = 'scoped memory for tpu_custom_call.1']
    #allocation14 [shape = 'u8[65536]{0}', space=vmem, size = 0x10000, scoped, tag = 'input window, operand 11, single buffered']
    #allocation15 [shape = 'u8[131072]{0}', space=vmem, size = 0x20000, scoped, tag = 'output window, operand 0']
    %18 = vsyncpa [#allocation4], 0
    %s19 = scalar_lea.sflag [#allocation4], 1
    %20 = vsyncpa %s19, 0
    %21 = vsyncpa [#allocation7], 0
    %22 = vsyncpa [#allocation10], 0
    %23 = vsyncpa [#allocation13], 0
    %24 = vsyncpa [#allocation5], 0
    %s25 = scalar_lea.sflag [#allocation5], 1
    %26 = vsyncpa %s25, 0
    loop: start=0, step=1, limit=4
    $region2: #{tpu_custom_call.1} parent=1 // loop_pre_header
      _
    $region3: #{tpu_custom_call.1} parent=1 // loop_header
      %s28 = sphi 0, %s32
      %p29 = scmp.ge.s32.totalorder %s28, 4
      %s38 = sphi 0, %s40
      %s41 = sphi 0, %s38
      %s42 = sphi 0, %s41
      %s58 = sphi 0, %s42
      %s62 = sphi 0, %s62
      %s64 = sphi 0, %s62
      %s65 = sphi 0, %s64
      %s79 = sphi 0, %s65
      %s83 = sphi 0, %s83
      %s85 = sphi 0, %s83
      %s86 = sphi 0, %s85
      %s100 = sphi 0, %s86
      %s104 = sphi 0, %s104
      %s106 = sphi 0, %s104
      %s107 = sphi 0, %s106
      %s121 = sphi 0, %s107
      %s125 = sphi 0, %s125
      %s127 = sphi 0, %s125
      %s128 = sphi 0, %s127
      %s142 = sphi 0, %s128
      %s146 = sphi 0, %s146
      %s148 = sphi 0, %s146
      %s149 = sphi 0, %s148
      %s163 = sphi 0, %s149
      %s167 = sphi 0, %s167
      %s169 = sphi 0, %s167
      %s170 = sphi 0, %s169
      %s184 = sphi 0, %s170
      %s188 = sphi 0, %s188
      %s190 = sphi 0, %s188
      %s191 = sphi 0, %s190
      %s205 = sphi 0, %s191
      %s209 = sphi 0, %s209
      %s211 = sphi 0, %s209
      %s212 = sphi 0, %s211
      %s226 = sphi 0, %s212
      %s230 = sphi 0, %s230
      %s232 = sphi 0, %s230
      %s233 = sphi 0, %s232
      %s247 = sphi 0, %s233
      %s251 = sphi 0, %s251
      %s253 = sphi 0, %s251
      %s254 = sphi 0, %s253
      %s268 = sphi 0, %s254
      %s272 = sphi 0, %s272
      %s274 = sphi 0, %s272
      %s275 = sphi 0, %s274
      %s289 = sphi 0, %s275
      %s293 = sphi 0, %s293
      %s295 = sphi 0, %s293
      %s296 = sphi 0, %s295
      %s310 = sphi 0, %s296
      %s316 = sphi 0, %s318
      %s319 = sphi 0, %s316
      %s320 = sphi 0, %s319
      %s336 = sphi 0, %s320
    $region4: #{tpu_custom_call.1} parent=1 // loop_header_branch
      %31 = sbr.rel (%p29) target = $region8
    $region5: #{tpu_custom_call.1} parent=1 // loop_body
      %s33 = ssub.s32 %s28, 1
      %s34 = ssub.s32 %s28, 2
      %s35 = sadd.s32 %s28, 1
      %s36 = ssub.s32 %s28, %s35
      %p37 = scmp.eq.s32.totalorder %s36, 0
      %s39 = sadd.s32 %s38, 1
      %s40 = scalar_select %p37, %s38, %s39
      %p43 = pneg %p37
      %p44 = scmp.eq.s32.totalorder %s28, 1
      %p45 = por %p43, %p44
      %p46 = scmp.ne.s32.totalorder %s38, %s41
      %p47 = scmp.eq.s32.totalorder %s28, 0
      %p48 = por %p46, %p47
      %p49 = scmp.ne.s32.totalorder %s38, %s41
      %p50 = scmp.eq.s32.totalorder %s33, 1
      %p51 = por %p49, %p50
      %p52 = scmp.ne.s32.totalorder %s41, %s42
      %p53 = scmp.eq.s32.totalorder %s33, 0
      %p54 = por %p52, %p53
      %p55 = scmp.ne.s32.totalorder %s41, %s42
      %p56 = scmp.eq.s32.totalorder %s34, 1
      %p57 = por %p55, %p56
      %p59 = scmp.ne.s32.totalorder %s42, %s58
      %p60 = scmp.eq.s32.totalorder %s34, 0
      %p61 = por %p59, %p60
      %s63 = sadd.s32 %s62, 1
      %p66 = scmp.eq.s32.totalorder %s28, 1
      %p67 = scmp.ne.s32.totalorder %s62, %s64
      %p68 = scmp.eq.s32.totalorder %s28, 0
      %p69 = por %p67, %p68
      %p70 = scmp.ne.s32.totalorder %s62, %s64
      %p71 = scmp.eq.s32.totalorder %s33, 1
      %p72 = por %p70, %p71
      %p73 = scmp.ne.s32.totalorder %s64, %s65
      %p74 = scmp.eq.s32.totalorder %s33, 0
      %p75 = por %p73, %p74
      %p76 = scmp.ne.s32.totalorder %s64, %s65
      %p77 = scmp.eq.s32.totalorder %s34, 1
      %p78 = por %p76, %p77
      %p80 = scmp.ne.s32.totalorder %s65, %s79
      %p81 = scmp.eq.s32.totalorder %s34, 0
      %p82 = por %p80, %p81
      %s84 = sadd.s32 %s83, 1
      %p87 = scmp.eq.s32.totalorder %s28, 1
      %p88 = scmp.ne.s32.totalorder %s83, %s85
      %p89 = scmp.eq.s32.totalorder %s28, 0
      %p90 = por %p88, %p89
      %p91 = scmp.ne.s32.totalorder %s83, %s85
      %p92 = scmp.eq.s32.totalorder %s33, 1
      %p93 = por %p91, %p92
      %p94 = scmp.ne.s32.totalorder %s85, %s86
      %p95 = scmp.eq.s32.totalorder %s33, 0
      %p96 = por %p94, %p95
      %p97 = scmp.ne.s32.totalorder %s85, %s86
      %p98 = scmp.eq.s32.totalorder %s34, 1
      %p99 = por %p97, %p98
      %p101 = scmp.ne.s32.totalorder %s86, %s100
      %p102 = scmp.eq.s32.totalorder %s34, 0
      %p103 = por %p101, %p102
      %s105 = sadd.s32 %s104, 1
      %p108 = scmp.eq.s32.totalorder %s28, 1
      %p109 = scmp.ne.s32.totalorder %s104, %s106
      %p110 = scmp.eq.s32.totalorder %s28, 0
      %p111 = por %p109, %p110
      %p112 = scmp.ne.s32.totalorder %s104, %s106
      %p113 = scmp.eq.s32.totalorder %s33, 1
      %p114 = por %p112, %p113
      %p115 = scmp.ne.s32.totalorder %s106, %s107
      %p116 = scmp.eq.s32.totalorder %s33, 0
      %p117 = por %p115, %p116
      %p118 = scmp.ne.s32.totalorder %s106, %s107
      %p119 = scmp.eq.s32.totalorder %s34, 1
      %p120 = por %p118, %p119
      %p122 = scmp.ne.s32.totalorder %s107, %s121
      %p123 = scmp.eq.s32.totalorder %s34, 0
      %p124 = por %p122, %p123
      %s126 = sadd.s32 %s125, 1
      %p129 = scmp.eq.s32.totalorder %s28, 1
      %p130 = scmp.ne.s32.totalorder %s125, %s127
      %p131 = scmp.eq.s32.totalorder %s28, 0
      %p132 = por %p130, %p131
      %p133 = scmp.ne.s32.totalorder %s125, %s127
      %p134 = scmp.eq.s32.totalorder %s33, 1
      %p135 = por %p133, %p134
      %p136 = scmp.ne.s32.totalorder %s127, %s128
      %p137 = scmp.eq.s32.totalorder %s33, 0
      %p138 = por %p136, %p137
      %p139 = scmp.ne.s32.totalorder %s127, %s128
      %p140 = scmp.eq.s32.totalorder %s34, 1
      %p141 = por %p139, %p140
      %p143 = scmp.ne.s32.totalorder %s128, %s142
      %p144 = scmp.eq.s32.totalorder %s34, 0
      %p145 = por %p143, %p144
      %s147 = sadd.s32 %s146, 1
      %p150 = scmp.eq.s32.totalorder %s28, 1
      %p151 = scmp.ne.s32.totalorder %s146, %s148
      %p152 = scmp.eq.s32.totalorder %s28, 0
      %p153 = por %p151, %p152
      %p154 = scmp.ne.s32.totalorder %s146, %s148
      %p155 = scmp.eq.s32.totalorder %s33, 1
      %p156 = por %p154, %p155
      %p157 = scmp.ne.s32.totalorder %s148, %s149
      %p158 = scmp.eq.s32.totalorder %s33, 0
      %p159 = por %p157, %p158
      %p160 = scmp.ne.s32.totalorder %s148, %s149
      %p161 = scmp.eq.s32.totalorder %s34, 1
      %p162 = por %p160, %p161
      %p164 = scmp.ne.s32.totalorder %s149, %s163
      %p165 = scmp.eq.s32.totalorder %s34, 0
      %p166 = por %p164, %p165
      %s168 = sadd.s32 %s167, 1
      %p171 = scmp.eq.s32.totalorder %s28, 1
      %p172 = scmp.ne.s32.totalorder %s167, %s169
      %p173 = scmp.eq.s32.totalorder %s28, 0
      %p174 = por %p172, %p173
      %p175 = scmp.ne.s32.totalorder %s167, %s169
      %p176 = scmp.eq.s32.totalorder %s33, 1
      %p177 = por %p175, %p176
      %p178 = scmp.ne.s32.totalorder %s169, %s170
      %p179 = scmp.eq.s32.totalorder %s33, 0
      %p180 = por %p178, %p179
      %p181 = scmp.ne.s32.totalorder %s169, %s170
      %p182 = scmp.eq.s32.totalorder %s34, 1
      %p183 = por %p181, %p182
      %p185 = scmp.ne.s32.totalorder %s170, %s184
      %p186 = scmp.eq.s32.totalorder %s34, 0
      %p187 = por %p185, %p186
      %s189 = sadd.s32 %s188, 1
      %p192 = scmp.eq.s32.totalorder %s28, 1
      %p193 = scmp.ne.s32.totalorder %s188, %s190
      %p194 = scmp.eq.s32.totalorder %s28, 0
      %p195 = por %p193, %p194
      %p196 = scmp.ne.s32.totalorder %s188, %s190
      %p197 = scmp.eq.s32.totalorder %s33, 1
      %p198 = por %p196, %p197
      %p199 = scmp.ne.s32.totalorder %s190, %s191
      %p200 = scmp.eq.s32.totalorder %s33, 0
      %p201 = por %p199, %p200
      %p202 = scmp.ne.s32.totalorder %s190, %s191
      %p203 = scmp.eq.s32.totalorder %s34, 1
      %p204 = por %p202, %p203
      %p206 = scmp.ne.s32.totalorder %s191, %s205
      %p207 = scmp.eq.s32.totalorder %s34, 0
      %p208 = por %p206, %p207
      %s210 = sadd.s32 %s209, 1
      %p213 = scmp.eq.s32.totalorder %s28, 1
      %p214 = scmp.ne.s32.totalorder %s209, %s211
      %p215 = scmp.eq.s32.totalorder %s28, 0
      %p216 = por %p214, %p215
      %p217 = scmp.ne.s32.totalorder %s209, %s211
      %p218 = scmp.eq.s32.totalorder %s33, 1
      %p219 = por %p217, %p218
      %p220 = scmp.ne.s32.totalorder %s211, %s212
      %p221 = scmp.eq.s32.totalorder %s33, 0
      %p222 = por %p220, %p221
      %p223 = scmp.ne.s32.totalorder %s211, %s212
      %p224 = scmp.eq.s32.totalorder %s34, 1
      %p225 = por %p223, %p224
      %p227 = scmp.ne.s32.totalorder %s212, %s226
      %p228 = scmp.eq.s32.totalorder %s34, 0
      %p229 = por %p227, %p228
      %s231 = sadd.s32 %s230, 1
      %p234 = scmp.eq.s32.totalorder %s28, 1
      %p235 = scmp.ne.s32.totalorder %s230, %s232
      %p236 = scmp.eq.s32.totalorder %s28, 0
      %p237 = por %p235, %p236
      %p238 = scmp.ne.s32.totalorder %s230, %s232
      %p239 = scmp.eq.s32.totalorder %s33, 1
      %p240 = por %p238, %p239
      %p241 = scmp.ne.s32.totalorder %s232, %s233
      %p242 = scmp.eq.s32.totalorder %s33, 0
      %p243 = por %p241, %p242
      %p244 = scmp.ne.s32.totalorder %s232, %s233
      %p245 = scmp.eq.s32.totalorder %s34, 1
      %p246 = por %p244, %p245
      %p248 = scmp.ne.s32.totalorder %s233, %s247
      %p249 = scmp.eq.s32.totalorder %s34, 0
      %p250 = por %p248, %p249
      %s252 = sadd.s32 %s251, 1
      %p255 = scmp.eq.s32.totalorder %s28, 1
      %p256 = scmp.ne.s32.totalorder %s251, %s253
      %p257 = scmp.eq.s32.totalorder %s28, 0
      %p258 = por %p256, %p257
      %p259 = scmp.ne.s32.totalorder %s251, %s253
      %p260 = scmp.eq.s32.totalorder %s33, 1
      %p261 = por %p259, %p260
      %p262 = scmp.ne.s32.totalorder %s253, %s254
      %p263 = scmp.eq.s32.totalorder %s33, 0
      %p264 = por %p262, %p263
      %p265 = scmp.ne.s32.totalorder %s253, %s254
      %p266 = scmp.eq.s32.totalorder %s34, 1
      %p267 = por %p265, %p266
      %p269 = scmp.ne.s32.totalorder %s254, %s268
      %p270 = scmp.eq.s32.totalorder %s34, 0
      %p271 = por %p269, %p270
      %s273 = sadd.s32 %s272, 1
      %p276 = scmp.eq.s32.totalorder %s28, 1
      %p277 = scmp.ne.s32.totalorder %s272, %s274
      %p278 = scmp.eq.s32.totalorder %s28, 0
      %p279 = por %p277, %p278
      %p280 = scmp.ne.s32.totalorder %s272, %s274
      %p281 = scmp.eq.s32.totalorder %s33, 1
      %p282 = por %p280, %p281
      %p283 = scmp.ne.s32.totalorder %s274, %s275
      %p284 = scmp.eq.s32.totalorder %s33, 0
      %p285 = por %p283, %p284
      %p286 = scmp.ne.s32.totalorder %s274, %s275
      %p287 = scmp.eq.s32.totalorder %s34, 1
      %p288 = por %p286, %p287
      %p290 = scmp.ne.s32.totalorder %s275, %s289
      %p291 = scmp.eq.s32.totalorder %s34, 0
      %p292 = por %p290, %p291
      %s294 = sadd.s32 %s293, 1
      %p297 = scmp.eq.s32.totalorder %s28, 1
      %p298 = scmp.ne.s32.totalorder %s293, %s295
      %p299 = scmp.eq.s32.totalorder %s28, 0
      %p300 = por %p298, %p299
      %p301 = scmp.ne.s32.totalorder %s293, %s295
      %p302 = scmp.eq.s32.totalorder %s33, 1
      %p303 = por %p301, %p302
      %p304 = scmp.ne.s32.totalorder %s295, %s296
      %p305 = scmp.eq.s32.totalorder %s33, 0
      %p306 = por %p304, %p305
      %p307 = scmp.ne.s32.totalorder %s295, %s296
      %p308 = scmp.eq.s32.totalorder %s34, 1
      %p309 = por %p307, %p308
      %p311 = scmp.ne.s32.totalorder %s296, %s310
      %p312 = scmp.eq.s32.totalorder %s34, 0
      %p313 = por %p311, %p312
      %s314 = ssub.s32 %s28, %s35
      %p315 = scmp.eq.s32.totalorder %s314, 0
      %s317 = sadd.s32 %s316, 1
      %s318 = scalar_select %p315, %s316, %s317
      %p321 = pneg %p315
      %p322 = scmp.eq.s32.totalorder %s28, 1
      %p323 = por %p321, %p322
      %p324 = scmp.ne.s32.totalorder %s316, %s319
      %p325 = scmp.eq.s32.totalorder %s28, 0
      %p326 = por %p324, %p325
      %p327 = scmp.ne.s32.totalorder %s316, %s319
      %p328 = scmp.eq.s32.totalorder %s33, 1
      %p329 = por %p327, %p328
      %p330 = scmp.ne.s32.totalorder %s319, %s320
      %p331 = scmp.eq.s32.totalorder %s33, 0
      %p332 = por %p330, %p331
      %p333 = scmp.ne.s32.totalorder %s319, %s320
      %p334 = scmp.eq.s32.totalorder %s34, 1
      %p335 = por %p333, %p334
      %p337 = scmp.ne.s32.totalorder %s320, %s336
      %p338 = scmp.eq.s32.totalorder %s34, 0
      %p339 = por %p337, %p338
      %p340 = scmp.le.s32.totalorder 1, %s28
      %p341 = scmp.lt.s32.totalorder %s28, 3
      %p342 = pnand %p340, %p341
      %p343 = pneg %p342
      // Predicated region
      $region9: #{tpu_custom_call.1} parent=5 // pred_check
        _
      $region10: #{tpu_custom_call.1} parent=5 // pred_check_branch
        %345 = sbr.rel (%p342) target = $region12
      $region11: #{tpu_custom_call.1} parent=5 // pred_region
        %s346 = ssub.s32 %s28, 1
        // Predicated region
        $region13: #{tpu_custom_call.1} parent=11 // pred_check
          %p347 = pneg %p75
        $region14: #{tpu_custom_call.1} parent=11 // pred_check_branch
          %349 = sbr.rel (%p347) target = $region16
        $region15: #{tpu_custom_call.1} parent=11 // pred_region
          %s351 = ssub.s32 16, 16
          %352 = vsyncadd [#allocation7], %s351
          %s354 = sshll.u32 [#allocation6], 4
          %s355 = int_to_ptr.vmem [resolvable:$true] %s354
          %357 = dma.hbm_to_vmem [thread:$0]  %s1, 16, %s355, [#allocation7]
        $region16: #{tpu_custom_call.1} parent=11 // pred_fallthru
          _
        // Predicated region
        $region17: #{tpu_custom_call.1} parent=11 // pred_check
          %p358 = pneg %p96
        $region18: #{tpu_custom_call.1} parent=11 // pred_check_branch
          %360 = sbr.rel (%p358) target = $region20
        $region19: #{tpu_custom_call.1} parent=11 // pred_region
          %s362 = ssub.s32 16, 16
          %363 = vsyncadd [#allocation7], %s362
          %s365 = sshll.u32 [#allocation8], 4
          %s366 = int_to_ptr.vmem [resolvable:$true] %s365
          %368 = dma.hbm_to_vmem [thread:$0]  %s2, 16, %s366, [#allocation7]
        $region20: #{tpu_custom_call.1} parent=11 // pred_fallthru
          _
        // Predicated region
        $region21: #{tpu_custom_call.1} parent=11 // pred_check
          %p369 = pneg %p117
        $region22: #{tpu_custom_call.1} parent=11 // pred_check_branch
          %371 = sbr.rel (%p369) target = $region24
        $region23: #{tpu_custom_call.1} parent=11 // pred_region
          %s373 = ssub.s32 3072, 3072
          %374 = vsyncadd [#allocation10], %s373
          %s375 = sshll.u32 [#allocation9], 4
          %s376 = int_to_ptr.vmem [resolvable:$true] %s375
          %381 = dma.hbm_to_vmem [thread:$0]  %s3, 3072, %s376, [#allocation10], 192, 192, 12
        $region24: #{tpu_custom_call.1} parent=11 // pred_fallthru
          _
        // Predicated region
        $region25: #{tpu_custom_call.1} parent=11 // pred_check
          %p382 = pneg %p138
        $region26: #{tpu_custom_call.1} parent=11 // pred_check_branch
          %384 = sbr.rel (%p382) target = $region28
        $region27: #{tpu_custom_call.1} parent=11 // pred_region
          _
        $region28: #{tpu_custom_call.1} parent=11 // pred_fallthru
          _
        // Predicated region
        $region29: #{tpu_custom_call.1} parent=11 // pred_check
          %p385 = pneg %p159
        $region30: #{tpu_custom_call.1} parent=11 // pred_check_branch
          %387 = sbr.rel (%p385) target = $region32
        $region31: #{tpu_custom_call.1} parent=11 // pred_region
          %s389 = ssub.s32 1024, 1024
          %390 = vsyncadd [#allocation10], %s389
          %s391 = sshll.u32 [#allocation11], 4
          %s392 = int_to_ptr.vmem [resolvable:$true] %s391
          %397 = dma.hbm_to_vmem [thread:$0]  %s5, 1024, %s392, [#allocation10], 64, 64, 4
        $region32: #{tpu_custom_call.1} parent=11 // pred_fallthru
          _
        // Predicated region
        $region33: #{tpu_custom_call.1} parent=11 // pred_check
          %p398 = pneg %p180
        $region34: #{tpu_custom_call.1} parent=11 // pred_check_branch
          %400 = sbr.rel (%p398) target = $region36
        $region35: #{tpu_custom_call.1} parent=11 // pred_region
          _
        $region36: #{tpu_custom_call.1} parent=11 // pred_fallthru
          _
        // Predicated region
        $region37: #{tpu_custom_call.1} parent=11 // pred_check
          %p401 = pneg %p201
        $region38: #{tpu_custom_call.1} parent=11 // pred_check_branch
          %403 = sbr.rel (%p401) target = $region40
        $region39: #{tpu_custom_call.1} parent=11 // pred_region
          _
        $region40: #{tpu_custom_call.1} parent=11 // pred_fallthru
          _
        // Predicated region
        $region41: #{tpu_custom_call.1} parent=11 // pred_check
          %p404 = pneg %p222
        $region42: #{tpu_custom_call.1} parent=11 // pred_check_branch
          %406 = sbr.rel (%p404) target = $region44
        $region43: #{tpu_custom_call.1} parent=11 // pred_region
          _
        $region44: #{tpu_custom_call.1} parent=11 // pred_fallthru
          _
        // Predicated region
        $region45: #{tpu_custom_call.1} parent=11 // pred_check
          %p407 = pneg %p243
        $region46: #{tpu_custom_call.1} parent=11 // pred_check_branch
          %409 = sbr.rel (%p407) target = $region48
        $region47: #{tpu_custom_call.1} parent=11 // pred_region
          %s411 = ssub.s32 2048, 2048
          %412 = vsyncadd [#allocation13], %s411
          %s413 = sshll.u32 [#allocation12], 4
          %s414 = int_to_ptr.vmem [resolvable:$true] %s413
          %419 = dma.hbm_to_vmem [thread:$0]  %s9, 2048, %s414, [#allocation13], 128, 128, 8
        $region48: #{tpu_custom_call.1} parent=11 // pred_fallthru
          _
        // Predicated region
        $region49: #{tpu_custom_call.1} parent=11 // pred_check
          %p420 = pneg %p264
        $region50: #{tpu_custom_call.1} parent=11 // pred_check_branch
          %422 = sbr.rel (%p420) target = $region52
        $region51: #{tpu_custom_call.1} parent=11 // pred_region
          _
        $region52: #{tpu_custom_call.1} parent=11 // pred_fallthru
          _
        // Predicated region
        $region53: #{tpu_custom_call.1} parent=11 // pred_check
          %p423 = pneg %p285
        $region54: #{tpu_custom_call.1} parent=11 // pred_check_branch
          %425 = sbr.rel (%p423) target = $region56
        $region55: #{tpu_custom_call.1} parent=11 // pred_region
          %s427 = ssub.s32 2048, 2048
          %428 = vsyncadd [#allocation13], %s427
          %s429 = sshll.u32 [#allocation14], 4
          %s430 = int_to_ptr.vmem [resolvable:$true] %s429
          %435 = dma.hbm_to_vmem [thread:$0]  %s11, 2048, %s430, [#allocation13], 64, 64, 4
        $region56: #{tpu_custom_call.1} parent=11 // pred_fallthru
          _
        // Predicated region
        $region57: #{tpu_custom_call.1} parent=11 // pred_check
          %p436 = pneg %p306
        $region58: #{tpu_custom_call.1} parent=11 // pred_check_branch
          %438 = sbr.rel (%p436) target = $region60
        $region59: #{tpu_custom_call.1} parent=11 // pred_region
          _
        $region60: #{tpu_custom_call.1} parent=11 // pred_fallthru
          _
      $region12: #{tpu_custom_call.1} parent=5 // pred_fallthru
        _
      %p439 = scmp.lt.s32.totalorder %s28, 2
      // Predicated region
      $region61: #{tpu_custom_call.1} parent=5 // pred_check
        %p440 = pneg %p439
      $region62: #{tpu_custom_call.1} parent=5 // pred_check_branch
        %442 = sbr.rel (%p440) target = $region64
      $region63: #{tpu_custom_call.1} parent=5 // pred_region
        // Predicated region
        $region65: #{tpu_custom_call.1} parent=63 // pred_check
          %p443 = pneg %p48
        $region66: #{tpu_custom_call.1} parent=63 // pred_check_branch
          %445 = sbr.rel (%p443) target = $region68
        $region67: #{tpu_custom_call.1} parent=63 // pred_region
          %s446 = sand.u32 %s38, 1
          %s447 = scalar_lea.sflag [#allocation4], %s446
          %s448 = sand.u32 %s38, 1
          %s449 = smul.addr %s448, 128
          %s450 = scalar_lea.vmem [#allocation3], %s449
          %s452 = ssub.s32 2048, 2048
          %453 = vsyncadd %s447, %s452
          %s454 = smul.addr %s28, 16
          %s455 = smul.addr %s454, 128
          %s456 = scalar_lea.hbm %s0, %s455
          %s457 = sshll.u32 %s450, 4
          %s458 = int_to_ptr.vmem [resolvable:$true] %s457
          %463 = dma.hbm_to_vmem [thread:$0]  %s456, 2048, %s458, %s447, 128, 128, 8
        $region68: #{tpu_custom_call.1} parent=63 // pred_fallthru
          _
      $region64: #{tpu_custom_call.1} parent=5 // pred_fallthru
        _
      %p464 = scmp.le.s32.totalorder 1, %s28
      %p465 = scmp.lt.s32.totalorder %s28, 3
      %p466 = pnand %p464, %p465
      %p467 = pneg %p466
      // Predicated region
      $region69: #{tpu_custom_call.1} parent=5 // pred_check
        _
      $region70: #{tpu_custom_call.1} parent=5 // pred_check_branch
        %469 = sbr.rel (%p466) target = $region72
      $region71: #{tpu_custom_call.1} parent=5 // pred_region
        %s470 = ssub.s32 %s28, 1
        %s471 = sand.u32 %s41, 1
        %s472 = scalar_lea.sflag [#allocation4], %s471
        %s473 = sand.u32 %s41, 1
        %s474 = smul.addr %s473, 128
        %s475 = scalar_lea.vmem [#allocation3], %s474
        // Predicated region
        $region73: #{tpu_custom_call.1} parent=71 // pred_check
          %p476 = pneg %p54
        $region74: #{tpu_custom_call.1} parent=71 // pred_check_branch
          %478 = sbr.rel (%p476) target = $region76
        $region75: #{tpu_custom_call.1} parent=71 // pred_region
          %479 = dma.done %s472, 2048
        $region76: #{tpu_custom_call.1} parent=71 // pred_fallthru
          _
        // Predicated region
        $region77: #{tpu_custom_call.1} parent=71 // pred_check
          %p480 = pneg %p75
        $region78: #{tpu_custom_call.1} parent=71 // pred_check_branch
          %482 = sbr.rel (%p480) target = $region80
        $region79: #{tpu_custom_call.1} parent=71 // pred_region
          %483 = dma.done [#allocation7], 16
        $region80: #{tpu_custom_call.1} parent=71 // pred_fallthru
          _
        // Predicated region
        $region81: #{tpu_custom_call.1} parent=71 // pred_check
          %p484 = pneg %p96
        $region82: #{tpu_custom_call.1} parent=71 // pred_check_branch
          %486 = sbr.rel (%p484) target = $region84
        $region83: #{tpu_custom_call.1} parent=71 // pred_region
          %487 = dma.done [#allocation7], 16
        $region84: #{tpu_custom_call.1} parent=71 // pred_fallthru
          _
        // Predicated region
        $region85: #{tpu_custom_call.1} parent=71 // pred_check
          %p488 = pneg %p117
        $region86: #{tpu_custom_call.1} parent=71 // pred_check_branch
          %490 = sbr.rel (%p488) target = $region88
        $region87: #{tpu_custom_call.1} parent=71 // pred_region
          %491 = dma.done [#allocation10], 3072
        $region88: #{tpu_custom_call.1} parent=71 // pred_fallthru
          _
        // Predicated region
        $region89: #{tpu_custom_call.1} parent=71 // pred_check
          %p492 = pneg %p159
        $region90: #{tpu_custom_call.1} parent=71 // pred_check_branch
          %494 = sbr.rel (%p492) target = $region92
        $region91: #{tpu_custom_call.1} parent=71 // pred_region
          %495 = dma.done [#allocation10], 1024
        $region92: #{tpu_custom_call.1} parent=71 // pred_fallthru
          _
        // Predicated region
        $region93: #{tpu_custom_call.1} parent=71 // pred_check
          %p496 = pneg %p243
        $region94: #{tpu_custom_call.1} parent=71 // pred_check_branch
          %498 = sbr.rel (%p496) target = $region96
        $region95: #{tpu_custom_call.1} parent=71 // pred_region
          %499 = dma.done [#allocation13], 2048
        $region96: #{tpu_custom_call.1} parent=71 // pred_fallthru
          _
        // Predicated region
        $region97: #{tpu_custom_call.1} parent=71 // pred_check
          %p500 = pneg %p285
        $region98: #{tpu_custom_call.1} parent=71 // pred_check_branch
          %502 = sbr.rel (%p500) target = $region100
        $region99: #{tpu_custom_call.1} parent=71 // pred_region
          %503 = dma.done [#allocation13], 2048
        $region100: #{tpu_custom_call.1} parent=71 // pred_fallthru
          _
        %s504 = sand.u32 %s41, 1
        %s505 = scalar_lea.sflag [#allocation4], %s504
        %s506 = sand.u32 %s41, 1
        %s507 = smul.addr %s506, 128
        %s508 = scalar_lea.vmem [#allocation3], %s507
        %p509 = pneg %p54
        %p510 = pneg %p51
        %p511 = pneg %p75
        %p512 = pneg %p72
        %p513 = pneg %p96
        %p514 = pneg %p93
        %p515 = pneg %p117
        %p516 = pneg %p114
        %p517 = pneg %p138
        %p518 = pneg %p135
        %p519 = pneg %p159
        %p520 = pneg %p156
        %p521 = pneg %p180
        %p522 = pneg %p177
        %p523 = pneg %p201
        %p524 = pneg %p198
        %p525 = pneg %p222
        %p526 = pneg %p219
        %p527 = pneg %p243
        %p528 = pneg %p240
        %p529 = pneg %p264
        %p530 = pneg %p261
        %p531 = pneg %p285
        %p532 = pneg %p282
        %p533 = pneg %p306
        %p534 = pneg %p303
        %p535 = pneg %p332
        %p536 = pneg %p329
        %s537 = sand.u32 %s319, 1
        %s538 = scalar_lea.sflag [#allocation5], %s537
        %s539 = sand.u32 %s319, 1
        %s540 = smul.addr %s539, 128
        %s541 = scalar_lea.vmem [#allocation15], %s540
        %v543 = vld [vmem:[%s475] sm:$0xff]
        %v544 = vld [vmem:[%s475 + $0x8] sm:$0xff]
        %v545 = vld [vmem:[%s475 + $0x10] sm:$0xff]
        %v546 = vld [vmem:[%s475 + $0x18] sm:$0xff]
        %v547 = vld [vmem:[%s475 + $0x20] sm:$0xff]
        %v548 = vld [vmem:[%s475 + $0x28] sm:$0xff]
        %v549 = vld [vmem:[%s475 + $0x30] sm:$0xff]
        %v550 = vld [vmem:[%s475 + $0x38] sm:$0xff]
        %v551 = vld [vmem:[%s475 + $0x40] sm:$0xff]
        %v552 = vld [vmem:[%s475 + $0x48] sm:$0xff]
        %v553 = vld [vmem:[%s475 + $0x50] sm:$0xff]
        %v554 = vld [vmem:[%s475 + $0x58] sm:$0xff]
        %v555 = vld [vmem:[%s475 + $0x60] sm:$0xff]
        %v556 = vld [vmem:[%s475 + $0x68] sm:$0xff]
        %v557 = vld [vmem:[%s475 + $0x70] sm:$0xff]
        %v558 = vld [vmem:[%s475 + $0x78] sm:$0xff]
        %v559 = vld [vmem:[#allocation6] sm:$0x1]
        %v560 = vld [vmem:[#allocation8] sm:$0x1]
        %561 = vadd.xlane.f32.xlu0 %v543
        %v562 = vpop.xlane.xlu0 %561
        %563 = vadd.xlane.f32.xlu0 %v544
        %v564 = vpop.xlane.xlu0 %563
        %565 = vadd.xlane.f32.xlu0 %v545
        %v566 = vpop.xlane.xlu0 %565
        %567 = vadd.xlane.f32.xlu0 %v546
        %v568 = vpop.xlane.xlu0 %567
        %569 = vadd.xlane.f32.xlu0 %v547
        %v570 = vpop.xlane.xlu0 %569
        %571 = vadd.xlane.f32.xlu0 %v548
        %v572 = vpop.xlane.xlu0 %571
        %573 = vadd.xlane.f32.xlu0 %v549
        %v574 = vpop.xlane.xlu0 %573
        %575 = vadd.xlane.f32.xlu0 %v550
        %v576 = vpop.xlane.xlu0 %575
        %577 = vadd.xlane.f32.xlu0 %v551
        %v578 = vpop.xlane.xlu0 %577
        %579 = vadd.xlane.f32.xlu0 %v552
        %v580 = vpop.xlane.xlu0 %579
        %581 = vadd.xlane.f32.xlu0 %v553
        %v582 = vpop.xlane.xlu0 %581
        %583 = vadd.xlane.f32.xlu0 %v554
        %v584 = vpop.xlane.xlu0 %583
        %585 = vadd.xlane.f32.xlu0 %v555
        %v586 = vpop.xlane.xlu0 %585
        %587 = vadd.xlane.f32.xlu0 %v556
        %v588 = vpop.xlane.xlu0 %587
        %589 = vadd.xlane.f32.xlu0 %v557
        %v590 = vpop.xlane.xlu0 %589
        %591 = vadd.xlane.f32.xlu0 %v558
        %v592 = vpop.xlane.xlu0 %591
        %v593 = vrcp.pop 128.0
        %v594 = vmul.f32 %v562, %v593
        %v595 = vmul.f32 %v564, %v593
        %v596 = vmul.f32 %v566, %v593
        %v597 = vmul.f32 %v568, %v593
        %v598 = vmul.f32 %v570, %v593
        %v599 = vmul.f32 %v572, %v593
        %v600 = vmul.f32 %v574, %v593
        %v601 = vmul.f32 %v576, %v593
        %v602 = vmul.f32 %v578, %v593
        %v603 = vmul.f32 %v580, %v593
        %v604 = vmul.f32 %v582, %v593
        %v605 = vmul.f32 %v584, %v593
        %v606 = vmul.f32 %v586, %v593
        %v607 = vmul.f32 %v588, %v593
        %v608 = vmul.f32 %v590, %v593
        %v609 = vmul.f32 %v592, %v593
        %v610 = vsub.f32 %v543, %v594
        %v611 = vsub.f32 %v544, %v595
        %v612 = vsub.f32 %v545, %v596
        %v613 = vsub.f32 %v546, %v597
        %v614 = vsub.f32 %v547, %v598
        %v615 = vsub.f32 %v548, %v599
        %v616 = vsub.f32 %v549, %v600
        %v617 = vsub.f32 %v550, %v601
        %v618 = vsub.f32 %v551, %v602
        %v619 = vsub.f32 %v552, %v603
        %v620 = vsub.f32 %v553, %v604
        %v621 = vsub.f32 %v554, %v605
        %v622 = vsub.f32 %v555, %v606
        %v623 = vsub.f32 %v556, %v607
        %v624 = vsub.f32 %v557, %v608
        %v625 = vsub.f32 %v558, %v609
        %v626 = vmul.f32 %v610, %v610
        %v627 = vmul.f32 %v611, %v611
        %v628 = vmul.f32 %v612, %v612
        %v629 = vmul.f32 %v613, %v613
        %v630 = vmul.f32 %v614, %v614
        %v631 = vmul.f32 %v615, %v615
        %v632 = vmul.f32 %v616, %v616
        %v633 = vmul.f32 %v617, %v617
        %v634 = vmul.f32 %v618, %v618
        %v635 = vmul.f32 %v619, %v619
        %v636 = vmul.f32 %v620, %v620
        %v637 = vmul.f32 %v621, %v621
        %v638 = vmul.f32 %v622, %v622
        %v639 = vmul.f32 %v623, %v623
        %v640 = vmul.f32 %v624, %v624
        %v641 = vmul.f32 %v625, %v625
        %642 = vadd.xlane.f32.xlu0 %v626
        %v643 = vpop.xlane.xlu0 %642
        %644 = vadd.xlane.f32.xlu0 %v627
        %v645 = vpop.xlane.xlu0 %644
        %646 = vadd.xlane.f32.xlu0 %v628
        %v647 = vpop.xlane.xlu0 %646
        %648 = vadd.xlane.f32.xlu0 %v629
        %v649 = vpop.xlane.xlu0 %648
        %650 = vadd.xlane.f32.xlu0 %v630
        %v651 = vpop.xlane.xlu0 %650
        %652 = vadd.xlane.f32.xlu0 %v631
        %v653 = vpop.xlane.xlu0 %652
        %654 = vadd.xlane.f32.xlu0 %v632
        %v655 = vpop.xlane.xlu0 %654
        %656 = vadd.xlane.f32.xlu0 %v633
        %v657 = vpop.xlane.xlu0 %656
        %658 = vadd.xlane.f32.xlu0 %v634
        %v659 = vpop.xlane.xlu0 %658
        %660 = vadd.xlane.f32.xlu0 %v635
        %v661 = vpop.xlane.xlu0 %660
        %662 = vadd.xlane.f32.xlu0 %v636
        %v663 = vpop.xlane.xlu0 %662
        %664 = vadd.xlane.f32.xlu0 %v637
        %v665 = vpop.xlane.xlu0 %664
        %666 = vadd.xlane.f32.xlu0 %v638
        %v667 = vpop.xlane.xlu0 %666
        %668 = vadd.xlane.f32.xlu0 %v639
        %v669 = vpop.xlane.xlu0 %668
        %670 = vadd.xlane.f32.xlu0 %v640
        %v671 = vpop.xlane.xlu0 %670
        %672 = vadd.xlane.f32.xlu0 %v641
        %v673 = vpop.xlane.xlu0 %672
        %v674 = vmul.f32 %v643, %v593
        %v675 = vmul.f32 %v645, %v593
        %v676 = vmul.f32 %v647, %v593
        %v677 = vmul.f32 %v649, %v593
        %v678 = vmul.f32 %v651, %v593
        %v679 = vmul.f32 %v653, %v593
        %v680 = vmul.f32 %v655, %v593
        %v681 = vmul.f32 %v657, %v593
        %v682 = vmul.f32 %v659, %v593
        %v683 = vmul.f32 %v661, %v593
        %v684 = vmul.f32 %v663, %v593
        %v685 = vmul.f32 %v665, %v593
        %v686 = vmul.f32 %v667, %v593
        %v687 = vmul.f32 %v669, %v593
        %v688 = vmul.f32 %v671, %v593
        %v689 = vmul.f32 %v673, %v593
        %v690 = vadd.f32 %v674, 1e-05
        %v691 = vadd.f32 %v675, 1e-05
        %v692 = vadd.f32 %v676, 1e-05
        %v693 = vadd.f32 %v677, 1e-05
        %v694 = vadd.f32 %v678, 1e-05
        %v695 = vadd.f32 %v679, 1e-05
        %v696 = vadd.f32 %v680, 1e-05
        %v697 = vadd.f32 %v681, 1e-05
        %v698 = vadd.f32 %v682, 1e-05
        %v699 = vadd.f32 %v683, 1e-05
        %v700 = vadd.f32 %v684, 1e-05
        %v701 = vadd.f32 %v685, 1e-05
        %v702 = vadd.f32 %v686, 1e-05
        %v703 = vadd.f32 %v687, 1e-05
        %v704 = vadd.f32 %v688, 1e-05
        %v705 = vadd.f32 %v689, 1e-05
        %v706 = vrsqrt.pop %v690
        %v707 = vrsqrt.pop %v691
        %v708 = vrsqrt.pop %v692
        %v709 = vrsqrt.pop %v693
        %v710 = vrsqrt.pop %v694
        %v711 = vrsqrt.pop %v695
        %v712 = vrsqrt.pop %v696
        %v713 = vrsqrt.pop %v697
        %v714 = vrsqrt.pop %v698
        %v715 = vrsqrt.pop %v699
        %v716 = vrsqrt.pop %v700
        %v717 = vrsqrt.pop %v701
        %v718 = vrsqrt.pop %v702
        %v719 = vrsqrt.pop %v703
        %v720 = vrsqrt.pop %v704
        %v721 = vrsqrt.pop %v705
        %v722 = vmul.f32 %v610, %v706
        %v723 = vmul.f32 %v611, %v707
        %v724 = vmul.f32 %v612, %v708
        %v725 = vmul.f32 %v613, %v709
        %v726 = vmul.f32 %v614, %v710
        %v727 = vmul.f32 %v615, %v711
        %v728 = vmul.f32 %v616, %v712
        %v729 = vmul.f32 %v617, %v713
        %v730 = vmul.f32 %v618, %v714
        %v731 = vmul.f32 %v619, %v715
        %v732 = vmul.f32 %v620, %v716
        %v733 = vmul.f32 %v621, %v717
        %v734 = vmul.f32 %v622, %v718
        %v735 = vmul.f32 %v623, %v719
        %v736 = vmul.f32 %v624, %v720
        %v737 = vmul.f32 %v625, %v721
        %v739 = vlaneseq
        %v740 = vshrl.u32 %v739, 7
        %v741 = vsub.s32 0, %v740
        %v742 = vrot.slane %v559, %v741
        %v744 = vmul.f32 %v722, %v742
        %v745 = vmul.f32 %v723, %v742
        %v746 = vmul.f32 %v724, %v742
        %v747 = vmul.f32 %v725, %v742
        %v748 = vmul.f32 %v726, %v742
        %v749 = vmul.f32 %v727, %v742
        %v750 = vmul.f32 %v728, %v742
        %v751 = vmul.f32 %v729, %v742
        %v752 = vmul.f32 %v730, %v742
        %v753 = vmul.f32 %v731, %v742
        %v754 = vmul.f32 %v732, %v742
        %v755 = vmul.f32 %v733, %v742
        %v756 = vmul.f32 %v734, %v742
        %v757 = vmul.f32 %v735, %v742
        %v758 = vmul.f32 %v736, %v742
        %v759 = vmul.f32 %v737, %v742
        %v761 = vlaneseq
        %v762 = vshrl.u32 %v761, 7
        %v763 = vsub.s32 0, %v762
        %v764 = vrot.slane %v560, %v763
        %v766 = vadd.f32 %v744, %v764
        %v767 = vadd.f32 %v745, %v764
        %v768 = vadd.f32 %v746, %v764
        %v769 = vadd.f32 %v747, %v764
        %v770 = vadd.f32 %v748, %v764
        %v771 = vadd.f32 %v749, %v764
        %v772 = vadd.f32 %v750, %v764
        %v773 = vadd.f32 %v751, %v764
        %v774 = vadd.f32 %v752, %v764
        %v775 = vadd.f32 %v753, %v764
        %v776 = vadd.f32 %v754, %v764
        %v777 = vadd.f32 %v755, %v764
        %v778 = vadd.f32 %v756, %v764
        %v779 = vadd.f32 %v757, %v764
        %v780 = vadd.f32 %v758, %v764
        %v781 = vadd.f32 %v759, %v764
        %v782 = vpack.c.bf16 %v767, %v766
        %v783 = vpack.c.bf16 %v769, %v768
        %v784 = vpack.c.bf16 %v771, %v770
        %v785 = vpack.c.bf16 %v773, %v772
        %v786 = vpack.c.bf16 %v775, %v774
        %v787 = vpack.c.bf16 %v777, %v776
        %v788 = vpack.c.bf16 %v779, %v778
        %v789 = vpack.c.bf16 %v781, %v780
        %v790 = vld [vmem:[#allocation9] sm:$0xff]
        %v791 = vld [vmem:[#allocation9 + $0x8] sm:$0xf]
        %v792 = vld [vmem:[#allocation9 + $0xc] sm:$0xff]
        %v793 = vld [vmem:[#allocation9 + $0x14] sm:$0xf]
        %v794 = vld [vmem:[#allocation9 + $0x18] sm:$0xff]
        %v795 = vld [vmem:[#allocation9 + $0x20] sm:$0xf]
        %v796 = vld [vmem:[#allocation9 + $0x24] sm:$0xff]
        %v797 = vld [vmem:[#allocation9 + $0x2c] sm:$0xf]
        %v798 = vld [vmem:[#allocation9 + $0x30] sm:$0xff]
        %v799 = vld [vmem:[#allocation9 + $0x38] sm:$0xf]
        %v800 = vld [vmem:[#allocation9 + $0x3c] sm:$0xff]
        %v801 = vld [vmem:[#allocation9 + $0x44] sm:$0xf]
        %v802 = vld [vmem:[#allocation9 + $0x48] sm:$0xff]
        %v803 = vld [vmem:[#allocation9 + $0x50] sm:$0xf]
        %v804 = vld [vmem:[#allocation9 + $0x54] sm:$0xff]
        %v805 = vld [vmem:[#allocation9 + $0x5c] sm:$0xf]
        %v806 = vld [vmem:[#allocation9 + $0x60] sm:$0xff]
        %v807 = vld [vmem:[#allocation9 + $0x68] sm:$0xf]
        %v808 = vld [vmem:[#allocation9 + $0x6c] sm:$0xff]
        %v809 = vld [vmem:[#allocation9 + $0x74] sm:$0xf]
        %v810 = vld [vmem:[#allocation9 + $0x78] sm:$0xff]
        %v811 = vld [vmem:[#allocation9 + $0x80] sm:$0xf]
        %v812 = vld [vmem:[#allocation9 + $0x84] sm:$0xff]
        %v813 = vld [vmem:[#allocation9 + $0x8c] sm:$0xf]
        %v814 = vld [vmem:[#allocation9 + $0x90] sm:$0xff]
        %v815 = vld [vmem:[#allocation9 + $0x98] sm:$0xf]
        %v816 = vld [vmem:[#allocation9 + $0x9c] sm:$0xff]
        %v817 = vld [vmem:[#allocation9 + $0xa4] sm:$0xf]
        %v818 = vld [vmem:[#allocation9 + $0xa8] sm:$0xff]
        %v819 = vld [vmem:[#allocation9 + $0xb0] sm:$0xf]
        %v820 = vld [vmem:[#allocation9 + $0xb4] sm:$0xff]
        %v821 = vld [vmem:[#allocation9 + $0xbc] sm:$0xf]
        %v822 = vld [vmem:[%s4] sm:$0x7]
        %v824 = vlaneseq
        %v825 = vshrl.u32 %v824, 7
        %v826 = vsub.s32 0, %v825
        %v827 = vrot.slane %v822, %v826
        %v828 = vlaneseq
        %v829 = vshrl.u32 %v828, 7
        %v830 = vsub.s32 1, %v829
        %v831 = vrot.slane %v822, %v830
        %v832 = vlaneseq
        %v833 = vshrl.u32 %v832, 7
        %v834 = vsub.s32 2, %v833
        %v835 = vrot.slane %v822, %v834
        %v871 = vunpack.c.l.b16 %v790
        %v872 = vunpack.c.h.b16 %v790
        %v873 = vunpack.c.l.b16 %v791
        %v874 = vunpack.c.l.b16 %v792
        %v875 = vunpack.c.h.b16 %v792
        %v876 = vunpack.c.l.b16 %v793
        %v877 = vunpack.c.l.b16 %v794
        %v878 = vunpack.c.h.b16 %v794
        %v879 = vunpack.c.l.b16 %v795
        %v880 = vunpack.c.l.b16 %v796
        %v881 = vunpack.c.h.b16 %v796
        %v882 = vunpack.c.l.b16 %v797
        %v883 = vunpack.c.l.b16 %v798
        %v884 = vunpack.c.h.b16 %v798
        %v885 = vunpack.c.l.b16 %v799
        %v886 = vunpack.c.l.b16 %v800
        %v887 = vunpack.c.h.b16 %v800
        %v888 = vunpack.c.l.b16 %v801
        %v889 = vunpack.c.l.b16 %v802
        %v890 = vunpack.c.h.b16 %v802
        %v891 = vunpack.c.l.b16 %v803
        %v892 = vunpack.c.l.b16 %v804
        %v893 = vunpack.c.h.b16 %v804
        %v894 = vunpack.c.l.b16 %v805
        %v895 = vunpack.c.l.b16 %v806
        %v896 = vunpack.c.h.b16 %v806
        %v897 = vunpack.c.l.b16 %v807
        %v898 = vunpack.c.l.b16 %v808
        %v899 = vunpack.c.h.b16 %v808
        %v900 = vunpack.c.l.b16 %v809
        %v901 = vunpack.c.l.b16 %v810
        %v902 = vunpack.c.h.b16 %v810
        %v903 = vunpack.c.l.b16 %v811
        %v904 = vunpack.c.l.b16 %v812
        %v905 = vunpack.c.h.b16 %v812
        %v906 = vunpack.c.l.b16 %v813
        %v907 = vunpack.c.l.b16 %v814
        %v908 = vunpack.c.h.b16 %v814
        %v909 = vunpack.c.l.b16 %v815
        %v910 = vunpack.c.l.b16 %v816
        %v911 = vunpack.c.h.b16 %v816
        %v912 = vunpack.c.l.b16 %v817
        %v913 = vunpack.c.l.b16 %v818
        %v914 = vunpack.c.h.b16 %v818
        %v915 = vunpack.c.l.b16 %v819
        %v916 = vunpack.c.l.b16 %v820
        %v917 = vunpack.c.h.b16 %v820
        %v918 = vunpack.c.l.b16 %v821
        %v919 = vpack.c.b16 %v874, %v871
        %v920 = vpack.c.b16 %v875, %v872
        %v921 = vpack.c.b16 %v876, %v873
        %v922 = vpack.c.b16 %v880, %v877
        %v923 = vpack.c.b16 %v881, %v878
        %v924 = vpack.c.b16 %v882, %v879
        %v925 = vpack.c.b16 %v886, %v883
        %v926 = vpack.c.b16 %v887, %v884
        %v927 = vpack.c.b16 %v888, %v885
        %v928 = vpack.c.b16 %v892, %v889
        %v929 = vpack.c.b16 %v893, %v890
        %v930 = vpack.c.b16 %v894, %v891
        %v931 = vpack.c.b16 %v898, %v895
        %v932 = vpack.c.b16 %v899, %v896
        %v933 = vpack.c.b16 %v900, %v897
        %v934 = vpack.c.b16 %v904, %v901
        %v935 = vpack.c.b16 %v905, %v902
        %v936 = vpack.c.b16 %v906, %v903
        %v937 = vpack.c.b16 %v910, %v907
        %v938 = vpack.c.b16 %v911, %v908
        %v939 = vpack.c.b16 %v912, %v909
        %v940 = vpack.c.b16 %v916, %v913
        %v941 = vpack.c.b16 %v917, %v914
        %v942 = vpack.c.b16 %v918, %v915
        %967 = vmatprep.subr.bf16.mxu0 %v941
        %968 = vmatpush1.bf16.msra.mxu0 %v940
        %969 = vmatprep.subr.bf16.mxu0 %v938
        %970 = vmatpush1.bf16.msra.mxu0 %v937
        %971 = vmatprep.subr.bf16.mxu0 %v935
        %972 = vmatpush1.bf16.msra.mxu0 %v934
        %973 = vmatprep.subr.bf16.mxu0 %v932
        %974 = vmatpush1.bf16.msra.mxu0 %v931
        %975 = vmatprep.subr.bf16.mxu0 %v929
        %976 = vmatpush1.bf16.msra.mxu0 %v928
        %977 = vmatprep.subr.bf16.mxu0 %v926
        %978 = vmatpush1.bf16.msra.mxu0 %v925
        %979 = vmatprep.subr.bf16.mxu0 %v923
        %980 = vmatpush1.bf16.msra.mxu0 %v922
        %981 = vmatprep.subr.bf16.mxu0 %v920
        %982 = vmatpush1.bf16.msra.mxu0 %v919
        %983 = vmatprep.subr.bf16.mxu0 0
        %984 = vmatpush2.bf16.msra.mxu0 0
        %985 = vmatprep.subr.bf16.mxu0 0
        %986 = vmatpush2.bf16.msra.mxu0 0
        %987 = vmatprep.subr.bf16.mxu0 0
        %988 = vmatpush2.bf16.msra.mxu0 0
        %989 = vmatprep.subr.bf16.mxu0 0
        %990 = vmatpush2.bf16.msra.mxu0 0
        %991 = vmatprep.subr.bf16.mxu0 0
        %992 = vmatpush2.bf16.msra.mxu0 0
        %993 = vmatprep.subr.bf16.mxu0 0
        %994 = vmatpush2.bf16.msra.mxu0 0
        %995 = vmatprep.subr.bf16.mxu0 0
        %996 = vmatpush2.bf16.msra.mxu0 0
        %997 = vmatprep.subr.bf16.mxu0 0
        %998 = vmatpush2.bf16.msra.mxu0 0
        %999 = vmatprep.mubr.bf16.mxu0 0
        %1000 = vmatmul.mubr.bf16.gmra.mxu0 %v782
        %v1001 = vpop.f32.mrf.mxu0
        %v1002 = vadd.f32 %v827, %v1001
        %v1003 = vpop.f32.mrf.mxu0
        %v1004 = vadd.f32 %v831, %v1003
        %v1005 = vpop.f32.mrf.mxu0
        %v1006 = vadd.f32 %v827, %v1005
        %v1007 = vpop.f32.mrf.mxu0
        %v1008 = vadd.f32 %v831, %v1007
        %1009 = vmatprep.mubr.bf16.mxu0 0
        %1010 = vmatmul.mubr.bf16.gmra.mxu0 %v783
        %v1011 = vpop.f32.mrf.mxu0
        %v1012 = vadd.f32 %v827, %v1011
        %v1013 = vpop.f32.mrf.mxu0
        %v1014 = vadd.f32 %v831, %v1013
        %v1015 = vpop.f32.mrf.mxu0
        %v1016 = vadd.f32 %v827, %v1015
        %v1017 = vpop.f32.mrf.mxu0
        %v1018 = vadd.f32 %v831, %v1017
        %1019 = vmatprep.mubr.bf16.mxu0 0
        %1020 = vmatmul.mubr.bf16.gmra.mxu0 %v784
        %v1021 = vpop.f32.mrf.mxu0
        %v1022 = vadd.f32 %v827, %v1021
        %v1023 = vpop.f32.mrf.mxu0
        %v1024 = vadd.f32 %v831, %v1023
        %v1025 = vpop.f32.mrf.mxu0
        %v1026 = vadd.f32 %v827, %v1025
        %v1027 = vpop.f32.mrf.mxu0
        %v1028 = vadd.f32 %v831, %v1027
        %1029 = vmatprep.mubr.bf16.mxu0 0
        %1030 = vmatmul.mubr.bf16.gmra.mxu0 %v785
        %v1031 = vpop.f32.mrf.mxu0
        %v1032 = vadd.f32 %v827, %v1031
        %v1033 = vpop.f32.mrf.mxu0
        %v1034 = vadd.f32 %v831, %v1033
        %v1035 = vpop.f32.mrf.mxu0
        %v1036 = vadd.f32 %v827, %v1035
        %v1037 = vpop.f32.mrf.mxu0
        %v1038 = vadd.f32 %v831, %v1037
        %1039 = vmatprep.mubr.bf16.mxu0 0
        %1040 = vmatmul.mubr.bf16.gmra.mxu0 %v786
        %v1041 = vpop.f32.mrf.mxu0
        %v1042 = vadd.f32 %v827, %v1041
        %v1043 = vpop.f32.mrf.mxu0
        %v1044 = vadd.f32 %v831, %v1043
        %v1045 = vpop.f32.mrf.mxu0
        %v1046 = vadd.f32 %v827, %v1045
        %v1047 = vpop.f32.mrf.mxu0
        %v1048 = vadd.f32 %v831, %v1047
        %1049 = vmatprep.mubr.bf16.mxu0 0
        %1050 = vmatmul.mubr.bf16.gmra.mxu0 %v787
        %v1051 = vpop.f32.mrf.mxu0
        %v1052 = vadd.f32 %v827, %v1051
        %v1053 = vpop.f32.mrf.mxu0
        %v1054 = vadd.f32 %v831, %v1053
        %v1055 = vpop.f32.mrf.mxu0
        %v1056 = vadd.f32 %v827, %v1055
        %v1057 = vpop.f32.mrf.mxu0
        %v1058 = vadd.f32 %v831, %v1057
        %1059 = vmatprep.mubr.bf16.mxu0 0
        %1060 = vmatmul.mubr.bf16.gmra.mxu0 %v788
        %v1061 = vpop.f32.mrf.mxu0
        %v1062 = vadd.f32 %v827, %v1061
        %v1063 = vpop.f32.mrf.mxu0
        %v1064 = vadd.f32 %v831, %v1063
        %v1065 = vpop.f32.mrf.mxu0
        %v1066 = vadd.f32 %v827, %v1065
        %v1067 = vpop.f32.mrf.mxu0
        %v1068 = vadd.f32 %v831, %v1067
        %1069 = vmatprep.mubr.bf16.mxu0 0
        %1070 = vmatmul.mubr.bf16.gmra.mxu0 %v789
        %v1071 = vpop.f32.mrf.mxu0
        %v1072 = vadd.f32 %v827, %v1071
        %v1073 = vpop.f32.mrf.mxu0
        %v1074 = vadd.f32 %v831, %v1073
        %v1075 = vpop.f32.mrf.mxu0
        %v1076 = vadd.f32 %v827, %v1075
        %v1077 = vpop.f32.mrf.mxu0
        %v1078 = vadd.f32 %v831, %v1077
        %1079 = vdwg.mxu0
        %1080 = vmatprep.subr.bf16.mxu0 0
        %1081 = vmatpush1.bf16.msra.mxu0 %v942
        %1082 = vmatprep.subr.bf16.mxu0 0
        %1083 = vmatpush1.bf16.msra.mxu0 %v939
        %1084 = vmatprep.subr.bf16.mxu0 0
        %1085 = vmatpush1.bf16.msra.mxu0 %v936
        %1086 = vmatprep.subr.bf16.mxu0 0
        %1087 = vmatpush1.bf16.msra.mxu0 %v933
        %1088 = vmatprep.subr.bf16.mxu0 0
        %1089 = vmatpush1.bf16.msra.mxu0 %v930
        %1090 = vmatprep.subr.bf16.mxu0 0
        %1091 = vmatpush1.bf16.msra.mxu0 %v927
        %1092 = vmatprep.subr.bf16.mxu0 0
        %1093 = vmatpush1.bf16.msra.mxu0 %v924
        %1094 = vmatprep.subr.bf16.mxu0 0
        %1095 = vmatpush1.bf16.msra.mxu0 %v921
        %1096 = vmatprep.subr.bf16.mxu0 0
        %1097 = vmatpush2.bf16.msra.mxu0 0
        %1098 = vmatprep.subr.bf16.mxu0 0
        %1099 = vmatpush2.bf16.msra.mxu0 0
        %1100 = vmatprep.subr.bf16.mxu0 0
        %1101 = vmatpush2.bf16.msra.mxu0 0
        %1102 = vmatprep.subr.bf16.mxu0 0
        %1103 = vmatpush2.bf16.msra.mxu0 0
        %1104 = vmatprep.subr.bf16.mxu0 0
        %1105 = vmatpush2.bf16.msra.mxu0 0
        %1106 = vmatprep.subr.bf16.mxu0 0
        %1107 = vmatpush2.bf16.msra.mxu0 0
        %1108 = vmatprep.subr.bf16.mxu0 0
        %1109 = vmatpush2.bf16.msra.mxu0 0
        %1110 = vmatprep.subr.bf16.mxu0 0
        %1111 = vmatpush2.bf16.msra.mxu0 0
        %1112 = vmatprep.mubr.bf16.mxu0 0
        %1113 = vmatmul.mubr.bf16.gmra.mxu0 %v782
        %v1114 = vpop.f32.mrf.mxu0
        %v1115 = vadd.f32 %v835, %v1114
        %v1116 = vpop.f32.mrf.mxu0
        %v1117 = vpop.f32.mrf.mxu0
        %v1118 = vadd.f32 %v835, %v1117
        %v1119 = vpop.f32.mrf.mxu0
        %1120 = vmatprep.mubr.bf16.mxu0 0
        %1121 = vmatmul.mubr.bf16.gmra.mxu0 %v783
        %v1122 = vpop.f32.mrf.mxu0
        %v1123 = vadd.f32 %v835, %v1122
        %v1124 = vpop.f32.mrf.mxu0
        %v1125 = vpop.f32.mrf.mxu0
        %v1126 = vadd.f32 %v835, %v1125
        %v1127 = vpop.f32.mrf.mxu0
        %1128 = vmatprep.mubr.bf16.mxu0 0
        %1129 = vmatmul.mubr.bf16.gmra.mxu0 %v784
        %v1130 = vpop.f32.mrf.mxu0
        %v1131 = vadd.f32 %v835, %v1130
        %v1132 = vpop.f32.mrf.mxu0
        %v1133 = vpop.f32.mrf.mxu0
        %v1134 = vadd.f32 %v835, %v1133
        %v1135 = vpop.f32.mrf.mxu0
        %1136 = vmatprep.mubr.bf16.mxu0 0
        %1137 = vmatmul.mubr.bf16.gmra.mxu0 %v785
        %v1138 = vpop.f32.mrf.mxu0
        %v1139 = vadd.f32 %v835, %v1138
        %v1140 = vpop.f32.mrf.mxu0
        %v1141 = vpop.f32.mrf.mxu0
        %v1142 = vadd.f32 %v835, %v1141
        %v1143 = vpop.f32.mrf.mxu0
        %1144 = vmatprep.mubr.bf16.mxu0 0
        %1145 = vmatmul.mubr.bf16.gmra.mxu0 %v786
        %v1146 = vpop.f32.mrf.mxu0
        %v1147 = vadd.f32 %v835, %v1146
        %v1148 = vpop.f32.mrf.mxu0
        %v1149 = vpop.f32.mrf.mxu0
        %v1150 = vadd.f32 %v835, %v1149
        %v1151 = vpop.f32.mrf.mxu0
        %1152 = vmatprep.mubr.bf16.mxu0 0
        %1153 = vmatmul.mubr.bf16.gmra.mxu0 %v787
        %v1154 = vpop.f32.mrf.mxu0
        %v1155 = vadd.f32 %v835, %v1154
        %v1156 = vpop.f32.mrf.mxu0
        %v1157 = vpop.f32.mrf.mxu0
        %v1158 = vadd.f32 %v835, %v1157
        %v1159 = vpop.f32.mrf.mxu0
        %1160 = vmatprep.mubr.bf16.mxu0 0
        %1161 = vmatmul.mubr.bf16.gmra.mxu0 %v788
        %v1162 = vpop.f32.mrf.mxu0
        %v1163 = vadd.f32 %v835, %v1162
        %v1164 = vpop.f32.mrf.mxu0
        %v1165 = vpop.f32.mrf.mxu0
        %v1166 = vadd.f32 %v835, %v1165
        %v1167 = vpop.f32.mrf.mxu0
        %1168 = vmatprep.mubr.bf16.mxu0 0
        %1169 = vmatmul.mubr.bf16.gmra.mxu0 %v789
        %v1170 = vpop.f32.mrf.mxu0
        %v1171 = vadd.f32 %v835, %v1170
        %v1172 = vpop.f32.mrf.mxu0
        %v1173 = vpop.f32.mrf.mxu0
        %v1174 = vadd.f32 %v835, %v1173
        %v1175 = vpop.f32.mrf.mxu0
        %1176 = vdwg.mxu0
        %v1177 = vpack.c.bf16 %v1006, %v1002
        %v1178 = vpack.c.bf16 %v1016, %v1012
        %v1179 = vpack.c.bf16 %v1026, %v1022
        %v1180 = vpack.c.bf16 %v1036, %v1032
        %v1181 = vpack.c.bf16 %v1046, %v1042
        %v1182 = vpack.c.bf16 %v1056, %v1052
        %v1183 = vpack.c.bf16 %v1066, %v1062
        %v1184 = vpack.c.bf16 %v1076, %v1072
        %v1185 = vpack.c.bf16 %v1008, %v1004
        %v1186 = vpack.c.bf16 %v1018, %v1014
        %v1187 = vpack.c.bf16 %v1028, %v1024
        %v1188 = vpack.c.bf16 %v1038, %v1034
        %v1189 = vpack.c.bf16 %v1048, %v1044
        %v1190 = vpack.c.bf16 %v1058, %v1054
        %v1191 = vpack.c.bf16 %v1068, %v1064
        %v1192 = vpack.c.bf16 %v1078, %v1074
        %vm1193 = vcmask 261120
        %v1195 = vsel %vm1193, %v1177, 0
        %v1198 = vsel %vm1193, %v1178, 0
        %v1201 = vsel %vm1193, %v1179, 0
        %v1204 = vsel %vm1193, %v1180, 0
        %v1207 = vsel %vm1193, %v1181, 0
        %v1210 = vsel %vm1193, %v1182, 0
        %v1213 = vsel %vm1193, %v1183, 0
        %v1216 = vsel %vm1193, %v1184, 0
        %v1219 = vsel %vm1193, %v1185, 0
        %v1222 = vsel %vm1193, %v1186, 0
        %v1225 = vsel %vm1193, %v1187, 0
        %v1228 = vsel %vm1193, %v1188, 0
        %v1231 = vsel %vm1193, %v1189, 0
        %v1234 = vsel %vm1193, %v1190, 0
        %v1237 = vsel %vm1193, %v1191, 0
        %v1240 = vsel %vm1193, %v1192, 0
        %1242 = vmatprep.subr.bf16.mxu0 0
        %1243 = vmatpush1.bf16.xpose.msra.mxu0 %v1240
        %1244 = vmatprep.subr.bf16.mxu0 0
        %1245 = vmatpush1.bf16.xpose.msra.mxu0 %v1237
        %1246 = vmatprep.subr.bf16.mxu0 0
        %1247 = vmatpush1.bf16.xpose.msra.mxu0 %v1234
        %1248 = vmatprep.subr.bf16.mxu0 0
        %1249 = vmatpush1.bf16.xpose.msra.mxu0 %v1231
        %1250 = vmatprep.subr.bf16.mxu0 0
        %1251 = vmatpush1.bf16.xpose.msra.mxu0 %v1228
        %1252 = vmatprep.subr.bf16.mxu0 0
        %1253 = vmatpush1.bf16.xpose.msra.mxu0 %v1225
        %1254 = vmatprep.subr.bf16.mxu0 0
        %1255 = vmatpush1.bf16.xpose.msra.mxu0 %v1222
        %1256 = vmatprep.subr.bf16.mxu0 0
        %1257 = vmatpush1.bf16.xpose.msra.mxu0 %v1219
        %1258 = vmatprep.subr.bf16.mxu0 0
        %1259 = vmatpush2.bf16.xpose.msra.mxu0 0
        %1260 = vmatprep.subr.bf16.mxu0 0
        %1261 = vmatpush2.bf16.xpose.msra.mxu0 0
        %1262 = vmatprep.subr.bf16.mxu0 0
        %1263 = vmatpush2.bf16.xpose.msra.mxu0 0
        %1264 = vmatprep.subr.bf16.mxu0 0
        %1265 = vmatpush2.bf16.xpose.msra.mxu0 0
        %1266 = vmatprep.subr.bf16.mxu0 0
        %1267 = vmatpush2.bf16.xpose.msra.mxu0 0
        %1268 = vmatprep.subr.bf16.mxu0 0
        %1269 = vmatpush2.bf16.xpose.msra.mxu0 0
        %1270 = vmatprep.subr.bf16.mxu0 0
        %1271 = vmatpush2.bf16.xpose.msra.mxu0 0
        %1272 = vmatprep.subr.bf16.mxu0 0
        %1273 = vmatpush2.bf16.xpose.msra.mxu0 0
        %1274 = vmatprep.mubr.bf16.mxu0 0
        %1275 = vmatmul.mubr.bf16.gmra.mxu0 %v1195
        %v1276 = vpop.f32.mrf.mxu0
        %v1277 = vadd.f32 0.0, %v1276
        %v1278 = vpop.f32.mrf.mxu0
        %v1279 = vpop.f32.mrf.mxu0
        %v1280 = vadd.f32 0.0, %v1279
        %v1281 = vpop.f32.mrf.mxu0
        %1282 = vmatprep.mubr.bf16.mxu0 0
        %1283 = vmatmul.mubr.bf16.gmra.mxu0 %v1198
        %v1284 = vpop.f32.mrf.mxu0
        %v1285 = vadd.f32 0.0, %v1284
        %v1286 = vpop.f32.mrf.mxu0
        %v1287 = vpop.f32.mrf.mxu0
        %v1288 = vadd.f32 0.0, %v1287
        %v1289 = vpop.f32.mrf.mxu0
        %1290 = vmatprep.mubr.bf16.mxu0 0
        %1291 = vmatmul.mubr.bf16.gmra.mxu0 %v1201
        %v1292 = vpop.f32.mrf.mxu0
        %v1293 = vadd.f32 0.0, %v1292
        %v1294 = vpop.f32.mrf.mxu0
        %v1295 = vpop.f32.mrf.mxu0
        %v1296 = vadd.f32 0.0, %v1295
        %v1297 = vpop.f32.mrf.mxu0
        %1298 = vmatprep.mubr.bf16.mxu0 0
        %1299 = vmatmul.mubr.bf16.gmra.mxu0 %v1204
        %v1300 = vpop.f32.mrf.mxu0
        %v1301 = vadd.f32 0.0, %v1300
        %v1302 = vpop.f32.mrf.mxu0
        %v1303 = vpop.f32.mrf.mxu0
        %v1304 = vadd.f32 0.0, %v1303
        %v1305 = vpop.f32.mrf.mxu0
        %1306 = vmatprep.mubr.bf16.mxu0 0
        %1307 = vmatmul.mubr.bf16.gmra.mxu0 %v1207
        %v1308 = vpop.f32.mrf.mxu0
        %v1309 = vadd.f32 0.0, %v1308
        %v1310 = vpop.f32.mrf.mxu0
        %v1311 = vpop.f32.mrf.mxu0
        %v1312 = vadd.f32 0.0, %v1311
        %v1313 = vpop.f32.mrf.mxu0
        %1314 = vmatprep.mubr.bf16.mxu0 0
        %1315 = vmatmul.mubr.bf16.gmra.mxu0 %v1210
        %v1316 = vpop.f32.mrf.mxu0
        %v1317 = vadd.f32 0.0, %v1316
        %v1318 = vpop.f32.mrf.mxu0
        %v1319 = vpop.f32.mrf.mxu0
        %v1320 = vadd.f32 0.0, %v1319
        %v1321 = vpop.f32.mrf.mxu0
        %1322 = vmatprep.mubr.bf16.mxu0 0
        %1323 = vmatmul.mubr.bf16.gmra.mxu0 %v1213
        %v1324 = vpop.f32.mrf.mxu0
        %v1325 = vadd.f32 0.0, %v1324
        %v1326 = vpop.f32.mrf.mxu0
        %v1327 = vpop.f32.mrf.mxu0
        %v1328 = vadd.f32 0.0, %v1327
        %v1329 = vpop.f32.mrf.mxu0
        %1330 = vmatprep.mubr.bf16.mxu0 0
        %1331 = vmatmul.mubr.bf16.gmra.mxu0 %v1216
        %v1332 = vpop.f32.mrf.mxu0
        %v1333 = vadd.f32 0.0, %v1332
        %v1334 = vpop.f32.mrf.mxu0
        %v1335 = vpop.f32.mrf.mxu0
        %v1336 = vadd.f32 0.0, %v1335
        %v1337 = vpop.f32.mrf.mxu0
        %1338 = vdwg.mxu0
        %1339 = vmax.xlane.f32.xlu0 %v1277
        %v1340 = vpop.xlane.xlu0 %1339
        %1341 = vmax.xlane.f32.xlu0 %v1280
        %v1342 = vpop.xlane.xlu0 %1341
        %1343 = vmax.xlane.f32.xlu0 %v1285
        %v1344 = vpop.xlane.xlu0 %1343
        %1345 = vmax.xlane.f32.xlu0 %v1288
        %v1346 = vpop.xlane.xlu0 %1345
        %1347 = vmax.xlane.f32.xlu0 %v1293
        %v1348 = vpop.xlane.xlu0 %1347
        %1349 = vmax.xlane.f32.xlu0 %v1296
        %v1350 = vpop.xlane.xlu0 %1349
        %1351 = vmax.xlane.f32.xlu0 %v1301
        %v1352 = vpop.xlane.xlu0 %1351
        %1353 = vmax.xlane.f32.xlu0 %v1304
        %v1354 = vpop.xlane.xlu0 %1353
        %1355 = vmax.xlane.f32.xlu0 %v1309
        %v1356 = vpop.xlane.xlu0 %1355
        %1357 = vmax.xlane.f32.xlu0 %v1312
        %v1358 = vpop.xlane.xlu0 %1357
        %1359 = vmax.xlane.f32.xlu0 %v1317
        %v1360 = vpop.xlane.xlu0 %1359
        %1361 = vmax.xlane.f32.xlu0 %v1320
        %v1362 = vpop.xlane.xlu0 %1361
        %1363 = vmax.xlane.f32.xlu0 %v1325
        %v1364 = vpop.xlane.xlu0 %1363
        %1365 = vmax.xlane.f32.xlu0 %v1328
        %v1366 = vpop.xlane.xlu0 %1365
        %1367 = vmax.xlane.f32.xlu0 %v1333
        %v1368 = vpop.xlane.xlu0 %1367
        %1369 = vmax.xlane.f32.xlu0 %v1336
        %v1370 = vpop.xlane.xlu0 %1369
        %v1371 = vsub.f32 %v1277, %v1340
        %v1372 = vsub.f32 %v1280, %v1342
        %v1373 = vsub.f32 %v1285, %v1344
        %v1374 = vsub.f32 %v1288, %v1346
        %v1375 = vsub.f32 %v1293, %v1348
        %v1376 = vsub.f32 %v1296, %v1350
        %v1377 = vsub.f32 %v1301, %v1352
        %v1378 = vsub.f32 %v1304, %v1354
        %v1379 = vsub.f32 %v1309, %v1356
        %v1380 = vsub.f32 %v1312, %v1358
        %v1381 = vsub.f32 %v1317, %v1360
        %v1382 = vsub.f32 %v1320, %v1362
        %v1383 = vsub.f32 %v1325, %v1364
        %v1384 = vsub.f32 %v1328, %v1366
        %v1385 = vsub.f32 %v1333, %v1368
        %v1386 = vsub.f32 %v1336, %v1370
        %v1387 = vmul.f32 %v1371, 1.442695
        %v1388 = vpow.pop %v1387
        %v1389 = vmul.f32 %v1372, 1.442695
        %v1390 = vpow.pop %v1389
        %v1391 = vmul.f32 %v1373, 1.442695
        %v1392 = vpow.pop %v1391
        %v1393 = vmul.f32 %v1374, 1.442695
        %v1394 = vpow.pop %v1393
        %v1395 = vmul.f32 %v1375, 1.442695
        %v1396 = vpow.pop %v1395
        %v1397 = vmul.f32 %v1376, 1.442695
        %v1398 = vpow.pop %v1397
        %v1399 = vmul.f32 %v1377, 1.442695
        %v1400 = vpow.pop %v1399
        %v1401 = vmul.f32 %v1378, 1.442695
        %v1402 = vpow.pop %v1401
        %v1403 = vmul.f32 %v1379, 1.442695
        %v1404 = vpow.pop %v1403
        %v1405 = vmul.f32 %v1380, 1.442695
        %v1406 = vpow.pop %v1405
        %v1407 = vmul.f32 %v1381, 1.442695
        %v1408 = vpow.pop %v1407
        %v1409 = vmul.f32 %v1382, 1.442695
        %v1410 = vpow.pop %v1409
        %v1411 = vmul.f32 %v1383, 1.442695
        %v1412 = vpow.pop %v1411
        %v1413 = vmul.f32 %v1384, 1.442695
        %v1414 = vpow.pop %v1413
        %v1415 = vmul.f32 %v1385, 1.442695
        %v1416 = vpow.pop %v1415
        %v1417 = vmul.f32 %v1386, 1.442695
        %v1418 = vpow.pop %v1417
        %1419 = vadd.xlane.f32.xlu0 %v1388
        %v1420 = vpop.xlane.xlu0 %1419
        %1421 = vadd.xlane.f32.xlu0 %v1390
        %v1422 = vpop.xlane.xlu0 %1421
        %1423 = vadd.xlane.f32.xlu0 %v1392
        %v1424 = vpop.xlane.xlu0 %1423
        %1425 = vadd.xlane.f32.xlu0 %v1394
        %v1426 = vpop.xlane.xlu0 %1425
        %1427 = vadd.xlane.f32.xlu0 %v1396
        %v1428 = vpop.xlane.xlu0 %1427
        %1429 = vadd.xlane.f32.xlu0 %v1398
        %v1430 = vpop.xlane.xlu0 %1429
        %1431 = vadd.xlane.f32.xlu0 %v1400
        %v1432 = vpop.xlane.xlu0 %1431
        %1433 = vadd.xlane.f32.xlu0 %v1402
        %v1434 = vpop.xlane.xlu0 %1433
        %1435 = vadd.xlane.f32.xlu0 %v1404
        %v1436 = vpop.xlane.xlu0 %1435
        %1437 = vadd.xlane.f32.xlu0 %v1406
        %v1438 = vpop.xlane.xlu0 %1437
        %1439 = vadd.xlane.f32.xlu0 %v1408
        %v1440 = vpop.xlane.xlu0 %1439
        %1441 = vadd.xlane.f32.xlu0 %v1410
        %v1442 = vpop.xlane.xlu0 %1441
        %1443 = vadd.xlane.f32.xlu0 %v1412
        %v1444 = vpop.xlane.xlu0 %1443
        %1445 = vadd.xlane.f32.xlu0 %v1414
        %v1446 = vpop.xlane.xlu0 %1445
        %1447 = vadd.xlane.f32.xlu0 %v1416
        %v1448 = vpop.xlane.xlu0 %1447
        %1449 = vadd.xlane.f32.xlu0 %v1418
        %v1450 = vpop.xlane.xlu0 %1449
        %v1451 = vpack.c.bf16 %v1390, %v1388
        %v1452 = vpack.c.bf16 %v1394, %v1392
        %v1453 = vpack.c.bf16 %v1398, %v1396
        %v1454 = vpack.c.bf16 %v1402, %v1400
        %v1455 = vpack.c.bf16 %v1406, %v1404
        %v1456 = vpack.c.bf16 %v1410, %v1408
        %v1457 = vpack.c.bf16 %v1414, %v1412
        %v1458 = vpack.c.bf16 %v1418, %v1416
        %v1459 = vpack.c.bf16 %v1118, %v1115
        %v1460 = vpack.c.bf16 %v1126, %v1123
        %v1461 = vpack.c.bf16 %v1134, %v1131
        %v1462 = vpack.c.bf16 %v1142, %v1139
        %v1463 = vpack.c.bf16 %v1150, %v1147
        %v1464 = vpack.c.bf16 %v1158, %v1155
        %v1465 = vpack.c.bf16 %v1166, %v1163
        %v1466 = vpack.c.bf16 %v1174, %v1171
        %1467 = vmatprep.subr.bf16.mxu0 0
        %1468 = vmatpush1.bf16.msra.mxu0 %v1466
        %1469 = vmatprep.subr.bf16.mxu0 0
        %1470 = vmatpush1.bf16.msra.mxu0 %v1465
        %1471 = vmatprep.subr.bf16.mxu0 0
        %1472 = vmatpush1.bf16.msra.mxu0 %v1464
        %1473 = vmatprep.subr.bf16.mxu0 0
        %1474 = vmatpush1.bf16.msra.mxu0 %v1463
        %1475 = vmatprep.subr.bf16.mxu0 0
        %1476 = vmatpush1.bf16.msra.mxu0 %v1462
        %1477 = vmatprep.subr.bf16.mxu0 0
        %1478 = vmatpush1.bf16.msra.mxu0 %v1461
        %1479 = vmatprep.subr.bf16.mxu0 0
        %1480 = vmatpush1.bf16.msra.mxu0 %v1460
        %1481 = vmatprep.subr.bf16.mxu0 0
        %1482 = vmatpush1.bf16.msra.mxu0 %v1459
        %1483 = vmatprep.subr.bf16.mxu0 0
        %1484 = vmatpush2.bf16.msra.mxu0 0
        %1485 = vmatprep.subr.bf16.mxu0 0
        %1486 = vmatpush2.bf16.msra.mxu0 0
        %1487 = vmatprep.subr.bf16.mxu0 0
        %1488 = vmatpush2.bf16.msra.mxu0 0
        %1489 = vmatprep.subr.bf16.mxu0 0
        %1490 = vmatpush2.bf16.msra.mxu0 0
        %1491 = vmatprep.subr.bf16.mxu0 0
        %1492 = vmatpush2.bf16.msra.mxu0 0
        %1493 = vmatprep.subr.bf16.mxu0 0
        %1494 = vmatpush2.bf16.msra.mxu0 0
        %1495 = vmatprep.subr.bf16.mxu0 0
        %1496 = vmatpush2.bf16.msra.mxu0 0
        %1497 = vmatprep.subr.bf16.mxu0 0
        %1498 = vmatpush2.bf16.msra.mxu0 0
        %1499 = vmatprep.mubr.bf16.mxu0 0
        %1500 = vmatmul.mubr.bf16.gmra.mxu0 %v1451
        %v1501 = vpop.f32.mrf.mxu0
        %v1502 = vadd.f32 0.0, %v1501
        %v1503 = vpop.f32.mrf.mxu0
        %v1504 = vpop.f32.mrf.mxu0
        %v1505 = vadd.f32 0.0, %v1504
        %v1506 = vpop.f32.mrf.mxu0
        %1507 = vmatprep.mubr.bf16.mxu0 0
        %1508 = vmatmul.mubr.bf16.gmra.mxu0 %v1452
        %v1509 = vpop.f32.mrf.mxu0
        %v1510 = vadd.f32 0.0, %v1509
        %v1511 = vpop.f32.mrf.mxu0
        %v1512 = vpop.f32.mrf.mxu0
        %v1513 = vadd.f32 0.0, %v1512
        %v1514 = vpop.f32.mrf.mxu0
        %1515 = vmatprep.mubr.bf16.mxu0 0
        %1516 = vmatmul.mubr.bf16.gmra.mxu0 %v1453
        %v1517 = vpop.f32.mrf.mxu0
        %v1518 = vadd.f32 0.0, %v1517
        %v1519 = vpop.f32.mrf.mxu0
        %v1520 = vpop.f32.mrf.mxu0
        %v1521 = vadd.f32 0.0, %v1520
        %v1522 = vpop.f32.mrf.mxu0
        %1523 = vmatprep.mubr.bf16.mxu0 0
        %1524 = vmatmul.mubr.bf16.gmra.mxu0 %v1454
        %v1525 = vpop.f32.mrf.mxu0
        %v1526 = vadd.f32 0.0, %v1525
        %v1527 = vpop.f32.mrf.mxu0
        %v1528 = vpop.f32.mrf.mxu0
        %v1529 = vadd.f32 0.0, %v1528
        %v1530 = vpop.f32.mrf.mxu0
        %1531 = vmatprep.mubr.bf16.mxu0 0
        %1532 = vmatmul.mubr.bf16.gmra.mxu0 %v1455
        %v1533 = vpop.f32.mrf.mxu0
        %v1534 = vadd.f32 0.0, %v1533
        %v1535 = vpop.f32.mrf.mxu0
        %v1536 = vpop.f32.mrf.mxu0
        %v1537 = vadd.f32 0.0, %v1536
        %v1538 = vpop.f32.mrf.mxu0
        %1539 = vmatprep.mubr.bf16.mxu0 0
        %1540 = vmatmul.mubr.bf16.gmra.mxu0 %v1456
        %v1541 = vpop.f32.mrf.mxu0
        %v1542 = vadd.f32 0.0, %v1541
        %v1543 = vpop.f32.mrf.mxu0
        %v1544 = vpop.f32.mrf.mxu0
        %v1545 = vadd.f32 0.0, %v1544
        %v1546 = vpop.f32.mrf.mxu0
        %1547 = vmatprep.mubr.bf16.mxu0 0
        %1548 = vmatmul.mubr.bf16.gmra.mxu0 %v1457
        %v1549 = vpop.f32.mrf.mxu0
        %v1550 = vadd.f32 0.0, %v1549
        %v1551 = vpop.f32.mrf.mxu0
        %v1552 = vpop.f32.mrf.mxu0
        %v1553 = vadd.f32 0.0, %v1552
        %v1554 = vpop.f32.mrf.mxu0
        %1555 = vmatprep.mubr.bf16.mxu0 0
        %1556 = vmatmul.mubr.bf16.gmra.mxu0 %v1458
        %v1557 = vpop.f32.mrf.mxu0
        %v1558 = vadd.f32 0.0, %v1557
        %v1559 = vpop.f32.mrf.mxu0
        %v1560 = vpop.f32.mrf.mxu0
        %v1561 = vadd.f32 0.0, %v1560
        %v1562 = vpop.f32.mrf.mxu0
        %1563 = vdwg.mxu0
        %v1564 = vrcp.pop %v1420
        %v1565 = vrcp.pop %v1422
        %v1566 = vrcp.pop %v1424
        %v1567 = vrcp.pop %v1426
        %v1568 = vrcp.pop %v1428
        %v1569 = vrcp.pop %v1430
        %v1570 = vrcp.pop %v1432
        %v1571 = vrcp.pop %v1434
        %v1572 = vrcp.pop %v1436
        %v1573 = vrcp.pop %v1438
        %v1574 = vrcp.pop %v1440
        %v1575 = vrcp.pop %v1442
        %v1576 = vrcp.pop %v1444
        %v1577 = vrcp.pop %v1446
        %v1578 = vrcp.pop %v1448
        %v1579 = vrcp.pop %v1450
        %v1580 = vmul.f32 %v1502, %v1564
        %v1581 = vmul.f32 %v1505, %v1565
        %v1582 = vmul.f32 %v1510, %v1566
        %v1583 = vmul.f32 %v1513, %v1567
        %v1584 = vmul.f32 %v1518, %v1568
        %v1585 = vmul.f32 %v1521, %v1569
        %v1586 = vmul.f32 %v1526, %v1570
        %v1587 = vmul.f32 %v1529, %v1571
        %v1588 = vmul.f32 %v1534, %v1572
        %v1589 = vmul.f32 %v1537, %v1573
        %v1590 = vmul.f32 %v1542, %v1574
        %v1591 = vmul.f32 %v1545, %v1575
        %v1592 = vmul.f32 %v1550, %v1576
        %v1593 = vmul.f32 %v1553, %v1577
        %v1594 = vmul.f32 %v1558, %v1578
        %v1595 = vmul.f32 %v1561, %v1579
        %v1596 = vpack.c.bf16 %v1581, %v1580
        %v1597 = vpack.c.bf16 %v1583, %v1582
        %v1598 = vpack.c.bf16 %v1585, %v1584
        %v1599 = vpack.c.bf16 %v1587, %v1586
        %v1600 = vpack.c.bf16 %v1589, %v1588
        %v1601 = vpack.c.bf16 %v1591, %v1590
        %v1602 = vpack.c.bf16 %v1593, %v1592
        %v1603 = vpack.c.bf16 %v1595, %v1594
        %v1612 = vunpack.c.l.b16 %v1596
        %v1613 = vunpack.c.h.b16 %v1596
        %v1614 = vunpack.c.l.b16 %v1597
        %v1615 = vunpack.c.h.b16 %v1597
        %v1616 = vunpack.c.l.b16 %v1598
        %v1617 = vunpack.c.h.b16 %v1598
        %v1618 = vunpack.c.l.b16 %v1599
        %v1619 = vunpack.c.h.b16 %v1599
        %v1620 = vunpack.c.l.b16 %v1600
        %v1621 = vunpack.c.h.b16 %v1600
        %v1622 = vunpack.c.l.b16 %v1601
        %v1623 = vunpack.c.h.b16 %v1601
        %v1624 = vunpack.c.l.b16 %v1602
        %v1625 = vunpack.c.h.b16 %v1602
        %v1626 = vunpack.c.l.b16 %v1603
        %v1627 = vunpack.c.h.b16 %v1603
        %v1628 = vpack.c.b16 %v1612, %v1612
        %v1629 = vpack.c.b16 %v1613, %v1613
        %v1630 = vpack.c.b16 %v1614, %v1614
        %v1631 = vpack.c.b16 %v1615, %v1615
        %v1632 = vpack.c.b16 %v1616, %v1616
        %v1633 = vpack.c.b16 %v1617, %v1617
        %v1634 = vpack.c.b16 %v1618, %v1618
        %v1635 = vpack.c.b16 %v1619, %v1619
        %v1636 = vpack.c.b16 %v1620, %v1620
        %v1637 = vpack.c.b16 %v1621, %v1621
        %v1638 = vpack.c.b16 %v1622, %v1622
        %v1639 = vpack.c.b16 %v1623, %v1623
        %v1640 = vpack.c.b16 %v1624, %v1624
        %v1641 = vpack.c.b16 %v1625, %v1625
        %v1642 = vpack.c.b16 %v1626, %v1626
        %v1643 = vpack.c.b16 %v1627, %v1627
        %vm1660 = vcmask 257024
        %1661 = vst.msk [vmem:[#allocation2] sm:$0xf] %vm1660, %v1628
        %1662 = vst.msk [vmem:[#allocation2 + $0x4] sm:$0xf] %vm1660, %v1629
        %1663 = vst.msk [vmem:[#allocation2 + $0x8] sm:$0xf] %vm1660, %v1630
        %1664 = vst.msk [vmem:[#allocation2 + $0xc] sm:$0xf] %vm1660, %v1631
        %1665 = vst.msk [vmem:[#allocation2 + $0x10] sm:$0xf] %vm1660, %v1632
        %1666 = vst.msk [vmem:[#allocation2 + $0x14] sm:$0xf] %vm1660, %v1633
        %1667 = vst.msk [vmem:[#allocation2 + $0x18] sm:$0xf] %vm1660, %v1634
        %1668 = vst.msk [vmem:[#allocation2 + $0x1c] sm:$0xf] %vm1660, %v1635
        %1669 = vst.msk [vmem:[#allocation2 + $0x20] sm:$0xf] %vm1660, %v1636
        %1670 = vst.msk [vmem:[#allocation2 + $0x24] sm:$0xf] %vm1660, %v1637
        %1671 = vst.msk [vmem:[#allocation2 + $0x28] sm:$0xf] %vm1660, %v1638
        %1672 = vst.msk [vmem:[#allocation2 + $0x2c] sm:$0xf] %vm1660, %v1639
        %1673 = vst.msk [vmem:[#allocation2 + $0x30] sm:$0xf] %vm1660, %v1640
        %1674 = vst.msk [vmem:[#allocation2 + $0x34] sm:$0xf] %vm1660, %v1641
        %1675 = vst.msk [vmem:[#allocation2 + $0x38] sm:$0xf] %vm1660, %v1642
        %1676 = vst.msk [vmem:[#allocation2 + $0x3c] sm:$0xf] %vm1660, %v1643
        %1685 = vrot.lane.b32.xlu0 %v1177, 96
        %v1686 = vpop.permute.xlu0 %1685
        %1687 = vrot.lane.b32.xlu0 %v1178, 96
        %v1688 = vpop.permute.xlu0 %1687
        %1689 = vrot.lane.b32.xlu0 %v1179, 96
        %v1690 = vpop.permute.xlu0 %1689
        %1691 = vrot.lane.b32.xlu0 %v1180, 96
        %v1692 = vpop.permute.xlu0 %1691
        %1693 = vrot.lane.b32.xlu0 %v1181, 96
        %v1694 = vpop.permute.xlu0 %1693
        %1695 = vrot.lane.b32.xlu0 %v1182, 96
        %v1696 = vpop.permute.xlu0 %1695
        %1697 = vrot.lane.b32.xlu0 %v1183, 96
        %v1698 = vpop.permute.xlu0 %1697
        %1699 = vrot.lane.b32.xlu0 %v1184, 96
        %v1700 = vpop.permute.xlu0 %1699
        %1709 = vrot.lane.b32.xlu0 %v1185, 96
        %v1710 = vpop.permute.xlu0 %1709
        %1711 = vrot.lane.b32.xlu0 %v1186, 96
        %v1712 = vpop.permute.xlu0 %1711
        %1713 = vrot.lane.b32.xlu0 %v1187, 96
        %v1714 = vpop.permute.xlu0 %1713
        %1715 = vrot.lane.b32.xlu0 %v1188, 96
        %v1716 = vpop.permute.xlu0 %1715
        %1717 = vrot.lane.b32.xlu0 %v1189, 96
        %v1718 = vpop.permute.xlu0 %1717
        %1719 = vrot.lane.b32.xlu0 %v1190, 96
        %v1720 = vpop.permute.xlu0 %1719
        %1721 = vrot.lane.b32.xlu0 %v1191, 96
        %v1722 = vpop.permute.xlu0 %1721
        %1723 = vrot.lane.b32.xlu0 %v1192, 96
        %v1724 = vpop.permute.xlu0 %1723
        %v1726 = vsel %vm1193, %v1686, 0
        %v1729 = vsel %vm1193, %v1688, 0
        %v1732 = vsel %vm1193, %v1690, 0
        %v1735 = vsel %vm1193, %v1692, 0
        %v1738 = vsel %vm1193, %v1694, 0
        %v1741 = vsel %vm1193, %v1696, 0
        %v1744 = vsel %vm1193, %v1698, 0
        %v1747 = vsel %vm1193, %v1700, 0
        %v1750 = vsel %vm1193, %v1710, 0
        %v1753 = vsel %vm1193, %v1712, 0
        %v1756 = vsel %vm1193, %v1714, 0
        %v1759 = vsel %vm1193, %v1716, 0
        %v1762 = vsel %vm1193, %v1718, 0
        %v1765 = vsel %vm1193, %v1720, 0
        %v1768 = vsel %vm1193, %v1722, 0
        %v1771 = vsel %vm1193, %v1724, 0
        %1773 = vmatprep.subr.bf16.mxu0 0
        %1774 = vmatpush1.bf16.xpose.msra.mxu0 %v1771
        %1775 = vmatprep.subr.bf16.mxu0 0
        %1776 = vmatpush1.bf16.xpose.msra.mxu0 %v1768
        %1777 = vmatprep.subr.bf16.mxu0 0
        %1778 = vmatpush1.bf16.xpose.msra.mxu0 %v1765
        %1779 = vmatprep.subr.bf16.mxu0 0
        %1780 = vmatpush1.bf16.xpose.msra.mxu0 %v1762
        %1781 = vmatprep.subr.bf16.mxu0 0
        %1782 = vmatpush1.bf16.xpose.msra.mxu0 %v1759
        %1783 = vmatprep.subr.bf16.mxu0 0
        %1784 = vmatpush1.bf16.xpose.msra.mxu0 %v1756
        %1785 = vmatprep.subr.bf16.mxu0 0
        %1786 = vmatpush1.bf16.xpose.msra.mxu0 %v1753
        %1787 = vmatprep.subr.bf16.mxu0 0
        %1788 = vmatpush1.bf16.xpose.msra.mxu0 %v1750
        %1789 = vmatprep.subr.bf16.mxu0 0
        %1790 = vmatpush2.bf16.xpose.msra.mxu0 0
        %1791 = vmatprep.subr.bf16.mxu0 0
        %1792 = vmatpush2.bf16.xpose.msra.mxu0 0
        %1793 = vmatprep.subr.bf16.mxu0 0
        %1794 = vmatpush2.bf16.xpose.msra.mxu0 0
        %1795 = vmatprep.subr.bf16.mxu0 0
        %1796 = vmatpush2.bf16.xpose.msra.mxu0 0
        %1797 = vmatprep.subr.bf16.mxu0 0
        %1798 = vmatpush2.bf16.xpose.msra.mxu0 0
        %1799 = vmatprep.subr.bf16.mxu0 0
        %1800 = vmatpush2.bf16.xpose.msra.mxu0 0
        %1801 = vmatprep.subr.bf16.mxu0 0
        %1802 = vmatpush2.bf16.xpose.msra.mxu0 0
        %1803 = vmatprep.subr.bf16.mxu0 0
        %1804 = vmatpush2.bf16.xpose.msra.mxu0 0
        %1805 = vmatprep.mubr.bf16.mxu0 0
        %1806 = vmatmul.mubr.bf16.gmra.mxu0 %v1726
        %v1807 = vpop.f32.mrf.mxu0
        %v1808 = vadd.f32 0.0, %v1807
        %v1809 = vpop.f32.mrf.mxu0
        %v1810 = vpop.f32.mrf.mxu0
        %v1811 = vadd.f32 0.0, %v1810
        %v1812 = vpop.f32.mrf.mxu0
        %1813 = vmatprep.mubr.bf16.mxu0 0
        %1814 = vmatmul.mubr.bf16.gmra.mxu0 %v1729
        %v1815 = vpop.f32.mrf.mxu0
        %v1816 = vadd.f32 0.0, %v1815
        %v1817 = vpop.f32.mrf.mxu0
        %v1818 = vpop.f32.mrf.mxu0
        %v1819 = vadd.f32 0.0, %v1818
        %v1820 = vpop.f32.mrf.mxu0
        %1821 = vmatprep.mubr.bf16.mxu0 0
        %1822 = vmatmul.mubr.bf16.gmra.mxu0 %v1732
        %v1823 = vpop.f32.mrf.mxu0
        %v1824 = vadd.f32 0.0, %v1823
        %v1825 = vpop.f32.mrf.mxu0
        %v1826 = vpop.f32.mrf.mxu0
        %v1827 = vadd.f32 0.0, %v1826
        %v1828 = vpop.f32.mrf.mxu0
        %1829 = vmatprep.mubr.bf16.mxu0 0
        %1830 = vmatmul.mubr.bf16.gmra.mxu0 %v1735
        %v1831 = vpop.f32.mrf.mxu0
        %v1832 = vadd.f32 0.0, %v1831
        %v1833 = vpop.f32.mrf.mxu0
        %v1834 = vpop.f32.mrf.mxu0
        %v1835 = vadd.f32 0.0, %v1834
        %v1836 = vpop.f32.mrf.mxu0
        %1837 = vmatprep.mubr.bf16.mxu0 0
        %1838 = vmatmul.mubr.bf16.gmra.mxu0 %v1738
        %v1839 = vpop.f32.mrf.mxu0
        %v1840 = vadd.f32 0.0, %v1839
        %v1841 = vpop.f32.mrf.mxu0
        %v1842 = vpop.f32.mrf.mxu0
        %v1843 = vadd.f32 0.0, %v1842
        %v1844 = vpop.f32.mrf.mxu0
        %1845 = vmatprep.mubr.bf16.mxu0 0
        %1846 = vmatmul.mubr.bf16.gmra.mxu0 %v1741
        %v1847 = vpop.f32.mrf.mxu0
        %v1848 = vadd.f32 0.0, %v1847
        %v1849 = vpop.f32.mrf.mxu0
        %v1850 = vpop.f32.mrf.mxu0
        %v1851 = vadd.f32 0.0, %v1850
        %v1852 = vpop.f32.mrf.mxu0
        %1853 = vmatprep.mubr.bf16.mxu0 0
        %1854 = vmatmul.mubr.bf16.gmra.mxu0 %v1744
        %v1855 = vpop.f32.mrf.mxu0
        %v1856 = vadd.f32 0.0, %v1855
        %v1857 = vpop.f32.mrf.mxu0
        %v1858 = vpop.f32.mrf.mxu0
        %v1859 = vadd.f32 0.0, %v1858
        %v1860 = vpop.f32.mrf.mxu0
        %1861 = vmatprep.mubr.bf16.mxu0 0
        %1862 = vmatmul.mubr.bf16.gmra.mxu0 %v1747
        %v1863 = vpop.f32.mrf.mxu0
        %v1864 = vadd.f32 0.0, %v1863
        %v1865 = vpop.f32.mrf.mxu0
        %v1866 = vpop.f32.mrf.mxu0
        %v1867 = vadd.f32 0.0, %v1866
        %v1868 = vpop.f32.mrf.mxu0
        %1869 = vdwg.mxu0
        %1870 = vmax.xlane.f32.xlu0 %v1808
        %v1871 = vpop.xlane.xlu0 %1870
        %1872 = vmax.xlane.f32.xlu0 %v1811
        %v1873 = vpop.xlane.xlu0 %1872
        %1874 = vmax.xlane.f32.xlu0 %v1816
        %v1875 = vpop.xlane.xlu0 %1874
        %1876 = vmax.xlane.f32.xlu0 %v1819
        %v1877 = vpop.xlane.xlu0 %1876
        %1878 = vmax.xlane.f32.xlu0 %v1824
        %v1879 = vpop.xlane.xlu0 %1878
        %1880 = vmax.xlane.f32.xlu0 %v1827
        %v1881 = vpop.xlane.xlu0 %1880
        %1882 = vmax.xlane.f32.xlu0 %v1832
        %v1883 = vpop.xlane.xlu0 %1882
        %1884 = vmax.xlane.f32.xlu0 %v1835
        %v1885 = vpop.xlane.xlu0 %1884
        %1886 = vmax.xlane.f32.xlu0 %v1840
        %v1887 = vpop.xlane.xlu0 %1886
        %1888 = vmax.xlane.f32.xlu0 %v1843
        %v1889 = vpop.xlane.xlu0 %1888
        %1890 = vmax.xlane.f32.xlu0 %v1848
        %v1891 = vpop.xlane.xlu0 %1890
        %1892 = vmax.xlane.f32.xlu0 %v1851
        %v1893 = vpop.xlane.xlu0 %1892
        %1894 = vmax.xlane.f32.xlu0 %v1856
        %v1895 = vpop.xlane.xlu0 %1894
        %1896 = vmax.xlane.f32.xlu0 %v1859
        %v1897 = vpop.xlane.xlu0 %1896
        %1898 = vmax.xlane.f32.xlu0 %v1864
        %v1899 = vpop.xlane.xlu0 %1898
        %1900 = vmax.xlane.f32.xlu0 %v1867
        %v1901 = vpop.xlane.xlu0 %1900
        %v1902 = vsub.f32 %v1808, %v1871
        %v1903 = vsub.f32 %v1811, %v1873
        %v1904 = vsub.f32 %v1816, %v1875
        %v1905 = vsub.f32 %v1819, %v1877
        %v1906 = vsub.f32 %v1824, %v1879
        %v1907 = vsub.f32 %v1827, %v1881
        %v1908 = vsub.f32 %v1832, %v1883
        %v1909 = vsub.f32 %v1835, %v1885
        %v1910 = vsub.f32 %v1840, %v1887
        %v1911 = vsub.f32 %v1843, %v1889
        %v1912 = vsub.f32 %v1848, %v1891
        %v1913 = vsub.f32 %v1851, %v1893
        %v1914 = vsub.f32 %v1856, %v1895
        %v1915 = vsub.f32 %v1859, %v1897
        %v1916 = vsub.f32 %v1864, %v1899
        %v1917 = vsub.f32 %v1867, %v1901
        %v1918 = vmul.f32 %v1902, 1.442695
        %v1919 = vpow.pop %v1918
        %v1920 = vmul.f32 %v1903, 1.442695
        %v1921 = vpow.pop %v1920
        %v1922 = vmul.f32 %v1904, 1.442695
        %v1923 = vpow.pop %v1922
        %v1924 = vmul.f32 %v1905, 1.442695
        %v1925 = vpow.pop %v1924
        %v1926 = vmul.f32 %v1906, 1.442695
        %v1927 = vpow.pop %v1926
        %v1928 = vmul.f32 %v1907, 1.442695
        %v1929 = vpow.pop %v1928
        %v1930 = vmul.f32 %v1908, 1.442695
        %v1931 = vpow.pop %v1930
        %v1932 = vmul.f32 %v1909, 1.442695
        %v1933 = vpow.pop %v1932
        %v1934 = vmul.f32 %v1910, 1.442695
        %v1935 = vpow.pop %v1934
        %v1936 = vmul.f32 %v1911, 1.442695
        %v1937 = vpow.pop %v1936
        %v1938 = vmul.f32 %v1912, 1.442695
        %v1939 = vpow.pop %v1938
        %v1940 = vmul.f32 %v1913, 1.442695
        %v1941 = vpow.pop %v1940
        %v1942 = vmul.f32 %v1914, 1.442695
        %v1943 = vpow.pop %v1942
        %v1944 = vmul.f32 %v1915, 1.442695
        %v1945 = vpow.pop %v1944
        %v1946 = vmul.f32 %v1916, 1.442695
        %v1947 = vpow.pop %v1946
        %v1948 = vmul.f32 %v1917, 1.442695
        %v1949 = vpow.pop %v1948
        %1950 = vadd.xlane.f32.xlu0 %v1919
        %v1951 = vpop.xlane.xlu0 %1950
        %1952 = vadd.xlane.f32.xlu0 %v1921
        %v1953 = vpop.xlane.xlu0 %1952
        %1954 = vadd.xlane.f32.xlu0 %v1923
        %v1955 = vpop.xlane.xlu0 %1954
        %1956 = vadd.xlane.f32.xlu0 %v1925
        %v1957 = vpop.xlane.xlu0 %1956
        %1958 = vadd.xlane.f32.xlu0 %v1927
        %v1959 = vpop.xlane.xlu0 %1958
        %1960 = vadd.xlane.f32.xlu0 %v1929
        %v1961 = vpop.xlane.xlu0 %1960
        %1962 = vadd.xlane.f32.xlu0 %v1931
        %v1963 = vpop.xlane.xlu0 %1962
        %1964 = vadd.xlane.f32.xlu0 %v1933
        %v1965 = vpop.xlane.xlu0 %1964
        %1966 = vadd.xlane.f32.xlu0 %v1935
        %v1967 = vpop.xlane.xlu0 %1966
        %1968 = vadd.xlane.f32.xlu0 %v1937
        %v1969 = vpop.xlane.xlu0 %1968
        %1970 = vadd.xlane.f32.xlu0 %v1939
        %v1971 = vpop.xlane.xlu0 %1970
        %1972 = vadd.xlane.f32.xlu0 %v1941
        %v1973 = vpop.xlane.xlu0 %1972
        %1974 = vadd.xlane.f32.xlu0 %v1943
        %v1975 = vpop.xlane.xlu0 %1974
        %1976 = vadd.xlane.f32.xlu0 %v1945
        %v1977 = vpop.xlane.xlu0 %1976
        %1978 = vadd.xlane.f32.xlu0 %v1947
        %v1979 = vpop.xlane.xlu0 %1978
        %1980 = vadd.xlane.f32.xlu0 %v1949
        %v1981 = vpop.xlane.xlu0 %1980
        %v1982 = vpack.c.bf16 %v1921, %v1919
        %v1983 = vpack.c.bf16 %v1925, %v1923
        %v1984 = vpack.c.bf16 %v1929, %v1927
        %v1985 = vpack.c.bf16 %v1933, %v1931
        %v1986 = vpack.c.bf16 %v1937, %v1935
        %v1987 = vpack.c.bf16 %v1941, %v1939
        %v1988 = vpack.c.bf16 %v1945, %v1943
        %v1989 = vpack.c.bf16 %v1949, %v1947
        %1998 = vrot.lane.b32.xlu0 %v1459, 96
        %v1999 = vpop.permute.xlu0 %1998
        %2000 = vrot.lane.b32.xlu0 %v1460, 96
        %v2001 = vpop.permute.xlu0 %2000
        %2002 = vrot.lane.b32.xlu0 %v1461, 96
        %v2003 = vpop.permute.xlu0 %2002
        %2004 = vrot.lane.b32.xlu0 %v1462, 96
        %v2005 = vpop.permute.xlu0 %2004
        %2006 = vrot.lane.b32.xlu0 %v1463, 96
        %v2007 = vpop.permute.xlu0 %2006
        %2008 = vrot.lane.b32.xlu0 %v1464, 96
        %v2009 = vpop.permute.xlu0 %2008
        %2010 = vrot.lane.b32.xlu0 %v1465, 96
        %v2011 = vpop.permute.xlu0 %2010
        %2012 = vrot.lane.b32.xlu0 %v1466, 96
        %v2013 = vpop.permute.xlu0 %2012
        %2022 = vmatprep.subr.bf16.mxu0 0
        %2023 = vmatpush1.bf16.msra.mxu0 %v2013
        %2024 = vmatprep.subr.bf16.mxu0 0
        %2025 = vmatpush1.bf16.msra.mxu0 %v2011
        %2026 = vmatprep.subr.bf16.mxu0 0
        %2027 = vmatpush1.bf16.msra.mxu0 %v2009
        %2028 = vmatprep.subr.bf16.mxu0 0
        %2029 = vmatpush1.bf16.msra.mxu0 %v2007
        %2030 = vmatprep.subr.bf16.mxu0 0
        %2031 = vmatpush1.bf16.msra.mxu0 %v2005
        %2032 = vmatprep.subr.bf16.mxu0 0
        %2033 = vmatpush1.bf16.msra.mxu0 %v2003
        %2034 = vmatprep.subr.bf16.mxu0 0
        %2035 = vmatpush1.bf16.msra.mxu0 %v2001
        %2036 = vmatprep.subr.bf16.mxu0 0
        %2037 = vmatpush1.bf16.msra.mxu0 %v1999
        %2038 = vmatprep.subr.bf16.mxu0 0
        %2039 = vmatpush2.bf16.msra.mxu0 0
        %2040 = vmatprep.subr.bf16.mxu0 0
        %2041 = vmatpush2.bf16.msra.mxu0 0
        %2042 = vmatprep.subr.bf16.mxu0 0
        %2043 = vmatpush2.bf16.msra.mxu0 0
        %2044 = vmatprep.subr.bf16.mxu0 0
        %2045 = vmatpush2.bf16.msra.mxu0 0
        %2046 = vmatprep.subr.bf16.mxu0 0
        %2047 = vmatpush2.bf16.msra.mxu0 0
        %2048 = vmatprep.subr.bf16.mxu0 0
        %2049 = vmatpush2.bf16.msra.mxu0 0
        %2050 = vmatprep.subr.bf16.mxu0 0
        %2051 = vmatpush2.bf16.msra.mxu0 0
        %2052 = vmatprep.subr.bf16.mxu0 0
        %2053 = vmatpush2.bf16.msra.mxu0 0
        %2054 = vmatprep.mubr.bf16.mxu0 0
        %2055 = vmatmul.mubr.bf16.gmra.mxu0 %v1982
        %v2056 = vpop.f32.mrf.mxu0
        %v2057 = vadd.f32 0.0, %v2056
        %v2058 = vpop.f32.mrf.mxu0
        %v2059 = vpop.f32.mrf.mxu0
        %v2060 = vadd.f32 0.0, %v2059
        %v2061 = vpop.f32.mrf.mxu0
        %2062 = vmatprep.mubr.bf16.mxu0 0
        %2063 = vmatmul.mubr.bf16.gmra.mxu0 %v1983
        %v2064 = vpop.f32.mrf.mxu0
        %v2065 = vadd.f32 0.0, %v2064
        %v2066 = vpop.f32.mrf.mxu0
        %v2067 = vpop.f32.mrf.mxu0
        %v2068 = vadd.f32 0.0, %v2067
        %v2069 = vpop.f32.mrf.mxu0
        %2070 = vmatprep.mubr.bf16.mxu0 0
        %2071 = vmatmul.mubr.bf16.gmra.mxu0 %v1984
        %v2072 = vpop.f32.mrf.mxu0
        %v2073 = vadd.f32 0.0, %v2072
        %v2074 = vpop.f32.mrf.mxu0
        %v2075 = vpop.f32.mrf.mxu0
        %v2076 = vadd.f32 0.0, %v2075
        %v2077 = vpop.f32.mrf.mxu0
        %2078 = vmatprep.mubr.bf16.mxu0 0
        %2079 = vmatmul.mubr.bf16.gmra.mxu0 %v1985
        %v2080 = vpop.f32.mrf.mxu0
        %v2081 = vadd.f32 0.0, %v2080
        %v2082 = vpop.f32.mrf.mxu0
        %v2083 = vpop.f32.mrf.mxu0
        %v2084 = vadd.f32 0.0, %v2083
        %v2085 = vpop.f32.mrf.mxu0
        %2086 = vmatprep.mubr.bf16.mxu0 0
        %2087 = vmatmul.mubr.bf16.gmra.mxu0 %v1986
        %v2088 = vpop.f32.mrf.mxu0
        %v2089 = vadd.f32 0.0, %v2088
        %v2090 = vpop.f32.mrf.mxu0
        %v2091 = vpop.f32.mrf.mxu0
        %v2092 = vadd.f32 0.0, %v2091
        %v2093 = vpop.f32.mrf.mxu0
        %2094 = vmatprep.mubr.bf16.mxu0 0
        %2095 = vmatmul.mubr.bf16.gmra.mxu0 %v1987
        %v2096 = vpop.f32.mrf.mxu0
        %v2097 = vadd.f32 0.0, %v2096
        %v2098 = vpop.f32.mrf.mxu0
        %v2099 = vpop.f32.mrf.mxu0
        %v2100 = vadd.f32 0.0, %v2099
        %v2101 = vpop.f32.mrf.mxu0
        %2102 = vmatprep.mubr.bf16.mxu0 0
        %2103 = vmatmul.mubr.bf16.gmra.mxu0 %v1988
        %v2104 = vpop.f32.mrf.mxu0
        %v2105 = vadd.f32 0.0, %v2104
        %v2106 = vpop.f32.mrf.mxu0
        %v2107 = vpop.f32.mrf.mxu0
        %v2108 = vadd.f32 0.0, %v2107
        %v2109 = vpop.f32.mrf.mxu0
        %2110 = vmatprep.mubr.bf16.mxu0 0
        %2111 = vmatmul.mubr.bf16.gmra.mxu0 %v1989
        %v2112 = vpop.f32.mrf.mxu0
        %v2113 = vadd.f32 0.0, %v2112
        %v2114 = vpop.f32.mrf.mxu0
        %v2115 = vpop.f32.mrf.mxu0
        %v2116 = vadd.f32 0.0, %v2115
        %v2117 = vpop.f32.mrf.mxu0
        %2118 = vdwg.mxu0
        %v2119 = vrcp.pop %v1951
        %v2120 = vrcp.pop %v1953
        %v2121 = vrcp.pop %v1955
        %v2122 = vrcp.pop %v1957
        %v2123 = vrcp.pop %v1959
        %v2124 = vrcp.pop %v1961
        %v2125 = vrcp.pop %v1963
        %v2126 = vrcp.pop %v1965
        %v2127 = vrcp.pop %v1967
        %v2128 = vrcp.pop %v1969
        %v2129 = vrcp.pop %v1971
        %v2130 = vrcp.pop %v1973
        %v2131 = vrcp.pop %v1975
        %v2132 = vrcp.pop %v1977
        %v2133 = vrcp.pop %v1979
        %v2134 = vrcp.pop %v1981
        %v2135 = vmul.f32 %v2057, %v2119
        %v2136 = vmul.f32 %v2060, %v2120
        %v2137 = vmul.f32 %v2065, %v2121
        %v2138 = vmul.f32 %v2068, %v2122
        %v2139 = vmul.f32 %v2073, %v2123
        %v2140 = vmul.f32 %v2076, %v2124
        %v2141 = vmul.f32 %v2081, %v2125
        %v2142 = vmul.f32 %v2084, %v2126
        %v2143 = vmul.f32 %v2089, %v2127
        %v2144 = vmul.f32 %v2092, %v2128
        %v2145 = vmul.f32 %v2097, %v2129
        %v2146 = vmul.f32 %v2100, %v2130
        %v2147 = vmul.f32 %v2105, %v2131
        %v2148 = vmul.f32 %v2108, %v2132
        %v2149 = vmul.f32 %v2113, %v2133
        %v2150 = vmul.f32 %v2116, %v2134
        %v2151 = vpack.c.bf16 %v2136, %v2135
        %v2152 = vpack.c.bf16 %v2138, %v2137
        %v2153 = vpack.c.bf16 %v2140, %v2139
        %v2154 = vpack.c.bf16 %v2142, %v2141
        %v2155 = vpack.c.bf16 %v2144, %v2143
        %v2156 = vpack.c.bf16 %v2146, %v2145
        %v2157 = vpack.c.bf16 %v2148, %v2147
        %v2158 = vpack.c.bf16 %v2150, %v2149
        %v2167 = vunpack.c.l.b16 %v2151
        %v2168 = vunpack.c.h.b16 %v2151
        %v2169 = vunpack.c.l.b16 %v2152
        %v2170 = vunpack.c.h.b16 %v2152
        %v2171 = vunpack.c.l.b16 %v2153
        %v2172 = vunpack.c.h.b16 %v2153
        %v2173 = vunpack.c.l.b16 %v2154
        %v2174 = vunpack.c.h.b16 %v2154
        %v2175 = vunpack.c.l.b16 %v2155
        %v2176 = vunpack.c.h.b16 %v2155
        %v2177 = vunpack.c.l.b16 %v2156
        %v2178 = vunpack.c.h.b16 %v2156
        %v2179 = vunpack.c.l.b16 %v2157
        %v2180 = vunpack.c.h.b16 %v2157
        %v2181 = vunpack.c.l.b16 %v2158
        %v2182 = vunpack.c.h.b16 %v2158
        %v2183 = vpack.c.b16 %v2167, %v2167
        %v2184 = vpack.c.b16 %v2168, %v2168
        %v2185 = vpack.c.b16 %v2169, %v2169
        %v2186 = vpack.c.b16 %v2170, %v2170
        %v2187 = vpack.c.b16 %v2171, %v2171
        %v2188 = vpack.c.b16 %v2172, %v2172
        %v2189 = vpack.c.b16 %v2173, %v2173
        %v2190 = vpack.c.b16 %v2174, %v2174
        %v2191 = vpack.c.b16 %v2175, %v2175
        %v2192 = vpack.c.b16 %v2176, %v2176
        %v2193 = vpack.c.b16 %v2177, %v2177
        %v2194 = vpack.c.b16 %v2178, %v2178
        %v2195 = vpack.c.b16 %v2179, %v2179
        %v2196 = vpack.c.b16 %v2180, %v2180
        %v2197 = vpack.c.b16 %v2181, %v2181
        %v2198 = vpack.c.b16 %v2182, %v2182
        %2199 = vrot.lane.b32.xlu0 %v2183, 32
        %v2200 = vpop.permute.xlu0 %2199
        %2201 = vrot.lane.b32.xlu0 %v2184, 32
        %v2202 = vpop.permute.xlu0 %2201
        %2203 = vrot.lane.b32.xlu0 %v2185, 32
        %v2204 = vpop.permute.xlu0 %2203
        %2205 = vrot.lane.b32.xlu0 %v2186, 32
        %v2206 = vpop.permute.xlu0 %2205
        %2207 = vrot.lane.b32.xlu0 %v2187, 32
        %v2208 = vpop.permute.xlu0 %2207
        %2209 = vrot.lane.b32.xlu0 %v2188, 32
        %v2210 = vpop.permute.xlu0 %2209
        %2211 = vrot.lane.b32.xlu0 %v2189, 32
        %v2212 = vpop.permute.xlu0 %2211
        %2213 = vrot.lane.b32.xlu0 %v2190, 32
        %v2214 = vpop.permute.xlu0 %2213
        %2215 = vrot.lane.b32.xlu0 %v2191, 32
        %v2216 = vpop.permute.xlu0 %2215
        %2217 = vrot.lane.b32.xlu0 %v2192, 32
        %v2218 = vpop.permute.xlu0 %2217
        %2219 = vrot.lane.b32.xlu0 %v2193, 32
        %v2220 = vpop.permute.xlu0 %2219
        %2221 = vrot.lane.b32.xlu0 %v2194, 32
        %v2222 = vpop.permute.xlu0 %2221
        %2223 = vrot.lane.b32.xlu0 %v2195, 32
        %v2224 = vpop.permute.xlu0 %2223
        %2225 = vrot.lane.b32.xlu0 %v2196, 32
        %v2226 = vpop.permute.xlu0 %2225
        %2227 = vrot.lane.b32.xlu0 %v2197, 32
        %v2228 = vpop.permute.xlu0 %2227
        %2229 = vrot.lane.b32.xlu0 %v2198, 32
        %v2230 = vpop.permute.xlu0 %2229
        %vm2247 = vcmask 519424
        %2248 = vst.msk [vmem:[#allocation2] sm:$0xf] %vm2247, %v2200
        %2249 = vst.msk [vmem:[#allocation2 + $0x4] sm:$0xf] %vm2247, %v2202
        %2250 = vst.msk [vmem:[#allocation2 + $0x8] sm:$0xf] %vm2247, %v2204
        %2251 = vst.msk [vmem:[#allocation2 + $0xc] sm:$0xf] %vm2247, %v2206
        %2252 = vst.msk [vmem:[#allocation2 + $0x10] sm:$0xf] %vm2247, %v2208
        %2253 = vst.msk [vmem:[#allocation2 + $0x14] sm:$0xf] %vm2247, %v2210
        %2254 = vst.msk [vmem:[#allocation2 + $0x18] sm:$0xf] %vm2247, %v2212
        %2255 = vst.msk [vmem:[#allocation2 + $0x1c] sm:$0xf] %vm2247, %v2214
        %2256 = vst.msk [vmem:[#allocation2 + $0x20] sm:$0xf] %vm2247, %v2216
        %2257 = vst.msk [vmem:[#allocation2 + $0x24] sm:$0xf] %vm2247, %v2218
        %2258 = vst.msk [vmem:[#allocation2 + $0x28] sm:$0xf] %vm2247, %v2220
        %2259 = vst.msk [vmem:[#allocation2 + $0x2c] sm:$0xf] %vm2247, %v2222
        %2260 = vst.msk [vmem:[#allocation2 + $0x30] sm:$0xf] %vm2247, %v2224
        %2261 = vst.msk [vmem:[#allocation2 + $0x34] sm:$0xf] %vm2247, %v2226
        %2262 = vst.msk [vmem:[#allocation2 + $0x38] sm:$0xf] %vm2247, %v2228
        %2263 = vst.msk [vmem:[#allocation2 + $0x3c] sm:$0xf] %vm2247, %v2230
        %2264 = vrot.lane.b32.xlu0 %v1177, 64
        %v2265 = vpop.permute.xlu0 %2264
        %2266 = vrot.lane.b32.xlu0 %v1178, 64
        %v2267 = vpop.permute.xlu0 %2266
        %2268 = vrot.lane.b32.xlu0 %v1179, 64
        %v2269 = vpop.permute.xlu0 %2268
        %2270 = vrot.lane.b32.xlu0 %v1180, 64
        %v2271 = vpop.permute.xlu0 %2270
        %2272 = vrot.lane.b32.xlu0 %v1181, 64
        %v2273 = vpop.permute.xlu0 %2272
        %2274 = vrot.lane.b32.xlu0 %v1182, 64
        %v2275 = vpop.permute.xlu0 %2274
        %2276 = vrot.lane.b32.xlu0 %v1183, 64
        %v2277 = vpop.permute.xlu0 %2276
        %2278 = vrot.lane.b32.xlu0 %v1184, 64
        %v2279 = vpop.permute.xlu0 %2278
        %2280 = vrot.lane.b32.xlu0 %v1185, 64
        %v2281 = vpop.permute.xlu0 %2280
        %2282 = vrot.lane.b32.xlu0 %v1186, 64
        %v2283 = vpop.permute.xlu0 %2282
        %2284 = vrot.lane.b32.xlu0 %v1187, 64
        %v2285 = vpop.permute.xlu0 %2284
        %2286 = vrot.lane.b32.xlu0 %v1188, 64
        %v2287 = vpop.permute.xlu0 %2286
        %2288 = vrot.lane.b32.xlu0 %v1189, 64
        %v2289 = vpop.permute.xlu0 %2288
        %2290 = vrot.lane.b32.xlu0 %v1190, 64
        %v2291 = vpop.permute.xlu0 %2290
        %2292 = vrot.lane.b32.xlu0 %v1191, 64
        %v2293 = vpop.permute.xlu0 %2292
        %2294 = vrot.lane.b32.xlu0 %v1192, 64
        %v2295 = vpop.permute.xlu0 %2294
        %v2297 = vsel %vm1193, %v2265, 0
        %v2300 = vsel %vm1193, %v2267, 0
        %v2303 = vsel %vm1193, %v2269, 0
        %v2306 = vsel %vm1193, %v2271, 0
        %v2309 = vsel %vm1193, %v2273, 0
        %v2312 = vsel %vm1193, %v2275, 0
        %v2315 = vsel %vm1193, %v2277, 0
        %v2318 = vsel %vm1193, %v2279, 0
        %v2321 = vsel %vm1193, %v2281, 0
        %v2324 = vsel %vm1193, %v2283, 0
        %v2327 = vsel %vm1193, %v2285, 0
        %v2330 = vsel %vm1193, %v2287, 0
        %v2333 = vsel %vm1193, %v2289, 0
        %v2336 = vsel %vm1193, %v2291, 0
        %v2339 = vsel %vm1193, %v2293, 0
        %v2342 = vsel %vm1193, %v2295, 0
        %2344 = vmatprep.subr.bf16.mxu0 0
        %2345 = vmatpush1.bf16.xpose.msra.mxu0 %v2342
        %2346 = vmatprep.subr.bf16.mxu0 0
        %2347 = vmatpush1.bf16.xpose.msra.mxu0 %v2339
        %2348 = vmatprep.subr.bf16.mxu0 0
        %2349 = vmatpush1.bf16.xpose.msra.mxu0 %v2336
        %2350 = vmatprep.subr.bf16.mxu0 0
        %2351 = vmatpush1.bf16.xpose.msra.mxu0 %v2333
        %2352 = vmatprep.subr.bf16.mxu0 0
        %2353 = vmatpush1.bf16.xpose.msra.mxu0 %v2330
        %2354 = vmatprep.subr.bf16.mxu0 0
        %2355 = vmatpush1.bf16.xpose.msra.mxu0 %v2327
        %2356 = vmatprep.subr.bf16.mxu0 0
        %2357 = vmatpush1.bf16.xpose.msra.mxu0 %v2324
        %2358 = vmatprep.subr.bf16.mxu0 0
        %2359 = vmatpush1.bf16.xpose.msra.mxu0 %v2321
        %2360 = vmatprep.subr.bf16.mxu0 0
        %2361 = vmatpush2.bf16.xpose.msra.mxu0 0
        %2362 = vmatprep.subr.bf16.mxu0 0
        %2363 = vmatpush2.bf16.xpose.msra.mxu0 0
        %2364 = vmatprep.subr.bf16.mxu0 0
        %2365 = vmatpush2.bf16.xpose.msra.mxu0 0
        %2366 = vmatprep.subr.bf16.mxu0 0
        %2367 = vmatpush2.bf16.xpose.msra.mxu0 0
        %2368 = vmatprep.subr.bf16.mxu0 0
        %2369 = vmatpush2.bf16.xpose.msra.mxu0 0
        %2370 = vmatprep.subr.bf16.mxu0 0
        %2371 = vmatpush2.bf16.xpose.msra.mxu0 0
        %2372 = vmatprep.subr.bf16.mxu0 0
        %2373 = vmatpush2.bf16.xpose.msra.mxu0 0
        %2374 = vmatprep.subr.bf16.mxu0 0
        %2375 = vmatpush2.bf16.xpose.msra.mxu0 0
        %2376 = vmatprep.mubr.bf16.mxu0 0
        %2377 = vmatmul.mubr.bf16.gmra.mxu0 %v2297
        %v2378 = vpop.f32.mrf.mxu0
        %v2379 = vadd.f32 0.0, %v2378
        %v2380 = vpop.f32.mrf.mxu0
        %v2381 = vpop.f32.mrf.mxu0
        %v2382 = vadd.f32 0.0, %v2381
        %v2383 = vpop.f32.mrf.mxu0
        %2384 = vmatprep.mubr.bf16.mxu0 0
        %2385 = vmatmul.mubr.bf16.gmra.mxu0 %v2300
        %v2386 = vpop.f32.mrf.mxu0
        %v2387 = vadd.f32 0.0, %v2386
        %v2388 = vpop.f32.mrf.mxu0
        %v2389 = vpop.f32.mrf.mxu0
        %v2390 = vadd.f32 0.0, %v2389
        %v2391 = vpop.f32.mrf.mxu0
        %2392 = vmatprep.mubr.bf16.mxu0 0
        %2393 = vmatmul.mubr.bf16.gmra.mxu0 %v2303
        %v2394 = vpop.f32.mrf.mxu0
        %v2395 = vadd.f32 0.0, %v2394
        %v2396 = vpop.f32.mrf.mxu0
        %v2397 = vpop.f32.mrf.mxu0
        %v2398 = vadd.f32 0.0, %v2397
        %v2399 = vpop.f32.mrf.mxu0
        %2400 = vmatprep.mubr.bf16.mxu0 0
        %2401 = vmatmul.mubr.bf16.gmra.mxu0 %v2306
        %v2402 = vpop.f32.mrf.mxu0
        %v2403 = vadd.f32 0.0, %v2402
        %v2404 = vpop.f32.mrf.mxu0
        %v2405 = vpop.f32.mrf.mxu0
        %v2406 = vadd.f32 0.0, %v2405
        %v2407 = vpop.f32.mrf.mxu0
        %2408 = vmatprep.mubr.bf16.mxu0 0
        %2409 = vmatmul.mubr.bf16.gmra.mxu0 %v2309
        %v2410 = vpop.f32.mrf.mxu0
        %v2411 = vadd.f32 0.0, %v2410
        %v2412 = vpop.f32.mrf.mxu0
        %v2413 = vpop.f32.mrf.mxu0
        %v2414 = vadd.f32 0.0, %v2413
        %v2415 = vpop.f32.mrf.mxu0
        %2416 = vmatprep.mubr.bf16.mxu0 0
        %2417 = vmatmul.mubr.bf16.gmra.mxu0 %v2312
        %v2418 = vpop.f32.mrf.mxu0
        %v2419 = vadd.f32 0.0, %v2418
        %v2420 = vpop.f32.mrf.mxu0
        %v2421 = vpop.f32.mrf.mxu0
        %v2422 = vadd.f32 0.0, %v2421
        %v2423 = vpop.f32.mrf.mxu0
        %2424 = vmatprep.mubr.bf16.mxu0 0
        %2425 = vmatmul.mubr.bf16.gmra.mxu0 %v2315
        %v2426 = vpop.f32.mrf.mxu0
        %v2427 = vadd.f32 0.0, %v2426
        %v2428 = vpop.f32.mrf.mxu0
        %v2429 = vpop.f32.mrf.mxu0
        %v2430 = vadd.f32 0.0, %v2429
        %v2431 = vpop.f32.mrf.mxu0
        %2432 = vmatprep.mubr.bf16.mxu0 0
        %2433 = vmatmul.mubr.bf16.gmra.mxu0 %v2318
        %v2434 = vpop.f32.mrf.mxu0
        %v2435 = vadd.f32 0.0, %v2434
        %v2436 = vpop.f32.mrf.mxu0
        %v2437 = vpop.f32.mrf.mxu0
        %v2438 = vadd.f32 0.0, %v2437
        %v2439 = vpop.f32.mrf.mxu0
        %2440 = vdwg.mxu0
        %2441 = vmax.xlane.f32.xlu0 %v2379
        %v2442 = vpop.xlane.xlu0 %2441
        %2443 = vmax.xlane.f32.xlu0 %v2382
        %v2444 = vpop.xlane.xlu0 %2443
        %2445 = vmax.xlane.f32.xlu0 %v2387
        %v2446 = vpop.xlane.xlu0 %2445
        %2447 = vmax.xlane.f32.xlu0 %v2390
        %v2448 = vpop.xlane.xlu0 %2447
        %2449 = vmax.xlane.f32.xlu0 %v2395
        %v2450 = vpop.xlane.xlu0 %2449
        %2451 = vmax.xlane.f32.xlu0 %v2398
        %v2452 = vpop.xlane.xlu0 %2451
        %2453 = vmax.xlane.f32.xlu0 %v2403
        %v2454 = vpop.xlane.xlu0 %2453
        %2455 = vmax.xlane.f32.xlu0 %v2406
        %v2456 = vpop.xlane.xlu0 %2455
        %2457 = vmax.xlane.f32.xlu0 %v2411
        %v2458 = vpop.xlane.xlu0 %2457
        %2459 = vmax.xlane.f32.xlu0 %v2414
        %v2460 = vpop.xlane.xlu0 %2459
        %2461 = vmax.xlane.f32.xlu0 %v2419
        %v2462 = vpop.xlane.xlu0 %2461
        %2463 = vmax.xlane.f32.xlu0 %v2422
        %v2464 = vpop.xlane.xlu0 %2463
        %2465 = vmax.xlane.f32.xlu0 %v2427
        %v2466 = vpop.xlane.xlu0 %2465
        %2467 = vmax.xlane.f32.xlu0 %v2430
        %v2468 = vpop.xlane.xlu0 %2467
        %2469 = vmax.xlane.f32.xlu0 %v2435
        %v2470 = vpop.xlane.xlu0 %2469
        %2471 = vmax.xlane.f32.xlu0 %v2438
        %v2472 = vpop.xlane.xlu0 %2471
        %v2473 = vsub.f32 %v2379, %v2442
        %v2474 = vsub.f32 %v2382, %v2444
        %v2475 = vsub.f32 %v2387, %v2446
        %v2476 = vsub.f32 %v2390, %v2448
        %v2477 = vsub.f32 %v2395, %v2450
        %v2478 = vsub.f32 %v2398, %v2452
        %v2479 = vsub.f32 %v2403, %v2454
        %v2480 = vsub.f32 %v2406, %v2456
        %v2481 = vsub.f32 %v2411, %v2458
        %v2482 = vsub.f32 %v2414, %v2460
        %v2483 = vsub.f32 %v2419, %v2462
        %v2484 = vsub.f32 %v2422, %v2464
        %v2485 = vsub.f32 %v2427, %v2466
        %v2486 = vsub.f32 %v2430, %v2468
        %v2487 = vsub.f32 %v2435, %v2470
        %v2488 = vsub.f32 %v2438, %v2472
        %v2489 = vmul.f32 %v2473, 1.442695
        %v2490 = vpow.pop %v2489
        %v2491 = vmul.f32 %v2474, 1.442695
        %v2492 = vpow.pop %v2491
        %v2493 = vmul.f32 %v2475, 1.442695
        %v2494 = vpow.pop %v2493
        %v2495 = vmul.f32 %v2476, 1.442695
        %v2496 = vpow.pop %v2495
        %v2497 = vmul.f32 %v2477, 1.442695
        %v2498 = vpow.pop %v2497
        %v2499 = vmul.f32 %v2478, 1.442695
        %v2500 = vpow.pop %v2499
        %v2501 = vmul.f32 %v2479, 1.442695
        %v2502 = vpow.pop %v2501
        %v2503 = vmul.f32 %v2480, 1.442695
        %v2504 = vpow.pop %v2503
        %v2505 = vmul.f32 %v2481, 1.442695
        %v2506 = vpow.pop %v2505
        %v2507 = vmul.f32 %v2482, 1.442695
        %v2508 = vpow.pop %v2507
        %v2509 = vmul.f32 %v2483, 1.442695
        %v2510 = vpow.pop %v2509
        %v2511 = vmul.f32 %v2484, 1.442695
        %v2512 = vpow.pop %v2511
        %v2513 = vmul.f32 %v2485, 1.442695
        %v2514 = vpow.pop %v2513
        %v2515 = vmul.f32 %v2486, 1.442695
        %v2516 = vpow.pop %v2515
        %v2517 = vmul.f32 %v2487, 1.442695
        %v2518 = vpow.pop %v2517
        %v2519 = vmul.f32 %v2488, 1.442695
        %v2520 = vpow.pop %v2519
        %2521 = vadd.xlane.f32.xlu0 %v2490
        %v2522 = vpop.xlane.xlu0 %2521
        %2523 = vadd.xlane.f32.xlu0 %v2492
        %v2524 = vpop.xlane.xlu0 %2523
        %2525 = vadd.xlane.f32.xlu0 %v2494
        %v2526 = vpop.xlane.xlu0 %2525
        %2527 = vadd.xlane.f32.xlu0 %v2496
        %v2528 = vpop.xlane.xlu0 %2527
        %2529 = vadd.xlane.f32.xlu0 %v2498
        %v2530 = vpop.xlane.xlu0 %2529
        %2531 = vadd.xlane.f32.xlu0 %v2500
        %v2532 = vpop.xlane.xlu0 %2531
        %2533 = vadd.xlane.f32.xlu0 %v2502
        %v2534 = vpop.xlane.xlu0 %2533
        %2535 = vadd.xlane.f32.xlu0 %v2504
        %v2536 = vpop.xlane.xlu0 %2535
        %2537 = vadd.xlane.f32.xlu0 %v2506
        %v2538 = vpop.xlane.xlu0 %2537
        %2539 = vadd.xlane.f32.xlu0 %v2508
        %v2540 = vpop.xlane.xlu0 %2539
        %2541 = vadd.xlane.f32.xlu0 %v2510
        %v2542 = vpop.xlane.xlu0 %2541
        %2543 = vadd.xlane.f32.xlu0 %v2512
        %v2544 = vpop.xlane.xlu0 %2543
        %2545 = vadd.xlane.f32.xlu0 %v2514
        %v2546 = vpop.xlane.xlu0 %2545
        %2547 = vadd.xlane.f32.xlu0 %v2516
        %v2548 = vpop.xlane.xlu0 %2547
        %2549 = vadd.xlane.f32.xlu0 %v2518
        %v2550 = vpop.xlane.xlu0 %2549
        %2551 = vadd.xlane.f32.xlu0 %v2520
        %v2552 = vpop.xlane.xlu0 %2551
        %v2553 = vpack.c.bf16 %v2492, %v2490
        %v2554 = vpack.c.bf16 %v2496, %v2494
        %v2555 = vpack.c.bf16 %v2500, %v2498
        %v2556 = vpack.c.bf16 %v2504, %v2502
        %v2557 = vpack.c.bf16 %v2508, %v2506
        %v2558 = vpack.c.bf16 %v2512, %v2510
        %v2559 = vpack.c.bf16 %v2516, %v2514
        %v2560 = vpack.c.bf16 %v2520, %v2518
        %2561 = vrot.lane.b32.xlu0 %v1459, 64
        %v2562 = vpop.permute.xlu0 %2561
        %2563 = vrot.lane.b32.xlu0 %v1460, 64
        %v2564 = vpop.permute.xlu0 %2563
        %2565 = vrot.lane.b32.xlu0 %v1461, 64
        %v2566 = vpop.permute.xlu0 %2565
        %2567 = vrot.lane.b32.xlu0 %v1462, 64
        %v2568 = vpop.permute.xlu0 %2567
        %2569 = vrot.lane.b32.xlu0 %v1463, 64
        %v2570 = vpop.permute.xlu0 %2569
        %2571 = vrot.lane.b32.xlu0 %v1464, 64
        %v2572 = vpop.permute.xlu0 %2571
        %2573 = vrot.lane.b32.xlu0 %v1465, 64
        %v2574 = vpop.permute.xlu0 %2573
        %2575 = vrot.lane.b32.xlu0 %v1466, 64
        %v2576 = vpop.permute.xlu0 %2575
        %2585 = vmatprep.subr.bf16.mxu0 0
        %2586 = vmatpush1.bf16.msra.mxu0 %v2576
        %2587 = vmatprep.subr.bf16.mxu0 0
        %2588 = vmatpush1.bf16.msra.mxu0 %v2574
        %2589 = vmatprep.subr.bf16.mxu0 0
        %2590 = vmatpush1.bf16.msra.mxu0 %v2572
        %2591 = vmatprep.subr.bf16.mxu0 0
        %2592 = vmatpush1.bf16.msra.mxu0 %v2570
        %2593 = vmatprep.subr.bf16.mxu0 0
        %2594 = vmatpush1.bf16.msra.mxu0 %v2568
        %2595 = vmatprep.subr.bf16.mxu0 0
        %2596 = vmatpush1.bf16.msra.mxu0 %v2566
        %2597 = vmatprep.subr.bf16.mxu0 0
        %2598 = vmatpush1.bf16.msra.mxu0 %v2564
        %2599 = vmatprep.subr.bf16.mxu0 0
        %2600 = vmatpush1.bf16.msra.mxu0 %v2562
        %2601 = vmatprep.subr.bf16.mxu0 0
        %2602 = vmatpush2.bf16.msra.mxu0 0
        %2603 = vmatprep.subr.bf16.mxu0 0
        %2604 = vmatpush2.bf16.msra.mxu0 0
        %2605 = vmatprep.subr.bf16.mxu0 0
        %2606 = vmatpush2.bf16.msra.mxu0 0
        %2607 = vmatprep.subr.bf16.mxu0 0
        %2608 = vmatpush2.bf16.msra.mxu0 0
        %2609 = vmatprep.subr.bf16.mxu0 0
        %2610 = vmatpush2.bf16.msra.mxu0 0
        %2611 = vmatprep.subr.bf16.mxu0 0
        %2612 = vmatpush2.bf16.msra.mxu0 0
        %2613 = vmatprep.subr.bf16.mxu0 0
        %2614 = vmatpush2.bf16.msra.mxu0 0
        %2615 = vmatprep.subr.bf16.mxu0 0
        %2616 = vmatpush2.bf16.msra.mxu0 0
        %2617 = vmatprep.mubr.bf16.mxu0 0
        %2618 = vmatmul.mubr.bf16.gmra.mxu0 %v2553
        %v2619 = vpop.f32.mrf.mxu0
        %v2620 = vadd.f32 0.0, %v2619
        %v2621 = vpop.f32.mrf.mxu0
        %v2622 = vpop.f32.mrf.mxu0
        %v2623 = vadd.f32 0.0, %v2622
        %v2624 = vpop.f32.mrf.mxu0
        %2625 = vmatprep.mubr.bf16.mxu0 0
        %2626 = vmatmul.mubr.bf16.gmra.mxu0 %v2554
        %v2627 = vpop.f32.mrf.mxu0
        %v2628 = vadd.f32 0.0, %v2627
        %v2629 = vpop.f32.mrf.mxu0
        %v2630 = vpop.f32.mrf.mxu0
        %v2631 = vadd.f32 0.0, %v2630
        %v2632 = vpop.f32.mrf.mxu0
        %2633 = vmatprep.mubr.bf16.mxu0 0
        %2634 = vmatmul.mubr.bf16.gmra.mxu0 %v2555
        %v2635 = vpop.f32.mrf.mxu0
        %v2636 = vadd.f32 0.0, %v2635
        %v2637 = vpop.f32.mrf.mxu0
        %v2638 = vpop.f32.mrf.mxu0
        %v2639 = vadd.f32 0.0, %v2638
        %v2640 = vpop.f32.mrf.mxu0
        %2641 = vmatprep.mubr.bf16.mxu0 0
        %2642 = vmatmul.mubr.bf16.gmra.mxu0 %v2556
        %v2643 = vpop.f32.mrf.mxu0
        %v2644 = vadd.f32 0.0, %v2643
        %v2645 = vpop.f32.mrf.mxu0
        %v2646 = vpop.f32.mrf.mxu0
        %v2647 = vadd.f32 0.0, %v2646
        %v2648 = vpop.f32.mrf.mxu0
        %2649 = vmatprep.mubr.bf16.mxu0 0
        %2650 = vmatmul.mubr.bf16.gmra.mxu0 %v2557
        %v2651 = vpop.f32.mrf.mxu0
        %v2652 = vadd.f32 0.0, %v2651
        %v2653 = vpop.f32.mrf.mxu0
        %v2654 = vpop.f32.mrf.mxu0
        %v2655 = vadd.f32 0.0, %v2654
        %v2656 = vpop.f32.mrf.mxu0
        %2657 = vmatprep.mubr.bf16.mxu0 0
        %2658 = vmatmul.mubr.bf16.gmra.mxu0 %v2558
        %v2659 = vpop.f32.mrf.mxu0
        %v2660 = vadd.f32 0.0, %v2659
        %v2661 = vpop.f32.mrf.mxu0
        %v2662 = vpop.f32.mrf.mxu0
        %v2663 = vadd.f32 0.0, %v2662
        %v2664 = vpop.f32.mrf.mxu0
        %2665 = vmatprep.mubr.bf16.mxu0 0
        %2666 = vmatmul.mubr.bf16.gmra.mxu0 %v2559
        %v2667 = vpop.f32.mrf.mxu0
        %v2668 = vadd.f32 0.0, %v2667
        %v2669 = vpop.f32.mrf.mxu0
        %v2670 = vpop.f32.mrf.mxu0
        %v2671 = vadd.f32 0.0, %v2670
        %v2672 = vpop.f32.mrf.mxu0
        %2673 = vmatprep.mubr.bf16.mxu0 0
        %2674 = vmatmul.mubr.bf16.gmra.mxu0 %v2560
        %v2675 = vpop.f32.mrf.mxu0
        %v2676 = vadd.f32 0.0, %v2675
        %v2677 = vpop.f32.mrf.mxu0
        %v2678 = vpop.f32.mrf.mxu0
        %v2679 = vadd.f32 0.0, %v2678
        %v2680 = vpop.f32.mrf.mxu0
        %2681 = vdwg.mxu0
        %v2682 = vrcp.pop %v2522
        %v2683 = vrcp.pop %v2524
        %v2684 = vrcp.pop %v2526
        %v2685 = vrcp.pop %v2528
        %v2686 = vrcp.pop %v2530
        %v2687 = vrcp.pop %v2532
        %v2688 = vrcp.pop %v2534
        %v2689 = vrcp.pop %v2536
        %v2690 = vrcp.pop %v2538
        %v2691 = vrcp.pop %v2540
        %v2692 = vrcp.pop %v2542
        %v2693 = vrcp.pop %v2544
        %v2694 = vrcp.pop %v2546
        %v2695 = vrcp.pop %v2548
        %v2696 = vrcp.pop %v2550
        %v2697 = vrcp.pop %v2552
        %v2698 = vmul.f32 %v2620, %v2682
        %v2699 = vmul.f32 %v2623, %v2683
        %v2700 = vmul.f32 %v2628, %v2684
        %v2701 = vmul.f32 %v2631, %v2685
        %v2702 = vmul.f32 %v2636, %v2686
        %v2703 = vmul.f32 %v2639, %v2687
        %v2704 = vmul.f32 %v2644, %v2688
        %v2705 = vmul.f32 %v2647, %v2689
        %v2706 = vmul.f32 %v2652, %v2690
        %v2707 = vmul.f32 %v2655, %v2691
        %v2708 = vmul.f32 %v2660, %v2692
        %v2709 = vmul.f32 %v2663, %v2693
        %v2710 = vmul.f32 %v2668, %v2694
        %v2711 = vmul.f32 %v2671, %v2695
        %v2712 = vmul.f32 %v2676, %v2696
        %v2713 = vmul.f32 %v2679, %v2697
        %v2714 = vpack.c.bf16 %v2699, %v2698
        %v2715 = vpack.c.bf16 %v2701, %v2700
        %v2716 = vpack.c.bf16 %v2703, %v2702
        %v2717 = vpack.c.bf16 %v2705, %v2704
        %v2718 = vpack.c.bf16 %v2707, %v2706
        %v2719 = vpack.c.bf16 %v2709, %v2708
        %v2720 = vpack.c.bf16 %v2711, %v2710
        %v2721 = vpack.c.bf16 %v2713, %v2712
        %v2730 = vunpack.c.l.b16 %v2714
        %v2731 = vunpack.c.h.b16 %v2714
        %v2732 = vunpack.c.l.b16 %v2715
        %v2733 = vunpack.c.h.b16 %v2715
        %v2734 = vunpack.c.l.b16 %v2716
        %v2735 = vunpack.c.h.b16 %v2716
        %v2736 = vunpack.c.l.b16 %v2717
        %v2737 = vunpack.c.h.b16 %v2717
        %v2738 = vunpack.c.l.b16 %v2718
        %v2739 = vunpack.c.h.b16 %v2718
        %v2740 = vunpack.c.l.b16 %v2719
        %v2741 = vunpack.c.h.b16 %v2719
        %v2742 = vunpack.c.l.b16 %v2720
        %v2743 = vunpack.c.h.b16 %v2720
        %v2744 = vunpack.c.l.b16 %v2721
        %v2745 = vunpack.c.h.b16 %v2721
        %v2746 = vpack.c.b16 %v2730, %v2730
        %v2747 = vpack.c.b16 %v2731, %v2731
        %v2748 = vpack.c.b16 %v2732, %v2732
        %v2749 = vpack.c.b16 %v2733, %v2733
        %v2750 = vpack.c.b16 %v2734, %v2734
        %v2751 = vpack.c.b16 %v2735, %v2735
        %v2752 = vpack.c.b16 %v2736, %v2736
        %v2753 = vpack.c.b16 %v2737, %v2737
        %v2754 = vpack.c.b16 %v2738, %v2738
        %v2755 = vpack.c.b16 %v2739, %v2739
        %v2756 = vpack.c.b16 %v2740, %v2740
        %v2757 = vpack.c.b16 %v2741, %v2741
        %v2758 = vpack.c.b16 %v2742, %v2742
        %v2759 = vpack.c.b16 %v2743, %v2743
        %v2760 = vpack.c.b16 %v2744, %v2744
        %v2761 = vpack.c.b16 %v2745, %v2745
        %2762 = vrot.lane.b32.xlu0 %v2746, 64
        %v2763 = vpop.permute.xlu0 %2762
        %2764 = vrot.lane.b32.xlu0 %v2747, 64
        %v2765 = vpop.permute.xlu0 %2764
        %2766 = vrot.lane.b32.xlu0 %v2748, 64
        %v2767 = vpop.permute.xlu0 %2766
        %2768 = vrot.lane.b32.xlu0 %v2749, 64
        %v2769 = vpop.permute.xlu0 %2768
        %2770 = vrot.lane.b32.xlu0 %v2750, 64
        %v2771 = vpop.permute.xlu0 %2770
        %2772 = vrot.lane.b32.xlu0 %v2751, 64
        %v2773 = vpop.permute.xlu0 %2772
        %2774 = vrot.lane.b32.xlu0 %v2752, 64
        %v2775 = vpop.permute.xlu0 %2774
        %2776 = vrot.lane.b32.xlu0 %v2753, 64
        %v2777 = vpop.permute.xlu0 %2776
        %2778 = vrot.lane.b32.xlu0 %v2754, 64
        %v2779 = vpop.permute.xlu0 %2778
        %2780 = vrot.lane.b32.xlu0 %v2755, 64
        %v2781 = vpop.permute.xlu0 %2780
        %2782 = vrot.lane.b32.xlu0 %v2756, 64
        %v2783 = vpop.permute.xlu0 %2782
        %2784 = vrot.lane.b32.xlu0 %v2757, 64
        %v2785 = vpop.permute.xlu0 %2784
        %2786 = vrot.lane.b32.xlu0 %v2758, 64
        %v2787 = vpop.permute.xlu0 %2786
        %2788 = vrot.lane.b32.xlu0 %v2759, 64
        %v2789 = vpop.permute.xlu0 %2788
        %2790 = vrot.lane.b32.xlu0 %v2760, 64
        %v2791 = vpop.permute.xlu0 %2790
        %2792 = vrot.lane.b32.xlu0 %v2761, 64
        %v2793 = vpop.permute.xlu0 %2792
        %vm2810 = vcmask 781824
        %2811 = vst.msk [vmem:[#allocation2] sm:$0xf] %vm2810, %v2763
        %2812 = vst.msk [vmem:[#allocation2 + $0x4] sm:$0xf] %vm2810, %v2765
        %2813 = vst.msk [vmem:[#allocation2 + $0x8] sm:$0xf] %vm2810, %v2767
        %2814 = vst.msk [vmem:[#allocation2 + $0xc] sm:$0xf] %vm2810, %v2769
        %2815 = vst.msk [vmem:[#allocation2 + $0x10] sm:$0xf] %vm2810, %v2771
        %2816 = vst.msk [vmem:[#allocation2 + $0x14] sm:$0xf] %vm2810, %v2773
        %2817 = vst.msk [vmem:[#allocation2 + $0x18] sm:$0xf] %vm2810, %v2775
        %2818 = vst.msk [vmem:[#allocation2 + $0x1c] sm:$0xf] %vm2810, %v2777
        %2819 = vst.msk [vmem:[#allocation2 + $0x20] sm:$0xf] %vm2810, %v2779
        %2820 = vst.msk [vmem:[#allocation2 + $0x24] sm:$0xf] %vm2810, %v2781
        %2821 = vst.msk [vmem:[#allocation2 + $0x28] sm:$0xf] %vm2810, %v2783
        %2822 = vst.msk [vmem:[#allocation2 + $0x2c] sm:$0xf] %vm2810, %v2785
        %2823 = vst.msk [vmem:[#allocation2 + $0x30] sm:$0xf] %vm2810, %v2787
        %2824 = vst.msk [vmem:[#allocation2 + $0x34] sm:$0xf] %vm2810, %v2789
        %2825 = vst.msk [vmem:[#allocation2 + $0x38] sm:$0xf] %vm2810, %v2791
        %2826 = vst.msk [vmem:[#allocation2 + $0x3c] sm:$0xf] %vm2810, %v2793
        %2827 = vrot.lane.b32.xlu0 %v1177, 32
        %v2828 = vpop.permute.xlu0 %2827
        %2829 = vrot.lane.b32.xlu0 %v1178, 32
        %v2830 = vpop.permute.xlu0 %2829
        %2831 = vrot.lane.b32.xlu0 %v1179, 32
        %v2832 = vpop.permute.xlu0 %2831
        %2833 = vrot.lane.b32.xlu0 %v1180, 32
        %v2834 = vpop.permute.xlu0 %2833
        %2835 = vrot.lane.b32.xlu0 %v1181, 32
        %v2836 = vpop.permute.xlu0 %2835
        %2837 = vrot.lane.b32.xlu0 %v1182, 32
        %v2838 = vpop.permute.xlu0 %2837
        %2839 = vrot.lane.b32.xlu0 %v1183, 32
        %v2840 = vpop.permute.xlu0 %2839
        %2841 = vrot.lane.b32.xlu0 %v1184, 32
        %v2842 = vpop.permute.xlu0 %2841
        %2843 = vrot.lane.b32.xlu0 %v1185, 32
        %v2844 = vpop.permute.xlu0 %2843
        %2845 = vrot.lane.b32.xlu0 %v1186, 32
        %v2846 = vpop.permute.xlu0 %2845
        %2847 = vrot.lane.b32.xlu0 %v1187, 32
        %v2848 = vpop.permute.xlu0 %2847
        %2849 = vrot.lane.b32.xlu0 %v1188, 32
        %v2850 = vpop.permute.xlu0 %2849
        %2851 = vrot.lane.b32.xlu0 %v1189, 32
        %v2852 = vpop.permute.xlu0 %2851
        %2853 = vrot.lane.b32.xlu0 %v1190, 32
        %v2854 = vpop.permute.xlu0 %2853
        %2855 = vrot.lane.b32.xlu0 %v1191, 32
        %v2856 = vpop.permute.xlu0 %2855
        %2857 = vrot.lane.b32.xlu0 %v1192, 32
        %v2858 = vpop.permute.xlu0 %2857
        %v2860 = vsel %vm1193, %v2828, 0
        %v2863 = vsel %vm1193, %v2830, 0
        %v2866 = vsel %vm1193, %v2832, 0
        %v2869 = vsel %vm1193, %v2834, 0
        %v2872 = vsel %vm1193, %v2836, 0
        %v2875 = vsel %vm1193, %v2838, 0
        %v2878 = vsel %vm1193, %v2840, 0
        %v2881 = vsel %vm1193, %v2842, 0
        %v2884 = vsel %vm1193, %v2844, 0
        %v2887 = vsel %vm1193, %v2846, 0
        %v2890 = vsel %vm1193, %v2848, 0
        %v2893 = vsel %vm1193, %v2850, 0
        %v2896 = vsel %vm1193, %v2852, 0
        %v2899 = vsel %vm1193, %v2854, 0
        %v2902 = vsel %vm1193, %v2856, 0
        %v2905 = vsel %vm1193, %v2858, 0
        %2907 = vmatprep.subr.bf16.mxu0 0
        %2908 = vmatpush1.bf16.xpose.msra.mxu0 %v2905
        %2909 = vmatprep.subr.bf16.mxu0 0
        %2910 = vmatpush1.bf16.xpose.msra.mxu0 %v2902
        %2911 = vmatprep.subr.bf16.mxu0 0
        %2912 = vmatpush1.bf16.xpose.msra.mxu0 %v2899
        %2913 = vmatprep.subr.bf16.mxu0 0
        %2914 = vmatpush1.bf16.xpose.msra.mxu0 %v2896
        %2915 = vmatprep.subr.bf16.mxu0 0
        %2916 = vmatpush1.bf16.xpose.msra.mxu0 %v2893
        %2917 = vmatprep.subr.bf16.mxu0 0
        %2918 = vmatpush1.bf16.xpose.msra.mxu0 %v2890
        %2919 = vmatprep.subr.bf16.mxu0 0
        %2920 = vmatpush1.bf16.xpose.msra.mxu0 %v2887
        %2921 = vmatprep.subr.bf16.mxu0 0
        %2922 = vmatpush1.bf16.xpose.msra.mxu0 %v2884
        %2923 = vmatprep.subr.bf16.mxu0 0
        %2924 = vmatpush2.bf16.xpose.msra.mxu0 0
        %2925 = vmatprep.subr.bf16.mxu0 0
        %2926 = vmatpush2.bf16.xpose.msra.mxu0 0
        %2927 = vmatprep.subr.bf16.mxu0 0
        %2928 = vmatpush2.bf16.xpose.msra.mxu0 0
        %2929 = vmatprep.subr.bf16.mxu0 0
        %2930 = vmatpush2.bf16.xpose.msra.mxu0 0
        %2931 = vmatprep.subr.bf16.mxu0 0
        %2932 = vmatpush2.bf16.xpose.msra.mxu0 0
        %2933 = vmatprep.subr.bf16.mxu0 0
        %2934 = vmatpush2.bf16.xpose.msra.mxu0 0
        %2935 = vmatprep.subr.bf16.mxu0 0
        %2936 = vmatpush2.bf16.xpose.msra.mxu0 0
        %2937 = vmatprep.subr.bf16.mxu0 0
        %2938 = vmatpush2.bf16.xpose.msra.mxu0 0
        %2939 = vmatprep.mubr.bf16.mxu0 0
        %2940 = vmatmul.mubr.bf16.gmra.mxu0 %v2860
        %v2941 = vpop.f32.mrf.mxu0
        %v2942 = vadd.f32 0.0, %v2941
        %v2943 = vpop.f32.mrf.mxu0
        %v2944 = vpop.f32.mrf.mxu0
        %v2945 = vadd.f32 0.0, %v2944
        %v2946 = vpop.f32.mrf.mxu0
        %2947 = vmatprep.mubr.bf16.mxu0 0
        %2948 = vmatmul.mubr.bf16.gmra.mxu0 %v2863
        %v2949 = vpop.f32.mrf.mxu0
        %v2950 = vadd.f32 0.0, %v2949
        %v2951 = vpop.f32.mrf.mxu0
        %v2952 = vpop.f32.mrf.mxu0
        %v2953 = vadd.f32 0.0, %v2952
        %v2954 = vpop.f32.mrf.mxu0
        %2955 = vmatprep.mubr.bf16.mxu0 0
        %2956 = vmatmul.mubr.bf16.gmra.mxu0 %v2866
        %v2957 = vpop.f32.mrf.mxu0
        %v2958 = vadd.f32 0.0, %v2957
        %v2959 = vpop.f32.mrf.mxu0
        %v2960 = vpop.f32.mrf.mxu0
        %v2961 = vadd.f32 0.0, %v2960
        %v2962 = vpop.f32.mrf.mxu0
        %2963 = vmatprep.mubr.bf16.mxu0 0
        %2964 = vmatmul.mubr.bf16.gmra.mxu0 %v2869
        %v2965 = vpop.f32.mrf.mxu0
        %v2966 = vadd.f32 0.0, %v2965
        %v2967 = vpop.f32.mrf.mxu0
        %v2968 = vpop.f32.mrf.mxu0
        %v2969 = vadd.f32 0.0, %v2968
        %v2970 = vpop.f32.mrf.mxu0
        %2971 = vmatprep.mubr.bf16.mxu0 0
        %2972 = vmatmul.mubr.bf16.gmra.mxu0 %v2872
        %v2973 = vpop.f32.mrf.mxu0
        %v2974 = vadd.f32 0.0, %v2973
        %v2975 = vpop.f32.mrf.mxu0
        %v2976 = vpop.f32.mrf.mxu0
        %v2977 = vadd.f32 0.0, %v2976
        %v2978 = vpop.f32.mrf.mxu0
        %2979 = vmatprep.mubr.bf16.mxu0 0
        %2980 = vmatmul.mubr.bf16.gmra.mxu0 %v2875
        %v2981 = vpop.f32.mrf.mxu0
        %v2982 = vadd.f32 0.0, %v2981
        %v2983 = vpop.f32.mrf.mxu0
        %v2984 = vpop.f32.mrf.mxu0
        %v2985 = vadd.f32 0.0, %v2984
        %v2986 = vpop.f32.mrf.mxu0
        %2987 = vmatprep.mubr.bf16.mxu0 0
        %2988 = vmatmul.mubr.bf16.gmra.mxu0 %v2878
        %v2989 = vpop.f32.mrf.mxu0
        %v2990 = vadd.f32 0.0, %v2989
        %v2991 = vpop.f32.mrf.mxu0
        %v2992 = vpop.f32.mrf.mxu0
        %v2993 = vadd.f32 0.0, %v2992
        %v2994 = vpop.f32.mrf.mxu0
        %2995 = vmatprep.mubr.bf16.mxu0 0
        %2996 = vmatmul.mubr.bf16.gmra.mxu0 %v2881
        %v2997 = vpop.f32.mrf.mxu0
        %v2998 = vadd.f32 0.0, %v2997
        %v2999 = vpop.f32.mrf.mxu0
        %v3000 = vpop.f32.mrf.mxu0
        %v3001 = vadd.f32 0.0, %v3000
        %v3002 = vpop.f32.mrf.mxu0
        %3003 = vdwg.mxu0
        %3004 = vmax.xlane.f32.xlu0 %v2942
        %v3005 = vpop.xlane.xlu0 %3004
        %3006 = vmax.xlane.f32.xlu0 %v2945
        %v3007 = vpop.xlane.xlu0 %3006
        %3008 = vmax.xlane.f32.xlu0 %v2950
        %v3009 = vpop.xlane.xlu0 %3008
        %3010 = vmax.xlane.f32.xlu0 %v2953
        %v3011 = vpop.xlane.xlu0 %3010
        %3012 = vmax.xlane.f32.xlu0 %v2958
        %v3013 = vpop.xlane.xlu0 %3012
        %3014 = vmax.xlane.f32.xlu0 %v2961
        %v3015 = vpop.xlane.xlu0 %3014
        %3016 = vmax.xlane.f32.xlu0 %v2966
        %v3017 = vpop.xlane.xlu0 %3016
        %3018 = vmax.xlane.f32.xlu0 %v2969
        %v3019 = vpop.xlane.xlu0 %3018
        %3020 = vmax.xlane.f32.xlu0 %v2974
        %v3021 = vpop.xlane.xlu0 %3020
        %3022 = vmax.xlane.f32.xlu0 %v2977
        %v3023 = vpop.xlane.xlu0 %3022
        %3024 = vmax.xlane.f32.xlu0 %v2982
        %v3025 = vpop.xlane.xlu0 %3024
        %3026 = vmax.xlane.f32.xlu0 %v2985
        %v3027 = vpop.xlane.xlu0 %3026
        %3028 = vmax.xlane.f32.xlu0 %v2990
        %v3029 = vpop.xlane.xlu0 %3028
        %3030 = vmax.xlane.f32.xlu0 %v2993
        %v3031 = vpop.xlane.xlu0 %3030
        %3032 = vmax.xlane.f32.xlu0 %v2998
        %v3033 = vpop.xlane.xlu0 %3032
        %3034 = vmax.xlane.f32.xlu0 %v3001
        %v3035 = vpop.xlane.xlu0 %3034
        %v3036 = vsub.f32 %v2942, %v3005
        %v3037 = vsub.f32 %v2945, %v3007
        %v3038 = vsub.f32 %v2950, %v3009
        %v3039 = vsub.f32 %v2953, %v3011
        %v3040 = vsub.f32 %v2958, %v3013
        %v3041 = vsub.f32 %v2961, %v3015
        %v3042 = vsub.f32 %v2966, %v3017
        %v3043 = vsub.f32 %v2969, %v3019
        %v3044 = vsub.f32 %v2974, %v3021
        %v3045 = vsub.f32 %v2977, %v3023
        %v3046 = vsub.f32 %v2982, %v3025
        %v3047 = vsub.f32 %v2985, %v3027
        %v3048 = vsub.f32 %v2990, %v3029
        %v3049 = vsub.f32 %v2993, %v3031
        %v3050 = vsub.f32 %v2998, %v3033
        %v3051 = vsub.f32 %v3001, %v3035
        %v3052 = vmul.f32 %v3036, 1.442695
        %v3053 = vpow.pop %v3052
        %v3054 = vmul.f32 %v3037, 1.442695
        %v3055 = vpow.pop %v3054
        %v3056 = vmul.f32 %v3038, 1.442695
        %v3057 = vpow.pop %v3056
        %v3058 = vmul.f32 %v3039, 1.442695
        %v3059 = vpow.pop %v3058
        %v3060 = vmul.f32 %v3040, 1.442695
        %v3061 = vpow.pop %v3060
        %v3062 = vmul.f32 %v3041, 1.442695
        %v3063 = vpow.pop %v3062
        %v3064 = vmul.f32 %v3042, 1.442695
        %v3065 = vpow.pop %v3064
        %v3066 = vmul.f32 %v3043, 1.442695
        %v3067 = vpow.pop %v3066
        %v3068 = vmul.f32 %v3044, 1.442695
        %v3069 = vpow.pop %v3068
        %v3070 = vmul.f32 %v3045, 1.442695
        %v3071 = vpow.pop %v3070
        %v3072 = vmul.f32 %v3046, 1.442695
        %v3073 = vpow.pop %v3072
        %v3074 = vmul.f32 %v3047, 1.442695
        %v3075 = vpow.pop %v3074
        %v3076 = vmul.f32 %v3048, 1.442695
        %v3077 = vpow.pop %v3076
        %v3078 = vmul.f32 %v3049, 1.442695
        %v3079 = vpow.pop %v3078
        %v3080 = vmul.f32 %v3050, 1.442695
        %v3081 = vpow.pop %v3080
        %v3082 = vmul.f32 %v3051, 1.442695
        %v3083 = vpow.pop %v3082
        %3084 = vadd.xlane.f32.xlu0 %v3053
        %v3085 = vpop.xlane.xlu0 %3084
        %3086 = vadd.xlane.f32.xlu0 %v3055
        %v3087 = vpop.xlane.xlu0 %3086
        %3088 = vadd.xlane.f32.xlu0 %v3057
        %v3089 = vpop.xlane.xlu0 %3088
        %3090 = vadd.xlane.f32.xlu0 %v3059
        %v3091 = vpop.xlane.xlu0 %3090
        %3092 = vadd.xlane.f32.xlu0 %v3061
        %v3093 = vpop.xlane.xlu0 %3092
        %3094 = vadd.xlane.f32.xlu0 %v3063
        %v3095 = vpop.xlane.xlu0 %3094
        %3096 = vadd.xlane.f32.xlu0 %v3065
        %v3097 = vpop.xlane.xlu0 %3096
        %3098 = vadd.xlane.f32.xlu0 %v3067
        %v3099 = vpop.xlane.xlu0 %3098
        %3100 = vadd.xlane.f32.xlu0 %v3069
        %v3101 = vpop.xlane.xlu0 %3100
        %3102 = vadd.xlane.f32.xlu0 %v3071
        %v3103 = vpop.xlane.xlu0 %3102
        %3104 = vadd.xlane.f32.xlu0 %v3073
        %v3105 = vpop.xlane.xlu0 %3104
        %3106 = vadd.xlane.f32.xlu0 %v3075
        %v3107 = vpop.xlane.xlu0 %3106
        %3108 = vadd.xlane.f32.xlu0 %v3077
        %v3109 = vpop.xlane.xlu0 %3108
        %3110 = vadd.xlane.f32.xlu0 %v3079
        %v3111 = vpop.xlane.xlu0 %3110
        %3112 = vadd.xlane.f32.xlu0 %v3081
        %v3113 = vpop.xlane.xlu0 %3112
        %3114 = vadd.xlane.f32.xlu0 %v3083
        %v3115 = vpop.xlane.xlu0 %3114
        %v3116 = vpack.c.bf16 %v3055, %v3053
        %v3117 = vpack.c.bf16 %v3059, %v3057
        %v3118 = vpack.c.bf16 %v3063, %v3061
        %v3119 = vpack.c.bf16 %v3067, %v3065
        %v3120 = vpack.c.bf16 %v3071, %v3069
        %v3121 = vpack.c.bf16 %v3075, %v3073
        %v3122 = vpack.c.bf16 %v3079, %v3077
        %v3123 = vpack.c.bf16 %v3083, %v3081
        %3124 = vrot.lane.b32.xlu0 %v1459, 32
        %v3125 = vpop.permute.xlu0 %3124
        %3126 = vrot.lane.b32.xlu0 %v1460, 32
        %v3127 = vpop.permute.xlu0 %3126
        %3128 = vrot.lane.b32.xlu0 %v1461, 32
        %v3129 = vpop.permute.xlu0 %3128
        %3130 = vrot.lane.b32.xlu0 %v1462, 32
        %v3131 = vpop.permute.xlu0 %3130
        %3132 = vrot.lane.b32.xlu0 %v1463, 32
        %v3133 = vpop.permute.xlu0 %3132
        %3134 = vrot.lane.b32.xlu0 %v1464, 32
        %v3135 = vpop.permute.xlu0 %3134
        %3136 = vrot.lane.b32.xlu0 %v1465, 32
        %v3137 = vpop.permute.xlu0 %3136
        %3138 = vrot.lane.b32.xlu0 %v1466, 32
        %v3139 = vpop.permute.xlu0 %3138
        %3148 = vmatprep.subr.bf16.mxu0 0
        %3149 = vmatpush1.bf16.msra.mxu0 %v3139
        %3150 = vmatprep.subr.bf16.mxu0 0
        %3151 = vmatpush1.bf16.msra.mxu0 %v3137
        %3152 = vmatprep.subr.bf16.mxu0 0
        %3153 = vmatpush1.bf16.msra.mxu0 %v3135
        %3154 = vmatprep.subr.bf16.mxu0 0
        %3155 = vmatpush1.bf16.msra.mxu0 %v3133
        %3156 = vmatprep.subr.bf16.mxu0 0
        %3157 = vmatpush1.bf16.msra.mxu0 %v3131
        %3158 = vmatprep.subr.bf16.mxu0 0
        %3159 = vmatpush1.bf16.msra.mxu0 %v3129
        %3160 = vmatprep.subr.bf16.mxu0 0
        %3161 = vmatpush1.bf16.msra.mxu0 %v3127
        %3162 = vmatprep.subr.bf16.mxu0 0
        %3163 = vmatpush1.bf16.msra.mxu0 %v3125
        %3164 = vmatprep.subr.bf16.mxu0 0
        %3165 = vmatpush2.bf16.msra.mxu0 0
        %3166 = vmatprep.subr.bf16.mxu0 0
        %3167 = vmatpush2.bf16.msra.mxu0 0
        %3168 = vmatprep.subr.bf16.mxu0 0
        %3169 = vmatpush2.bf16.msra.mxu0 0
        %3170 = vmatprep.subr.bf16.mxu0 0
        %3171 = vmatpush2.bf16.msra.mxu0 0
        %3172 = vmatprep.subr.bf16.mxu0 0
        %3173 = vmatpush2.bf16.msra.mxu0 0
        %3174 = vmatprep.subr.bf16.mxu0 0
        %3175 = vmatpush2.bf16.msra.mxu0 0
        %3176 = vmatprep.subr.bf16.mxu0 0
        %3177 = vmatpush2.bf16.msra.mxu0 0
        %3178 = vmatprep.subr.bf16.mxu0 0
        %3179 = vmatpush2.bf16.msra.mxu0 0
        %3180 = vmatprep.mubr.bf16.mxu0 0
        %3181 = vmatmul.mubr.bf16.gmra.mxu0 %v3116
        %v3182 = vpop.f32.mrf.mxu0
        %v3183 = vadd.f32 0.0, %v3182
        %v3184 = vpop.f32.mrf.mxu0
        %v3185 = vpop.f32.mrf.mxu0
        %v3186 = vadd.f32 0.0, %v3185
        %v3187 = vpop.f32.mrf.mxu0
        %3188 = vmatprep.mubr.bf16.mxu0 0
        %3189 = vmatmul.mubr.bf16.gmra.mxu0 %v3117
        %v3190 = vpop.f32.mrf.mxu0
        %v3191 = vadd.f32 0.0, %v3190
        %v3192 = vpop.f32.mrf.mxu0
        %v3193 = vpop.f32.mrf.mxu0
        %v3194 = vadd.f32 0.0, %v3193
        %v3195 = vpop.f32.mrf.mxu0
        %3196 = vmatprep.mubr.bf16.mxu0 0
        %3197 = vmatmul.mubr.bf16.gmra.mxu0 %v3118
        %v3198 = vpop.f32.mrf.mxu0
        %v3199 = vadd.f32 0.0, %v3198
        %v3200 = vpop.f32.mrf.mxu0
        %v3201 = vpop.f32.mrf.mxu0
        %v3202 = vadd.f32 0.0, %v3201
        %v3203 = vpop.f32.mrf.mxu0
        %3204 = vmatprep.mubr.bf16.mxu0 0
        %3205 = vmatmul.mubr.bf16.gmra.mxu0 %v3119
        %v3206 = vpop.f32.mrf.mxu0
        %v3207 = vadd.f32 0.0, %v3206
        %v3208 = vpop.f32.mrf.mxu0
        %v3209 = vpop.f32.mrf.mxu0
        %v3210 = vadd.f32 0.0, %v3209
        %v3211 = vpop.f32.mrf.mxu0
        %3212 = vmatprep.mubr.bf16.mxu0 0
        %3213 = vmatmul.mubr.bf16.gmra.mxu0 %v3120
        %v3214 = vpop.f32.mrf.mxu0
        %v3215 = vadd.f32 0.0, %v3214
        %v3216 = vpop.f32.mrf.mxu0
        %v3217 = vpop.f32.mrf.mxu0
        %v3218 = vadd.f32 0.0, %v3217
        %v3219 = vpop.f32.mrf.mxu0
        %3220 = vmatprep.mubr.bf16.mxu0 0
        %3221 = vmatmul.mubr.bf16.gmra.mxu0 %v3121
        %v3222 = vpop.f32.mrf.mxu0
        %v3223 = vadd.f32 0.0, %v3222
        %v3224 = vpop.f32.mrf.mxu0
        %v3225 = vpop.f32.mrf.mxu0
        %v3226 = vadd.f32 0.0, %v3225
        %v3227 = vpop.f32.mrf.mxu0
        %3228 = vmatprep.mubr.bf16.mxu0 0
        %3229 = vmatmul.mubr.bf16.gmra.mxu0 %v3122
        %v3230 = vpop.f32.mrf.mxu0
        %v3231 = vadd.f32 0.0, %v3230
        %v3232 = vpop.f32.mrf.mxu0
        %v3233 = vpop.f32.mrf.mxu0
        %v3234 = vadd.f32 0.0, %v3233
        %v3235 = vpop.f32.mrf.mxu0
        %3236 = vmatprep.mubr.bf16.mxu0 0
        %3237 = vmatmul.mubr.bf16.gmra.mxu0 %v3123
        %v3238 = vpop.f32.mrf.mxu0
        %v3239 = vadd.f32 0.0, %v3238
        %v3240 = vpop.f32.mrf.mxu0
        %v3241 = vpop.f32.mrf.mxu0
        %v3242 = vadd.f32 0.0, %v3241
        %v3243 = vpop.f32.mrf.mxu0
        %3244 = vdwg.mxu0
        %v3245 = vrcp.pop %v3085
        %v3246 = vrcp.pop %v3087
        %v3247 = vrcp.pop %v3089
        %v3248 = vrcp.pop %v3091
        %v3249 = vrcp.pop %v3093
        %v3250 = vrcp.pop %v3095
        %v3251 = vrcp.pop %v3097
        %v3252 = vrcp.pop %v3099
        %v3253 = vrcp.pop %v3101
        %v3254 = vrcp.pop %v3103
        %v3255 = vrcp.pop %v3105
        %v3256 = vrcp.pop %v3107
        %v3257 = vrcp.pop %v3109
        %v3258 = vrcp.pop %v3111
        %v3259 = vrcp.pop %v3113
        %v3260 = vrcp.pop %v3115
        %v3261 = vmul.f32 %v3183, %v3245
        %v3262 = vmul.f32 %v3186, %v3246
        %v3263 = vmul.f32 %v3191, %v3247
        %v3264 = vmul.f32 %v3194, %v3248
        %v3265 = vmul.f32 %v3199, %v3249
        %v3266 = vmul.f32 %v3202, %v3250
        %v3267 = vmul.f32 %v3207, %v3251
        %v3268 = vmul.f32 %v3210, %v3252
        %v3269 = vmul.f32 %v3215, %v3253
        %v3270 = vmul.f32 %v3218, %v3254
        %v3271 = vmul.f32 %v3223, %v3255
        %v3272 = vmul.f32 %v3226, %v3256
        %v3273 = vmul.f32 %v3231, %v3257
        %v3274 = vmul.f32 %v3234, %v3258
        %v3275 = vmul.f32 %v3239, %v3259
        %v3276 = vmul.f32 %v3242, %v3260
        %v3277 = vpack.c.bf16 %v3262, %v3261
        %v3278 = vpack.c.bf16 %v3264, %v3263
        %v3279 = vpack.c.bf16 %v3266, %v3265
        %v3280 = vpack.c.bf16 %v3268, %v3267
        %v3281 = vpack.c.bf16 %v3270, %v3269
        %v3282 = vpack.c.bf16 %v3272, %v3271
        %v3283 = vpack.c.bf16 %v3274, %v3273
        %v3284 = vpack.c.bf16 %v3276, %v3275
        %v3293 = vunpack.c.l.b16 %v3277
        %v3294 = vunpack.c.h.b16 %v3277
        %v3295 = vunpack.c.l.b16 %v3278
        %v3296 = vunpack.c.h.b16 %v3278
        %v3297 = vunpack.c.l.b16 %v3279
        %v3298 = vunpack.c.h.b16 %v3279
        %v3299 = vunpack.c.l.b16 %v3280
        %v3300 = vunpack.c.h.b16 %v3280
        %v3301 = vunpack.c.l.b16 %v3281
        %v3302 = vunpack.c.h.b16 %v3281
        %v3303 = vunpack.c.l.b16 %v3282
        %v3304 = vunpack.c.h.b16 %v3282
        %v3305 = vunpack.c.l.b16 %v3283
        %v3306 = vunpack.c.h.b16 %v3283
        %v3307 = vunpack.c.l.b16 %v3284
        %v3308 = vunpack.c.h.b16 %v3284
        %v3309 = vpack.c.b16 %v3293, %v3293
        %v3310 = vpack.c.b16 %v3294, %v3294
        %v3311 = vpack.c.b16 %v3295, %v3295
        %v3312 = vpack.c.b16 %v3296, %v3296
        %v3313 = vpack.c.b16 %v3297, %v3297
        %v3314 = vpack.c.b16 %v3298, %v3298
        %v3315 = vpack.c.b16 %v3299, %v3299
        %v3316 = vpack.c.b16 %v3300, %v3300
        %v3317 = vpack.c.b16 %v3301, %v3301
        %v3318 = vpack.c.b16 %v3302, %v3302
        %v3319 = vpack.c.b16 %v3303, %v3303
        %v3320 = vpack.c.b16 %v3304, %v3304
        %v3321 = vpack.c.b16 %v3305, %v3305
        %v3322 = vpack.c.b16 %v3306, %v3306
        %v3323 = vpack.c.b16 %v3307, %v3307
        %v3324 = vpack.c.b16 %v3308, %v3308
        %3325 = vrot.lane.b32.xlu0 %v3309, 96
        %v3326 = vpop.permute.xlu0 %3325
        %3327 = vrot.lane.b32.xlu0 %v3310, 96
        %v3328 = vpop.permute.xlu0 %3327
        %3329 = vrot.lane.b32.xlu0 %v3311, 96
        %v3330 = vpop.permute.xlu0 %3329
        %3331 = vrot.lane.b32.xlu0 %v3312, 96
        %v3332 = vpop.permute.xlu0 %3331
        %3333 = vrot.lane.b32.xlu0 %v3313, 96
        %v3334 = vpop.permute.xlu0 %3333
        %3335 = vrot.lane.b32.xlu0 %v3314, 96
        %v3336 = vpop.permute.xlu0 %3335
        %3337 = vrot.lane.b32.xlu0 %v3315, 96
        %v3338 = vpop.permute.xlu0 %3337
        %3339 = vrot.lane.b32.xlu0 %v3316, 96
        %v3340 = vpop.permute.xlu0 %3339
        %3341 = vrot.lane.b32.xlu0 %v3317, 96
        %v3342 = vpop.permute.xlu0 %3341
        %3343 = vrot.lane.b32.xlu0 %v3318, 96
        %v3344 = vpop.permute.xlu0 %3343
        %3345 = vrot.lane.b32.xlu0 %v3319, 96
        %v3346 = vpop.permute.xlu0 %3345
        %3347 = vrot.lane.b32.xlu0 %v3320, 96
        %v3348 = vpop.permute.xlu0 %3347
        %3349 = vrot.lane.b32.xlu0 %v3321, 96
        %v3350 = vpop.permute.xlu0 %3349
        %3351 = vrot.lane.b32.xlu0 %v3322, 96
        %v3352 = vpop.permute.xlu0 %3351
        %3353 = vrot.lane.b32.xlu0 %v3323, 96
        %v3354 = vpop.permute.xlu0 %3353
        %3355 = vrot.lane.b32.xlu0 %v3324, 96
        %v3356 = vpop.permute.xlu0 %3355
        %vm3373 = vcmask 1044224
        %3374 = vst.msk [vmem:[#allocation2] sm:$0xf] %vm3373, %v3326
        %3375 = vst.msk [vmem:[#allocation2 + $0x4] sm:$0xf] %vm3373, %v3328
        %3376 = vst.msk [vmem:[#allocation2 + $0x8] sm:$0xf] %vm3373, %v3330
        %3377 = vst.msk [vmem:[#allocation2 + $0xc] sm:$0xf] %vm3373, %v3332
        %3378 = vst.msk [vmem:[#allocation2 + $0x10] sm:$0xf] %vm3373, %v3334
        %3379 = vst.msk [vmem:[#allocation2 + $0x14] sm:$0xf] %vm3373, %v3336
        %3380 = vst.msk [vmem:[#allocation2 + $0x18] sm:$0xf] %vm3373, %v3338
        %3381 = vst.msk [vmem:[#allocation2 + $0x1c] sm:$0xf] %vm3373, %v3340
        %3382 = vst.msk [vmem:[#allocation2 + $0x20] sm:$0xf] %vm3373, %v3342
        %3383 = vst.msk [vmem:[#allocation2 + $0x24] sm:$0xf] %vm3373, %v3344
        %3384 = vst.msk [vmem:[#allocation2 + $0x28] sm:$0xf] %vm3373, %v3346
        %3385 = vst.msk [vmem:[#allocation2 + $0x2c] sm:$0xf] %vm3373, %v3348
        %3386 = vst.msk [vmem:[#allocation2 + $0x30] sm:$0xf] %vm3373, %v3350
        %3387 = vst.msk [vmem:[#allocation2 + $0x34] sm:$0xf] %vm3373, %v3352
        %3388 = vst.msk [vmem:[#allocation2 + $0x38] sm:$0xf] %vm3373, %v3354
        %3389 = vst.msk [vmem:[#allocation2 + $0x3c] sm:$0xf] %vm3373, %v3356
        %v3390 = vld [vmem:[#allocation2] sm:$0xf]
        %v3391 = vld [vmem:[#allocation2 + $0x4] sm:$0xf]
        %v3392 = vld [vmem:[#allocation2 + $0x8] sm:$0xf]
        %v3393 = vld [vmem:[#allocation2 + $0xc] sm:$0xf]
        %v3394 = vld [vmem:[#allocation2 + $0x10] sm:$0xf]
        %v3395 = vld [vmem:[#allocation2 + $0x14] sm:$0xf]
        %v3396 = vld [vmem:[#allocation2 + $0x18] sm:$0xf]
        %v3397 = vld [vmem:[#allocation2 + $0x1c] sm:$0xf]
        %v3398 = vld [vmem:[#allocation2 + $0x20] sm:$0xf]
        %v3399 = vld [vmem:[#allocation2 + $0x24] sm:$0xf]
        %v3400 = vld [vmem:[#allocation2 + $0x28] sm:$0xf]
        %v3401 = vld [vmem:[#allocation2 + $0x2c] sm:$0xf]
        %v3402 = vld [vmem:[#allocation2 + $0x30] sm:$0xf]
        %v3403 = vld [vmem:[#allocation2 + $0x34] sm:$0xf]
        %v3404 = vld [vmem:[#allocation2 + $0x38] sm:$0xf]
        %v3405 = vld [vmem:[#allocation2 + $0x3c] sm:$0xf]
        %v3406 = vld [vmem:[#allocation11] sm:$0xf]
        %v3407 = vld [vmem:[#allocation11 + $0x4] sm:$0xf]
        %v3408 = vld [vmem:[#allocation11 + $0x8] sm:$0xf]
        %v3409 = vld [vmem:[#allocation11 + $0xc] sm:$0xf]
        %v3410 = vld [vmem:[#allocation11 + $0x10] sm:$0xf]
        %v3411 = vld [vmem:[#allocation11 + $0x14] sm:$0xf]
        %v3412 = vld [vmem:[#allocation11 + $0x18] sm:$0xf]
        %v3413 = vld [vmem:[#allocation11 + $0x1c] sm:$0xf]
        %v3414 = vld [vmem:[#allocation11 + $0x20] sm:$0xf]
        %v3415 = vld [vmem:[#allocation11 + $0x24] sm:$0xf]
        %v3416 = vld [vmem:[#allocation11 + $0x28] sm:$0xf]
        %v3417 = vld [vmem:[#allocation11 + $0x2c] sm:$0xf]
        %v3418 = vld [vmem:[#allocation11 + $0x30] sm:$0xf]
        %v3419 = vld [vmem:[#allocation11 + $0x34] sm:$0xf]
        %v3420 = vld [vmem:[#allocation11 + $0x38] sm:$0xf]
        %v3421 = vld [vmem:[#allocation11 + $0x3c] sm:$0xf]
        %v3422 = vld [vmem:[%s6] sm:$0x1]
        %v3424 = vlaneseq
        %v3425 = vshrl.u32 %v3424, 7
        %v3426 = vsub.s32 0, %v3425
        %v3427 = vrot.slane %v3422, %v3426
        %v3445 = vunpack.c.l.b16 %v3390
        %v3446 = vunpack.c.l.b16 %v3391
        %v3447 = vunpack.c.l.b16 %v3392
        %v3448 = vunpack.c.l.b16 %v3393
        %v3449 = vunpack.c.l.b16 %v3394
        %v3450 = vunpack.c.l.b16 %v3395
        %v3451 = vunpack.c.l.b16 %v3396
        %v3452 = vunpack.c.l.b16 %v3397
        %v3453 = vunpack.c.l.b16 %v3398
        %v3454 = vunpack.c.l.b16 %v3399
        %v3455 = vunpack.c.l.b16 %v3400
        %v3456 = vunpack.c.l.b16 %v3401
        %v3457 = vunpack.c.l.b16 %v3402
        %v3458 = vunpack.c.l.b16 %v3403
        %v3459 = vunpack.c.l.b16 %v3404
        %v3460 = vunpack.c.l.b16 %v3405
        %v3461 = vpack.c.b16 %v3446, %v3445
        %v3462 = vpack.c.b16 %v3448, %v3447
        %v3463 = vpack.c.b16 %v3450, %v3449
        %v3464 = vpack.c.b16 %v3452, %v3451
        %v3465 = vpack.c.b16 %v3454, %v3453
        %v3466 = vpack.c.b16 %v3456, %v3455
        %v3467 = vpack.c.b16 %v3458, %v3457
        %v3468 = vpack.c.b16 %v3460, %v3459
        %v3493 = vunpack.c.l.b16 %v3406
        %v3494 = vunpack.c.l.b16 %v3407
        %v3495 = vunpack.c.l.b16 %v3408
        %v3496 = vunpack.c.l.b16 %v3409
        %v3497 = vunpack.c.l.b16 %v3410
        %v3498 = vunpack.c.l.b16 %v3411
        %v3499 = vunpack.c.l.b16 %v3412
        %v3500 = vunpack.c.l.b16 %v3413
        %v3501 = vunpack.c.l.b16 %v3414
        %v3502 = vunpack.c.l.b16 %v3415
        %v3503 = vunpack.c.l.b16 %v3416
        %v3504 = vunpack.c.l.b16 %v3417
        %v3505 = vunpack.c.l.b16 %v3418
        %v3506 = vunpack.c.l.b16 %v3419
        %v3507 = vunpack.c.l.b16 %v3420
        %v3508 = vunpack.c.l.b16 %v3421
        %v3509 = vpack.c.b16 %v3494, %v3493
        %v3510 = vpack.c.b16 %v3496, %v3495
        %v3511 = vpack.c.b16 %v3498, %v3497
        %v3512 = vpack.c.b16 %v3500, %v3499
        %v3513 = vpack.c.b16 %v3502, %v3501
        %v3514 = vpack.c.b16 %v3504, %v3503
        %v3515 = vpack.c.b16 %v3506, %v3505
        %v3516 = vpack.c.b16 %v3508, %v3507
        %3525 = vmatprep.subr.bf16.mxu0 0
        %3526 = vmatpush1.bf16.msra.mxu0 %v3516
        %3527 = vmatprep.subr.bf16.mxu0 0
        %3528 = vmatpush1.bf16.msra.mxu0 %v3515
        %3529 = vmatprep.subr.bf16.mxu0 0
        %3530 = vmatpush1.bf16.msra.mxu0 %v3514
        %3531 = vmatprep.subr.bf16.mxu0 0
        %3532 = vmatpush1.bf16.msra.mxu0 %v3513
        %3533 = vmatprep.subr.bf16.mxu0 0
        %3534 = vmatpush1.bf16.msra.mxu0 %v3512
        %3535 = vmatprep.subr.bf16.mxu0 0
        %3536 = vmatpush1.bf16.msra.mxu0 %v3511
        %3537 = vmatprep.subr.bf16.mxu0 0
        %3538 = vmatpush1.bf16.msra.mxu0 %v3510
        %3539 = vmatprep.subr.bf16.mxu0 0
        %3540 = vmatpush1.bf16.msra.mxu0 %v3509
        %3541 = vmatprep.subr.bf16.mxu0 0
        %3542 = vmatpush2.bf16.msra.mxu0 0
        %3543 = vmatprep.subr.bf16.mxu0 0
        %3544 = vmatpush2.bf16.msra.mxu0 0
        %3545 = vmatprep.subr.bf16.mxu0 0
        %3546 = vmatpush2.bf16.msra.mxu0 0
        %3547 = vmatprep.subr.bf16.mxu0 0
        %3548 = vmatpush2.bf16.msra.mxu0 0
        %3549 = vmatprep.subr.bf16.mxu0 0
        %3550 = vmatpush2.bf16.msra.mxu0 0
        %3551 = vmatprep.subr.bf16.mxu0 0
        %3552 = vmatpush2.bf16.msra.mxu0 0
        %3553 = vmatprep.subr.bf16.mxu0 0
        %3554 = vmatpush2.bf16.msra.mxu0 0
        %3555 = vmatprep.subr.bf16.mxu0 0
        %3556 = vmatpush2.bf16.msra.mxu0 0
        %3557 = vmatprep.mubr.bf16.mxu0 0
        %3558 = vmatmul.mubr.bf16.gmra.mxu0 %v3461
        %v3559 = vpop.f32.mrf.mxu0
        %v3560 = vadd.f32 %v3427, %v3559
        %v3561 = vpop.f32.mrf.mxu0
        %v3562 = vpop.f32.mrf.mxu0
        %v3563 = vadd.f32 %v3427, %v3562
        %v3564 = vpop.f32.mrf.mxu0
        %3565 = vmatprep.mubr.bf16.mxu0 0
        %3566 = vmatmul.mubr.bf16.gmra.mxu0 %v3462
        %v3567 = vpop.f32.mrf.mxu0
        %v3568 = vadd.f32 %v3427, %v3567
        %v3569 = vpop.f32.mrf.mxu0
        %v3570 = vpop.f32.mrf.mxu0
        %v3571 = vadd.f32 %v3427, %v3570
        %v3572 = vpop.f32.mrf.mxu0
        %3573 = vmatprep.mubr.bf16.mxu0 0
        %3574 = vmatmul.mubr.bf16.gmra.mxu0 %v3463
        %v3575 = vpop.f32.mrf.mxu0
        %v3576 = vadd.f32 %v3427, %v3575
        %v3577 = vpop.f32.mrf.mxu0
        %v3578 = vpop.f32.mrf.mxu0
        %v3579 = vadd.f32 %v3427, %v3578
        %v3580 = vpop.f32.mrf.mxu0
        %3581 = vmatprep.mubr.bf16.mxu0 0
        %3582 = vmatmul.mubr.bf16.gmra.mxu0 %v3464
        %v3583 = vpop.f32.mrf.mxu0
        %v3584 = vadd.f32 %v3427, %v3583
        %v3585 = vpop.f32.mrf.mxu0
        %v3586 = vpop.f32.mrf.mxu0
        %v3587 = vadd.f32 %v3427, %v3586
        %v3588 = vpop.f32.mrf.mxu0
        %3589 = vmatprep.mubr.bf16.mxu0 0
        %3590 = vmatmul.mubr.bf16.gmra.mxu0 %v3465
        %v3591 = vpop.f32.mrf.mxu0
        %v3592 = vadd.f32 %v3427, %v3591
        %v3593 = vpop.f32.mrf.mxu0
        %v3594 = vpop.f32.mrf.mxu0
        %v3595 = vadd.f32 %v3427, %v3594
        %v3596 = vpop.f32.mrf.mxu0
        %3597 = vmatprep.mubr.bf16.mxu0 0
        %3598 = vmatmul.mubr.bf16.gmra.mxu0 %v3466
        %v3599 = vpop.f32.mrf.mxu0
        %v3600 = vadd.f32 %v3427, %v3599
        %v3601 = vpop.f32.mrf.mxu0
        %v3602 = vpop.f32.mrf.mxu0
        %v3603 = vadd.f32 %v3427, %v3602
        %v3604 = vpop.f32.mrf.mxu0
        %3605 = vmatprep.mubr.bf16.mxu0 0
        %3606 = vmatmul.mubr.bf16.gmra.mxu0 %v3467
        %v3607 = vpop.f32.mrf.mxu0
        %v3608 = vadd.f32 %v3427, %v3607
        %v3609 = vpop.f32.mrf.mxu0
        %v3610 = vpop.f32.mrf.mxu0
        %v3611 = vadd.f32 %v3427, %v3610
        %v3612 = vpop.f32.mrf.mxu0
        %3613 = vmatprep.mubr.bf16.mxu0 0
        %3614 = vmatmul.mubr.bf16.gmra.mxu0 %v3468
        %v3615 = vpop.f32.mrf.mxu0
        %v3616 = vadd.f32 %v3427, %v3615
        %v3617 = vpop.f32.mrf.mxu0
        %v3618 = vpop.f32.mrf.mxu0
        %v3619 = vadd.f32 %v3427, %v3618
        %v3620 = vpop.f32.mrf.mxu0
        %3621 = vdwg.mxu0
        %v3622 = vadd.f32 %v543, %v3560
        %v3623 = vadd.f32 %v544, %v3563
        %v3624 = vadd.f32 %v545, %v3568
        %v3625 = vadd.f32 %v546, %v3571
        %v3626 = vadd.f32 %v547, %v3576
        %v3627 = vadd.f32 %v548, %v3579
        %v3628 = vadd.f32 %v549, %v3584
        %v3629 = vadd.f32 %v550, %v3587
        %v3630 = vadd.f32 %v551, %v3592
        %v3631 = vadd.f32 %v552, %v3595
        %v3632 = vadd.f32 %v553, %v3600
        %v3633 = vadd.f32 %v554, %v3603
        %v3634 = vadd.f32 %v555, %v3608
        %v3635 = vadd.f32 %v556, %v3611
        %v3636 = vadd.f32 %v557, %v3616
        %v3637 = vadd.f32 %v558, %v3619
        %v3638 = vld [vmem:[%s7] sm:$0x1]
        %v3639 = vld [vmem:[%s8] sm:$0x1]
        %3640 = vadd.xlane.f32.xlu0 %v3622
        %v3641 = vpop.xlane.xlu0 %3640
        %3642 = vadd.xlane.f32.xlu0 %v3623
        %v3643 = vpop.xlane.xlu0 %3642
        %3644 = vadd.xlane.f32.xlu0 %v3624
        %v3645 = vpop.xlane.xlu0 %3644
        %3646 = vadd.xlane.f32.xlu0 %v3625
        %v3647 = vpop.xlane.xlu0 %3646
        %3648 = vadd.xlane.f32.xlu0 %v3626
        %v3649 = vpop.xlane.xlu0 %3648
        %3650 = vadd.xlane.f32.xlu0 %v3627
        %v3651 = vpop.xlane.xlu0 %3650
        %3652 = vadd.xlane.f32.xlu0 %v3628
        %v3653 = vpop.xlane.xlu0 %3652
        %3654 = vadd.xlane.f32.xlu0 %v3629
        %v3655 = vpop.xlane.xlu0 %3654
        %3656 = vadd.xlane.f32.xlu0 %v3630
        %v3657 = vpop.xlane.xlu0 %3656
        %3658 = vadd.xlane.f32.xlu0 %v3631
        %v3659 = vpop.xlane.xlu0 %3658
        %3660 = vadd.xlane.f32.xlu0 %v3632
        %v3661 = vpop.xlane.xlu0 %3660
        %3662 = vadd.xlane.f32.xlu0 %v3633
        %v3663 = vpop.xlane.xlu0 %3662
        %3664 = vadd.xlane.f32.xlu0 %v3634
        %v3665 = vpop.xlane.xlu0 %3664
        %3666 = vadd.xlane.f32.xlu0 %v3635
        %v3667 = vpop.xlane.xlu0 %3666
        %3668 = vadd.xlane.f32.xlu0 %v3636
        %v3669 = vpop.xlane.xlu0 %3668
        %3670 = vadd.xlane.f32.xlu0 %v3637
        %v3671 = vpop.xlane.xlu0 %3670
        %v3672 = vmul.f32 %v3641, %v593
        %v3673 = vmul.f32 %v3643, %v593
        %v3674 = vmul.f32 %v3645, %v593
        %v3675 = vmul.f32 %v3647, %v593
        %v3676 = vmul.f32 %v3649, %v593
        %v3677 = vmul.f32 %v3651, %v593
        %v3678 = vmul.f32 %v3653, %v593
        %v3679 = vmul.f32 %v3655, %v593
        %v3680 = vmul.f32 %v3657, %v593
        %v3681 = vmul.f32 %v3659, %v593
        %v3682 = vmul.f32 %v3661, %v593
        %v3683 = vmul.f32 %v3663, %v593
        %v3684 = vmul.f32 %v3665, %v593
        %v3685 = vmul.f32 %v3667, %v593
        %v3686 = vmul.f32 %v3669, %v593
        %v3687 = vmul.f32 %v3671, %v593
        %v3688 = vsub.f32 %v3622, %v3672
        %v3689 = vsub.f32 %v3623, %v3673
        %v3690 = vsub.f32 %v3624, %v3674
        %v3691 = vsub.f32 %v3625, %v3675
        %v3692 = vsub.f32 %v3626, %v3676
        %v3693 = vsub.f32 %v3627, %v3677
        %v3694 = vsub.f32 %v3628, %v3678
        %v3695 = vsub.f32 %v3629, %v3679
        %v3696 = vsub.f32 %v3630, %v3680
        %v3697 = vsub.f32 %v3631, %v3681
        %v3698 = vsub.f32 %v3632, %v3682
        %v3699 = vsub.f32 %v3633, %v3683
        %v3700 = vsub.f32 %v3634, %v3684
        %v3701 = vsub.f32 %v3635, %v3685
        %v3702 = vsub.f32 %v3636, %v3686
        %v3703 = vsub.f32 %v3637, %v3687
        %v3704 = vmul.f32 %v3688, %v3688
        %v3705 = vmul.f32 %v3689, %v3689
        %v3706 = vmul.f32 %v3690, %v3690
        %v3707 = vmul.f32 %v3691, %v3691
        %v3708 = vmul.f32 %v3692, %v3692
        %v3709 = vmul.f32 %v3693, %v3693
        %v3710 = vmul.f32 %v3694, %v3694
        %v3711 = vmul.f32 %v3695, %v3695
        %v3712 = vmul.f32 %v3696, %v3696
        %v3713 = vmul.f32 %v3697, %v3697
        %v3714 = vmul.f32 %v3698, %v3698
        %v3715 = vmul.f32 %v3699, %v3699
        %v3716 = vmul.f32 %v3700, %v3700
        %v3717 = vmul.f32 %v3701, %v3701
        %v3718 = vmul.f32 %v3702, %v3702
        %v3719 = vmul.f32 %v3703, %v3703
        %3720 = vadd.xlane.f32.xlu0 %v3704
        %v3721 = vpop.xlane.xlu0 %3720
        %3722 = vadd.xlane.f32.xlu0 %v3705
        %v3723 = vpop.xlane.xlu0 %3722
        %3724 = vadd.xlane.f32.xlu0 %v3706
        %v3725 = vpop.xlane.xlu0 %3724
        %3726 = vadd.xlane.f32.xlu0 %v3707
        %v3727 = vpop.xlane.xlu0 %3726
        %3728 = vadd.xlane.f32.xlu0 %v3708
        %v3729 = vpop.xlane.xlu0 %3728
        %3730 = vadd.xlane.f32.xlu0 %v3709
        %v3731 = vpop.xlane.xlu0 %3730
        %3732 = vadd.xlane.f32.xlu0 %v3710
        %v3733 = vpop.xlane.xlu0 %3732
        %3734 = vadd.xlane.f32.xlu0 %v3711
        %v3735 = vpop.xlane.xlu0 %3734
        %3736 = vadd.xlane.f32.xlu0 %v3712
        %v3737 = vpop.xlane.xlu0 %3736
        %3738 = vadd.xlane.f32.xlu0 %v3713
        %v3739 = vpop.xlane.xlu0 %3738
        %3740 = vadd.xlane.f32.xlu0 %v3714
        %v3741 = vpop.xlane.xlu0 %3740
        %3742 = vadd.xlane.f32.xlu0 %v3715
        %v3743 = vpop.xlane.xlu0 %3742
        %3744 = vadd.xlane.f32.xlu0 %v3716
        %v3745 = vpop.xlane.xlu0 %3744
        %3746 = vadd.xlane.f32.xlu0 %v3717
        %v3747 = vpop.xlane.xlu0 %3746
        %3748 = vadd.xlane.f32.xlu0 %v3718
        %v3749 = vpop.xlane.xlu0 %3748
        %3750 = vadd.xlane.f32.xlu0 %v3719
        %v3751 = vpop.xlane.xlu0 %3750
        %v3752 = vmul.f32 %v3721, %v593
        %v3753 = vmul.f32 %v3723, %v593
        %v3754 = vmul.f32 %v3725, %v593
        %v3755 = vmul.f32 %v3727, %v593
        %v3756 = vmul.f32 %v3729, %v593
        %v3757 = vmul.f32 %v3731, %v593
        %v3758 = vmul.f32 %v3733, %v593
        %v3759 = vmul.f32 %v3735, %v593
        %v3760 = vmul.f32 %v3737, %v593
        %v3761 = vmul.f32 %v3739, %v593
        %v3762 = vmul.f32 %v3741, %v593
        %v3763 = vmul.f32 %v3743, %v593
        %v3764 = vmul.f32 %v3745, %v593
        %v3765 = vmul.f32 %v3747, %v593
        %v3766 = vmul.f32 %v3749, %v593
        %v3767 = vmul.f32 %v3751, %v593
        %v3768 = vadd.f32 %v3752, 1e-05
        %v3769 = vadd.f32 %v3753, 1e-05
        %v3770 = vadd.f32 %v3754, 1e-05
        %v3771 = vadd.f32 %v3755, 1e-05
        %v3772 = vadd.f32 %v3756, 1e-05
        %v3773 = vadd.f32 %v3757, 1e-05
        %v3774 = vadd.f32 %v3758, 1e-05
        %v3775 = vadd.f32 %v3759, 1e-05
        %v3776 = vadd.f32 %v3760, 1e-05
        %v3777 = vadd.f32 %v3761, 1e-05
        %v3778 = vadd.f32 %v3762, 1e-05
        %v3779 = vadd.f32 %v3763, 1e-05
        %v3780 = vadd.f32 %v3764, 1e-05
        %v3781 = vadd.f32 %v3765, 1e-05
        %v3782 = vadd.f32 %v3766, 1e-05
        %v3783 = vadd.f32 %v3767, 1e-05
        %v3784 = vrsqrt.pop %v3768
        %v3785 = vrsqrt.pop %v3769
        %v3786 = vrsqrt.pop %v3770
        %v3787 = vrsqrt.pop %v3771
        %v3788 = vrsqrt.pop %v3772
        %v3789 = vrsqrt.pop %v3773
        %v3790 = vrsqrt.pop %v3774
        %v3791 = vrsqrt.pop %v3775
        %v3792 = vrsqrt.pop %v3776
        %v3793 = vrsqrt.pop %v3777
        %v3794 = vrsqrt.pop %v3778
        %v3795 = vrsqrt.pop %v3779
        %v3796 = vrsqrt.pop %v3780
        %v3797 = vrsqrt.pop %v3781
        %v3798 = vrsqrt.pop %v3782
        %v3799 = vrsqrt.pop %v3783
        %v3800 = vmul.f32 %v3688, %v3784
        %v3801 = vmul.f32 %v3689, %v3785
        %v3802 = vmul.f32 %v3690, %v3786
        %v3803 = vmul.f32 %v3691, %v3787
        %v3804 = vmul.f32 %v3692, %v3788
        %v3805 = vmul.f32 %v3693, %v3789
        %v3806 = vmul.f32 %v3694, %v3790
        %v3807 = vmul.f32 %v3695, %v3791
        %v3808 = vmul.f32 %v3696, %v3792
        %v3809 = vmul.f32 %v3697, %v3793
        %v3810 = vmul.f32 %v3698, %v3794
        %v3811 = vmul.f32 %v3699, %v3795
        %v3812 = vmul.f32 %v3700, %v3796
        %v3813 = vmul.f32 %v3701, %v3797
        %v3814 = vmul.f32 %v3702, %v3798
        %v3815 = vmul.f32 %v3703, %v3799
        %v3817 = vlaneseq
        %v3818 = vshrl.u32 %v3817, 7
        %v3819 = vsub.s32 0, %v3818
        %v3820 = vrot.slane %v3638, %v3819
        %v3822 = vmul.f32 %v3800, %v3820
        %v3823 = vmul.f32 %v3801, %v3820
        %v3824 = vmul.f32 %v3802, %v3820
        %v3825 = vmul.f32 %v3803, %v3820
        %v3826 = vmul.f32 %v3804, %v3820
        %v3827 = vmul.f32 %v3805, %v3820
        %v3828 = vmul.f32 %v3806, %v3820
        %v3829 = vmul.f32 %v3807, %v3820
        %v3830 = vmul.f32 %v3808, %v3820
        %v3831 = vmul.f32 %v3809, %v3820
        %v3832 = vmul.f32 %v3810, %v3820
        %v3833 = vmul.f32 %v3811, %v3820
        %v3834 = vmul.f32 %v3812, %v3820
        %v3835 = vmul.f32 %v3813, %v3820
        %v3836 = vmul.f32 %v3814, %v3820
        %v3837 = vmul.f32 %v3815, %v3820
        %v3839 = vlaneseq
        %v3840 = vshrl.u32 %v3839, 7
        %v3841 = vsub.s32 0, %v3840
        %v3842 = vrot.slane %v3639, %v3841
        %v3844 = vadd.f32 %v3822, %v3842
        %v3845 = vadd.f32 %v3823, %v3842
        %v3846 = vadd.f32 %v3824, %v3842
        %v3847 = vadd.f32 %v3825, %v3842
        %v3848 = vadd.f32 %v3826, %v3842
        %v3849 = vadd.f32 %v3827, %v3842
        %v3850 = vadd.f32 %v3828, %v3842
        %v3851 = vadd.f32 %v3829, %v3842
        %v3852 = vadd.f32 %v3830, %v3842
        %v3853 = vadd.f32 %v3831, %v3842
        %v3854 = vadd.f32 %v3832, %v3842
        %v3855 = vadd.f32 %v3833, %v3842
        %v3856 = vadd.f32 %v3834, %v3842
        %v3857 = vadd.f32 %v3835, %v3842
        %v3858 = vadd.f32 %v3836, %v3842
        %v3859 = vadd.f32 %v3837, %v3842
        %v3860 = vpack.c.bf16 %v3845, %v3844
        %v3861 = vpack.c.bf16 %v3847, %v3846
        %v3862 = vpack.c.bf16 %v3849, %v3848
        %v3863 = vpack.c.bf16 %v3851, %v3850
        %v3864 = vpack.c.bf16 %v3853, %v3852
        %v3865 = vpack.c.bf16 %v3855, %v3854
        %v3866 = vpack.c.bf16 %v3857, %v3856
        %v3867 = vpack.c.bf16 %v3859, %v3858
        %v3868 = vld [vmem:[#allocation12] sm:$0xff]
        %v3869 = vld [vmem:[#allocation12 + $0x8] sm:$0xff]
        %v3870 = vld [vmem:[#allocation12 + $0x10] sm:$0xff]
        %v3871 = vld [vmem:[#allocation12 + $0x18] sm:$0xff]
        %v3872 = vld [vmem:[#allocation12 + $0x20] sm:$0xff]
        %v3873 = vld [vmem:[#allocation12 + $0x28] sm:$0xff]
        %v3874 = vld [vmem:[#allocation12 + $0x30] sm:$0xff]
        %v3875 = vld [vmem:[#allocation12 + $0x38] sm:$0xff]
        %v3876 = vld [vmem:[#allocation12 + $0x40] sm:$0xff]
        %v3877 = vld [vmem:[#allocation12 + $0x48] sm:$0xff]
        %v3878 = vld [vmem:[#allocation12 + $0x50] sm:$0xff]
        %v3879 = vld [vmem:[#allocation12 + $0x58] sm:$0xff]
        %v3880 = vld [vmem:[#allocation12 + $0x60] sm:$0xff]
        %v3881 = vld [vmem:[#allocation12 + $0x68] sm:$0xff]
        %v3882 = vld [vmem:[#allocation12 + $0x70] sm:$0xff]
        %v3883 = vld [vmem:[#allocation12 + $0x78] sm:$0xff]
        %v3884 = vld [vmem:[%s10] sm:$0x3]
        %v3886 = vlaneseq
        %v3887 = vshrl.u32 %v3886, 7
        %v3888 = vsub.s32 0, %v3887
        %v3889 = vrot.slane %v3884, %v3888
        %v3890 = vlaneseq
        %v3891 = vshrl.u32 %v3890, 7
        %v3892 = vsub.s32 1, %v3891
        %v3893 = vrot.slane %v3884, %v3892
        %v3912 = vunpack.c.l.b16 %v3868
        %v3913 = vunpack.c.h.b16 %v3868
        %v3914 = vunpack.c.l.b16 %v3869
        %v3915 = vunpack.c.h.b16 %v3869
        %v3916 = vunpack.c.l.b16 %v3870
        %v3917 = vunpack.c.h.b16 %v3870
        %v3918 = vunpack.c.l.b16 %v3871
        %v3919 = vunpack.c.h.b16 %v3871
        %v3920 = vunpack.c.l.b16 %v3872
        %v3921 = vunpack.c.h.b16 %v3872
        %v3922 = vunpack.c.l.b16 %v3873
        %v3923 = vunpack.c.h.b16 %v3873
        %v3924 = vunpack.c.l.b16 %v3874
        %v3925 = vunpack.c.h.b16 %v3874
        %v3926 = vunpack.c.l.b16 %v3875
        %v3927 = vunpack.c.h.b16 %v3875
        %v3928 = vunpack.c.l.b16 %v3876
        %v3929 = vunpack.c.h.b16 %v3876
        %v3930 = vunpack.c.l.b16 %v3877
        %v3931 = vunpack.c.h.b16 %v3877
        %v3932 = vunpack.c.l.b16 %v3878
        %v3933 = vunpack.c.h.b16 %v3878
        %v3934 = vunpack.c.l.b16 %v3879
        %v3935 = vunpack.c.h.b16 %v3879
        %v3936 = vunpack.c.l.b16 %v3880
        %v3937 = vunpack.c.h.b16 %v3880
        %v3938 = vunpack.c.l.b16 %v3881
        %v3939 = vunpack.c.h.b16 %v3881
        %v3940 = vunpack.c.l.b16 %v3882
        %v3941 = vunpack.c.h.b16 %v3882
        %v3942 = vunpack.c.l.b16 %v3883
        %v3943 = vunpack.c.h.b16 %v3883
        %v3944 = vpack.c.b16 %v3914, %v3912
        %v3945 = vpack.c.b16 %v3915, %v3913
        %v3946 = vpack.c.b16 %v3918, %v3916
        %v3947 = vpack.c.b16 %v3919, %v3917
        %v3948 = vpack.c.b16 %v3922, %v3920
        %v3949 = vpack.c.b16 %v3923, %v3921
        %v3950 = vpack.c.b16 %v3926, %v3924
        %v3951 = vpack.c.b16 %v3927, %v3925
        %v3952 = vpack.c.b16 %v3930, %v3928
        %v3953 = vpack.c.b16 %v3931, %v3929
        %v3954 = vpack.c.b16 %v3934, %v3932
        %v3955 = vpack.c.b16 %v3935, %v3933
        %v3956 = vpack.c.b16 %v3938, %v3936
        %v3957 = vpack.c.b16 %v3939, %v3937
        %v3958 = vpack.c.b16 %v3942, %v3940
        %v3959 = vpack.c.b16 %v3943, %v3941
        %3976 = vmatprep.subr.bf16.mxu0 %v3959
        %3977 = vmatpush1.bf16.msra.mxu0 %v3958
        %3978 = vmatprep.subr.bf16.mxu0 %v3957
        %3979 = vmatpush1.bf16.msra.mxu0 %v3956
        %3980 = vmatprep.subr.bf16.mxu0 %v3955
        %3981 = vmatpush1.bf16.msra.mxu0 %v3954
        %3982 = vmatprep.subr.bf16.mxu0 %v3953
        %3983 = vmatpush1.bf16.msra.mxu0 %v3952
        %3984 = vmatprep.subr.bf16.mxu0 %v3951
        %3985 = vmatpush1.bf16.msra.mxu0 %v3950
        %3986 = vmatprep.subr.bf16.mxu0 %v3949
        %3987 = vmatpush1.bf16.msra.mxu0 %v3948
        %3988 = vmatprep.subr.bf16.mxu0 %v3947
        %3989 = vmatpush1.bf16.msra.mxu0 %v3946
        %3990 = vmatprep.subr.bf16.mxu0 %v3945
        %3991 = vmatpush1.bf16.msra.mxu0 %v3944
        %3992 = vmatprep.subr.bf16.mxu0 0
        %3993 = vmatpush2.bf16.msra.mxu0 0
        %3994 = vmatprep.subr.bf16.mxu0 0
        %3995 = vmatpush2.bf16.msra.mxu0 0
        %3996 = vmatprep.subr.bf16.mxu0 0
        %3997 = vmatpush2.bf16.msra.mxu0 0
        %3998 = vmatprep.subr.bf16.mxu0 0
        %3999 = vmatpush2.bf16.msra.mxu0 0
        %4000 = vmatprep.subr.bf16.mxu0 0
        %4001 = vmatpush2.bf16.msra.mxu0 0
        %4002 = vmatprep.subr.bf16.mxu0 0
        %4003 = vmatpush2.bf16.msra.mxu0 0
        %4004 = vmatprep.subr.bf16.mxu0 0
        %4005 = vmatpush2.bf16.msra.mxu0 0
        %4006 = vmatprep.subr.bf16.mxu0 0
        %4007 = vmatpush2.bf16.msra.mxu0 0
        %4008 = vmatprep.mubr.bf16.mxu0 0
        %4009 = vmatmul.mubr.bf16.gmra.mxu0 %v3860
        %v4010 = vpop.f32.mrf.mxu0
        %v4011 = vadd.f32 %v3889, %v4010
        %v4012 = vpop.f32.mrf.mxu0
        %v4013 = vadd.f32 %v3893, %v4012
        %v4014 = vpop.f32.mrf.mxu0
        %v4015 = vadd.f32 %v3889, %v4014
        %v4016 = vpop.f32.mrf.mxu0
        %v4017 = vadd.f32 %v3893, %v4016
        %4018 = vmatprep.mubr.bf16.mxu0 0
        %4019 = vmatmul.mubr.bf16.gmra.mxu0 %v3861
        %v4020 = vpop.f32.mrf.mxu0
        %v4021 = vadd.f32 %v3889, %v4020
        %v4022 = vpop.f32.mrf.mxu0
        %v4023 = vadd.f32 %v3893, %v4022
        %v4024 = vpop.f32.mrf.mxu0
        %v4025 = vadd.f32 %v3889, %v4024
        %v4026 = vpop.f32.mrf.mxu0
        %v4027 = vadd.f32 %v3893, %v4026
        %4028 = vmatprep.mubr.bf16.mxu0 0
        %4029 = vmatmul.mubr.bf16.gmra.mxu0 %v3862
        %v4030 = vpop.f32.mrf.mxu0
        %v4031 = vadd.f32 %v3889, %v4030
        %v4032 = vpop.f32.mrf.mxu0
        %v4033 = vadd.f32 %v3893, %v4032
        %v4034 = vpop.f32.mrf.mxu0
        %v4035 = vadd.f32 %v3889, %v4034
        %v4036 = vpop.f32.mrf.mxu0
        %v4037 = vadd.f32 %v3893, %v4036
        %4038 = vmatprep.mubr.bf16.mxu0 0
        %4039 = vmatmul.mubr.bf16.gmra.mxu0 %v3863
        %v4040 = vpop.f32.mrf.mxu0
        %v4041 = vadd.f32 %v3889, %v4040
        %v4042 = vpop.f32.mrf.mxu0
        %v4043 = vadd.f32 %v3893, %v4042
        %v4044 = vpop.f32.mrf.mxu0
        %v4045 = vadd.f32 %v3889, %v4044
        %v4046 = vpop.f32.mrf.mxu0
        %v4047 = vadd.f32 %v3893, %v4046
        %4048 = vmatprep.mubr.bf16.mxu0 0
        %4049 = vmatmul.mubr.bf16.gmra.mxu0 %v3864
        %v4050 = vpop.f32.mrf.mxu0
        %v4051 = vadd.f32 %v3889, %v4050
        %v4052 = vpop.f32.mrf.mxu0
        %v4053 = vadd.f32 %v3893, %v4052
        %v4054 = vpop.f32.mrf.mxu0
        %v4055 = vadd.f32 %v3889, %v4054
        %v4056 = vpop.f32.mrf.mxu0
        %v4057 = vadd.f32 %v3893, %v4056
        %4058 = vmatprep.mubr.bf16.mxu0 0
        %4059 = vmatmul.mubr.bf16.gmra.mxu0 %v3865
        %v4060 = vpop.f32.mrf.mxu0
        %v4061 = vadd.f32 %v3889, %v4060
        %v4062 = vpop.f32.mrf.mxu0
        %v4063 = vadd.f32 %v3893, %v4062
        %v4064 = vpop.f32.mrf.mxu0
        %v4065 = vadd.f32 %v3889, %v4064
        %v4066 = vpop.f32.mrf.mxu0
        %v4067 = vadd.f32 %v3893, %v4066
        %4068 = vmatprep.mubr.bf16.mxu0 0
        %4069 = vmatmul.mubr.bf16.gmra.mxu0 %v3866
        %v4070 = vpop.f32.mrf.mxu0
        %v4071 = vadd.f32 %v3889, %v4070
        %v4072 = vpop.f32.mrf.mxu0
        %v4073 = vadd.f32 %v3893, %v4072
        %v4074 = vpop.f32.mrf.mxu0
        %v4075 = vadd.f32 %v3889, %v4074
        %v4076 = vpop.f32.mrf.mxu0
        %v4077 = vadd.f32 %v3893, %v4076
        %4078 = vmatprep.mubr.bf16.mxu0 0
        %4079 = vmatmul.mubr.bf16.gmra.mxu0 %v3867
        %v4080 = vpop.f32.mrf.mxu0
        %v4081 = vadd.f32 %v3889, %v4080
        %v4082 = vpop.f32.mrf.mxu0
        %v4083 = vadd.f32 %v3893, %v4082
        %v4084 = vpop.f32.mrf.mxu0
        %v4085 = vadd.f32 %v3889, %v4084
        %v4086 = vpop.f32.mrf.mxu0
        %v4087 = vadd.f32 %v3893, %v4086
        %4088 = vdwg.mxu0
        %v4089 = vmul.f32 %v4011, 0.5
        %v4090 = vmul.f32 %v4013, 0.5
        %v4091 = vmul.f32 %v4015, 0.5
        %v4092 = vmul.f32 %v4017, 0.5
        %v4093 = vmul.f32 %v4021, 0.5
        %v4094 = vmul.f32 %v4023, 0.5
        %v4095 = vmul.f32 %v4025, 0.5
        %v4096 = vmul.f32 %v4027, 0.5
        %v4097 = vmul.f32 %v4031, 0.5
        %v4098 = vmul.f32 %v4033, 0.5
        %v4099 = vmul.f32 %v4035, 0.5
        %v4100 = vmul.f32 %v4037, 0.5
        %v4101 = vmul.f32 %v4041, 0.5
        %v4102 = vmul.f32 %v4043, 0.5
        %v4103 = vmul.f32 %v4045, 0.5
        %v4104 = vmul.f32 %v4047, 0.5
        %v4105 = vmul.f32 %v4051, 0.5
        %v4106 = vmul.f32 %v4053, 0.5
        %v4107 = vmul.f32 %v4055, 0.5
        %v4108 = vmul.f32 %v4057, 0.5
        %v4109 = vmul.f32 %v4061, 0.5
        %v4110 = vmul.f32 %v4063, 0.5
        %v4111 = vmul.f32 %v4065, 0.5
        %v4112 = vmul.f32 %v4067, 0.5
        %v4113 = vmul.f32 %v4071, 0.5
        %v4114 = vmul.f32 %v4073, 0.5
        %v4115 = vmul.f32 %v4075, 0.5
        %v4116 = vmul.f32 %v4077, 0.5
        %v4117 = vmul.f32 %v4081, 0.5
        %v4118 = vmul.f32 %v4083, 0.5
        %v4119 = vmul.f32 %v4085, 0.5
        %v4120 = vmul.f32 %v4087, 0.5
        %v4121 = vmul.f32 %v4011, 0.70710677
        %v4122 = vmul.f32 %v4013, 0.70710677
        %v4123 = vmul.f32 %v4015, 0.70710677
        %v4124 = vmul.f32 %v4017, 0.70710677
        %v4125 = vmul.f32 %v4021, 0.70710677
        %v4126 = vmul.f32 %v4023, 0.70710677
        %v4127 = vmul.f32 %v4025, 0.70710677
        %v4128 = vmul.f32 %v4027, 0.70710677
        %v4129 = vmul.f32 %v4031, 0.70710677
        %v4130 = vmul.f32 %v4033, 0.70710677
        %v4131 = vmul.f32 %v4035, 0.70710677
        %v4132 = vmul.f32 %v4037, 0.70710677
        %v4133 = vmul.f32 %v4041, 0.70710677
        %v4134 = vmul.f32 %v4043, 0.70710677
        %v4135 = vmul.f32 %v4045, 0.70710677
        %v4136 = vmul.f32 %v4047, 0.70710677
        %v4137 = vmul.f32 %v4051, 0.70710677
        %v4138 = vmul.f32 %v4053, 0.70710677
        %v4139 = vmul.f32 %v4055, 0.70710677
        %v4140 = vmul.f32 %v4057, 0.70710677
        %v4141 = vmul.f32 %v4061, 0.70710677
        %v4142 = vmul.f32 %v4063, 0.70710677
        %v4143 = vmul.f32 %v4065, 0.70710677
        %v4144 = vmul.f32 %v4067, 0.70710677
        %v4145 = vmul.f32 %v4071, 0.70710677
        %v4146 = vmul.f32 %v4073, 0.70710677
        %v4147 = vmul.f32 %v4075, 0.70710677
        %v4148 = vmul.f32 %v4077, 0.70710677
        %v4149 = vmul.f32 %v4081, 0.70710677
        %v4150 = vmul.f32 %v4083, 0.70710677
        %v4151 = vmul.f32 %v4085, 0.70710677
        %v4152 = vmul.f32 %v4087, 0.70710677
        %v4153 = verf.f32.pop %v4121
        %v4154 = verf.f32.pop %v4122
        %v4155 = verf.f32.pop %v4123
        %v4156 = verf.f32.pop %v4124
        %v4157 = verf.f32.pop %v4125
        %v4158 = verf.f32.pop %v4126
        %v4159 = verf.f32.pop %v4127
        %v4160 = verf.f32.pop %v4128
        %v4161 = verf.f32.pop %v4129
        %v4162 = verf.f32.pop %v4130
        %v4163 = verf.f32.pop %v4131
        %v4164 = verf.f32.pop %v4132
        %v4165 = verf.f32.pop %v4133
        %v4166 = verf.f32.pop %v4134
        %v4167 = verf.f32.pop %v4135
        %v4168 = verf.f32.pop %v4136
        %v4169 = verf.f32.pop %v4137
        %v4170 = verf.f32.pop %v4138
        %v4171 = verf.f32.pop %v4139
        %v4172 = verf.f32.pop %v4140
        %v4173 = verf.f32.pop %v4141
        %v4174 = verf.f32.pop %v4142
        %v4175 = verf.f32.pop %v4143
        %v4176 = verf.f32.pop %v4144
        %v4177 = verf.f32.pop %v4145
        %v4178 = verf.f32.pop %v4146
        %v4179 = verf.f32.pop %v4147
        %v4180 = verf.f32.pop %v4148
        %v4181 = verf.f32.pop %v4149
        %v4182 = verf.f32.pop %v4150
        %v4183 = verf.f32.pop %v4151
        %v4184 = verf.f32.pop %v4152
        %v4185 = vadd.f32 %v4153, 1.0
        %v4186 = vadd.f32 %v4154, 1.0
        %v4187 = vadd.f32 %v4155, 1.0
        %v4188 = vadd.f32 %v4156, 1.0
        %v4189 = vadd.f32 %v4157, 1.0
        %v4190 = vadd.f32 %v4158, 1.0
        %v4191 = vadd.f32 %v4159, 1.0
        %v4192 = vadd.f32 %v4160, 1.0
        %v4193 = vadd.f32 %v4161, 1.0
        %v4194 = vadd.f32 %v4162, 1.0
        %v4195 = vadd.f32 %v4163, 1.0
        %v4196 = vadd.f32 %v4164, 1.0
        %v4197 = vadd.f32 %v4165, 1.0
        %v4198 = vadd.f32 %v4166, 1.0
        %v4199 = vadd.f32 %v4167, 1.0
        %v4200 = vadd.f32 %v4168, 1.0
        %v4201 = vadd.f32 %v4169, 1.0
        %v4202 = vadd.f32 %v4170, 1.0
        %v4203 = vadd.f32 %v4171, 1.0
        %v4204 = vadd.f32 %v4172, 1.0
        %v4205 = vadd.f32 %v4173, 1.0
        %v4206 = vadd.f32 %v4174, 1.0
        %v4207 = vadd.f32 %v4175, 1.0
        %v4208 = vadd.f32 %v4176, 1.0
        %v4209 = vadd.f32 %v4177, 1.0
        %v4210 = vadd.f32 %v4178, 1.0
        %v4211 = vadd.f32 %v4179, 1.0
        %v4212 = vadd.f32 %v4180, 1.0
        %v4213 = vadd.f32 %v4181, 1.0
        %v4214 = vadd.f32 %v4182, 1.0
        %v4215 = vadd.f32 %v4183, 1.0
        %v4216 = vadd.f32 %v4184, 1.0
        %v4217 = vmul.f32 %v4089, %v4185
        %v4218 = vmul.f32 %v4090, %v4186
        %v4219 = vmul.f32 %v4091, %v4187
        %v4220 = vmul.f32 %v4092, %v4188
        %v4221 = vmul.f32 %v4093, %v4189
        %v4222 = vmul.f32 %v4094, %v4190
        %v4223 = vmul.f32 %v4095, %v4191
        %v4224 = vmul.f32 %v4096, %v4192
        %v4225 = vmul.f32 %v4097, %v4193
        %v4226 = vmul.f32 %v4098, %v4194
        %v4227 = vmul.f32 %v4099, %v4195
        %v4228 = vmul.f32 %v4100, %v4196
        %v4229 = vmul.f32 %v4101, %v4197
        %v4230 = vmul.f32 %v4102, %v4198
        %v4231 = vmul.f32 %v4103, %v4199
        %v4232 = vmul.f32 %v4104, %v4200
        %v4233 = vmul.f32 %v4105, %v4201
        %v4234 = vmul.f32 %v4106, %v4202
        %v4235 = vmul.f32 %v4107, %v4203
        %v4236 = vmul.f32 %v4108, %v4204
        %v4237 = vmul.f32 %v4109, %v4205
        %v4238 = vmul.f32 %v4110, %v4206
        %v4239 = vmul.f32 %v4111, %v4207
        %v4240 = vmul.f32 %v4112, %v4208
        %v4241 = vmul.f32 %v4113, %v4209
        %v4242 = vmul.f32 %v4114, %v4210
        %v4243 = vmul.f32 %v4115, %v4211
        %v4244 = vmul.f32 %v4116, %v4212
        %v4245 = vmul.f32 %v4117, %v4213
        %v4246 = vmul.f32 %v4118, %v4214
        %v4247 = vmul.f32 %v4119, %v4215
        %v4248 = vmul.f32 %v4120, %v4216
        %v4249 = vpack.c.bf16 %v4219, %v4217
        %v4250 = vpack.c.bf16 %v4220, %v4218
        %v4251 = vpack.c.bf16 %v4223, %v4221
        %v4252 = vpack.c.bf16 %v4224, %v4222
        %v4253 = vpack.c.bf16 %v4227, %v4225
        %v4254 = vpack.c.bf16 %v4228, %v4226
        %v4255 = vpack.c.bf16 %v4231, %v4229
        %v4256 = vpack.c.bf16 %v4232, %v4230
        %v4257 = vpack.c.bf16 %v4235, %v4233
        %v4258 = vpack.c.bf16 %v4236, %v4234
        %v4259 = vpack.c.bf16 %v4239, %v4237
        %v4260 = vpack.c.bf16 %v4240, %v4238
        %v4261 = vpack.c.bf16 %v4243, %v4241
        %v4262 = vpack.c.bf16 %v4244, %v4242
        %v4263 = vpack.c.bf16 %v4247, %v4245
        %v4264 = vpack.c.bf16 %v4248, %v4246
        %v4265 = vld [vmem:[#allocation14] sm:$0xf]
        %v4266 = vld [vmem:[#allocation14 + $0x4] sm:$0xf]
        %v4267 = vld [vmem:[#allocation14 + $0x8] sm:$0xf]
        %v4268 = vld [vmem:[#allocation14 + $0xc] sm:$0xf]
        %v4269 = vld [vmem:[#allocation14 + $0x10] sm:$0xf]
        %v4270 = vld [vmem:[#allocation14 + $0x14] sm:$0xf]
        %v4271 = vld [vmem:[#allocation14 + $0x18] sm:$0xf]
        %v4272 = vld [vmem:[#allocation14 + $0x1c] sm:$0xf]
        %v4273 = vld [vmem:[#allocation14 + $0x20] sm:$0xf]
        %v4274 = vld [vmem:[#allocation14 + $0x24] sm:$0xf]
        %v4275 = vld [vmem:[#allocation14 + $0x28] sm:$0xf]
        %v4276 = vld [vmem:[#allocation14 + $0x2c] sm:$0xf]
        %v4277 = vld [vmem:[#allocation14 + $0x30] sm:$0xf]
        %v4278 = vld [vmem:[#allocation14 + $0x34] sm:$0xf]
        %v4279 = vld [vmem:[#allocation14 + $0x38] sm:$0xf]
        %v4280 = vld [vmem:[#allocation14 + $0x3c] sm:$0xf]
        %v4281 = vld [vmem:[#allocation14 + $0x40] sm:$0xf]
        %v4282 = vld [vmem:[#allocation14 + $0x44] sm:$0xf]
        %v4283 = vld [vmem:[#allocation14 + $0x48] sm:$0xf]
        %v4284 = vld [vmem:[#allocation14 + $0x4c] sm:$0xf]
        %v4285 = vld [vmem:[#allocation14 + $0x50] sm:$0xf]
        %v4286 = vld [vmem:[#allocation14 + $0x54] sm:$0xf]
        %v4287 = vld [vmem:[#allocation14 + $0x58] sm:$0xf]
        %v4288 = vld [vmem:[#allocation14 + $0x5c] sm:$0xf]
        %v4289 = vld [vmem:[#allocation14 + $0x60] sm:$0xf]
        %v4290 = vld [vmem:[#allocation14 + $0x64] sm:$0xf]
        %v4291 = vld [vmem:[#allocation14 + $0x68] sm:$0xf]
        %v4292 = vld [vmem:[#allocation14 + $0x6c] sm:$0xf]
        %v4293 = vld [vmem:[#allocation14 + $0x70] sm:$0xf]
        %v4294 = vld [vmem:[#allocation14 + $0x74] sm:$0xf]
        %v4295 = vld [vmem:[#allocation14 + $0x78] sm:$0xf]
        %v4296 = vld [vmem:[#allocation14 + $0x7c] sm:$0xf]
        %v4297 = vld [vmem:[%s12] sm:$0x1]
        %v4299 = vlaneseq
        %v4300 = vshrl.u32 %v4299, 7
        %v4301 = vsub.s32 0, %v4300
        %v4302 = vrot.slane %v4297, %v4301
        %v4336 = vunpack.c.l.b16 %v4265
        %v4337 = vunpack.c.l.b16 %v4266
        %v4338 = vunpack.c.l.b16 %v4267
        %v4339 = vunpack.c.l.b16 %v4268
        %v4340 = vunpack.c.l.b16 %v4269
        %v4341 = vunpack.c.l.b16 %v4270
        %v4342 = vunpack.c.l.b16 %v4271
        %v4343 = vunpack.c.l.b16 %v4272
        %v4344 = vunpack.c.l.b16 %v4273
        %v4345 = vunpack.c.l.b16 %v4274
        %v4346 = vunpack.c.l.b16 %v4275
        %v4347 = vunpack.c.l.b16 %v4276
        %v4348 = vunpack.c.l.b16 %v4277
        %v4349 = vunpack.c.l.b16 %v4278
        %v4350 = vunpack.c.l.b16 %v4279
        %v4351 = vunpack.c.l.b16 %v4280
        %v4352 = vunpack.c.l.b16 %v4281
        %v4353 = vunpack.c.l.b16 %v4282
        %v4354 = vunpack.c.l.b16 %v4283
        %v4355 = vunpack.c.l.b16 %v4284
        %v4356 = vunpack.c.l.b16 %v4285
        %v4357 = vunpack.c.l.b16 %v4286
        %v4358 = vunpack.c.l.b16 %v4287
        %v4359 = vunpack.c.l.b16 %v4288
        %v4360 = vunpack.c.l.b16 %v4289
        %v4361 = vunpack.c.l.b16 %v4290
        %v4362 = vunpack.c.l.b16 %v4291
        %v4363 = vunpack.c.l.b16 %v4292
        %v4364 = vunpack.c.l.b16 %v4293
        %v4365 = vunpack.c.l.b16 %v4294
        %v4366 = vunpack.c.l.b16 %v4295
        %v4367 = vunpack.c.l.b16 %v4296
        %v4368 = vpack.c.b16 %v4337, %v4336
        %v4369 = vpack.c.b16 %v4339, %v4338
        %v4370 = vpack.c.b16 %v4341, %v4340
        %v4371 = vpack.c.b16 %v4343, %v4342
        %v4372 = vpack.c.b16 %v4345, %v4344
        %v4373 = vpack.c.b16 %v4347, %v4346
        %v4374 = vpack.c.b16 %v4349, %v4348
        %v4375 = vpack.c.b16 %v4351, %v4350
        %v4376 = vpack.c.b16 %v4353, %v4352
        %v4377 = vpack.c.b16 %v4355, %v4354
        %v4378 = vpack.c.b16 %v4357, %v4356
        %v4379 = vpack.c.b16 %v4359, %v4358
        %v4380 = vpack.c.b16 %v4361, %v4360
        %v4381 = vpack.c.b16 %v4363, %v4362
        %v4382 = vpack.c.b16 %v4365, %v4364
        %v4383 = vpack.c.b16 %v4367, %v4366
        %4400 = vmatprep.subr.bf16.mxu0 0
        %4401 = vmatpush1.bf16.msra.mxu0 %v4375
        %4402 = vmatprep.subr.bf16.mxu0 0
        %4403 = vmatpush1.bf16.msra.mxu0 %v4374
        %4404 = vmatprep.subr.bf16.mxu0 0
        %4405 = vmatpush1.bf16.msra.mxu0 %v4373
        %4406 = vmatprep.subr.bf16.mxu0 0
        %4407 = vmatpush1.bf16.msra.mxu0 %v4372
        %4408 = vmatprep.subr.bf16.mxu0 0
        %4409 = vmatpush1.bf16.msra.mxu0 %v4371
        %4410 = vmatprep.subr.bf16.mxu0 0
        %4411 = vmatpush1.bf16.msra.mxu0 %v4370
        %4412 = vmatprep.subr.bf16.mxu0 0
        %4413 = vmatpush1.bf16.msra.mxu0 %v4369
        %4414 = vmatprep.subr.bf16.mxu0 0
        %4415 = vmatpush1.bf16.msra.mxu0 %v4368
        %4416 = vmatprep.subr.bf16.mxu0 0
        %4417 = vmatpush2.bf16.msra.mxu0 %v4383
        %4418 = vmatprep.subr.bf16.mxu0 0
        %4419 = vmatpush2.bf16.msra.mxu0 %v4382
        %4420 = vmatprep.subr.bf16.mxu0 0
        %4421 = vmatpush2.bf16.msra.mxu0 %v4381
        %4422 = vmatprep.subr.bf16.mxu0 0
        %4423 = vmatpush2.bf16.msra.mxu0 %v4380
        %4424 = vmatprep.subr.bf16.mxu0 0
        %4425 = vmatpush2.bf16.msra.mxu0 %v4379
        %4426 = vmatprep.subr.bf16.mxu0 0
        %4427 = vmatpush2.bf16.msra.mxu0 %v4378
        %4428 = vmatprep.subr.bf16.mxu0 0
        %4429 = vmatpush2.bf16.msra.mxu0 %v4377
        %4430 = vmatprep.subr.bf16.mxu0 0
        %4431 = vmatpush2.bf16.msra.mxu0 %v4376
        %4432 = vmatprep.mubr.bf16.mxu0 %v4250
        %4433 = vmatmul.mubr.bf16.gmra.mxu0 %v4249
        %v4434 = vpop.f32.mrf.mxu0
        %v4435 = vadd.f32 %v4302, %v4434
        %v4436 = vpop.f32.mrf.mxu0
        %v4437 = vpop.f32.mrf.mxu0
        %v4438 = vadd.f32 %v4302, %v4437
        %v4439 = vpop.f32.mrf.mxu0
        %4440 = vmatprep.mubr.bf16.mxu0 %v4252
        %4441 = vmatmul.mubr.bf16.gmra.mxu0 %v4251
        %v4442 = vpop.f32.mrf.mxu0
        %v4443 = vadd.f32 %v4302, %v4442
        %v4444 = vpop.f32.mrf.mxu0
        %v4445 = vpop.f32.mrf.mxu0
        %v4446 = vadd.f32 %v4302, %v4445
        %v4447 = vpop.f32.mrf.mxu0
        %4448 = vmatprep.mubr.bf16.mxu0 %v4254
        %4449 = vmatmul.mubr.bf16.gmra.mxu0 %v4253
        %v4450 = vpop.f32.mrf.mxu0
        %v4451 = vadd.f32 %v4302, %v4450
        %v4452 = vpop.f32.mrf.mxu0
        %v4453 = vpop.f32.mrf.mxu0
        %v4454 = vadd.f32 %v4302, %v4453
        %v4455 = vpop.f32.mrf.mxu0
        %4456 = vmatprep.mubr.bf16.mxu0 %v4256
        %4457 = vmatmul.mubr.bf16.gmra.mxu0 %v4255
        %v4458 = vpop.f32.mrf.mxu0
        %v4459 = vadd.f32 %v4302, %v4458
        %v4460 = vpop.f32.mrf.mxu0
        %v4461 = vpop.f32.mrf.mxu0
        %v4462 = vadd.f32 %v4302, %v4461
        %v4463 = vpop.f32.mrf.mxu0
        %4464 = vmatprep.mubr.bf16.mxu0 %v4258
        %4465 = vmatmul.mubr.bf16.gmra.mxu0 %v4257
        %v4466 = vpop.f32.mrf.mxu0
        %v4467 = vadd.f32 %v4302, %v4466
        %v4468 = vpop.f32.mrf.mxu0
        %v4469 = vpop.f32.mrf.mxu0
        %v4470 = vadd.f32 %v4302, %v4469
        %v4471 = vpop.f32.mrf.mxu0
        %4472 = vmatprep.mubr.bf16.mxu0 %v4260
        %4473 = vmatmul.mubr.bf16.gmra.mxu0 %v4259
        %v4474 = vpop.f32.mrf.mxu0
        %v4475 = vadd.f32 %v4302, %v4474
        %v4476 = vpop.f32.mrf.mxu0
        %v4477 = vpop.f32.mrf.mxu0
        %v4478 = vadd.f32 %v4302, %v4477
        %v4479 = vpop.f32.mrf.mxu0
        %4480 = vmatprep.mubr.bf16.mxu0 %v4262
        %4481 = vmatmul.mubr.bf16.gmra.mxu0 %v4261
        %v4482 = vpop.f32.mrf.mxu0
        %v4483 = vadd.f32 %v4302, %v4482
        %v4484 = vpop.f32.mrf.mxu0
        %v4485 = vpop.f32.mrf.mxu0
        %v4486 = vadd.f32 %v4302, %v4485
        %v4487 = vpop.f32.mrf.mxu0
        %4488 = vmatprep.mubr.bf16.mxu0 %v4264
        %4489 = vmatmul.mubr.bf16.gmra.mxu0 %v4263
        %v4490 = vpop.f32.mrf.mxu0
        %v4491 = vadd.f32 %v4302, %v4490
        %v4492 = vpop.f32.mrf.mxu0
        %v4493 = vpop.f32.mrf.mxu0
        %v4494 = vadd.f32 %v4302, %v4493
        %v4495 = vpop.f32.mrf.mxu0
        %4496 = vdwg.mxu0
        %v4497 = vadd.f32 %v3622, %v4435
        %v4498 = vadd.f32 %v3623, %v4438
        %v4499 = vadd.f32 %v3624, %v4443
        %v4500 = vadd.f32 %v3625, %v4446
        %v4501 = vadd.f32 %v3626, %v4451
        %v4502 = vadd.f32 %v3627, %v4454
        %v4503 = vadd.f32 %v3628, %v4459
        %v4504 = vadd.f32 %v3629, %v4462
        %v4505 = vadd.f32 %v3630, %v4467
        %v4506 = vadd.f32 %v3631, %v4470
        %v4507 = vadd.f32 %v3632, %v4475
        %v4508 = vadd.f32 %v3633, %v4478
        %v4509 = vadd.f32 %v3634, %v4483
        %v4510 = vadd.f32 %v3635, %v4486
        %v4511 = vadd.f32 %v3636, %v4491
        %v4512 = vadd.f32 %v3637, %v4494
        %4513 = vst [vmem:[%s541] sm:$0xff] %v4497
        %4514 = vst [vmem:[%s541 + $0x8] sm:$0xff] %v4498
        %4515 = vst [vmem:[%s541 + $0x10] sm:$0xff] %v4499
        %4516 = vst [vmem:[%s541 + $0x18] sm:$0xff] %v4500
        %4517 = vst [vmem:[%s541 + $0x20] sm:$0xff] %v4501
        %4518 = vst [vmem:[%s541 + $0x28] sm:$0xff] %v4502
        %4519 = vst [vmem:[%s541 + $0x30] sm:$0xff] %v4503
        %4520 = vst [vmem:[%s541 + $0x38] sm:$0xff] %v4504
        %4521 = vst [vmem:[%s541 + $0x40] sm:$0xff] %v4505
        %4522 = vst [vmem:[%s541 + $0x48] sm:$0xff] %v4506
        %4523 = vst [vmem:[%s541 + $0x50] sm:$0xff] %v4507
        %4524 = vst [vmem:[%s541 + $0x58] sm:$0xff] %v4508
        %4525 = vst [vmem:[%s541 + $0x60] sm:$0xff] %v4509
        %4526 = vst [vmem:[%s541 + $0x68] sm:$0xff] %v4510
        %4527 = vst [vmem:[%s541 + $0x70] sm:$0xff] %v4511
        %4528 = vst [vmem:[%s541 + $0x78] sm:$0xff] %v4512
        %s4529 = sand.u32 %s319, 1
        %s4530 = scalar_lea.sflag [#allocation5], %s4529
        %s4531 = sand.u32 %s319, 1
        %s4532 = smul.addr %s4531, 128
        %s4533 = scalar_lea.vmem [#allocation15], %s4532
        // Predicated region
        $region101: #{tpu_custom_call.1} parent=71 // pred_check
          %p4534 = pneg %p329
        $region102: #{tpu_custom_call.1} parent=71 // pred_check_branch
          %4536 = sbr.rel (%p4534) target = $region104
        $region103: #{tpu_custom_call.1} parent=71 // pred_region
          %s4538 = ssub.s32 2048, 2048
          %4539 = vsyncadd %s4530, %s4538
          %s4540 = smul.addr %s33, 16
          %s4541 = smul.addr %s4540, 128
          %s4542 = scalar_lea.hbm %s13, %s4541
          %s4543 = sshll.u32 %s4533, 4
          %s4544 = int_to_ptr.vmem [resolvable:$true] %s4543
          %4549 = dma.vmem_to_hbm [thread:$0]  %s4544, 2048, %s4542, %s4530, 128, 128, 8
        $region104: #{tpu_custom_call.1} parent=71 // pred_fallthru
          _
      $region72: #{tpu_custom_call.1} parent=5 // pred_fallthru
        _
      %p4550 = scmp.le.s32.totalorder 2, %s28
      // Predicated region
      $region105: #{tpu_custom_call.1} parent=5 // pred_check
        %p4551 = pneg %p4550
      $region106: #{tpu_custom_call.1} parent=5 // pred_check_branch
        %4553 = sbr.rel (%p4551) target = $region108
      $region107: #{tpu_custom_call.1} parent=5 // pred_region
        %s4554 = ssub.s32 %s28, 2
        // Predicated region
        $region109: #{tpu_custom_call.1} parent=107 // pred_check
          %p4555 = pneg %p335
        $region110: #{tpu_custom_call.1} parent=107 // pred_check_branch
          %4557 = sbr.rel (%p4555) target = $region112
        $region111: #{tpu_custom_call.1} parent=107 // pred_region
          %s4558 = sand.u32 %s320, 1
          %s4559 = scalar_lea.sflag [#allocation5], %s4558
          %s4560 = sand.u32 %s320, 1
          %s4561 = smul.addr %s4560, 128
          %s4562 = scalar_lea.vmem [#allocation15], %s4561
          %4563 = dma.done %s4559, 2048
        $region112: #{tpu_custom_call.1} parent=107 // pred_fallthru
          _
      $region108: #{tpu_custom_call.1} parent=5 // pred_fallthru
        _
    $region6: #{tpu_custom_call.1} parent=1 // loop_footer
      %s32 = sadd.s32 1, %s28
    $region7: #{tpu_custom_call.1} parent=1 // loop_footer_branch
      %27 = sbr.rel target = $region3
    $region8: #{tpu_custom_call.1} parent=1 // loop_exit
      _
    %4564 = vsyncpa [#allocation4], 1
    %s4565 = scalar_lea.sflag [#allocation4], 1
    %4566 = vsyncpa %s4565, 1
    %4567 = vsyncpa [#allocation7], 1
    %4568 = vsyncpa [#allocation10], 1
    %4569 = vsyncpa [#allocation13], 1
    %4570 = vsyncpa [#allocation5], 1
    %s4571 = scalar_lea.sflag [#allocation5], 1
    %4572 = vsyncpa %s4571, 1

</llo_original>
